<compile_context>
chip_gen: v5e
topology: v5e:2x2
jax: 0.10.0
libtpu: 0.0.40
codegen_flags: <defaults>
</compile_context>

<pallas_src>
import math

import numpy as np
import jax
import jax.numpy as jnp
from jax.experimental import pallas as pl
from jax.experimental.pallas import tpu as pltpu


# ----------------------------- model configuration -----------------------------
EMBED_IN = 4            # input channels (module default embed_in=4)
NUM_CLASSES = 256       # module default num_classes=256
LAYERS = (1, 1, 1, 1)   # one BasicBlock per stage (smallest config)
L_IN = 64               # input sequence length for the example
BN_EPS = 1e-5
STAGE_PLANES = (32, 64, 128, 256)
STAGE_STRIDES = (1, 2, 2, 2)


def conv_out_len(L, K, stride, pad):
    return (L + 2 * pad - K) // stride + 1


def block_configs(layers=LAYERS):
    """Static per-block config: (inplanes, planes, stride, need_downsample)."""
    cfgs = []
    inplanes = 16
    for planes, nb, st in zip(STAGE_PLANES, layers, STAGE_STRIDES):
        for bi in range(nb):
            stride = st if bi == 0 else 1
            need_ds = (stride != 1) or (inplanes != planes)
            cfgs.append((inplanes, planes, stride, need_ds))
            inplanes = planes
    return cfgs, inplanes


# ------------------------- parameter initialization ----------------------------
def init_params(key, layers=LAYERS, embed_in=EMBED_IN, num_classes=NUM_CLASSES):
    cfgs, feat_dim = block_configs(layers)
    keys = iter(jax.random.split(key, 8 + 16 * len(cfgs)))

    def conv_w(cout, cin, k):
        std = math.sqrt(2.0 / (cout * k))  # kaiming_normal_, mode='fan_out', relu
        return std * jax.random.normal(next(keys), (cout, cin, k), jnp.float32)

    def bn_params(c):
        return {
            "gamma": jax.random.uniform(next(keys), (c,), jnp.float32, 0.5, 1.5),
            "beta": 0.1 * jax.random.normal(next(keys), (c,), jnp.float32),
            "mean": 0.1 * jax.random.normal(next(keys), (c,), jnp.float32),
            "var": jax.random.uniform(next(keys), (c,), jnp.float32, 0.5, 1.5),
        }

    params = {"conv1": conv_w(16, embed_in, 7), "bn1": bn_params(16), "blocks": []}
    for inpl, planes, stride, need_ds in cfgs:
        blk = {
            "conv1": conv_w(planes, inpl, 3), "bn1": bn_params(planes),
            "conv2": conv_w(planes, planes, 3), "bn2": bn_params(planes),
        }
        if need_ds:
            blk["ds_conv"] = conv_w(planes, inpl, 1)
            blk["ds_bn"] = bn_params(planes)
        params["blocks"].append(blk)

    bound = 1.0 / math.sqrt(feat_dim)
    params["fc_w"] = jax.random.uniform(next(keys), (num_classes, feat_dim),
                                        jnp.float32, -bound, bound)
    params["fc_b"] = jax.random.uniform(next(keys), (num_classes,),
                                        jnp.float32, -bound, bound)
    return params


# ----------------------- host-side kernel-input preparation --------------------
def _sel_matrices(L_in, L_out, K, stride, pad):
    """S[t, i, j] = 1 iff input position i feeds output j through tap t
    (i == stride*j + t - pad).  Out-of-range -> all-zero column == zero pad."""
    S = np.zeros((K, L_in, L_out), np.float32)
    for t in range(K):
        for j in range(L_out):
            i = stride * j + t - pad
            if 0 <= i < L_in:
                S[t, i, j] = 1.0
    return jnp.asarray(S)


def _fold_conv_bn(w, bnp):
    """Fold eval-mode BatchNorm1d into a bias-free conv.  Returns per-tap
    weights [K, Cout, Cin] and a bias column [Cout, 1]."""
    scale = bnp["gamma"] / jnp.sqrt(bnp["var"] + BN_EPS)
    bias = bnp["beta"] - bnp["mean"] * scale
    w_folded = w * scale[:, None, None]
    w_taps = jnp.transpose(w_folded, (2, 0, 1)).astype(jnp.float32)
    return w_taps, bias[:, None].astype(jnp.float32)


def build_program(params, layers, L_in):
    """Flatten all (BN-folded) parameters + selection matrices into a list of
    arrays and a static program describing the forward pass."""
    cfgs, feat_dim = block_configs(layers)
    arrays = []
    flops = 0

    def add(a):
        arrays.append(a)
        return len(arrays) - 1

    def conv_spec(w_raw, bn_p, L_cur, stride, pad):
        nonlocal flops
        cout, cin, K = w_raw.shape
        L_out = conv_out_len(L_cur, K, stride, pad)
        w_taps, bias = _fold_conv_bn(w_raw, bn_p)
        spec = {"w": add(w_taps), "b": add(bias), "s": None, "K": K}
        if not (K == 1 and stride == 1 and pad == 0):   # identity selection -> skip
            spec["s"] = add(_sel_matrices(L_cur, L_out, K, stride, pad))
            flops += 2 * K * cin * L_cur * L_out
        flops += 2 * K * cout * cin * L_out
        return spec, L_out

    # stem: conv7/s2/p3 + BN
    stem, L = conv_spec(params["conv1"], params["bn1"], L_in, 2, 3)
    # maxpool 3/s2/p1
    L_pool = conv_out_len(L, 3, 2, 1)
    pool = {"s": add(_sel_matrices(L, L_pool, 3, 2, 1)), "K": 3}
    flops += 2 * 3 * 16 * L * L_pool
    L = L_pool

    blocks = []
    for (inpl, planes, stride, need_ds), bp in zip(cfgs, params["blocks"]):
        c1, L_out = conv_spec(bp["conv1"], bp["bn1"], L, stride, 1)
        c2, _ = conv_spec(bp["conv2"], bp["bn2"], L_out, 1, 1)
        ds = None
        if need_ds:
            ds, _ = conv_spec(bp["ds_conv"], bp["ds_bn"], L, stride, 0)
        blocks.append({"c1": c1, "c2": c2, "ds": ds})
        L = L_out

    num_classes = params["fc_w"].shape[0]
    fc_w = add(params["fc_w"].astype(jnp.float32))
    fc_b = add(params["fc_b"][:, None].astype(jnp.float32))
    flops += 2 * num_classes * feat_dim

    program = {"stem": stem, "pool": pool, "blocks": blocks,
               "fc_w": fc_w, "fc_b": fc_b}
    return program, arrays, flops


# ----------------------------------- kernel ------------------------------------
def make_kernel(program, n_params):
    def conv_apply(x, p, spec):
        w = p[spec["w"]]          # ref [K, Cout, Cin]
        b = p[spec["b"]]          # ref [Cout, 1]
        if spec["s"] is None:     # 1x1 conv, stride 1: plain matmul
            acc = jnp.dot(w[0], x, preferred_element_type=jnp.float32)
        else:
            s = p[spec["s"]]      # ref [K, L_in, L_out]
            acc = None
            for t in range(spec["K"]):
                xt = jnp.dot(x, s[t], preferred_element_type=jnp.float32)
                yt = jnp.dot(w[t], xt, preferred_element_type=jnp.float32)
                acc = yt if acc is None else acc + yt
        return acc + b[...]

    def kernel(*refs):
        x_ref = refs[0]
        p = refs[1:1 + n_params]
        out_ref = refs[1 + n_params]

        h = x_ref[...].astype(jnp.float32)                     # [C_in, L_in]

        # stem: conv7/s2 (+folded BN) -> ReLU -> maxpool3/s2
        h = jnp.maximum(conv_apply(h, p, program["stem"]), 0.0)
        s_pool = p[program["pool"]["s"]]
        m = jnp.dot(h, s_pool[0], preferred_element_type=jnp.float32)
        for t in range(1, program["pool"]["K"]):
            m = jnp.maximum(m, jnp.dot(h, s_pool[t],
                                       preferred_element_type=jnp.float32))
        h = m  # zero-fill == -inf pad here since h >= 0 (post-ReLU)

        # residual BasicBlocks (BN folded into convs, eval mode)
        for blk in program["blocks"]:
            identity = h
            o = jnp.maximum(conv_apply(h, p, blk["c1"]), 0.0)
            o = conv_apply(o, p, blk["c2"])
            if blk["ds"] is not None:
                identity = conv_apply(h, p, blk["ds"])
            h = jnp.maximum(o + identity, 0.0)

        # adaptive avg pool over length + fully connected head
        feat = jnp.mean(h, axis=1, keepdims=True)              # [256, 1]
        out = jnp.dot(p[program["fc_w"]][...], feat,
                      preferred_element_type=jnp.float32) + p[program["fc_b"]][...]
        out_ref[...] = out.astype(out_ref.dtype)               # [num_classes, 1]

    return kernel


def _const_index_map(ndim):
    def idx(b):
        return (0,) * ndim
    return idx


# --------------------------------- host wrapper ---------------------------------
@jax.jit
def convresnet_forward(x, params):
    B, C, L = x.shape
    program, arrays, flops_per_sample = build_program(params, LAYERS, L)
    num_classes = params["fc_w"].shape[0]
    kernel = make_kernel(program, len(arrays))

    in_specs = [pl.BlockSpec((None, C, L), lambda b: (b, 0, 0))]
    in_specs += [pl.BlockSpec(a.shape, _const_index_map(a.ndim)) for a in arrays]
    out_specs = pl.BlockSpec((None, num_classes, 1), lambda b: (b, 0, 0))

    bytes_accessed = 4 * (x.size
                          + sum(int(np.prod(a.shape)) for a in arrays)
                          + B * num_classes)

    out = pl.pallas_call(
        kernel,
        out_shape=jax.ShapeDtypeStruct((B, num_classes, 1), jnp.float32),
        grid=(B,),
        in_specs=in_specs,
        out_specs=out_specs,
        compiler_params=pltpu.CompilerParams(
            dimension_semantics=("parallel",),       # megacore on v7x, no-op v5e/v6e
            vmem_limit_bytes=32 * 1024 * 1024,       # safe on v5e/v6e/v7x; usage ~5 MB
        ),
        cost_estimate=pl.CostEstimate(
            flops=int(B * flops_per_sample),
            transcendentals=0,
            bytes_accessed=int(bytes_accessed),
        ),
    )(x, *arrays)
    return out.reshape(B, num_classes)


# ------------------------------ pure-JAX reference ------------------------------
def _conv1d_ref(x, w, stride, pad):
    return jax.lax.conv_general_dilated(
        x, w, window_strides=(stride,), padding=[(pad, pad)],
        dimension_numbers=("NCH", "OIH", "NCH"),
        precision=jax.lax.Precision.HIGHEST)


def _bn_ref(x, p):
    scale = p["gamma"] / jnp.sqrt(p["var"] + BN_EPS)
    return (x - p["mean"][None, :, None]) * scale[None, :, None] + p["beta"][None, :, None]


def convresnet_ref(x, params, layers=LAYERS):
    cfgs, _ = block_configs(layers)
    h = _conv1d_ref(x, params["conv1"], 2, 3)
    h = jnp.maximum(_bn_ref(h, params["bn1"]), 0.0)
    h = jax.lax.reduce_window(h, -jnp.inf, jax.lax.max,
                              (1, 1, 3), (1, 1, 2),
                              [(0, 0), (0, 0), (1, 1)])
    for (inpl, planes, stride, need_ds), bp in zip(cfgs, params["blocks"]):
        identity = h
        o = jnp.maximum(_bn_ref(_conv1d_ref(h, bp["conv1"], stride, 1), bp["bn1"]), 0.0)
        o = _bn_ref(_conv1d_ref(o, bp["conv2"], 1, 1), bp["bn2"])
        if need_ds:
            identity = _bn_ref(_conv1d_ref(h, bp["ds_conv"], stride, 0), bp["ds_bn"])
        h = jnp.maximum(o + identity, 0.0)
    feat = jnp.mean(h, axis=2)
    return jnp.dot(feat, params["fc_w"].T,
                   precision=jax.lax.Precision.HIGHEST) + params["fc_b"]


# ------------------------------------- main -------------------------------------
if __name__ == "__main__":
    key = jax.random.PRNGKey(0)
    kx, kp = jax.random.split(key)

    B = 2
    x = jax.random.normal(kx, (B, EMBED_IN, L_IN), jnp.float32)
    params = init_params(kp)

    out = convresnet_forward(x, params)
    out = jax.block_until_ready(out)

    ref = convresnet_ref(x, params)
    assert out.shape == (B, NUM_CLASSES)
    max_err = float(jnp.max(jnp.abs(out - ref)))
    assert jnp.allclose(out, ref, atol=2e-3, rtol=2e-3), f"max abs err {max_err}"
    print("KERNEL_OK")
</pallas_src>

<mosaic_0001>
module attributes {stable_mosaic.version = 11 : i64} {
  func.func @kernel(%arg0: i32, %arg1: memref<1x4x64xf32, #tpu.memory_space<vmem>>, %arg2: memref<7x16x4xf32, #tpu.memory_space<vmem>>, %arg3: memref<16x1xf32, #tpu.memory_space<vmem>>, %arg4: memref<7x64x32xf32, #tpu.memory_space<vmem>>, %arg5: memref<3x32x16xf32, #tpu.memory_space<vmem>>, %arg6: memref<3x32x16xf32, #tpu.memory_space<vmem>>, %arg7: memref<32x1xf32, #tpu.memory_space<vmem>>, %arg8: memref<3x16x16xf32, #tpu.memory_space<vmem>>, %arg9: memref<3x32x32xf32, #tpu.memory_space<vmem>>, %arg10: memref<32x1xf32, #tpu.memory_space<vmem>>, %arg11: memref<3x16x16xf32, #tpu.memory_space<vmem>>, %arg12: memref<1x32x16xf32, #tpu.memory_space<vmem>>, %arg13: memref<32x1xf32, #tpu.memory_space<vmem>>, %arg14: memref<3x64x32xf32, #tpu.memory_space<vmem>>, %arg15: memref<64x1xf32, #tpu.memory_space<vmem>>, %arg16: memref<3x16x8xf32, #tpu.memory_space<vmem>>, %arg17: memref<3x64x64xf32, #tpu.memory_space<vmem>>, %arg18: memref<64x1xf32, #tpu.memory_space<vmem>>, %arg19: memref<3x8x8xf32, #tpu.memory_space<vmem>>, %arg20: memref<1x64x32xf32, #tpu.memory_space<vmem>>, %arg21: memref<64x1xf32, #tpu.memory_space<vmem>>, %arg22: memref<1x16x8xf32, #tpu.memory_space<vmem>>, %arg23: memref<3x128x64xf32, #tpu.memory_space<vmem>>, %arg24: memref<128x1xf32, #tpu.memory_space<vmem>>, %arg25: memref<3x8x4xf32, #tpu.memory_space<vmem>>, %arg26: memref<3x128x128xf32, #tpu.memory_space<vmem>>, %arg27: memref<128x1xf32, #tpu.memory_space<vmem>>, %arg28: memref<3x4x4xf32, #tpu.memory_space<vmem>>, %arg29: memref<1x128x64xf32, #tpu.memory_space<vmem>>, %arg30: memref<128x1xf32, #tpu.memory_space<vmem>>, %arg31: memref<1x8x4xf32, #tpu.memory_space<vmem>>, %arg32: memref<3x256x128xf32, #tpu.memory_space<vmem>>, %arg33: memref<256x1xf32, #tpu.memory_space<vmem>>, %arg34: memref<3x4x2xf32, #tpu.memory_space<vmem>>, %arg35: memref<3x256x256xf32, #tpu.memory_space<vmem>>, %arg36: memref<256x1xf32, #tpu.memory_space<vmem>>, %arg37: memref<3x2x2xf32, #tpu.memory_space<vmem>>, %arg38: memref<1x256x128xf32, #tpu.memory_space<vmem>>, %arg39: memref<256x1xf32, #tpu.memory_space<vmem>>, %arg40: memref<1x4x2xf32, #tpu.memory_space<vmem>>, %arg41: memref<256x256xf32, #tpu.memory_space<vmem>>, %arg42: memref<256x1xf32, #tpu.memory_space<vmem>>, %arg43: memref<1x256x1xf32, #tpu.memory_space<vmem>>) attributes {dimension_semantics = [#tpu.dimension_semantics<parallel>], iteration_bounds = array<i64: 2>, scalar_prefetch = 0 : i64, scratch_operands = 0 : i64, tpu.core_type = #tpu.core_type<tc>, window_params = [{transform_indices = @transform_0, window_bounds = array<i64: 1, 4, 64>}, {pipeline_mode = #tpu.pipeline_mode<synchronous>, transform_indices = @transform_1, window_bounds = array<i64: 7, 16, 4>}, {pipeline_mode = #tpu.pipeline_mode<synchronous>, transform_indices = @transform_2, window_bounds = array<i64: 16, 1>}, {pipeline_mode = #tpu.pipeline_mode<synchronous>, transform_indices = @transform_3, window_bounds = array<i64: 7, 64, 32>}, {pipeline_mode = #tpu.pipeline_mode<synchronous>, transform_indices = @transform_4, window_bounds = array<i64: 3, 32, 16>}, {pipeline_mode = #tpu.pipeline_mode<synchronous>, transform_indices = @transform_5, window_bounds = array<i64: 3, 32, 16>}, {pipeline_mode = #tpu.pipeline_mode<synchronous>, transform_indices = @transform_6, window_bounds = array<i64: 32, 1>}, {pipeline_mode = #tpu.pipeline_mode<synchronous>, transform_indices = @transform_7, window_bounds = array<i64: 3, 16, 16>}, {pipeline_mode = #tpu.pipeline_mode<synchronous>, transform_indices = @transform_8, window_bounds = array<i64: 3, 32, 32>}, {pipeline_mode = #tpu.pipeline_mode<synchronous>, transform_indices = @transform_9, window_bounds = array<i64: 32, 1>}, {pipeline_mode = #tpu.pipeline_mode<synchronous>, transform_indices = @transform_10, window_bounds = array<i64: 3, 16, 16>}, {pipeline_mode = #tpu.pipeline_mode<synchronous>, transform_indices = @transform_11, window_bounds = array<i64: 1, 32, 16>}, {pipeline_mode = #tpu.pipeline_mode<synchronous>, transform_indices = @transform_12, window_bounds = array<i64: 32, 1>}, {pipeline_mode = #tpu.pipeline_mode<synchronous>, transform_indices = @transform_13, window_bounds = array<i64: 3, 64, 32>}, {pipeline_mode = #tpu.pipeline_mode<synchronous>, transform_indices = @transform_14, window_bounds = array<i64: 64, 1>}, {pipeline_mode = #tpu.pipeline_mode<synchronous>, transform_indices = @transform_15, window_bounds = array<i64: 3, 16, 8>}, {pipeline_mode = #tpu.pipeline_mode<synchronous>, transform_indices = @transform_16, window_bounds = array<i64: 3, 64, 64>}, {pipeline_mode = #tpu.pipeline_mode<synchronous>, transform_indices = @transform_17, window_bounds = array<i64: 64, 1>}, {pipeline_mode = #tpu.pipeline_mode<synchronous>, transform_indices = @transform_18, window_bounds = array<i64: 3, 8, 8>}, {pipeline_mode = #tpu.pipeline_mode<synchronous>, transform_indices = @transform_19, window_bounds = array<i64: 1, 64, 32>}, {pipeline_mode = #tpu.pipeline_mode<synchronous>, transform_indices = @transform_20, window_bounds = array<i64: 64, 1>}, {pipeline_mode = #tpu.pipeline_mode<synchronous>, transform_indices = @transform_21, window_bounds = array<i64: 1, 16, 8>}, {pipeline_mode = #tpu.pipeline_mode<synchronous>, transform_indices = @transform_22, window_bounds = array<i64: 3, 128, 64>}, {pipeline_mode = #tpu.pipeline_mode<synchronous>, transform_indices = @transform_23, window_bounds = array<i64: 128, 1>}, {pipeline_mode = #tpu.pipeline_mode<synchronous>, transform_indices = @transform_24, window_bounds = array<i64: 3, 8, 4>}, {pipeline_mode = #tpu.pipeline_mode<synchronous>, transform_indices = @transform_25, window_bounds = array<i64: 3, 128, 128>}, {pipeline_mode = #tpu.pipeline_mode<synchronous>, transform_indices = @transform_26, window_bounds = array<i64: 128, 1>}, {pipeline_mode = #tpu.pipeline_mode<synchronous>, transform_indices = @transform_27, window_bounds = array<i64: 3, 4, 4>}, {pipeline_mode = #tpu.pipeline_mode<synchronous>, transform_indices = @transform_28, window_bounds = array<i64: 1, 128, 64>}, {pipeline_mode = #tpu.pipeline_mode<synchronous>, transform_indices = @transform_29, window_bounds = array<i64: 128, 1>}, {pipeline_mode = #tpu.pipeline_mode<synchronous>, transform_indices = @transform_30, window_bounds = array<i64: 1, 8, 4>}, {pipeline_mode = #tpu.pipeline_mode<synchronous>, transform_indices = @transform_31, window_bounds = array<i64: 3, 256, 128>}, {pipeline_mode = #tpu.pipeline_mode<synchronous>, transform_indices = @transform_32, window_bounds = array<i64: 256, 1>}, {pipeline_mode = #tpu.pipeline_mode<synchronous>, transform_indices = @transform_33, window_bounds = array<i64: 3, 4, 2>}, {pipeline_mode = #tpu.pipeline_mode<synchronous>, transform_indices = @transform_34, window_bounds = array<i64: 3, 256, 256>}, {pipeline_mode = #tpu.pipeline_mode<synchronous>, transform_indices = @transform_35, window_bounds = array<i64: 256, 1>}, {pipeline_mode = #tpu.pipeline_mode<synchronous>, transform_indices = @transform_36, window_bounds = array<i64: 3, 2, 2>}, {pipeline_mode = #tpu.pipeline_mode<synchronous>, transform_indices = @transform_37, window_bounds = array<i64: 1, 256, 128>}, {pipeline_mode = #tpu.pipeline_mode<synchronous>, transform_indices = @transform_38, window_bounds = array<i64: 256, 1>}, {pipeline_mode = #tpu.pipeline_mode<synchronous>, transform_indices = @transform_39, window_bounds = array<i64: 1, 4, 2>}, {pipeline_mode = #tpu.pipeline_mode<synchronous>, transform_indices = @transform_40, window_bounds = array<i64: 256, 256>}, {pipeline_mode = #tpu.pipeline_mode<synchronous>, transform_indices = @transform_41, window_bounds = array<i64: 256, 1>}, {transform_indices = @transform_42, window_bounds = array<i64: 1, 256, 1>}]} {
    %c0 = arith.constant 0 : index
    %c0_0 = arith.constant 0 : index
    %c0_1 = arith.constant 0 : index
    %0 = vector.load %arg1[%c0, %c0_0, %c0_1] : memref<1x4x64xf32, #tpu.memory_space<vmem>>, vector<1x4x64xf32>
    %1 = vector.shape_cast %0 : vector<1x4x64xf32> to vector<4x64xf32>
    %c0_2 = arith.constant 0 : index
    %c0_3 = arith.constant 0 : index
    %c0_4 = arith.constant 0 : index
    %2 = vector.load %arg4[%c0_2, %c0_3, %c0_4] : memref<7x64x32xf32, #tpu.memory_space<vmem>>, vector<1x64x32xf32>
    %3 = vector.shape_cast %2 : vector<1x64x32xf32> to vector<64x32xf32>
    %cst = arith.constant dense<0.000000e+00> : vector<4x32xf32>
    %4 = tpu.matmul %1, %3, %cst {dimension_numbers = #tpu.dot_dimension_numbers<[1], [0], [0], [1], [0, 0, 1, 1], [], []>} : vector<4x64xf32>, vector<64x32xf32>, vector<4x32xf32> -> vector<4x32xf32>
    %c0_5 = arith.constant 0 : index
    %c0_6 = arith.constant 0 : index
    %c0_7 = arith.constant 0 : index
    %5 = vector.load %arg2[%c0_5, %c0_6, %c0_7] : memref<7x16x4xf32, #tpu.memory_space<vmem>>, vector<1x16x4xf32>
    %6 = vector.shape_cast %5 : vector<1x16x4xf32> to vector<16x4xf32>
    %cst_8 = arith.constant dense<0.000000e+00> : vector<16x32xf32>
    %7 = tpu.matmul %6, %4, %cst_8 {dimension_numbers = #tpu.dot_dimension_numbers<[1], [0], [0], [1], [0, 0, 1, 1], [], []>} : vector<16x4xf32>, vector<4x32xf32>, vector<16x32xf32> -> vector<16x32xf32>
    %c1 = arith.constant 1 : index
    %c0_9 = arith.constant 0 : index
    %c0_10 = arith.constant 0 : index
    %8 = vector.load %arg4[%c1, %c0_9, %c0_10] : memref<7x64x32xf32, #tpu.memory_space<vmem>>, vector<1x64x32xf32>
    %9 = vector.shape_cast %8 : vector<1x64x32xf32> to vector<64x32xf32>
    %cst_11 = arith.constant dense<0.000000e+00> : vector<4x32xf32>
    %10 = tpu.matmul %1, %9, %cst_11 {dimension_numbers = #tpu.dot_dimension_numbers<[1], [0], [0], [1], [0, 0, 1, 1], [], []>} : vector<4x64xf32>, vector<64x32xf32>, vector<4x32xf32> -> vector<4x32xf32>
    %c1_12 = arith.constant 1 : index
    %c0_13 = arith.constant 0 : index
    %c0_14 = arith.constant 0 : index
    %11 = vector.load %arg2[%c1_12, %c0_13, %c0_14] : memref<7x16x4xf32, #tpu.memory_space<vmem>>, vector<1x16x4xf32>
    %12 = vector.shape_cast %11 : vector<1x16x4xf32> to vector<16x4xf32>
    %cst_15 = arith.constant dense<0.000000e+00> : vector<16x32xf32>
    %13 = tpu.matmul %12, %10, %cst_15 {dimension_numbers = #tpu.dot_dimension_numbers<[1], [0], [0], [1], [0, 0, 1, 1], [], []>} : vector<16x4xf32>, vector<4x32xf32>, vector<16x32xf32> -> vector<16x32xf32>
    %14 = arith.addf %7, %13 : vector<16x32xf32>
    %c2 = arith.constant 2 : index
    %c0_16 = arith.constant 0 : index
    %c0_17 = arith.constant 0 : index
    %15 = vector.load %arg4[%c2, %c0_16, %c0_17] : memref<7x64x32xf32, #tpu.memory_space<vmem>>, vector<1x64x32xf32>
    %16 = vector.shape_cast %15 : vector<1x64x32xf32> to vector<64x32xf32>
    %cst_18 = arith.constant dense<0.000000e+00> : vector<4x32xf32>
    %17 = tpu.matmul %1, %16, %cst_18 {dimension_numbers = #tpu.dot_dimension_numbers<[1], [0], [0], [1], [0, 0, 1, 1], [], []>} : vector<4x64xf32>, vector<64x32xf32>, vector<4x32xf32> -> vector<4x32xf32>
    %c2_19 = arith.constant 2 : index
    %c0_20 = arith.constant 0 : index
    %c0_21 = arith.constant 0 : index
    %18 = vector.load %arg2[%c2_19, %c0_20, %c0_21] : memref<7x16x4xf32, #tpu.memory_space<vmem>>, vector<1x16x4xf32>
    %19 = vector.shape_cast %18 : vector<1x16x4xf32> to vector<16x4xf32>
    %cst_22 = arith.constant dense<0.000000e+00> : vector<16x32xf32>
    %20 = tpu.matmul %19, %17, %cst_22 {dimension_numbers = #tpu.dot_dimension_numbers<[1], [0], [0], [1], [0, 0, 1, 1], [], []>} : vector<16x4xf32>, vector<4x32xf32>, vector<16x32xf32> -> vector<16x32xf32>
    %21 = arith.addf %14, %20 : vector<16x32xf32>
    %c3 = arith.constant 3 : index
    %c0_23 = arith.constant 0 : index
    %c0_24 = arith.constant 0 : index
    %22 = vector.load %arg4[%c3, %c0_23, %c0_24] : memref<7x64x32xf32, #tpu.memory_space<vmem>>, vector<1x64x32xf32>
    %23 = vector.shape_cast %22 : vector<1x64x32xf32> to vector<64x32xf32>
    %cst_25 = arith.constant dense<0.000000e+00> : vector<4x32xf32>
    %24 = tpu.matmul %1, %23, %cst_25 {dimension_numbers = #tpu.dot_dimension_numbers<[1], [0], [0], [1], [0, 0, 1, 1], [], []>} : vector<4x64xf32>, vector<64x32xf32>, vector<4x32xf32> -> vector<4x32xf32>
    %c3_26 = arith.constant 3 : index
    %c0_27 = arith.constant 0 : index
    %c0_28 = arith.constant 0 : index
    %25 = vector.load %arg2[%c3_26, %c0_27, %c0_28] : memref<7x16x4xf32, #tpu.memory_space<vmem>>, vector<1x16x4xf32>
    %26 = vector.shape_cast %25 : vector<1x16x4xf32> to vector<16x4xf32>
    %cst_29 = arith.constant dense<0.000000e+00> : vector<16x32xf32>
    %27 = tpu.matmul %26, %24, %cst_29 {dimension_numbers = #tpu.dot_dimension_numbers<[1], [0], [0], [1], [0, 0, 1, 1], [], []>} : vector<16x4xf32>, vector<4x32xf32>, vector<16x32xf32> -> vector<16x32xf32>
    %28 = arith.addf %21, %27 : vector<16x32xf32>
    %c4 = arith.constant 4 : index
    %c0_30 = arith.constant 0 : index
    %c0_31 = arith.constant 0 : index
    %29 = vector.load %arg4[%c4, %c0_30, %c0_31] : memref<7x64x32xf32, #tpu.memory_space<vmem>>, vector<1x64x32xf32>
    %30 = vector.shape_cast %29 : vector<1x64x32xf32> to vector<64x32xf32>
    %cst_32 = arith.constant dense<0.000000e+00> : vector<4x32xf32>
    %31 = tpu.matmul %1, %30, %cst_32 {dimension_numbers = #tpu.dot_dimension_numbers<[1], [0], [0], [1], [0, 0, 1, 1], [], []>} : vector<4x64xf32>, vector<64x32xf32>, vector<4x32xf32> -> vector<4x32xf32>
    %c4_33 = arith.constant 4 : index
    %c0_34 = arith.constant 0 : index
    %c0_35 = arith.constant 0 : index
    %32 = vector.load %arg2[%c4_33, %c0_34, %c0_35] : memref<7x16x4xf32, #tpu.memory_space<vmem>>, vector<1x16x4xf32>
    %33 = vector.shape_cast %32 : vector<1x16x4xf32> to vector<16x4xf32>
    %cst_36 = arith.constant dense<0.000000e+00> : vector<16x32xf32>
    %34 = tpu.matmul %33, %31, %cst_36 {dimension_numbers = #tpu.dot_dimension_numbers<[1], [0], [0], [1], [0, 0, 1, 1], [], []>} : vector<16x4xf32>, vector<4x32xf32>, vector<16x32xf32> -> vector<16x32xf32>
    %35 = arith.addf %28, %34 : vector<16x32xf32>
    %c5 = arith.constant 5 : index
    %c0_37 = arith.constant 0 : index
    %c0_38 = arith.constant 0 : index
    %36 = vector.load %arg4[%c5, %c0_37, %c0_38] : memref<7x64x32xf32, #tpu.memory_space<vmem>>, vector<1x64x32xf32>
    %37 = vector.shape_cast %36 : vector<1x64x32xf32> to vector<64x32xf32>
    %cst_39 = arith.constant dense<0.000000e+00> : vector<4x32xf32>
    %38 = tpu.matmul %1, %37, %cst_39 {dimension_numbers = #tpu.dot_dimension_numbers<[1], [0], [0], [1], [0, 0, 1, 1], [], []>} : vector<4x64xf32>, vector<64x32xf32>, vector<4x32xf32> -> vector<4x32xf32>
    %c5_40 = arith.constant 5 : index
    %c0_41 = arith.constant 0 : index
    %c0_42 = arith.constant 0 : index
    %39 = vector.load %arg2[%c5_40, %c0_41, %c0_42] : memref<7x16x4xf32, #tpu.memory_space<vmem>>, vector<1x16x4xf32>
    %40 = vector.shape_cast %39 : vector<1x16x4xf32> to vector<16x4xf32>
    %cst_43 = arith.constant dense<0.000000e+00> : vector<16x32xf32>
    %41 = tpu.matmul %40, %38, %cst_43 {dimension_numbers = #tpu.dot_dimension_numbers<[1], [0], [0], [1], [0, 0, 1, 1], [], []>} : vector<16x4xf32>, vector<4x32xf32>, vector<16x32xf32> -> vector<16x32xf32>
    %42 = arith.addf %35, %41 : vector<16x32xf32>
    %c6 = arith.constant 6 : index
    %c0_44 = arith.constant 0 : index
    %c0_45 = arith.constant 0 : index
    %43 = vector.load %arg4[%c6, %c0_44, %c0_45] : memref<7x64x32xf32, #tpu.memory_space<vmem>>, vector<1x64x32xf32>
    %44 = vector.shape_cast %43 : vector<1x64x32xf32> to vector<64x32xf32>
    %cst_46 = arith.constant dense<0.000000e+00> : vector<4x32xf32>
    %45 = tpu.matmul %1, %44, %cst_46 {dimension_numbers = #tpu.dot_dimension_numbers<[1], [0], [0], [1], [0, 0, 1, 1], [], []>} : vector<4x64xf32>, vector<64x32xf32>, vector<4x32xf32> -> vector<4x32xf32>
    %c6_47 = arith.constant 6 : index
    %c0_48 = arith.constant 0 : index
    %c0_49 = arith.constant 0 : index
    %46 = vector.load %arg2[%c6_47, %c0_48, %c0_49] : memref<7x16x4xf32, #tpu.memory_space<vmem>>, vector<1x16x4xf32>
    %47 = vector.shape_cast %46 : vector<1x16x4xf32> to vector<16x4xf32>
    %cst_50 = arith.constant dense<0.000000e+00> : vector<16x32xf32>
    %48 = tpu.matmul %47, %45, %cst_50 {dimension_numbers = #tpu.dot_dimension_numbers<[1], [0], [0], [1], [0, 0, 1, 1], [], []>} : vector<16x4xf32>, vector<4x32xf32>, vector<16x32xf32> -> vector<16x32xf32>
    %49 = arith.addf %42, %48 : vector<16x32xf32>
    %c0_51 = arith.constant 0 : index
    %c0_52 = arith.constant 0 : index
    %50 = vector.load %arg3[%c0_51, %c0_52] : memref<16x1xf32, #tpu.memory_space<vmem>>, vector<16x1xf32>
    %51 = vector.broadcast %50 : vector<16x1xf32> to vector<16x32xf32>
    %52 = arith.addf %49, %51 : vector<16x32xf32>
    %cst_53 = arith.constant 0.000000e+00 : f32
    %53 = vector.broadcast %cst_53 : f32 to vector<16x32xf32>
    %54 = arith.maximumf %52, %53 : vector<16x32xf32>
    %c0_54 = arith.constant 0 : index
    %c0_55 = arith.constant 0 : index
    %c0_56 = arith.constant 0 : index
    %55 = vector.load %arg5[%c0_54, %c0_55, %c0_56] : memref<3x32x16xf32, #tpu.memory_space<vmem>>, vector<1x32x16xf32>
    %56 = vector.shape_cast %55 : vector<1x32x16xf32> to vector<32x16xf32>
    %cst_57 = arith.constant dense<0.000000e+00> : vector<16x16xf32>
    %57 = tpu.matmul %54, %56, %cst_57 {dimension_numbers = #tpu.dot_dimension_numbers<[1], [0], [0], [1], [0, 0, 1, 1], [], []>} : vector<16x32xf32>, vector<32x16xf32>, vector<16x16xf32> -> vector<16x16xf32>
    %c1_58 = arith.constant 1 : index
    %c0_59 = arith.constant 0 : index
    %c0_60 = arith.constant 0 : index
    %58 = vector.load %arg5[%c1_58, %c0_59, %c0_60] : memref<3x32x16xf32, #tpu.memory_space<vmem>>, vector<1x32x16xf32>
    %59 = vector.shape_cast %58 : vector<1x32x16xf32> to vector<32x16xf32>
    %cst_61 = arith.constant dense<0.000000e+00> : vector<16x16xf32>
    %60 = tpu.matmul %54, %59, %cst_61 {dimension_numbers = #tpu.dot_dimension_numbers<[1], [0], [0], [1], [0, 0, 1, 1], [], []>} : vector<16x32xf32>, vector<32x16xf32>, vector<16x16xf32> -> vector<16x16xf32>
    %61 = arith.maximumf %57, %60 : vector<16x16xf32>
    %c2_62 = arith.constant 2 : index
    %c0_63 = arith.constant 0 : index
    %c0_64 = arith.constant 0 : index
    %62 = vector.load %arg5[%c2_62, %c0_63, %c0_64] : memref<3x32x16xf32, #tpu.memory_space<vmem>>, vector<1x32x16xf32>
    %63 = vector.shape_cast %62 : vector<1x32x16xf32> to vector<32x16xf32>
    %cst_65 = arith.constant dense<0.000000e+00> : vector<16x16xf32>
    %64 = tpu.matmul %54, %63, %cst_65 {dimension_numbers = #tpu.dot_dimension_numbers<[1], [0], [0], [1], [0, 0, 1, 1], [], []>} : vector<16x32xf32>, vector<32x16xf32>, vector<16x16xf32> -> vector<16x16xf32>
    %65 = arith.maximumf %61, %64 : vector<16x16xf32>
    %c0_66 = arith.constant 0 : index
    %c0_67 = arith.constant 0 : index
    %c0_68 = arith.constant 0 : index
    %66 = vector.load %arg8[%c0_66, %c0_67, %c0_68] : memref<3x16x16xf32, #tpu.memory_space<vmem>>, vector<1x16x16xf32>
    %67 = vector.shape_cast %66 : vector<1x16x16xf32> to vector<16x16xf32>
    %cst_69 = arith.constant dense<0.000000e+00> : vector<16x16xf32>
    %68 = tpu.matmul %65, %67, %cst_69 {dimension_numbers = #tpu.dot_dimension_numbers<[1], [0], [0], [1], [0, 0, 1, 1], [], []>} : vector<16x16xf32>, vector<16x16xf32>, vector<16x16xf32> -> vector<16x16xf32>
    %c0_70 = arith.constant 0 : index
    %c0_71 = arith.constant 0 : index
    %c0_72 = arith.constant 0 : index
    %69 = vector.load %arg6[%c0_70, %c0_71, %c0_72] : memref<3x32x16xf32, #tpu.memory_space<vmem>>, vector<1x32x16xf32>
    %70 = vector.shape_cast %69 : vector<1x32x16xf32> to vector<32x16xf32>
    %cst_73 = arith.constant dense<0.000000e+00> : vector<32x16xf32>
    %71 = tpu.matmul %70, %68, %cst_73 {dimension_numbers = #tpu.dot_dimension_numbers<[1], [0], [0], [1], [0, 0, 1, 1], [], []>} : vector<32x16xf32>, vector<16x16xf32>, vector<32x16xf32> -> vector<32x16xf32>
    %c1_74 = arith.constant 1 : index
    %c0_75 = arith.constant 0 : index
    %c0_76 = arith.constant 0 : index
    %72 = vector.load %arg8[%c1_74, %c0_75, %c0_76] : memref<3x16x16xf32, #tpu.memory_space<vmem>>, vector<1x16x16xf32>
    %73 = vector.shape_cast %72 : vector<1x16x16xf32> to vector<16x16xf32>
    %cst_77 = arith.constant dense<0.000000e+00> : vector<16x16xf32>
    %74 = tpu.matmul %65, %73, %cst_77 {dimension_numbers = #tpu.dot_dimension_numbers<[1], [0], [0], [1], [0, 0, 1, 1], [], []>} : vector<16x16xf32>, vector<16x16xf32>, vector<16x16xf32> -> vector<16x16xf32>
    %c1_78 = arith.constant 1 : index
    %c0_79 = arith.constant 0 : index
    %c0_80 = arith.constant 0 : index
    %75 = vector.load %arg6[%c1_78, %c0_79, %c0_80] : memref<3x32x16xf32, #tpu.memory_space<vmem>>, vector<1x32x16xf32>
    %76 = vector.shape_cast %75 : vector<1x32x16xf32> to vector<32x16xf32>
    %cst_81 = arith.constant dense<0.000000e+00> : vector<32x16xf32>
    %77 = tpu.matmul %76, %74, %cst_81 {dimension_numbers = #tpu.dot_dimension_numbers<[1], [0], [0], [1], [0, 0, 1, 1], [], []>} : vector<32x16xf32>, vector<16x16xf32>, vector<32x16xf32> -> vector<32x16xf32>
    %78 = arith.addf %71, %77 : vector<32x16xf32>
    %c2_82 = arith.constant 2 : index
    %c0_83 = arith.constant 0 : index
    %c0_84 = arith.constant 0 : index
    %79 = vector.load %arg8[%c2_82, %c0_83, %c0_84] : memref<3x16x16xf32, #tpu.memory_space<vmem>>, vector<1x16x16xf32>
    %80 = vector.shape_cast %79 : vector<1x16x16xf32> to vector<16x16xf32>
    %cst_85 = arith.constant dense<0.000000e+00> : vector<16x16xf32>
    %81 = tpu.matmul %65, %80, %cst_85 {dimension_numbers = #tpu.dot_dimension_numbers<[1], [0], [0], [1], [0, 0, 1, 1], [], []>} : vector<16x16xf32>, vector<16x16xf32>, vector<16x16xf32> -> vector<16x16xf32>
    %c2_86 = arith.constant 2 : index
    %c0_87 = arith.constant 0 : index
    %c0_88 = arith.constant 0 : index
    %82 = vector.load %arg6[%c2_86, %c0_87, %c0_88] : memref<3x32x16xf32, #tpu.memory_space<vmem>>, vector<1x32x16xf32>
    %83 = vector.shape_cast %82 : vector<1x32x16xf32> to vector<32x16xf32>
    %cst_89 = arith.constant dense<0.000000e+00> : vector<32x16xf32>
    %84 = tpu.matmul %83, %81, %cst_89 {dimension_numbers = #tpu.dot_dimension_numbers<[1], [0], [0], [1], [0, 0, 1, 1], [], []>} : vector<32x16xf32>, vector<16x16xf32>, vector<32x16xf32> -> vector<32x16xf32>
    %85 = arith.addf %78, %84 : vector<32x16xf32>
    %c0_90 = arith.constant 0 : index
    %c0_91 = arith.constant 0 : index
    %86 = vector.load %arg7[%c0_90, %c0_91] : memref<32x1xf32, #tpu.memory_space<vmem>>, vector<32x1xf32>
    %87 = vector.broadcast %86 : vector<32x1xf32> to vector<32x16xf32>
    %88 = arith.addf %85, %87 : vector<32x16xf32>
    %cst_92 = arith.constant 0.000000e+00 : f32
    %89 = vector.broadcast %cst_92 : f32 to vector<32x16xf32>
    %90 = arith.maximumf %88, %89 : vector<32x16xf32>
    %c0_93 = arith.constant 0 : index
    %c0_94 = arith.constant 0 : index
    %c0_95 = arith.constant 0 : index
    %91 = vector.load %arg11[%c0_93, %c0_94, %c0_95] : memref<3x16x16xf32, #tpu.memory_space<vmem>>, vector<1x16x16xf32>
    %92 = vector.shape_cast %91 : vector<1x16x16xf32> to vector<16x16xf32>
    %cst_96 = arith.constant dense<0.000000e+00> : vector<32x16xf32>
    %93 = tpu.matmul %90, %92, %cst_96 {dimension_numbers = #tpu.dot_dimension_numbers<[1], [0], [0], [1], [0, 0, 1, 1], [], []>} : vector<32x16xf32>, vector<16x16xf32>, vector<32x16xf32> -> vector<32x16xf32>
    %c0_97 = arith.constant 0 : index
    %c0_98 = arith.constant 0 : index
    %c0_99 = arith.constant 0 : index
    %94 = vector.load %arg9[%c0_97, %c0_98, %c0_99] : memref<3x32x32xf32, #tpu.memory_space<vmem>>, vector<1x32x32xf32>
    %95 = vector.shape_cast %94 : vector<1x32x32xf32> to vector<32x32xf32>
    %cst_100 = arith.constant dense<0.000000e+00> : vector<32x16xf32>
    %96 = tpu.matmul %95, %93, %cst_100 {dimension_numbers = #tpu.dot_dimension_numbers<[1], [0], [0], [1], [0, 0, 1, 1], [], []>} : vector<32x32xf32>, vector<32x16xf32>, vector<32x16xf32> -> vector<32x16xf32>
    %c1_101 = arith.constant 1 : index
    %c0_102 = arith.constant 0 : index
    %c0_103 = arith.constant 0 : index
    %97 = vector.load %arg11[%c1_101, %c0_102, %c0_103] : memref<3x16x16xf32, #tpu.memory_space<vmem>>, vector<1x16x16xf32>
    %98 = vector.shape_cast %97 : vector<1x16x16xf32> to vector<16x16xf32>
    %cst_104 = arith.constant dense<0.000000e+00> : vector<32x16xf32>
    %99 = tpu.matmul %90, %98, %cst_104 {dimension_numbers = #tpu.dot_dimension_numbers<[1], [0], [0], [1], [0, 0, 1, 1], [], []>} : vector<32x16xf32>, vector<16x16xf32>, vector<32x16xf32> -> vector<32x16xf32>
    %c1_105 = arith.constant 1 : index
    %c0_106 = arith.constant 0 : index
    %c0_107 = arith.constant 0 : index
    %100 = vector.load %arg9[%c1_105, %c0_106, %c0_107] : memref<3x32x32xf32, #tpu.memory_space<vmem>>, vector<1x32x32xf32>
    %101 = vector.shape_cast %100 : vector<1x32x32xf32> to vector<32x32xf32>
    %cst_108 = arith.constant dense<0.000000e+00> : vector<32x16xf32>
    %102 = tpu.matmul %101, %99, %cst_108 {dimension_numbers = #tpu.dot_dimension_numbers<[1], [0], [0], [1], [0, 0, 1, 1], [], []>} : vector<32x32xf32>, vector<32x16xf32>, vector<32x16xf32> -> vector<32x16xf32>
    %103 = arith.addf %96, %102 : vector<32x16xf32>
    %c2_109 = arith.constant 2 : index
    %c0_110 = arith.constant 0 : index
    %c0_111 = arith.constant 0 : index
    %104 = vector.load %arg11[%c2_109, %c0_110, %c0_111] : memref<3x16x16xf32, #tpu.memory_space<vmem>>, vector<1x16x16xf32>
    %105 = vector.shape_cast %104 : vector<1x16x16xf32> to vector<16x16xf32>
    %cst_112 = arith.constant dense<0.000000e+00> : vector<32x16xf32>
    %106 = tpu.matmul %90, %105, %cst_112 {dimension_numbers = #tpu.dot_dimension_numbers<[1], [0], [0], [1], [0, 0, 1, 1], [], []>} : vector<32x16xf32>, vector<16x16xf32>, vector<32x16xf32> -> vector<32x16xf32>
    %c2_113 = arith.constant 2 : index
    %c0_114 = arith.constant 0 : index
    %c0_115 = arith.constant 0 : index
    %107 = vector.load %arg9[%c2_113, %c0_114, %c0_115] : memref<3x32x32xf32, #tpu.memory_space<vmem>>, vector<1x32x32xf32>
    %108 = vector.shape_cast %107 : vector<1x32x32xf32> to vector<32x32xf32>
    %cst_116 = arith.constant dense<0.000000e+00> : vector<32x16xf32>
    %109 = tpu.matmul %108, %106, %cst_116 {dimension_numbers = #tpu.dot_dimension_numbers<[1], [0], [0], [1], [0, 0, 1, 1], [], []>} : vector<32x32xf32>, vector<32x16xf32>, vector<32x16xf32> -> vector<32x16xf32>
    %110 = arith.addf %103, %109 : vector<32x16xf32>
    %c0_117 = arith.constant 0 : index
    %c0_118 = arith.constant 0 : index
    %111 = vector.load %arg10[%c0_117, %c0_118] : memref<32x1xf32, #tpu.memory_space<vmem>>, vector<32x1xf32>
    %112 = vector.broadcast %111 : vector<32x1xf32> to vector<32x16xf32>
    %113 = arith.addf %110, %112 : vector<32x16xf32>
    %c0_119 = arith.constant 0 : index
    %c0_120 = arith.constant 0 : index
    %c0_121 = arith.constant 0 : index
    %114 = vector.load %arg12[%c0_119, %c0_120, %c0_121] : memref<1x32x16xf32, #tpu.memory_space<vmem>>, vector<1x32x16xf32>
    %115 = vector.shape_cast %114 : vector<1x32x16xf32> to vector<32x16xf32>
    %cst_122 = arith.constant dense<0.000000e+00> : vector<32x16xf32>
    %116 = tpu.matmul %115, %65, %cst_122 {dimension_numbers = #tpu.dot_dimension_numbers<[1], [0], [0], [1], [0, 0, 1, 1], [], []>} : vector<32x16xf32>, vector<16x16xf32>, vector<32x16xf32> -> vector<32x16xf32>
    %c0_123 = arith.constant 0 : index
    %c0_124 = arith.constant 0 : index
    %117 = vector.load %arg13[%c0_123, %c0_124] : memref<32x1xf32, #tpu.memory_space<vmem>>, vector<32x1xf32>
    %118 = vector.broadcast %117 : vector<32x1xf32> to vector<32x16xf32>
    %119 = arith.addf %116, %118 : vector<32x16xf32>
    %120 = arith.addf %113, %119 : vector<32x16xf32>
    %cst_125 = arith.constant 0.000000e+00 : f32
    %121 = vector.broadcast %cst_125 : f32 to vector<32x16xf32>
    %122 = arith.maximumf %120, %121 : vector<32x16xf32>
    %c0_126 = arith.constant 0 : index
    %c0_127 = arith.constant 0 : index
    %c0_128 = arith.constant 0 : index
    %123 = vector.load %arg16[%c0_126, %c0_127, %c0_128] : memref<3x16x8xf32, #tpu.memory_space<vmem>>, vector<1x16x8xf32>
    %124 = vector.shape_cast %123 : vector<1x16x8xf32> to vector<16x8xf32>
    %cst_129 = arith.constant dense<0.000000e+00> : vector<32x8xf32>
    %125 = tpu.matmul %122, %124, %cst_129 {dimension_numbers = #tpu.dot_dimension_numbers<[1], [0], [0], [1], [0, 0, 1, 1], [], []>} : vector<32x16xf32>, vector<16x8xf32>, vector<32x8xf32> -> vector<32x8xf32>
    %c0_130 = arith.constant 0 : index
    %c0_131 = arith.constant 0 : index
    %c0_132 = arith.constant 0 : index
    %126 = vector.load %arg14[%c0_130, %c0_131, %c0_132] : memref<3x64x32xf32, #tpu.memory_space<vmem>>, vector<1x64x32xf32>
    %127 = vector.shape_cast %126 : vector<1x64x32xf32> to vector<64x32xf32>
    %cst_133 = arith.constant dense<0.000000e+00> : vector<64x8xf32>
    %128 = tpu.matmul %127, %125, %cst_133 {dimension_numbers = #tpu.dot_dimension_numbers<[1], [0], [0], [1], [0, 0, 1, 1], [], []>} : vector<64x32xf32>, vector<32x8xf32>, vector<64x8xf32> -> vector<64x8xf32>
    %c1_134 = arith.constant 1 : index
    %c0_135 = arith.constant 0 : index
    %c0_136 = arith.constant 0 : index
    %129 = vector.load %arg16[%c1_134, %c0_135, %c0_136] : memref<3x16x8xf32, #tpu.memory_space<vmem>>, vector<1x16x8xf32>
    %130 = vector.shape_cast %129 : vector<1x16x8xf32> to vector<16x8xf32>
    %cst_137 = arith.constant dense<0.000000e+00> : vector<32x8xf32>
    %131 = tpu.matmul %122, %130, %cst_137 {dimension_numbers = #tpu.dot_dimension_numbers<[1], [0], [0], [1], [0, 0, 1, 1], [], []>} : vector<32x16xf32>, vector<16x8xf32>, vector<32x8xf32> -> vector<32x8xf32>
    %c1_138 = arith.constant 1 : index
    %c0_139 = arith.constant 0 : index
    %c0_140 = arith.constant 0 : index
    %132 = vector.load %arg14[%c1_138, %c0_139, %c0_140] : memref<3x64x32xf32, #tpu.memory_space<vmem>>, vector<1x64x32xf32>
    %133 = vector.shape_cast %132 : vector<1x64x32xf32> to vector<64x32xf32>
    %cst_141 = arith.constant dense<0.000000e+00> : vector<64x8xf32>
    %134 = tpu.matmul %133, %131, %cst_141 {dimension_numbers = #tpu.dot_dimension_numbers<[1], [0], [0], [1], [0, 0, 1, 1], [], []>} : vector<64x32xf32>, vector<32x8xf32>, vector<64x8xf32> -> vector<64x8xf32>
    %135 = arith.addf %128, %134 : vector<64x8xf32>
    %c2_142 = arith.constant 2 : index
    %c0_143 = arith.constant 0 : index
    %c0_144 = arith.constant 0 : index
    %136 = vector.load %arg16[%c2_142, %c0_143, %c0_144] : memref<3x16x8xf32, #tpu.memory_space<vmem>>, vector<1x16x8xf32>
    %137 = vector.shape_cast %136 : vector<1x16x8xf32> to vector<16x8xf32>
    %cst_145 = arith.constant dense<0.000000e+00> : vector<32x8xf32>
    %138 = tpu.matmul %122, %137, %cst_145 {dimension_numbers = #tpu.dot_dimension_numbers<[1], [0], [0], [1], [0, 0, 1, 1], [], []>} : vector<32x16xf32>, vector<16x8xf32>, vector<32x8xf32> -> vector<32x8xf32>
    %c2_146 = arith.constant 2 : index
    %c0_147 = arith.constant 0 : index
    %c0_148 = arith.constant 0 : index
    %139 = vector.load %arg14[%c2_146, %c0_147, %c0_148] : memref<3x64x32xf32, #tpu.memory_space<vmem>>, vector<1x64x32xf32>
    %140 = vector.shape_cast %139 : vector<1x64x32xf32> to vector<64x32xf32>
    %cst_149 = arith.constant dense<0.000000e+00> : vector<64x8xf32>
    %141 = tpu.matmul %140, %138, %cst_149 {dimension_numbers = #tpu.dot_dimension_numbers<[1], [0], [0], [1], [0, 0, 1, 1], [], []>} : vector<64x32xf32>, vector<32x8xf32>, vector<64x8xf32> -> vector<64x8xf32>
    %142 = arith.addf %135, %141 : vector<64x8xf32>
    %c0_150 = arith.constant 0 : index
    %c0_151 = arith.constant 0 : index
    %143 = vector.load %arg15[%c0_150, %c0_151] : memref<64x1xf32, #tpu.memory_space<vmem>>, vector<64x1xf32>
    %144 = vector.broadcast %143 : vector<64x1xf32> to vector<64x8xf32>
    %145 = arith.addf %142, %144 : vector<64x8xf32>
    %cst_152 = arith.constant 0.000000e+00 : f32
    %146 = vector.broadcast %cst_152 : f32 to vector<64x8xf32>
    %147 = arith.maximumf %145, %146 : vector<64x8xf32>
    %c0_153 = arith.constant 0 : index
    %c0_154 = arith.constant 0 : index
    %c0_155 = arith.constant 0 : index
    %148 = vector.load %arg19[%c0_153, %c0_154, %c0_155] : memref<3x8x8xf32, #tpu.memory_space<vmem>>, vector<1x8x8xf32>
    %149 = vector.shape_cast %148 : vector<1x8x8xf32> to vector<8x8xf32>
    %cst_156 = arith.constant dense<0.000000e+00> : vector<64x8xf32>
    %150 = tpu.matmul %147, %149, %cst_156 {dimension_numbers = #tpu.dot_dimension_numbers<[1], [0], [0], [1], [0, 0, 1, 1], [], []>} : vector<64x8xf32>, vector<8x8xf32>, vector<64x8xf32> -> vector<64x8xf32>
    %c0_157 = arith.constant 0 : index
    %c0_158 = arith.constant 0 : index
    %c0_159 = arith.constant 0 : index
    %151 = vector.load %arg17[%c0_157, %c0_158, %c0_159] : memref<3x64x64xf32, #tpu.memory_space<vmem>>, vector<1x64x64xf32>
    %152 = vector.shape_cast %151 : vector<1x64x64xf32> to vector<64x64xf32>
    %cst_160 = arith.constant dense<0.000000e+00> : vector<64x8xf32>
    %153 = tpu.matmul %152, %150, %cst_160 {dimension_numbers = #tpu.dot_dimension_numbers<[1], [0], [0], [1], [0, 0, 1, 1], [], []>} : vector<64x64xf32>, vector<64x8xf32>, vector<64x8xf32> -> vector<64x8xf32>
    %c1_161 = arith.constant 1 : index
    %c0_162 = arith.constant 0 : index
    %c0_163 = arith.constant 0 : index
    %154 = vector.load %arg19[%c1_161, %c0_162, %c0_163] : memref<3x8x8xf32, #tpu.memory_space<vmem>>, vector<1x8x8xf32>
    %155 = vector.shape_cast %154 : vector<1x8x8xf32> to vector<8x8xf32>
    %cst_164 = arith.constant dense<0.000000e+00> : vector<64x8xf32>
    %156 = tpu.matmul %147, %155, %cst_164 {dimension_numbers = #tpu.dot_dimension_numbers<[1], [0], [0], [1], [0, 0, 1, 1], [], []>} : vector<64x8xf32>, vector<8x8xf32>, vector<64x8xf32> -> vector<64x8xf32>
    %c1_165 = arith.constant 1 : index
    %c0_166 = arith.constant 0 : index
    %c0_167 = arith.constant 0 : index
    %157 = vector.load %arg17[%c1_165, %c0_166, %c0_167] : memref<3x64x64xf32, #tpu.memory_space<vmem>>, vector<1x64x64xf32>
    %158 = vector.shape_cast %157 : vector<1x64x64xf32> to vector<64x64xf32>
    %cst_168 = arith.constant dense<0.000000e+00> : vector<64x8xf32>
    %159 = tpu.matmul %158, %156, %cst_168 {dimension_numbers = #tpu.dot_dimension_numbers<[1], [0], [0], [1], [0, 0, 1, 1], [], []>} : vector<64x64xf32>, vector<64x8xf32>, vector<64x8xf32> -> vector<64x8xf32>
    %160 = arith.addf %153, %159 : vector<64x8xf32>
    %c2_169 = arith.constant 2 : index
    %c0_170 = arith.constant 0 : index
    %c0_171 = arith.constant 0 : index
    %161 = vector.load %arg19[%c2_169, %c0_170, %c0_171] : memref<3x8x8xf32, #tpu.memory_space<vmem>>, vector<1x8x8xf32>
    %162 = vector.shape_cast %161 : vector<1x8x8xf32> to vector<8x8xf32>
    %cst_172 = arith.constant dense<0.000000e+00> : vector<64x8xf32>
    %163 = tpu.matmul %147, %162, %cst_172 {dimension_numbers = #tpu.dot_dimension_numbers<[1], [0], [0], [1], [0, 0, 1, 1], [], []>} : vector<64x8xf32>, vector<8x8xf32>, vector<64x8xf32> -> vector<64x8xf32>
    %c2_173 = arith.constant 2 : index
    %c0_174 = arith.constant 0 : index
    %c0_175 = arith.constant 0 : index
    %164 = vector.load %arg17[%c2_173, %c0_174, %c0_175] : memref<3x64x64xf32, #tpu.memory_space<vmem>>, vector<1x64x64xf32>
    %165 = vector.shape_cast %164 : vector<1x64x64xf32> to vector<64x64xf32>
    %cst_176 = arith.constant dense<0.000000e+00> : vector<64x8xf32>
    %166 = tpu.matmul %165, %163, %cst_176 {dimension_numbers = #tpu.dot_dimension_numbers<[1], [0], [0], [1], [0, 0, 1, 1], [], []>} : vector<64x64xf32>, vector<64x8xf32>, vector<64x8xf32> -> vector<64x8xf32>
    %167 = arith.addf %160, %166 : vector<64x8xf32>
    %c0_177 = arith.constant 0 : index
    %c0_178 = arith.constant 0 : index
    %168 = vector.load %arg18[%c0_177, %c0_178] : memref<64x1xf32, #tpu.memory_space<vmem>>, vector<64x1xf32>
    %169 = vector.broadcast %168 : vector<64x1xf32> to vector<64x8xf32>
    %170 = arith.addf %167, %169 : vector<64x8xf32>
    %c0_179 = arith.constant 0 : index
    %c0_180 = arith.constant 0 : index
    %c0_181 = arith.constant 0 : index
    %171 = vector.load %arg22[%c0_179, %c0_180, %c0_181] : memref<1x16x8xf32, #tpu.memory_space<vmem>>, vector<1x16x8xf32>
    %172 = vector.shape_cast %171 : vector<1x16x8xf32> to vector<16x8xf32>
    %cst_182 = arith.constant dense<0.000000e+00> : vector<32x8xf32>
    %173 = tpu.matmul %122, %172, %cst_182 {dimension_numbers = #tpu.dot_dimension_numbers<[1], [0], [0], [1], [0, 0, 1, 1], [], []>} : vector<32x16xf32>, vector<16x8xf32>, vector<32x8xf32> -> vector<32x8xf32>
    %c0_183 = arith.constant 0 : index
    %c0_184 = arith.constant 0 : index
    %c0_185 = arith.constant 0 : index
    %174 = vector.load %arg20[%c0_183, %c0_184, %c0_185] : memref<1x64x32xf32, #tpu.memory_space<vmem>>, vector<1x64x32xf32>
    %175 = vector.shape_cast %174 : vector<1x64x32xf32> to vector<64x32xf32>
    %cst_186 = arith.constant dense<0.000000e+00> : vector<64x8xf32>
    %176 = tpu.matmul %175, %173, %cst_186 {dimension_numbers = #tpu.dot_dimension_numbers<[1], [0], [0], [1], [0, 0, 1, 1], [], []>} : vector<64x32xf32>, vector<32x8xf32>, vector<64x8xf32> -> vector<64x8xf32>
    %c0_187 = arith.constant 0 : index
    %c0_188 = arith.constant 0 : index
    %177 = vector.load %arg21[%c0_187, %c0_188] : memref<64x1xf32, #tpu.memory_space<vmem>>, vector<64x1xf32>
    %178 = vector.broadcast %177 : vector<64x1xf32> to vector<64x8xf32>
    %179 = arith.addf %176, %178 : vector<64x8xf32>
    %180 = arith.addf %170, %179 : vector<64x8xf32>
    %cst_189 = arith.constant 0.000000e+00 : f32
    %181 = vector.broadcast %cst_189 : f32 to vector<64x8xf32>
    %182 = arith.maximumf %180, %181 : vector<64x8xf32>
    %c0_190 = arith.constant 0 : index
    %c0_191 = arith.constant 0 : index
    %c0_192 = arith.constant 0 : index
    %183 = vector.load %arg25[%c0_190, %c0_191, %c0_192] : memref<3x8x4xf32, #tpu.memory_space<vmem>>, vector<1x8x4xf32>
    %184 = vector.shape_cast %183 : vector<1x8x4xf32> to vector<8x4xf32>
    %cst_193 = arith.constant dense<0.000000e+00> : vector<64x4xf32>
    %185 = tpu.matmul %182, %184, %cst_193 {dimension_numbers = #tpu.dot_dimension_numbers<[1], [0], [0], [1], [0, 0, 1, 1], [], []>} : vector<64x8xf32>, vector<8x4xf32>, vector<64x4xf32> -> vector<64x4xf32>
    %c0_194 = arith.constant 0 : index
    %c0_195 = arith.constant 0 : index
    %c0_196 = arith.constant 0 : index
    %186 = vector.load %arg23[%c0_194, %c0_195, %c0_196] : memref<3x128x64xf32, #tpu.memory_space<vmem>>, vector<1x128x64xf32>
    %187 = vector.shape_cast %186 : vector<1x128x64xf32> to vector<128x64xf32>
    %cst_197 = arith.constant dense<0.000000e+00> : vector<128x4xf32>
    %188 = tpu.matmul %187, %185, %cst_197 {dimension_numbers = #tpu.dot_dimension_numbers<[1], [0], [0], [1], [0, 0, 1, 1], [], []>} : vector<128x64xf32>, vector<64x4xf32>, vector<128x4xf32> -> vector<128x4xf32>
    %c1_198 = arith.constant 1 : index
    %c0_199 = arith.constant 0 : index
    %c0_200 = arith.constant 0 : index
    %189 = vector.load %arg25[%c1_198, %c0_199, %c0_200] : memref<3x8x4xf32, #tpu.memory_space<vmem>>, vector<1x8x4xf32>
    %190 = vector.shape_cast %189 : vector<1x8x4xf32> to vector<8x4xf32>
    %cst_201 = arith.constant dense<0.000000e+00> : vector<64x4xf32>
    %191 = tpu.matmul %182, %190, %cst_201 {dimension_numbers = #tpu.dot_dimension_numbers<[1], [0], [0], [1], [0, 0, 1, 1], [], []>} : vector<64x8xf32>, vector<8x4xf32>, vector<64x4xf32> -> vector<64x4xf32>
    %c1_202 = arith.constant 1 : index
    %c0_203 = arith.constant 0 : index
    %c0_204 = arith.constant 0 : index
    %192 = vector.load %arg23[%c1_202, %c0_203, %c0_204] : memref<3x128x64xf32, #tpu.memory_space<vmem>>, vector<1x128x64xf32>
    %193 = vector.shape_cast %192 : vector<1x128x64xf32> to vector<128x64xf32>
    %cst_205 = arith.constant dense<0.000000e+00> : vector<128x4xf32>
    %194 = tpu.matmul %193, %191, %cst_205 {dimension_numbers = #tpu.dot_dimension_numbers<[1], [0], [0], [1], [0, 0, 1, 1], [], []>} : vector<128x64xf32>, vector<64x4xf32>, vector<128x4xf32> -> vector<128x4xf32>
    %195 = arith.addf %188, %194 : vector<128x4xf32>
    %c2_206 = arith.constant 2 : index
    %c0_207 = arith.constant 0 : index
    %c0_208 = arith.constant 0 : index
    %196 = vector.load %arg25[%c2_206, %c0_207, %c0_208] : memref<3x8x4xf32, #tpu.memory_space<vmem>>, vector<1x8x4xf32>
    %197 = vector.shape_cast %196 : vector<1x8x4xf32> to vector<8x4xf32>
    %cst_209 = arith.constant dense<0.000000e+00> : vector<64x4xf32>
    %198 = tpu.matmul %182, %197, %cst_209 {dimension_numbers = #tpu.dot_dimension_numbers<[1], [0], [0], [1], [0, 0, 1, 1], [], []>} : vector<64x8xf32>, vector<8x4xf32>, vector<64x4xf32> -> vector<64x4xf32>
    %c2_210 = arith.constant 2 : index
    %c0_211 = arith.constant 0 : index
    %c0_212 = arith.constant 0 : index
    %199 = vector.load %arg23[%c2_210, %c0_211, %c0_212] : memref<3x128x64xf32, #tpu.memory_space<vmem>>, vector<1x128x64xf32>
    %200 = vector.shape_cast %199 : vector<1x128x64xf32> to vector<128x64xf32>
    %cst_213 = arith.constant dense<0.000000e+00> : vector<128x4xf32>
    %201 = tpu.matmul %200, %198, %cst_213 {dimension_numbers = #tpu.dot_dimension_numbers<[1], [0], [0], [1], [0, 0, 1, 1], [], []>} : vector<128x64xf32>, vector<64x4xf32>, vector<128x4xf32> -> vector<128x4xf32>
    %202 = arith.addf %195, %201 : vector<128x4xf32>
    %c0_214 = arith.constant 0 : index
    %c0_215 = arith.constant 0 : index
    %203 = vector.load %arg24[%c0_214, %c0_215] : memref<128x1xf32, #tpu.memory_space<vmem>>, vector<128x1xf32>
    %204 = vector.broadcast %203 : vector<128x1xf32> to vector<128x4xf32>
    %205 = arith.addf %202, %204 : vector<128x4xf32>
    %cst_216 = arith.constant 0.000000e+00 : f32
    %206 = vector.broadcast %cst_216 : f32 to vector<128x4xf32>
    %207 = arith.maximumf %205, %206 : vector<128x4xf32>
    %c0_217 = arith.constant 0 : index
    %c0_218 = arith.constant 0 : index
    %c0_219 = arith.constant 0 : index
    %208 = vector.load %arg28[%c0_217, %c0_218, %c0_219] : memref<3x4x4xf32, #tpu.memory_space<vmem>>, vector<1x4x4xf32>
    %209 = vector.shape_cast %208 : vector<1x4x4xf32> to vector<4x4xf32>
    %cst_220 = arith.constant dense<0.000000e+00> : vector<128x4xf32>
    %210 = tpu.matmul %207, %209, %cst_220 {dimension_numbers = #tpu.dot_dimension_numbers<[1], [0], [0], [1], [0, 0, 1, 1], [], []>} : vector<128x4xf32>, vector<4x4xf32>, vector<128x4xf32> -> vector<128x4xf32>
    %c0_221 = arith.constant 0 : index
    %c0_222 = arith.constant 0 : index
    %c0_223 = arith.constant 0 : index
    %211 = vector.load %arg26[%c0_221, %c0_222, %c0_223] : memref<3x128x128xf32, #tpu.memory_space<vmem>>, vector<1x128x128xf32>
    %212 = vector.shape_cast %211 : vector<1x128x128xf32> to vector<128x128xf32>
    %cst_224 = arith.constant dense<0.000000e+00> : vector<128x4xf32>
    %213 = tpu.matmul %212, %210, %cst_224 {dimension_numbers = #tpu.dot_dimension_numbers<[1], [0], [0], [1], [0, 0, 1, 1], [], []>} : vector<128x128xf32>, vector<128x4xf32>, vector<128x4xf32> -> vector<128x4xf32>
    %c1_225 = arith.constant 1 : index
    %c0_226 = arith.constant 0 : index
    %c0_227 = arith.constant 0 : index
    %214 = vector.load %arg28[%c1_225, %c0_226, %c0_227] : memref<3x4x4xf32, #tpu.memory_space<vmem>>, vector<1x4x4xf32>
    %215 = vector.shape_cast %214 : vector<1x4x4xf32> to vector<4x4xf32>
    %cst_228 = arith.constant dense<0.000000e+00> : vector<128x4xf32>
    %216 = tpu.matmul %207, %215, %cst_228 {dimension_numbers = #tpu.dot_dimension_numbers<[1], [0], [0], [1], [0, 0, 1, 1], [], []>} : vector<128x4xf32>, vector<4x4xf32>, vector<128x4xf32> -> vector<128x4xf32>
    %c1_229 = arith.constant 1 : index
    %c0_230 = arith.constant 0 : index
    %c0_231 = arith.constant 0 : index
    %217 = vector.load %arg26[%c1_229, %c0_230, %c0_231] : memref<3x128x128xf32, #tpu.memory_space<vmem>>, vector<1x128x128xf32>
    %218 = vector.shape_cast %217 : vector<1x128x128xf32> to vector<128x128xf32>
    %cst_232 = arith.constant dense<0.000000e+00> : vector<128x4xf32>
    %219 = tpu.matmul %218, %216, %cst_232 {dimension_numbers = #tpu.dot_dimension_numbers<[1], [0], [0], [1], [0, 0, 1, 1], [], []>} : vector<128x128xf32>, vector<128x4xf32>, vector<128x4xf32> -> vector<128x4xf32>
    %220 = arith.addf %213, %219 : vector<128x4xf32>
    %c2_233 = arith.constant 2 : index
    %c0_234 = arith.constant 0 : index
    %c0_235 = arith.constant 0 : index
    %221 = vector.load %arg28[%c2_233, %c0_234, %c0_235] : memref<3x4x4xf32, #tpu.memory_space<vmem>>, vector<1x4x4xf32>
    %222 = vector.shape_cast %221 : vector<1x4x4xf32> to vector<4x4xf32>
    %cst_236 = arith.constant dense<0.000000e+00> : vector<128x4xf32>
    %223 = tpu.matmul %207, %222, %cst_236 {dimension_numbers = #tpu.dot_dimension_numbers<[1], [0], [0], [1], [0, 0, 1, 1], [], []>} : vector<128x4xf32>, vector<4x4xf32>, vector<128x4xf32> -> vector<128x4xf32>
    %c2_237 = arith.constant 2 : index
    %c0_238 = arith.constant 0 : index
    %c0_239 = arith.constant 0 : index
    %224 = vector.load %arg26[%c2_237, %c0_238, %c0_239] : memref<3x128x128xf32, #tpu.memory_space<vmem>>, vector<1x128x128xf32>
    %225 = vector.shape_cast %224 : vector<1x128x128xf32> to vector<128x128xf32>
    %cst_240 = arith.constant dense<0.000000e+00> : vector<128x4xf32>
    %226 = tpu.matmul %225, %223, %cst_240 {dimension_numbers = #tpu.dot_dimension_numbers<[1], [0], [0], [1], [0, 0, 1, 1], [], []>} : vector<128x128xf32>, vector<128x4xf32>, vector<128x4xf32> -> vector<128x4xf32>
    %227 = arith.addf %220, %226 : vector<128x4xf32>
    %c0_241 = arith.constant 0 : index
    %c0_242 = arith.constant 0 : index
    %228 = vector.load %arg27[%c0_241, %c0_242] : memref<128x1xf32, #tpu.memory_space<vmem>>, vector<128x1xf32>
    %229 = vector.broadcast %228 : vector<128x1xf32> to vector<128x4xf32>
    %230 = arith.addf %227, %229 : vector<128x4xf32>
    %c0_243 = arith.constant 0 : index
    %c0_244 = arith.constant 0 : index
    %c0_245 = arith.constant 0 : index
    %231 = vector.load %arg31[%c0_243, %c0_244, %c0_245] : memref<1x8x4xf32, #tpu.memory_space<vmem>>, vector<1x8x4xf32>
    %232 = vector.shape_cast %231 : vector<1x8x4xf32> to vector<8x4xf32>
    %cst_246 = arith.constant dense<0.000000e+00> : vector<64x4xf32>
    %233 = tpu.matmul %182, %232, %cst_246 {dimension_numbers = #tpu.dot_dimension_numbers<[1], [0], [0], [1], [0, 0, 1, 1], [], []>} : vector<64x8xf32>, vector<8x4xf32>, vector<64x4xf32> -> vector<64x4xf32>
    %c0_247 = arith.constant 0 : index
    %c0_248 = arith.constant 0 : index
    %c0_249 = arith.constant 0 : index
    %234 = vector.load %arg29[%c0_247, %c0_248, %c0_249] : memref<1x128x64xf32, #tpu.memory_space<vmem>>, vector<1x128x64xf32>
    %235 = vector.shape_cast %234 : vector<1x128x64xf32> to vector<128x64xf32>
    %cst_250 = arith.constant dense<0.000000e+00> : vector<128x4xf32>
    %236 = tpu.matmul %235, %233, %cst_250 {dimension_numbers = #tpu.dot_dimension_numbers<[1], [0], [0], [1], [0, 0, 1, 1], [], []>} : vector<128x64xf32>, vector<64x4xf32>, vector<128x4xf32> -> vector<128x4xf32>
    %c0_251 = arith.constant 0 : index
    %c0_252 = arith.constant 0 : index
    %237 = vector.load %arg30[%c0_251, %c0_252] : memref<128x1xf32, #tpu.memory_space<vmem>>, vector<128x1xf32>
    %238 = vector.broadcast %237 : vector<128x1xf32> to vector<128x4xf32>
    %239 = arith.addf %236, %238 : vector<128x4xf32>
    %240 = arith.addf %230, %239 : vector<128x4xf32>
    %cst_253 = arith.constant 0.000000e+00 : f32
    %241 = vector.broadcast %cst_253 : f32 to vector<128x4xf32>
    %242 = arith.maximumf %240, %241 : vector<128x4xf32>
    %c0_254 = arith.constant 0 : index
    %c0_255 = arith.constant 0 : index
    %c0_256 = arith.constant 0 : index
    %243 = vector.load %arg34[%c0_254, %c0_255, %c0_256] : memref<3x4x2xf32, #tpu.memory_space<vmem>>, vector<1x4x2xf32>
    %244 = vector.shape_cast %243 : vector<1x4x2xf32> to vector<4x2xf32>
    %cst_257 = arith.constant dense<0.000000e+00> : vector<128x2xf32>
    %245 = tpu.matmul %242, %244, %cst_257 {dimension_numbers = #tpu.dot_dimension_numbers<[1], [0], [0], [1], [0, 0, 1, 1], [], []>} : vector<128x4xf32>, vector<4x2xf32>, vector<128x2xf32> -> vector<128x2xf32>
    %c0_258 = arith.constant 0 : index
    %c0_259 = arith.constant 0 : index
    %c0_260 = arith.constant 0 : index
    %246 = vector.load %arg32[%c0_258, %c0_259, %c0_260] : memref<3x256x128xf32, #tpu.memory_space<vmem>>, vector<1x256x128xf32>
    %247 = vector.shape_cast %246 : vector<1x256x128xf32> to vector<256x128xf32>
    %cst_261 = arith.constant dense<0.000000e+00> : vector<256x2xf32>
    %248 = tpu.matmul %247, %245, %cst_261 {dimension_numbers = #tpu.dot_dimension_numbers<[1], [0], [0], [1], [0, 0, 1, 1], [], []>} : vector<256x128xf32>, vector<128x2xf32>, vector<256x2xf32> -> vector<256x2xf32>
    %c1_262 = arith.constant 1 : index
    %c0_263 = arith.constant 0 : index
    %c0_264 = arith.constant 0 : index
    %249 = vector.load %arg34[%c1_262, %c0_263, %c0_264] : memref<3x4x2xf32, #tpu.memory_space<vmem>>, vector<1x4x2xf32>
    %250 = vector.shape_cast %249 : vector<1x4x2xf32> to vector<4x2xf32>
    %cst_265 = arith.constant dense<0.000000e+00> : vector<128x2xf32>
    %251 = tpu.matmul %242, %250, %cst_265 {dimension_numbers = #tpu.dot_dimension_numbers<[1], [0], [0], [1], [0, 0, 1, 1], [], []>} : vector<128x4xf32>, vector<4x2xf32>, vector<128x2xf32> -> vector<128x2xf32>
    %c1_266 = arith.constant 1 : index
    %c0_267 = arith.constant 0 : index
    %c0_268 = arith.constant 0 : index
    %252 = vector.load %arg32[%c1_266, %c0_267, %c0_268] : memref<3x256x128xf32, #tpu.memory_space<vmem>>, vector<1x256x128xf32>
    %253 = vector.shape_cast %252 : vector<1x256x128xf32> to vector<256x128xf32>
    %cst_269 = arith.constant dense<0.000000e+00> : vector<256x2xf32>
    %254 = tpu.matmul %253, %251, %cst_269 {dimension_numbers = #tpu.dot_dimension_numbers<[1], [0], [0], [1], [0, 0, 1, 1], [], []>} : vector<256x128xf32>, vector<128x2xf32>, vector<256x2xf32> -> vector<256x2xf32>
    %255 = arith.addf %248, %254 : vector<256x2xf32>
    %c2_270 = arith.constant 2 : index
    %c0_271 = arith.constant 0 : index
    %c0_272 = arith.constant 0 : index
    %256 = vector.load %arg34[%c2_270, %c0_271, %c0_272] : memref<3x4x2xf32, #tpu.memory_space<vmem>>, vector<1x4x2xf32>
    %257 = vector.shape_cast %256 : vector<1x4x2xf32> to vector<4x2xf32>
    %cst_273 = arith.constant dense<0.000000e+00> : vector<128x2xf32>
    %258 = tpu.matmul %242, %257, %cst_273 {dimension_numbers = #tpu.dot_dimension_numbers<[1], [0], [0], [1], [0, 0, 1, 1], [], []>} : vector<128x4xf32>, vector<4x2xf32>, vector<128x2xf32> -> vector<128x2xf32>
    %c2_274 = arith.constant 2 : index
    %c0_275 = arith.constant 0 : index
    %c0_276 = arith.constant 0 : index
    %259 = vector.load %arg32[%c2_274, %c0_275, %c0_276] : memref<3x256x128xf32, #tpu.memory_space<vmem>>, vector<1x256x128xf32>
    %260 = vector.shape_cast %259 : vector<1x256x128xf32> to vector<256x128xf32>
    %cst_277 = arith.constant dense<0.000000e+00> : vector<256x2xf32>
    %261 = tpu.matmul %260, %258, %cst_277 {dimension_numbers = #tpu.dot_dimension_numbers<[1], [0], [0], [1], [0, 0, 1, 1], [], []>} : vector<256x128xf32>, vector<128x2xf32>, vector<256x2xf32> -> vector<256x2xf32>
    %262 = arith.addf %255, %261 : vector<256x2xf32>
    %c0_278 = arith.constant 0 : index
    %c0_279 = arith.constant 0 : index
    %263 = vector.load %arg33[%c0_278, %c0_279] : memref<256x1xf32, #tpu.memory_space<vmem>>, vector<256x1xf32>
    %264 = vector.broadcast %263 : vector<256x1xf32> to vector<256x2xf32>
    %265 = arith.addf %262, %264 : vector<256x2xf32>
    %cst_280 = arith.constant 0.000000e+00 : f32
    %266 = vector.broadcast %cst_280 : f32 to vector<256x2xf32>
    %267 = arith.maximumf %265, %266 : vector<256x2xf32>
    %c0_281 = arith.constant 0 : index
    %c0_282 = arith.constant 0 : index
    %c0_283 = arith.constant 0 : index
    %268 = vector.load %arg37[%c0_281, %c0_282, %c0_283] : memref<3x2x2xf32, #tpu.memory_space<vmem>>, vector<1x2x2xf32>
    %269 = vector.shape_cast %268 : vector<1x2x2xf32> to vector<2x2xf32>
    %cst_284 = arith.constant dense<0.000000e+00> : vector<256x2xf32>
    %270 = tpu.matmul %267, %269, %cst_284 {dimension_numbers = #tpu.dot_dimension_numbers<[1], [0], [0], [1], [0, 0, 1, 1], [], []>} : vector<256x2xf32>, vector<2x2xf32>, vector<256x2xf32> -> vector<256x2xf32>
    %c0_285 = arith.constant 0 : index
    %c0_286 = arith.constant 0 : index
    %c0_287 = arith.constant 0 : index
    %271 = vector.load %arg35[%c0_285, %c0_286, %c0_287] : memref<3x256x256xf32, #tpu.memory_space<vmem>>, vector<1x256x256xf32>
    %272 = vector.shape_cast %271 : vector<1x256x256xf32> to vector<256x256xf32>
    %cst_288 = arith.constant dense<0.000000e+00> : vector<256x2xf32>
    %273 = tpu.matmul %272, %270, %cst_288 {dimension_numbers = #tpu.dot_dimension_numbers<[1], [0], [0], [1], [0, 0, 1, 1], [], []>} : vector<256x256xf32>, vector<256x2xf32>, vector<256x2xf32> -> vector<256x2xf32>
    %c1_289 = arith.constant 1 : index
    %c0_290 = arith.constant 0 : index
    %c0_291 = arith.constant 0 : index
    %274 = vector.load %arg37[%c1_289, %c0_290, %c0_291] : memref<3x2x2xf32, #tpu.memory_space<vmem>>, vector<1x2x2xf32>
    %275 = vector.shape_cast %274 : vector<1x2x2xf32> to vector<2x2xf32>
    %cst_292 = arith.constant dense<0.000000e+00> : vector<256x2xf32>
    %276 = tpu.matmul %267, %275, %cst_292 {dimension_numbers = #tpu.dot_dimension_numbers<[1], [0], [0], [1], [0, 0, 1, 1], [], []>} : vector<256x2xf32>, vector<2x2xf32>, vector<256x2xf32> -> vector<256x2xf32>
    %c1_293 = arith.constant 1 : index
    %c0_294 = arith.constant 0 : index
    %c0_295 = arith.constant 0 : index
    %277 = vector.load %arg35[%c1_293, %c0_294, %c0_295] : memref<3x256x256xf32, #tpu.memory_space<vmem>>, vector<1x256x256xf32>
    %278 = vector.shape_cast %277 : vector<1x256x256xf32> to vector<256x256xf32>
    %cst_296 = arith.constant dense<0.000000e+00> : vector<256x2xf32>
    %279 = tpu.matmul %278, %276, %cst_296 {dimension_numbers = #tpu.dot_dimension_numbers<[1], [0], [0], [1], [0, 0, 1, 1], [], []>} : vector<256x256xf32>, vector<256x2xf32>, vector<256x2xf32> -> vector<256x2xf32>
    %280 = arith.addf %273, %279 : vector<256x2xf32>
    %c2_297 = arith.constant 2 : index
    %c0_298 = arith.constant 0 : index
    %c0_299 = arith.constant 0 : index
    %281 = vector.load %arg37[%c2_297, %c0_298, %c0_299] : memref<3x2x2xf32, #tpu.memory_space<vmem>>, vector<1x2x2xf32>
    %282 = vector.shape_cast %281 : vector<1x2x2xf32> to vector<2x2xf32>
    %cst_300 = arith.constant dense<0.000000e+00> : vector<256x2xf32>
    %283 = tpu.matmul %267, %282, %cst_300 {dimension_numbers = #tpu.dot_dimension_numbers<[1], [0], [0], [1], [0, 0, 1, 1], [], []>} : vector<256x2xf32>, vector<2x2xf32>, vector<256x2xf32> -> vector<256x2xf32>
    %c2_301 = arith.constant 2 : index
    %c0_302 = arith.constant 0 : index
    %c0_303 = arith.constant 0 : index
    %284 = vector.load %arg35[%c2_301, %c0_302, %c0_303] : memref<3x256x256xf32, #tpu.memory_space<vmem>>, vector<1x256x256xf32>
    %285 = vector.shape_cast %284 : vector<1x256x256xf32> to vector<256x256xf32>
    %cst_304 = arith.constant dense<0.000000e+00> : vector<256x2xf32>
    %286 = tpu.matmul %285, %283, %cst_304 {dimension_numbers = #tpu.dot_dimension_numbers<[1], [0], [0], [1], [0, 0, 1, 1], [], []>} : vector<256x256xf32>, vector<256x2xf32>, vector<256x2xf32> -> vector<256x2xf32>
    %287 = arith.addf %280, %286 : vector<256x2xf32>
    %c0_305 = arith.constant 0 : index
    %c0_306 = arith.constant 0 : index
    %288 = vector.load %arg36[%c0_305, %c0_306] : memref<256x1xf32, #tpu.memory_space<vmem>>, vector<256x1xf32>
    %289 = vector.broadcast %288 : vector<256x1xf32> to vector<256x2xf32>
    %290 = arith.addf %287, %289 : vector<256x2xf32>
    %c0_307 = arith.constant 0 : index
    %c0_308 = arith.constant 0 : index
    %c0_309 = arith.constant 0 : index
    %291 = vector.load %arg40[%c0_307, %c0_308, %c0_309] : memref<1x4x2xf32, #tpu.memory_space<vmem>>, vector<1x4x2xf32>
    %292 = vector.shape_cast %291 : vector<1x4x2xf32> to vector<4x2xf32>
    %cst_310 = arith.constant dense<0.000000e+00> : vector<128x2xf32>
    %293 = tpu.matmul %242, %292, %cst_310 {dimension_numbers = #tpu.dot_dimension_numbers<[1], [0], [0], [1], [0, 0, 1, 1], [], []>} : vector<128x4xf32>, vector<4x2xf32>, vector<128x2xf32> -> vector<128x2xf32>
    %c0_311 = arith.constant 0 : index
    %c0_312 = arith.constant 0 : index
    %c0_313 = arith.constant 0 : index
    %294 = vector.load %arg38[%c0_311, %c0_312, %c0_313] : memref<1x256x128xf32, #tpu.memory_space<vmem>>, vector<1x256x128xf32>
    %295 = vector.shape_cast %294 : vector<1x256x128xf32> to vector<256x128xf32>
    %cst_314 = arith.constant dense<0.000000e+00> : vector<256x2xf32>
    %296 = tpu.matmul %295, %293, %cst_314 {dimension_numbers = #tpu.dot_dimension_numbers<[1], [0], [0], [1], [0, 0, 1, 1], [], []>} : vector<256x128xf32>, vector<128x2xf32>, vector<256x2xf32> -> vector<256x2xf32>
    %c0_315 = arith.constant 0 : index
    %c0_316 = arith.constant 0 : index
    %297 = vector.load %arg39[%c0_315, %c0_316] : memref<256x1xf32, #tpu.memory_space<vmem>>, vector<256x1xf32>
    %298 = vector.broadcast %297 : vector<256x1xf32> to vector<256x2xf32>
    %299 = arith.addf %296, %298 : vector<256x2xf32>
    %300 = arith.addf %290, %299 : vector<256x2xf32>
    %cst_317 = arith.constant 0.000000e+00 : f32
    %301 = vector.broadcast %cst_317 : f32 to vector<256x2xf32>
    %302 = arith.maximumf %300, %301 : vector<256x2xf32>
    %cst_318 = arith.constant dense<0.000000e+00> : vector<256xf32>
    %303 = vector.multi_reduction <add>, %302, %cst_318 [1] : vector<256x2xf32> to vector<256xf32>
    %304 = vector.shape_cast %303 : vector<256xf32> to vector<256x1xf32>
    %cst_319 = arith.constant 2.000000e+00 : f32
    %305 = vector.broadcast %cst_319 : f32 to vector<256x1xf32>
    %306 = arith.divf %304, %305 : vector<256x1xf32>
    %c0_320 = arith.constant 0 : index
    %c0_321 = arith.constant 0 : index
    %307 = vector.load %arg41[%c0_320, %c0_321] : memref<256x256xf32, #tpu.memory_space<vmem>>, vector<256x256xf32>
    %cst_322 = arith.constant dense<0.000000e+00> : vector<256x1xf32>
    %308 = tpu.matmul %307, %306, %cst_322 {dimension_numbers = #tpu.dot_dimension_numbers<[1], [0], [0], [1], [0, 0, 1, 1], [], []>} : vector<256x256xf32>, vector<256x1xf32>, vector<256x1xf32> -> vector<256x1xf32>
    %c0_323 = arith.constant 0 : index
    %c0_324 = arith.constant 0 : index
    %309 = vector.load %arg42[%c0_323, %c0_324] : memref<256x1xf32, #tpu.memory_space<vmem>>, vector<256x1xf32>
    %310 = arith.addf %308, %309 : vector<256x1xf32>
    %c0_325 = arith.constant 0 : index
    %c0_326 = arith.constant 0 : index
    %c0_327 = arith.constant 0 : index
    %311 = vector.load %arg43[%c0_325, %c0_326, %c0_327] : memref<1x256x1xf32, #tpu.memory_space<vmem>>, vector<1x256x1xf32>
    %312 = vector.shape_cast %311 : vector<1x256x1xf32> to vector<256x1xf32>
    %313 = vector.shape_cast %310 : vector<256x1xf32> to vector<1x256x1xf32>
    tpu.vector_store %arg43[%c0_325, %c0_326, %c0_327], %313 {strides = array<i32>} : memref<1x256x1xf32, #tpu.memory_space<vmem>>, vector<1x256x1xf32>,
    return
  }
  func.func @transform_0(%arg0: i32) -> (i32, i32, i32) {
    %c0_i32 = arith.constant 0 : i32
    %c0_i32_0 = arith.constant 0 : i32
    %c0_i32_1 = arith.constant 0 : i32
    return %arg0, %c0_i32, %c0_i32_0 : i32, i32, i32
  }
  func.func @transform_1(%arg0: i32) -> (i32, i32, i32) {
    %c0_i32 = arith.constant 0 : i32
    %c0_i32_0 = arith.constant 0 : i32
    %c0_i32_1 = arith.constant 0 : i32
    %c0_i32_2 = arith.constant 0 : i32
    return %c0_i32, %c0_i32_0, %c0_i32_1 : i32, i32, i32
  }
  func.func @transform_2(%arg0: i32) -> (i32, i32) {
    %c0_i32 = arith.constant 0 : i32
    %c0_i32_0 = arith.constant 0 : i32
    %c0_i32_1 = arith.constant 0 : i32
    return %c0_i32, %c0_i32_0 : i32, i32
  }
  func.func @transform_3(%arg0: i32) -> (i32, i32, i32) {
    %c0_i32 = arith.constant 0 : i32
    %c0_i32_0 = arith.constant 0 : i32
    %c0_i32_1 = arith.constant 0 : i32
    %c0_i32_2 = arith.constant 0 : i32
    return %c0_i32, %c0_i32_0, %c0_i32_1 : i32, i32, i32
  }
  func.func @transform_4(%arg0: i32) -> (i32, i32, i32) {
    %c0_i32 = arith.constant 0 : i32
    %c0_i32_0 = arith.constant 0 : i32
    %c0_i32_1 = arith.constant 0 : i32
    %c0_i32_2 = arith.constant 0 : i32
    return %c0_i32, %c0_i32_0, %c0_i32_1 : i32, i32, i32
  }
  func.func @transform_5(%arg0: i32) -> (i32, i32, i32) {
    %c0_i32 = arith.constant 0 : i32
    %c0_i32_0 = arith.constant 0 : i32
    %c0_i32_1 = arith.constant 0 : i32
    %c0_i32_2 = arith.constant 0 : i32
    return %c0_i32, %c0_i32_0, %c0_i32_1 : i32, i32, i32
  }
  func.func @transform_6(%arg0: i32) -> (i32, i32) {
    %c0_i32 = arith.constant 0 : i32
    %c0_i32_0 = arith.constant 0 : i32
    %c0_i32_1 = arith.constant 0 : i32
    return %c0_i32, %c0_i32_0 : i32, i32
  }
  func.func @transform_7(%arg0: i32) -> (i32, i32, i32) {
    %c0_i32 = arith.constant 0 : i32
    %c0_i32_0 = arith.constant 0 : i32
    %c0_i32_1 = arith.constant 0 : i32
    %c0_i32_2 = arith.constant 0 : i32
    return %c0_i32, %c0_i32_0, %c0_i32_1 : i32, i32, i32
  }
  func.func @transform_8(%arg0: i32) -> (i32, i32, i32) {
    %c0_i32 = arith.constant 0 : i32
    %c0_i32_0 = arith.constant 0 : i32
    %c0_i32_1 = arith.constant 0 : i32
    %c0_i32_2 = arith.constant 0 : i32
    return %c0_i32, %c0_i32_0, %c0_i32_1 : i32, i32, i32
  }
  func.func @transform_9(%arg0: i32) -> (i32, i32) {
    %c0_i32 = arith.constant 0 : i32
    %c0_i32_0 = arith.constant 0 : i32
    %c0_i32_1 = arith.constant 0 : i32
    return %c0_i32, %c0_i32_0 : i32, i32
  }
  func.func @transform_10(%arg0: i32) -> (i32, i32, i32) {
    %c0_i32 = arith.constant 0 : i32
    %c0_i32_0 = arith.constant 0 : i32
    %c0_i32_1 = arith.constant 0 : i32
    %c0_i32_2 = arith.constant 0 : i32
    return %c0_i32, %c0_i32_0, %c0_i32_1 : i32, i32, i32
  }
  func.func @transform_11(%arg0: i32) -> (i32, i32, i32) {
    %c0_i32 = arith.constant 0 : i32
    %c0_i32_0 = arith.constant 0 : i32
    %c0_i32_1 = arith.constant 0 : i32
    %c0_i32_2 = arith.constant 0 : i32
    return %c0_i32, %c0_i32_0, %c0_i32_1 : i32, i32, i32
  }
  func.func @transform_12(%arg0: i32) -> (i32, i32) {
    %c0_i32 = arith.constant 0 : i32
    %c0_i32_0 = arith.constant 0 : i32
    %c0_i32_1 = arith.constant 0 : i32
    return %c0_i32, %c0_i32_0 : i32, i32
  }
  func.func @transform_13(%arg0: i32) -> (i32, i32, i32) {
    %c0_i32 = arith.constant 0 : i32
    %c0_i32_0 = arith.constant 0 : i32
    %c0_i32_1 = arith.constant 0 : i32
    %c0_i32_2 = arith.constant 0 : i32
    return %c0_i32, %c0_i32_0, %c0_i32_1 : i32, i32, i32
  }
  func.func @transform_14(%arg0: i32) -> (i32, i32) {
    %c0_i32 = arith.constant 0 : i32
    %c0_i32_0 = arith.constant 0 : i32
    %c0_i32_1 = arith.constant 0 : i32
    return %c0_i32, %c0_i32_0 : i32, i32
  }
  func.func @transform_15(%arg0: i32) -> (i32, i32, i32) {
    %c0_i32 = arith.constant 0 : i32
    %c0_i32_0 = arith.constant 0 : i32
    %c0_i32_1 = arith.constant 0 : i32
    %c0_i32_2 = arith.constant 0 : i32
    return %c0_i32, %c0_i32_0, %c0_i32_1 : i32, i32, i32
  }
  func.func @transform_16(%arg0: i32) -> (i32, i32, i32) {
    %c0_i32 = arith.constant 0 : i32
    %c0_i32_0 = arith.constant 0 : i32
    %c0_i32_1 = arith.constant 0 : i32
    %c0_i32_2 = arith.constant 0 : i32
    return %c0_i32, %c0_i32_0, %c0_i32_1 : i32, i32, i32
  }
  func.func @transform_17(%arg0: i32) -> (i32, i32) {
    %c0_i32 = arith.constant 0 : i32
    %c0_i32_0 = arith.constant 0 : i32
    %c0_i32_1 = arith.constant 0 : i32
    return %c0_i32, %c0_i32_0 : i32, i32
  }
  func.func @transform_18(%arg0: i32) -> (i32, i32, i32) {
    %c0_i32 = arith.constant 0 : i32
    %c0_i32_0 = arith.constant 0 : i32
    %c0_i32_1 = arith.constant 0 : i32
    %c0_i32_2 = arith.constant 0 : i32
    return %c0_i32, %c0_i32_0, %c0_i32_1 : i32, i32, i32
  }
  func.func @transform_19(%arg0: i32) -> (i32, i32, i32) {
    %c0_i32 = arith.constant 0 : i32
    %c0_i32_0 = arith.constant 0 : i32
    %c0_i32_1 = arith.constant 0 : i32
    %c0_i32_2 = arith.constant 0 : i32
    return %c0_i32, %c0_i32_0, %c0_i32_1 : i32, i32, i32
  }
  func.func @transform_20(%arg0: i32) -> (i32, i32) {
    %c0_i32 = arith.constant 0 : i32
    %c0_i32_0 = arith.constant 0 : i32
    %c0_i32_1 = arith.constant 0 : i32
    return %c0_i32, %c0_i32_0 : i32, i32
  }
  func.func @transform_21(%arg0: i32) -> (i32, i32, i32) {
    %c0_i32 = arith.constant 0 : i32
    %c0_i32_0 = arith.constant 0 : i32
    %c0_i32_1 = arith.constant 0 : i32
    %c0_i32_2 = arith.constant 0 : i32
    return %c0_i32, %c0_i32_0, %c0_i32_1 : i32, i32, i32
  }
  func.func @transform_22(%arg0: i32) -> (i32, i32, i32) {
    %c0_i32 = arith.constant 0 : i32
    %c0_i32_0 = arith.constant 0 : i32
    %c0_i32_1 = arith.constant 0 : i32
    %c0_i32_2 = arith.constant 0 : i32
    return %c0_i32, %c0_i32_0, %c0_i32_1 : i32, i32, i32
  }
  func.func @transform_23(%arg0: i32) -> (i32, i32) {
    %c0_i32 = arith.constant 0 : i32
    %c0_i32_0 = arith.constant 0 : i32
    %c0_i32_1 = arith.constant 0 : i32
    return %c0_i32, %c0_i32_0 : i32, i32
  }
  func.func @transform_24(%arg0: i32) -> (i32, i32, i32) {
    %c0_i32 = arith.constant 0 : i32
    %c0_i32_0 = arith.constant 0 : i32
    %c0_i32_1 = arith.constant 0 : i32
    %c0_i32_2 = arith.constant 0 : i32
    return %c0_i32, %c0_i32_0, %c0_i32_1 : i32, i32, i32
  }
  func.func @transform_25(%arg0: i32) -> (i32, i32, i32) {
    %c0_i32 = arith.constant 0 : i32
    %c0_i32_0 = arith.constant 0 : i32
    %c0_i32_1 = arith.constant 0 : i32
    %c0_i32_2 = arith.constant 0 : i32
    return %c0_i32, %c0_i32_0, %c0_i32_1 : i32, i32, i32
  }
  func.func @transform_26(%arg0: i32) -> (i32, i32) {
    %c0_i32 = arith.constant 0 : i32
    %c0_i32_0 = arith.constant 0 : i32
    %c0_i32_1 = arith.constant 0 : i32
    return %c0_i32, %c0_i32_0 : i32, i32
  }
  func.func @transform_27(%arg0: i32) -> (i32, i32, i32) {
    %c0_i32 = arith.constant 0 : i32
    %c0_i32_0 = arith.constant 0 : i32
    %c0_i32_1 = arith.constant 0 : i32
    %c0_i32_2 = arith.constant 0 : i32
    return %c0_i32, %c0_i32_0, %c0_i32_1 : i32, i32, i32
  }
  func.func @transform_28(%arg0: i32) -> (i32, i32, i32) {
    %c0_i32 = arith.constant 0 : i32
    %c0_i32_0 = arith.constant 0 : i32
    %c0_i32_1 = arith.constant 0 : i32
    %c0_i32_2 = arith.constant 0 : i32
    return %c0_i32, %c0_i32_0, %c0_i32_1 : i32, i32, i32
  }
  func.func @transform_29(%arg0: i32) -> (i32, i32) {
    %c0_i32 = arith.constant 0 : i32
    %c0_i32_0 = arith.constant 0 : i32
    %c0_i32_1 = arith.constant 0 : i32
    return %c0_i32, %c0_i32_0 : i32, i32
  }
  func.func @transform_30(%arg0: i32) -> (i32, i32, i32) {
    %c0_i32 = arith.constant 0 : i32
    %c0_i32_0 = arith.constant 0 : i32
    %c0_i32_1 = arith.constant 0 : i32
    %c0_i32_2 = arith.constant 0 : i32
    return %c0_i32, %c0_i32_0, %c0_i32_1 : i32, i32, i32
  }
  func.func @transform_31(%arg0: i32) -> (i32, i32, i32) {
    %c0_i32 = arith.constant 0 : i32
    %c0_i32_0 = arith.constant 0 : i32
    %c0_i32_1 = arith.constant 0 : i32
    %c0_i32_2 = arith.constant 0 : i32
    return %c0_i32, %c0_i32_0, %c0_i32_1 : i32, i32, i32
  }
  func.func @transform_32(%arg0: i32) -> (i32, i32) {
    %c0_i32 = arith.constant 0 : i32
    %c0_i32_0 = arith.constant 0 : i32
    %c0_i32_1 = arith.constant 0 : i32
    return %c0_i32, %c0_i32_0 : i32, i32
  }
  func.func @transform_33(%arg0: i32) -> (i32, i32, i32) {
    %c0_i32 = arith.constant 0 : i32
    %c0_i32_0 = arith.constant 0 : i32
    %c0_i32_1 = arith.constant 0 : i32
    %c0_i32_2 = arith.constant 0 : i32
    return %c0_i32, %c0_i32_0, %c0_i32_1 : i32, i32, i32
  }
  func.func @transform_34(%arg0: i32) -> (i32, i32, i32) {
    %c0_i32 = arith.constant 0 : i32
    %c0_i32_0 = arith.constant 0 : i32
    %c0_i32_1 = arith.constant 0 : i32
    %c0_i32_2 = arith.constant 0 : i32
    return %c0_i32, %c0_i32_0, %c0_i32_1 : i32, i32, i32
  }
  func.func @transform_35(%arg0: i32) -> (i32, i32) {
    %c0_i32 = arith.constant 0 : i32
    %c0_i32_0 = arith.constant 0 : i32
    %c0_i32_1 = arith.constant 0 : i32
    return %c0_i32, %c0_i32_0 : i32, i32
  }
  func.func @transform_36(%arg0: i32) -> (i32, i32, i32) {
    %c0_i32 = arith.constant 0 : i32
    %c0_i32_0 = arith.constant 0 : i32
    %c0_i32_1 = arith.constant 0 : i32
    %c0_i32_2 = arith.constant 0 : i32
    return %c0_i32, %c0_i32_0, %c0_i32_1 : i32, i32, i32
  }
  func.func @transform_37(%arg0: i32) -> (i32, i32, i32) {
    %c0_i32 = arith.constant 0 : i32
    %c0_i32_0 = arith.constant 0 : i32
    %c0_i32_1 = arith.constant 0 : i32
    %c0_i32_2 = arith.constant 0 : i32
    return %c0_i32, %c0_i32_0, %c0_i32_1 : i32, i32, i32
  }
  func.func @transform_38(%arg0: i32) -> (i32, i32) {
    %c0_i32 = arith.constant 0 : i32
    %c0_i32_0 = arith.constant 0 : i32
    %c0_i32_1 = arith.constant 0 : i32
    return %c0_i32, %c0_i32_0 : i32, i32
  }
  func.func @transform_39(%arg0: i32) -> (i32, i32, i32) {
    %c0_i32 = arith.constant 0 : i32
    %c0_i32_0 = arith.constant 0 : i32
    %c0_i32_1 = arith.constant 0 : i32
    %c0_i32_2 = arith.constant 0 : i32
    return %c0_i32, %c0_i32_0, %c0_i32_1 : i32, i32, i32
  }
  func.func @transform_40(%arg0: i32) -> (i32, i32) {
    %c0_i32 = arith.constant 0 : i32
    %c0_i32_0 = arith.constant 0 : i32
    %c0_i32_1 = arith.constant 0 : i32
    return %c0_i32, %c0_i32_0 : i32, i32
  }
  func.func @transform_41(%arg0: i32) -> (i32, i32) {
    %c0_i32 = arith.constant 0 : i32
    %c0_i32_0 = arith.constant 0 : i32
    %c0_i32_1 = arith.constant 0 : i32
    return %c0_i32, %c0_i32_0 : i32, i32
  }
  func.func @transform_42(%arg0: i32) -> (i32, i32, i32) {
    %c0_i32 = arith.constant 0 : i32
    %c0_i32_0 = arith.constant 0 : i32
    %c0_i32_1 = arith.constant 0 : i32
    return %arg0, %c0_i32, %c0_i32_0 : i32, i32, i32
  }
}

</mosaic_0001>

<llo_original>
// kernel: convresnet_forward.1
$region0: #{convresnet_forward.1}
  #allocation0 [shape = 'u32[]', space=smem, size = 0x4, offset = 0x4, fixed_abs, tag = 'smem constant byte address 0x4 - core index']
  #allocation1 [shape = 'u32[72,128]{1,0:T(1,128)}', space=vmem, size = 0x9000, scoped, tag = 'internal scratch']
  %s0 = inlined_call_operand.smem [shape: u32[43], index: -1, kind: input, shape index: {}]
  %s1 = sld [smem:[%s0]]
  %s2 = scalar_lea.smem %s0, 1
  %s3 = sld [smem:[%s2]]
  %s4 = scalar_lea.smem %s0, 2
  %s5 = sld [smem:[%s4]]
  %s6 = scalar_lea.smem %s0, 3
  %s7 = sld [smem:[%s6]]
  %s8 = scalar_lea.smem %s0, 4
  %s9 = sld [smem:[%s8]]
  %s10 = scalar_lea.smem %s0, 5
  %s11 = sld [smem:[%s10]]
  %s12 = scalar_lea.smem %s0, 6
  %s13 = sld [smem:[%s12]]
  %s14 = scalar_lea.smem %s0, 7
  %s15 = sld [smem:[%s14]]
  %s16 = scalar_lea.smem %s0, 8
  %s17 = sld [smem:[%s16]]
  %s18 = scalar_lea.smem %s0, 9
  %s19 = sld [smem:[%s18]]
  %s20 = scalar_lea.smem %s0, 10
  %s21 = sld [smem:[%s20]]
  %s22 = scalar_lea.smem %s0, 11
  %s23 = sld [smem:[%s22]]
  %s24 = scalar_lea.smem %s0, 12
  %s25 = sld [smem:[%s24]]
  %s26 = scalar_lea.smem %s0, 13
  %s27 = sld [smem:[%s26]]
  %s28 = scalar_lea.smem %s0, 14
  %s29 = sld [smem:[%s28]]
  %s30 = scalar_lea.smem %s0, 15
  %s31 = sld [smem:[%s30]]
  %s32 = scalar_lea.smem %s0, 16
  %s33 = sld [smem:[%s32]]
  %s34 = scalar_lea.smem %s0, 17
  %s35 = sld [smem:[%s34]]
  %s36 = scalar_lea.smem %s0, 18
  %s37 = sld [smem:[%s36]]
  %s38 = scalar_lea.smem %s0, 19
  %s39 = sld [smem:[%s38]]
  %s40 = scalar_lea.smem %s0, 20
  %s41 = sld [smem:[%s40]]
  %s42 = scalar_lea.smem %s0, 21
  %s43 = sld [smem:[%s42]]
  %s44 = scalar_lea.smem %s0, 22
  %s45 = sld [smem:[%s44]]
  %s46 = scalar_lea.smem %s0, 23
  %s47 = sld [smem:[%s46]]
  %s48 = scalar_lea.smem %s0, 24
  %s49 = sld [smem:[%s48]]
  %s50 = scalar_lea.smem %s0, 25
  %s51 = sld [smem:[%s50]]
  %s52 = scalar_lea.smem %s0, 26
  %s53 = sld [smem:[%s52]]
  %s54 = scalar_lea.smem %s0, 27
  %s55 = sld [smem:[%s54]]
  %s56 = scalar_lea.smem %s0, 28
  %s57 = sld [smem:[%s56]]
  %s58 = scalar_lea.smem %s0, 29
  %s59 = sld [smem:[%s58]]
  %s60 = scalar_lea.smem %s0, 30
  %s61 = sld [smem:[%s60]]
  %s62 = scalar_lea.smem %s0, 31
  %s63 = sld [smem:[%s62]]
  %s64 = scalar_lea.smem %s0, 32
  %s65 = sld [smem:[%s64]]
  %s66 = scalar_lea.smem %s0, 33
  %s67 = sld [smem:[%s66]]
  %s68 = scalar_lea.smem %s0, 34
  %s69 = sld [smem:[%s68]]
  %s70 = scalar_lea.smem %s0, 35
  %s71 = sld [smem:[%s70]]
  %s72 = scalar_lea.smem %s0, 36
  %s73 = sld [smem:[%s72]]
  %s74 = scalar_lea.smem %s0, 37
  %s75 = sld [smem:[%s74]]
  %s76 = scalar_lea.smem %s0, 38
  %s77 = sld [smem:[%s76]]
  %s78 = scalar_lea.smem %s0, 39
  %s79 = sld [smem:[%s78]]
  %s80 = scalar_lea.smem %s0, 40
  %s81 = sld [smem:[%s80]]
  %s82 = scalar_lea.smem %s0, 41
  %s83 = sld [smem:[%s82]]
  %s84 = scalar_lea.smem %s0, 42
  %s85 = sld [smem:[%s84]]
  %s86 = sld [smem:[#allocation0]]
  $region201: #{convresnet_forward.1} parent=0
    _
  %s88 = ssub.s32 1, %s86
  %s89 = scalar_select 0, %s88, %s86
  loop: start=0, step=1, limit=4
  $region2: #{convresnet_forward.1} parent=0 // loop_pre_header
    _
  $region3: #{convresnet_forward.1} parent=0 // loop_header
    %s91 = sphi 0, %s95
    %p92 = scmp.ge.s32.totalorder %s91, 4
    %s101 = sphi 0, %s103
    %s104 = sphi 0, %s101
    %s105 = sphi 0, %s104
    %s121 = sphi 0, %s105
    %s125 = sphi 0, %s125
    %s127 = sphi 0, %s125
    %s128 = sphi 0, %s127
    %s142 = sphi 0, %s128
    %s146 = sphi 0, %s146
    %s148 = sphi 0, %s146
    %s149 = sphi 0, %s148
    %s163 = sphi 0, %s149
    %s167 = sphi 0, %s167
    %s169 = sphi 0, %s167
    %s170 = sphi 0, %s169
    %s184 = sphi 0, %s170
    %s188 = sphi 0, %s188
    %s190 = sphi 0, %s188
    %s191 = sphi 0, %s190
    %s205 = sphi 0, %s191
    %s209 = sphi 0, %s209
    %s211 = sphi 0, %s209
    %s212 = sphi 0, %s211
    %s226 = sphi 0, %s212
    %s230 = sphi 0, %s230
    %s232 = sphi 0, %s230
    %s233 = sphi 0, %s232
    %s247 = sphi 0, %s233
    %s251 = sphi 0, %s251
    %s253 = sphi 0, %s251
    %s254 = sphi 0, %s253
    %s268 = sphi 0, %s254
    %s272 = sphi 0, %s272
    %s274 = sphi 0, %s272
    %s275 = sphi 0, %s274
    %s289 = sphi 0, %s275
    %s293 = sphi 0, %s293
    %s295 = sphi 0, %s293
    %s296 = sphi 0, %s295
    %s310 = sphi 0, %s296
    %s314 = sphi 0, %s314
    %s316 = sphi 0, %s314
    %s317 = sphi 0, %s316
    %s331 = sphi 0, %s317
    %s335 = sphi 0, %s335
    %s337 = sphi 0, %s335
    %s338 = sphi 0, %s337
    %s352 = sphi 0, %s338
    %s356 = sphi 0, %s356
    %s358 = sphi 0, %s356
    %s359 = sphi 0, %s358
    %s373 = sphi 0, %s359
    %s377 = sphi 0, %s377
    %s379 = sphi 0, %s377
    %s380 = sphi 0, %s379
    %s394 = sphi 0, %s380
    %s398 = sphi 0, %s398
    %s400 = sphi 0, %s398
    %s401 = sphi 0, %s400
    %s415 = sphi 0, %s401
    %s419 = sphi 0, %s419
    %s421 = sphi 0, %s419
    %s422 = sphi 0, %s421
    %s436 = sphi 0, %s422
    %s440 = sphi 0, %s440
    %s442 = sphi 0, %s440
    %s443 = sphi 0, %s442
    %s457 = sphi 0, %s443
    %s461 = sphi 0, %s461
    %s463 = sphi 0, %s461
    %s464 = sphi 0, %s463
    %s478 = sphi 0, %s464
    %s482 = sphi 0, %s482
    %s484 = sphi 0, %s482
    %s485 = sphi 0, %s484
    %s499 = sphi 0, %s485
    %s503 = sphi 0, %s503
    %s505 = sphi 0, %s503
    %s506 = sphi 0, %s505
    %s520 = sphi 0, %s506
    %s524 = sphi 0, %s524
    %s526 = sphi 0, %s524
    %s527 = sphi 0, %s526
    %s541 = sphi 0, %s527
    %s545 = sphi 0, %s545
    %s547 = sphi 0, %s545
    %s548 = sphi 0, %s547
    %s562 = sphi 0, %s548
    %s566 = sphi 0, %s566
    %s568 = sphi 0, %s566
    %s569 = sphi 0, %s568
    %s583 = sphi 0, %s569
    %s587 = sphi 0, %s587
    %s589 = sphi 0, %s587
    %s590 = sphi 0, %s589
    %s604 = sphi 0, %s590
    %s608 = sphi 0, %s608
    %s610 = sphi 0, %s608
    %s611 = sphi 0, %s610
    %s625 = sphi 0, %s611
    %s629 = sphi 0, %s629
    %s631 = sphi 0, %s629
    %s632 = sphi 0, %s631
    %s646 = sphi 0, %s632
    %s650 = sphi 0, %s650
    %s652 = sphi 0, %s650
    %s653 = sphi 0, %s652
    %s667 = sphi 0, %s653
    %s671 = sphi 0, %s671
    %s673 = sphi 0, %s671
    %s674 = sphi 0, %s673
    %s688 = sphi 0, %s674
    %s692 = sphi 0, %s692
    %s694 = sphi 0, %s692
    %s695 = sphi 0, %s694
    %s709 = sphi 0, %s695
    %s713 = sphi 0, %s713
    %s715 = sphi 0, %s713
    %s716 = sphi 0, %s715
    %s730 = sphi 0, %s716
    %s734 = sphi 0, %s734
    %s736 = sphi 0, %s734
    %s737 = sphi 0, %s736
    %s751 = sphi 0, %s737
    %s755 = sphi 0, %s755
    %s757 = sphi 0, %s755
    %s758 = sphi 0, %s757
    %s772 = sphi 0, %s758
    %s776 = sphi 0, %s776
    %s778 = sphi 0, %s776
    %s779 = sphi 0, %s778
    %s793 = sphi 0, %s779
    %s797 = sphi 0, %s797
    %s799 = sphi 0, %s797
    %s800 = sphi 0, %s799
    %s814 = sphi 0, %s800
    %s818 = sphi 0, %s818
    %s820 = sphi 0, %s818
    %s821 = sphi 0, %s820
    %s835 = sphi 0, %s821
    %s839 = sphi 0, %s839
    %s841 = sphi 0, %s839
    %s842 = sphi 0, %s841
    %s856 = sphi 0, %s842
    %s860 = sphi 0, %s860
    %s862 = sphi 0, %s860
    %s863 = sphi 0, %s862
    %s877 = sphi 0, %s863
    %s881 = sphi 0, %s881
    %s883 = sphi 0, %s881
    %s884 = sphi 0, %s883
    %s898 = sphi 0, %s884
    %s902 = sphi 0, %s902
    %s904 = sphi 0, %s902
    %s905 = sphi 0, %s904
    %s919 = sphi 0, %s905
    %s923 = sphi 0, %s923
    %s925 = sphi 0, %s923
    %s926 = sphi 0, %s925
    %s940 = sphi 0, %s926
    %s944 = sphi 0, %s944
    %s946 = sphi 0, %s944
    %s947 = sphi 0, %s946
    %s961 = sphi 0, %s947
    %s965 = sphi 0, %s965
    %s967 = sphi 0, %s965
    %s968 = sphi 0, %s967
    %s982 = sphi 0, %s968
    %s988 = sphi 0, %s990
    %s991 = sphi 0, %s988
    %s992 = sphi 0, %s991
    %s1008 = sphi 0, %s992
  $region4: #{convresnet_forward.1} parent=0 // loop_header_branch
    %94 = sbr.rel (%p92) target = $region8
  $region5: #{convresnet_forward.1} parent=0 // loop_body
    %s96 = ssub.s32 %s91, 1
    %s97 = ssub.s32 %s91, 2
    %s98 = sadd.s32 %s91, 1
    %s99 = ssub.s32 %s91, %s98
    %p100 = scmp.eq.s32.totalorder %s99, 0
    %s102 = sadd.s32 %s101, 1
    %s103 = scalar_select %p100, %s101, %s102
    %p106 = pneg %p100
    %p107 = scmp.eq.s32.totalorder %s91, 1
    %p108 = por %p106, %p107
    %p109 = scmp.ne.s32.totalorder %s101, %s104
    %p110 = scmp.eq.s32.totalorder %s91, 0
    %p111 = por %p109, %p110
    %p112 = scmp.ne.s32.totalorder %s101, %s104
    %p113 = scmp.eq.s32.totalorder %s96, 1
    %p114 = por %p112, %p113
    %p115 = scmp.ne.s32.totalorder %s104, %s105
    %p116 = scmp.eq.s32.totalorder %s96, 0
    %p117 = por %p115, %p116
    %p118 = scmp.ne.s32.totalorder %s104, %s105
    %p119 = scmp.eq.s32.totalorder %s97, 1
    %p120 = por %p118, %p119
    %p122 = scmp.ne.s32.totalorder %s105, %s121
    %p123 = scmp.eq.s32.totalorder %s97, 0
    %p124 = por %p122, %p123
    %s126 = sadd.s32 %s125, 1
    %p129 = scmp.eq.s32.totalorder %s91, 1
    %p130 = scmp.ne.s32.totalorder %s125, %s127
    %p131 = scmp.eq.s32.totalorder %s91, 0
    %p132 = por %p130, %p131
    %p133 = scmp.ne.s32.totalorder %s125, %s127
    %p134 = scmp.eq.s32.totalorder %s96, 1
    %p135 = por %p133, %p134
    %p136 = scmp.ne.s32.totalorder %s127, %s128
    %p137 = scmp.eq.s32.totalorder %s96, 0
    %p138 = por %p136, %p137
    %p139 = scmp.ne.s32.totalorder %s127, %s128
    %p140 = scmp.eq.s32.totalorder %s97, 1
    %p141 = por %p139, %p140
    %p143 = scmp.ne.s32.totalorder %s128, %s142
    %p144 = scmp.eq.s32.totalorder %s97, 0
    %p145 = por %p143, %p144
    %s147 = sadd.s32 %s146, 1
    %p150 = scmp.eq.s32.totalorder %s91, 1
    %p151 = scmp.ne.s32.totalorder %s146, %s148
    %p152 = scmp.eq.s32.totalorder %s91, 0
    %p153 = por %p151, %p152
    %p154 = scmp.ne.s32.totalorder %s146, %s148
    %p155 = scmp.eq.s32.totalorder %s96, 1
    %p156 = por %p154, %p155
    %p157 = scmp.ne.s32.totalorder %s148, %s149
    %p158 = scmp.eq.s32.totalorder %s96, 0
    %p159 = por %p157, %p158
    %p160 = scmp.ne.s32.totalorder %s148, %s149
    %p161 = scmp.eq.s32.totalorder %s97, 1
    %p162 = por %p160, %p161
    %p164 = scmp.ne.s32.totalorder %s149, %s163
    %p165 = scmp.eq.s32.totalorder %s97, 0
    %p166 = por %p164, %p165
    %s168 = sadd.s32 %s167, 1
    %p171 = scmp.eq.s32.totalorder %s91, 1
    %p172 = scmp.ne.s32.totalorder %s167, %s169
    %p173 = scmp.eq.s32.totalorder %s91, 0
    %p174 = por %p172, %p173
    %p175 = scmp.ne.s32.totalorder %s167, %s169
    %p176 = scmp.eq.s32.totalorder %s96, 1
    %p177 = por %p175, %p176
    %p178 = scmp.ne.s32.totalorder %s169, %s170
    %p179 = scmp.eq.s32.totalorder %s96, 0
    %p180 = por %p178, %p179
    %p181 = scmp.ne.s32.totalorder %s169, %s170
    %p182 = scmp.eq.s32.totalorder %s97, 1
    %p183 = por %p181, %p182
    %p185 = scmp.ne.s32.totalorder %s170, %s184
    %p186 = scmp.eq.s32.totalorder %s97, 0
    %p187 = por %p185, %p186
    %s189 = sadd.s32 %s188, 1
    %p192 = scmp.eq.s32.totalorder %s91, 1
    %p193 = scmp.ne.s32.totalorder %s188, %s190
    %p194 = scmp.eq.s32.totalorder %s91, 0
    %p195 = por %p193, %p194
    %p196 = scmp.ne.s32.totalorder %s188, %s190
    %p197 = scmp.eq.s32.totalorder %s96, 1
    %p198 = por %p196, %p197
    %p199 = scmp.ne.s32.totalorder %s190, %s191
    %p200 = scmp.eq.s32.totalorder %s96, 0
    %p201 = por %p199, %p200
    %p202 = scmp.ne.s32.totalorder %s190, %s191
    %p203 = scmp.eq.s32.totalorder %s97, 1
    %p204 = por %p202, %p203
    %p206 = scmp.ne.s32.totalorder %s191, %s205
    %p207 = scmp.eq.s32.totalorder %s97, 0
    %p208 = por %p206, %p207
    %s210 = sadd.s32 %s209, 1
    %p213 = scmp.eq.s32.totalorder %s91, 1
    %p214 = scmp.ne.s32.totalorder %s209, %s211
    %p215 = scmp.eq.s32.totalorder %s91, 0
    %p216 = por %p214, %p215
    %p217 = scmp.ne.s32.totalorder %s209, %s211
    %p218 = scmp.eq.s32.totalorder %s96, 1
    %p219 = por %p217, %p218
    %p220 = scmp.ne.s32.totalorder %s211, %s212
    %p221 = scmp.eq.s32.totalorder %s96, 0
    %p222 = por %p220, %p221
    %p223 = scmp.ne.s32.totalorder %s211, %s212
    %p224 = scmp.eq.s32.totalorder %s97, 1
    %p225 = por %p223, %p224
    %p227 = scmp.ne.s32.totalorder %s212, %s226
    %p228 = scmp.eq.s32.totalorder %s97, 0
    %p229 = por %p227, %p228
    %s231 = sadd.s32 %s230, 1
    %p234 = scmp.eq.s32.totalorder %s91, 1
    %p235 = scmp.ne.s32.totalorder %s230, %s232
    %p236 = scmp.eq.s32.totalorder %s91, 0
    %p237 = por %p235, %p236
    %p238 = scmp.ne.s32.totalorder %s230, %s232
    %p239 = scmp.eq.s32.totalorder %s96, 1
    %p240 = por %p238, %p239
    %p241 = scmp.ne.s32.totalorder %s232, %s233
    %p242 = scmp.eq.s32.totalorder %s96, 0
    %p243 = por %p241, %p242
    %p244 = scmp.ne.s32.totalorder %s232, %s233
    %p245 = scmp.eq.s32.totalorder %s97, 1
    %p246 = por %p244, %p245
    %p248 = scmp.ne.s32.totalorder %s233, %s247
    %p249 = scmp.eq.s32.totalorder %s97, 0
    %p250 = por %p248, %p249
    %s252 = sadd.s32 %s251, 1
    %p255 = scmp.eq.s32.totalorder %s91, 1
    %p256 = scmp.ne.s32.totalorder %s251, %s253
    %p257 = scmp.eq.s32.totalorder %s91, 0
    %p258 = por %p256, %p257
    %p259 = scmp.ne.s32.totalorder %s251, %s253
    %p260 = scmp.eq.s32.totalorder %s96, 1
    %p261 = por %p259, %p260
    %p262 = scmp.ne.s32.totalorder %s253, %s254
    %p263 = scmp.eq.s32.totalorder %s96, 0
    %p264 = por %p262, %p263
    %p265 = scmp.ne.s32.totalorder %s253, %s254
    %p266 = scmp.eq.s32.totalorder %s97, 1
    %p267 = por %p265, %p266
    %p269 = scmp.ne.s32.totalorder %s254, %s268
    %p270 = scmp.eq.s32.totalorder %s97, 0
    %p271 = por %p269, %p270
    %s273 = sadd.s32 %s272, 1
    %p276 = scmp.eq.s32.totalorder %s91, 1
    %p277 = scmp.ne.s32.totalorder %s272, %s274
    %p278 = scmp.eq.s32.totalorder %s91, 0
    %p279 = por %p277, %p278
    %p280 = scmp.ne.s32.totalorder %s272, %s274
    %p281 = scmp.eq.s32.totalorder %s96, 1
    %p282 = por %p280, %p281
    %p283 = scmp.ne.s32.totalorder %s274, %s275
    %p284 = scmp.eq.s32.totalorder %s96, 0
    %p285 = por %p283, %p284
    %p286 = scmp.ne.s32.totalorder %s274, %s275
    %p287 = scmp.eq.s32.totalorder %s97, 1
    %p288 = por %p286, %p287
    %p290 = scmp.ne.s32.totalorder %s275, %s289
    %p291 = scmp.eq.s32.totalorder %s97, 0
    %p292 = por %p290, %p291
    %s294 = sadd.s32 %s293, 1
    %p297 = scmp.eq.s32.totalorder %s91, 1
    %p298 = scmp.ne.s32.totalorder %s293, %s295
    %p299 = scmp.eq.s32.totalorder %s91, 0
    %p300 = por %p298, %p299
    %p301 = scmp.ne.s32.totalorder %s293, %s295
    %p302 = scmp.eq.s32.totalorder %s96, 1
    %p303 = por %p301, %p302
    %p304 = scmp.ne.s32.totalorder %s295, %s296
    %p305 = scmp.eq.s32.totalorder %s96, 0
    %p306 = por %p304, %p305
    %p307 = scmp.ne.s32.totalorder %s295, %s296
    %p308 = scmp.eq.s32.totalorder %s97, 1
    %p309 = por %p307, %p308
    %p311 = scmp.ne.s32.totalorder %s296, %s310
    %p312 = scmp.eq.s32.totalorder %s97, 0
    %p313 = por %p311, %p312
    %s315 = sadd.s32 %s314, 1
    %p318 = scmp.eq.s32.totalorder %s91, 1
    %p319 = scmp.ne.s32.totalorder %s314, %s316
    %p320 = scmp.eq.s32.totalorder %s91, 0
    %p321 = por %p319, %p320
    %p322 = scmp.ne.s32.totalorder %s314, %s316
    %p323 = scmp.eq.s32.totalorder %s96, 1
    %p324 = por %p322, %p323
    %p325 = scmp.ne.s32.totalorder %s316, %s317
    %p326 = scmp.eq.s32.totalorder %s96, 0
    %p327 = por %p325, %p326
    %p328 = scmp.ne.s32.totalorder %s316, %s317
    %p329 = scmp.eq.s32.totalorder %s97, 1
    %p330 = por %p328, %p329
    %p332 = scmp.ne.s32.totalorder %s317, %s331
    %p333 = scmp.eq.s32.totalorder %s97, 0
    %p334 = por %p332, %p333
    %s336 = sadd.s32 %s335, 1
    %p339 = scmp.eq.s32.totalorder %s91, 1
    %p340 = scmp.ne.s32.totalorder %s335, %s337
    %p341 = scmp.eq.s32.totalorder %s91, 0
    %p342 = por %p340, %p341
    %p343 = scmp.ne.s32.totalorder %s335, %s337
    %p344 = scmp.eq.s32.totalorder %s96, 1
    %p345 = por %p343, %p344
    %p346 = scmp.ne.s32.totalorder %s337, %s338
    %p347 = scmp.eq.s32.totalorder %s96, 0
    %p348 = por %p346, %p347
    %p349 = scmp.ne.s32.totalorder %s337, %s338
    %p350 = scmp.eq.s32.totalorder %s97, 1
    %p351 = por %p349, %p350
    %p353 = scmp.ne.s32.totalorder %s338, %s352
    %p354 = scmp.eq.s32.totalorder %s97, 0
    %p355 = por %p353, %p354
    %s357 = sadd.s32 %s356, 1
    %p360 = scmp.eq.s32.totalorder %s91, 1
    %p361 = scmp.ne.s32.totalorder %s356, %s358
    %p362 = scmp.eq.s32.totalorder %s91, 0
    %p363 = por %p361, %p362
    %p364 = scmp.ne.s32.totalorder %s356, %s358
    %p365 = scmp.eq.s32.totalorder %s96, 1
    %p366 = por %p364, %p365
    %p367 = scmp.ne.s32.totalorder %s358, %s359
    %p368 = scmp.eq.s32.totalorder %s96, 0
    %p369 = por %p367, %p368
    %p370 = scmp.ne.s32.totalorder %s358, %s359
    %p371 = scmp.eq.s32.totalorder %s97, 1
    %p372 = por %p370, %p371
    %p374 = scmp.ne.s32.totalorder %s359, %s373
    %p375 = scmp.eq.s32.totalorder %s97, 0
    %p376 = por %p374, %p375
    %s378 = sadd.s32 %s377, 1
    %p381 = scmp.eq.s32.totalorder %s91, 1
    %p382 = scmp.ne.s32.totalorder %s377, %s379
    %p383 = scmp.eq.s32.totalorder %s91, 0
    %p384 = por %p382, %p383
    %p385 = scmp.ne.s32.totalorder %s377, %s379
    %p386 = scmp.eq.s32.totalorder %s96, 1
    %p387 = por %p385, %p386
    %p388 = scmp.ne.s32.totalorder %s379, %s380
    %p389 = scmp.eq.s32.totalorder %s96, 0
    %p390 = por %p388, %p389
    %p391 = scmp.ne.s32.totalorder %s379, %s380
    %p392 = scmp.eq.s32.totalorder %s97, 1
    %p393 = por %p391, %p392
    %p395 = scmp.ne.s32.totalorder %s380, %s394
    %p396 = scmp.eq.s32.totalorder %s97, 0
    %p397 = por %p395, %p396
    %s399 = sadd.s32 %s398, 1
    %p402 = scmp.eq.s32.totalorder %s91, 1
    %p403 = scmp.ne.s32.totalorder %s398, %s400
    %p404 = scmp.eq.s32.totalorder %s91, 0
    %p405 = por %p403, %p404
    %p406 = scmp.ne.s32.totalorder %s398, %s400
    %p407 = scmp.eq.s32.totalorder %s96, 1
    %p408 = por %p406, %p407
    %p409 = scmp.ne.s32.totalorder %s400, %s401
    %p410 = scmp.eq.s32.totalorder %s96, 0
    %p411 = por %p409, %p410
    %p412 = scmp.ne.s32.totalorder %s400, %s401
    %p413 = scmp.eq.s32.totalorder %s97, 1
    %p414 = por %p412, %p413
    %p416 = scmp.ne.s32.totalorder %s401, %s415
    %p417 = scmp.eq.s32.totalorder %s97, 0
    %p418 = por %p416, %p417
    %s420 = sadd.s32 %s419, 1
    %p423 = scmp.eq.s32.totalorder %s91, 1
    %p424 = scmp.ne.s32.totalorder %s419, %s421
    %p425 = scmp.eq.s32.totalorder %s91, 0
    %p426 = por %p424, %p425
    %p427 = scmp.ne.s32.totalorder %s419, %s421
    %p428 = scmp.eq.s32.totalorder %s96, 1
    %p429 = por %p427, %p428
    %p430 = scmp.ne.s32.totalorder %s421, %s422
    %p431 = scmp.eq.s32.totalorder %s96, 0
    %p432 = por %p430, %p431
    %p433 = scmp.ne.s32.totalorder %s421, %s422
    %p434 = scmp.eq.s32.totalorder %s97, 1
    %p435 = por %p433, %p434
    %p437 = scmp.ne.s32.totalorder %s422, %s436
    %p438 = scmp.eq.s32.totalorder %s97, 0
    %p439 = por %p437, %p438
    %s441 = sadd.s32 %s440, 1
    %p444 = scmp.eq.s32.totalorder %s91, 1
    %p445 = scmp.ne.s32.totalorder %s440, %s442
    %p446 = scmp.eq.s32.totalorder %s91, 0
    %p447 = por %p445, %p446
    %p448 = scmp.ne.s32.totalorder %s440, %s442
    %p449 = scmp.eq.s32.totalorder %s96, 1
    %p450 = por %p448, %p449
    %p451 = scmp.ne.s32.totalorder %s442, %s443
    %p452 = scmp.eq.s32.totalorder %s96, 0
    %p453 = por %p451, %p452
    %p454 = scmp.ne.s32.totalorder %s442, %s443
    %p455 = scmp.eq.s32.totalorder %s97, 1
    %p456 = por %p454, %p455
    %p458 = scmp.ne.s32.totalorder %s443, %s457
    %p459 = scmp.eq.s32.totalorder %s97, 0
    %p460 = por %p458, %p459
    %s462 = sadd.s32 %s461, 1
    %p465 = scmp.eq.s32.totalorder %s91, 1
    %p466 = scmp.ne.s32.totalorder %s461, %s463
    %p467 = scmp.eq.s32.totalorder %s91, 0
    %p468 = por %p466, %p467
    %p469 = scmp.ne.s32.totalorder %s461, %s463
    %p470 = scmp.eq.s32.totalorder %s96, 1
    %p471 = por %p469, %p470
    %p472 = scmp.ne.s32.totalorder %s463, %s464
    %p473 = scmp.eq.s32.totalorder %s96, 0
    %p474 = por %p472, %p473
    %p475 = scmp.ne.s32.totalorder %s463, %s464
    %p476 = scmp.eq.s32.totalorder %s97, 1
    %p477 = por %p475, %p476
    %p479 = scmp.ne.s32.totalorder %s464, %s478
    %p480 = scmp.eq.s32.totalorder %s97, 0
    %p481 = por %p479, %p480
    %s483 = sadd.s32 %s482, 1
    %p486 = scmp.eq.s32.totalorder %s91, 1
    %p487 = scmp.ne.s32.totalorder %s482, %s484
    %p488 = scmp.eq.s32.totalorder %s91, 0
    %p489 = por %p487, %p488
    %p490 = scmp.ne.s32.totalorder %s482, %s484
    %p491 = scmp.eq.s32.totalorder %s96, 1
    %p492 = por %p490, %p491
    %p493 = scmp.ne.s32.totalorder %s484, %s485
    %p494 = scmp.eq.s32.totalorder %s96, 0
    %p495 = por %p493, %p494
    %p496 = scmp.ne.s32.totalorder %s484, %s485
    %p497 = scmp.eq.s32.totalorder %s97, 1
    %p498 = por %p496, %p497
    %p500 = scmp.ne.s32.totalorder %s485, %s499
    %p501 = scmp.eq.s32.totalorder %s97, 0
    %p502 = por %p500, %p501
    %s504 = sadd.s32 %s503, 1
    %p507 = scmp.eq.s32.totalorder %s91, 1
    %p508 = scmp.ne.s32.totalorder %s503, %s505
    %p509 = scmp.eq.s32.totalorder %s91, 0
    %p510 = por %p508, %p509
    %p511 = scmp.ne.s32.totalorder %s503, %s505
    %p512 = scmp.eq.s32.totalorder %s96, 1
    %p513 = por %p511, %p512
    %p514 = scmp.ne.s32.totalorder %s505, %s506
    %p515 = scmp.eq.s32.totalorder %s96, 0
    %p516 = por %p514, %p515
    %p517 = scmp.ne.s32.totalorder %s505, %s506
    %p518 = scmp.eq.s32.totalorder %s97, 1
    %p519 = por %p517, %p518
    %p521 = scmp.ne.s32.totalorder %s506, %s520
    %p522 = scmp.eq.s32.totalorder %s97, 0
    %p523 = por %p521, %p522
    %s525 = sadd.s32 %s524, 1
    %p528 = scmp.eq.s32.totalorder %s91, 1
    %p529 = scmp.ne.s32.totalorder %s524, %s526
    %p530 = scmp.eq.s32.totalorder %s91, 0
    %p531 = por %p529, %p530
    %p532 = scmp.ne.s32.totalorder %s524, %s526
    %p533 = scmp.eq.s32.totalorder %s96, 1
    %p534 = por %p532, %p533
    %p535 = scmp.ne.s32.totalorder %s526, %s527
    %p536 = scmp.eq.s32.totalorder %s96, 0
    %p537 = por %p535, %p536
    %p538 = scmp.ne.s32.totalorder %s526, %s527
    %p539 = scmp.eq.s32.totalorder %s97, 1
    %p540 = por %p538, %p539
    %p542 = scmp.ne.s32.totalorder %s527, %s541
    %p543 = scmp.eq.s32.totalorder %s97, 0
    %p544 = por %p542, %p543
    %s546 = sadd.s32 %s545, 1
    %p549 = scmp.eq.s32.totalorder %s91, 1
    %p550 = scmp.ne.s32.totalorder %s545, %s547
    %p551 = scmp.eq.s32.totalorder %s91, 0
    %p552 = por %p550, %p551
    %p553 = scmp.ne.s32.totalorder %s545, %s547
    %p554 = scmp.eq.s32.totalorder %s96, 1
    %p555 = por %p553, %p554
    %p556 = scmp.ne.s32.totalorder %s547, %s548
    %p557 = scmp.eq.s32.totalorder %s96, 0
    %p558 = por %p556, %p557
    %p559 = scmp.ne.s32.totalorder %s547, %s548
    %p560 = scmp.eq.s32.totalorder %s97, 1
    %p561 = por %p559, %p560
    %p563 = scmp.ne.s32.totalorder %s548, %s562
    %p564 = scmp.eq.s32.totalorder %s97, 0
    %p565 = por %p563, %p564
    %s567 = sadd.s32 %s566, 1
    %p570 = scmp.eq.s32.totalorder %s91, 1
    %p571 = scmp.ne.s32.totalorder %s566, %s568
    %p572 = scmp.eq.s32.totalorder %s91, 0
    %p573 = por %p571, %p572
    %p574 = scmp.ne.s32.totalorder %s566, %s568
    %p575 = scmp.eq.s32.totalorder %s96, 1
    %p576 = por %p574, %p575
    %p577 = scmp.ne.s32.totalorder %s568, %s569
    %p578 = scmp.eq.s32.totalorder %s96, 0
    %p579 = por %p577, %p578
    %p580 = scmp.ne.s32.totalorder %s568, %s569
    %p581 = scmp.eq.s32.totalorder %s97, 1
    %p582 = por %p580, %p581
    %p584 = scmp.ne.s32.totalorder %s569, %s583
    %p585 = scmp.eq.s32.totalorder %s97, 0
    %p586 = por %p584, %p585
    %s588 = sadd.s32 %s587, 1
    %p591 = scmp.eq.s32.totalorder %s91, 1
    %p592 = scmp.ne.s32.totalorder %s587, %s589
    %p593 = scmp.eq.s32.totalorder %s91, 0
    %p594 = por %p592, %p593
    %p595 = scmp.ne.s32.totalorder %s587, %s589
    %p596 = scmp.eq.s32.totalorder %s96, 1
    %p597 = por %p595, %p596
    %p598 = scmp.ne.s32.totalorder %s589, %s590
    %p599 = scmp.eq.s32.totalorder %s96, 0
    %p600 = por %p598, %p599
    %p601 = scmp.ne.s32.totalorder %s589, %s590
    %p602 = scmp.eq.s32.totalorder %s97, 1
    %p603 = por %p601, %p602
    %p605 = scmp.ne.s32.totalorder %s590, %s604
    %p606 = scmp.eq.s32.totalorder %s97, 0
    %p607 = por %p605, %p606
    %s609 = sadd.s32 %s608, 1
    %p612 = scmp.eq.s32.totalorder %s91, 1
    %p613 = scmp.ne.s32.totalorder %s608, %s610
    %p614 = scmp.eq.s32.totalorder %s91, 0
    %p615 = por %p613, %p614
    %p616 = scmp.ne.s32.totalorder %s608, %s610
    %p617 = scmp.eq.s32.totalorder %s96, 1
    %p618 = por %p616, %p617
    %p619 = scmp.ne.s32.totalorder %s610, %s611
    %p620 = scmp.eq.s32.totalorder %s96, 0
    %p621 = por %p619, %p620
    %p622 = scmp.ne.s32.totalorder %s610, %s611
    %p623 = scmp.eq.s32.totalorder %s97, 1
    %p624 = por %p622, %p623
    %p626 = scmp.ne.s32.totalorder %s611, %s625
    %p627 = scmp.eq.s32.totalorder %s97, 0
    %p628 = por %p626, %p627
    %s630 = sadd.s32 %s629, 1
    %p633 = scmp.eq.s32.totalorder %s91, 1
    %p634 = scmp.ne.s32.totalorder %s629, %s631
    %p635 = scmp.eq.s32.totalorder %s91, 0
    %p636 = por %p634, %p635
    %p637 = scmp.ne.s32.totalorder %s629, %s631
    %p638 = scmp.eq.s32.totalorder %s96, 1
    %p639 = por %p637, %p638
    %p640 = scmp.ne.s32.totalorder %s631, %s632
    %p641 = scmp.eq.s32.totalorder %s96, 0
    %p642 = por %p640, %p641
    %p643 = scmp.ne.s32.totalorder %s631, %s632
    %p644 = scmp.eq.s32.totalorder %s97, 1
    %p645 = por %p643, %p644
    %p647 = scmp.ne.s32.totalorder %s632, %s646
    %p648 = scmp.eq.s32.totalorder %s97, 0
    %p649 = por %p647, %p648
    %s651 = sadd.s32 %s650, 1
    %p654 = scmp.eq.s32.totalorder %s91, 1
    %p655 = scmp.ne.s32.totalorder %s650, %s652
    %p656 = scmp.eq.s32.totalorder %s91, 0
    %p657 = por %p655, %p656
    %p658 = scmp.ne.s32.totalorder %s650, %s652
    %p659 = scmp.eq.s32.totalorder %s96, 1
    %p660 = por %p658, %p659
    %p661 = scmp.ne.s32.totalorder %s652, %s653
    %p662 = scmp.eq.s32.totalorder %s96, 0
    %p663 = por %p661, %p662
    %p664 = scmp.ne.s32.totalorder %s652, %s653
    %p665 = scmp.eq.s32.totalorder %s97, 1
    %p666 = por %p664, %p665
    %p668 = scmp.ne.s32.totalorder %s653, %s667
    %p669 = scmp.eq.s32.totalorder %s97, 0
    %p670 = por %p668, %p669
    %s672 = sadd.s32 %s671, 1
    %p675 = scmp.eq.s32.totalorder %s91, 1
    %p676 = scmp.ne.s32.totalorder %s671, %s673
    %p677 = scmp.eq.s32.totalorder %s91, 0
    %p678 = por %p676, %p677
    %p679 = scmp.ne.s32.totalorder %s671, %s673
    %p680 = scmp.eq.s32.totalorder %s96, 1
    %p681 = por %p679, %p680
    %p682 = scmp.ne.s32.totalorder %s673, %s674
    %p683 = scmp.eq.s32.totalorder %s96, 0
    %p684 = por %p682, %p683
    %p685 = scmp.ne.s32.totalorder %s673, %s674
    %p686 = scmp.eq.s32.totalorder %s97, 1
    %p687 = por %p685, %p686
    %p689 = scmp.ne.s32.totalorder %s674, %s688
    %p690 = scmp.eq.s32.totalorder %s97, 0
    %p691 = por %p689, %p690
    %s693 = sadd.s32 %s692, 1
    %p696 = scmp.eq.s32.totalorder %s91, 1
    %p697 = scmp.ne.s32.totalorder %s692, %s694
    %p698 = scmp.eq.s32.totalorder %s91, 0
    %p699 = por %p697, %p698
    %p700 = scmp.ne.s32.totalorder %s692, %s694
    %p701 = scmp.eq.s32.totalorder %s96, 1
    %p702 = por %p700, %p701
    %p703 = scmp.ne.s32.totalorder %s694, %s695
    %p704 = scmp.eq.s32.totalorder %s96, 0
    %p705 = por %p703, %p704
    %p706 = scmp.ne.s32.totalorder %s694, %s695
    %p707 = scmp.eq.s32.totalorder %s97, 1
    %p708 = por %p706, %p707
    %p710 = scmp.ne.s32.totalorder %s695, %s709
    %p711 = scmp.eq.s32.totalorder %s97, 0
    %p712 = por %p710, %p711
    %s714 = sadd.s32 %s713, 1
    %p717 = scmp.eq.s32.totalorder %s91, 1
    %p718 = scmp.ne.s32.totalorder %s713, %s715
    %p719 = scmp.eq.s32.totalorder %s91, 0
    %p720 = por %p718, %p719
    %p721 = scmp.ne.s32.totalorder %s713, %s715
    %p722 = scmp.eq.s32.totalorder %s96, 1
    %p723 = por %p721, %p722
    %p724 = scmp.ne.s32.totalorder %s715, %s716
    %p725 = scmp.eq.s32.totalorder %s96, 0
    %p726 = por %p724, %p725
    %p727 = scmp.ne.s32.totalorder %s715, %s716
    %p728 = scmp.eq.s32.totalorder %s97, 1
    %p729 = por %p727, %p728
    %p731 = scmp.ne.s32.totalorder %s716, %s730
    %p732 = scmp.eq.s32.totalorder %s97, 0
    %p733 = por %p731, %p732
    %s735 = sadd.s32 %s734, 1
    %p738 = scmp.eq.s32.totalorder %s91, 1
    %p739 = scmp.ne.s32.totalorder %s734, %s736
    %p740 = scmp.eq.s32.totalorder %s91, 0
    %p741 = por %p739, %p740
    %p742 = scmp.ne.s32.totalorder %s734, %s736
    %p743 = scmp.eq.s32.totalorder %s96, 1
    %p744 = por %p742, %p743
    %p745 = scmp.ne.s32.totalorder %s736, %s737
    %p746 = scmp.eq.s32.totalorder %s96, 0
    %p747 = por %p745, %p746
    %p748 = scmp.ne.s32.totalorder %s736, %s737
    %p749 = scmp.eq.s32.totalorder %s97, 1
    %p750 = por %p748, %p749
    %p752 = scmp.ne.s32.totalorder %s737, %s751
    %p753 = scmp.eq.s32.totalorder %s97, 0
    %p754 = por %p752, %p753
    %s756 = sadd.s32 %s755, 1
    %p759 = scmp.eq.s32.totalorder %s91, 1
    %p760 = scmp.ne.s32.totalorder %s755, %s757
    %p761 = scmp.eq.s32.totalorder %s91, 0
    %p762 = por %p760, %p761
    %p763 = scmp.ne.s32.totalorder %s755, %s757
    %p764 = scmp.eq.s32.totalorder %s96, 1
    %p765 = por %p763, %p764
    %p766 = scmp.ne.s32.totalorder %s757, %s758
    %p767 = scmp.eq.s32.totalorder %s96, 0
    %p768 = por %p766, %p767
    %p769 = scmp.ne.s32.totalorder %s757, %s758
    %p770 = scmp.eq.s32.totalorder %s97, 1
    %p771 = por %p769, %p770
    %p773 = scmp.ne.s32.totalorder %s758, %s772
    %p774 = scmp.eq.s32.totalorder %s97, 0
    %p775 = por %p773, %p774
    %s777 = sadd.s32 %s776, 1
    %p780 = scmp.eq.s32.totalorder %s91, 1
    %p781 = scmp.ne.s32.totalorder %s776, %s778
    %p782 = scmp.eq.s32.totalorder %s91, 0
    %p783 = por %p781, %p782
    %p784 = scmp.ne.s32.totalorder %s776, %s778
    %p785 = scmp.eq.s32.totalorder %s96, 1
    %p786 = por %p784, %p785
    %p787 = scmp.ne.s32.totalorder %s778, %s779
    %p788 = scmp.eq.s32.totalorder %s96, 0
    %p789 = por %p787, %p788
    %p790 = scmp.ne.s32.totalorder %s778, %s779
    %p791 = scmp.eq.s32.totalorder %s97, 1
    %p792 = por %p790, %p791
    %p794 = scmp.ne.s32.totalorder %s779, %s793
    %p795 = scmp.eq.s32.totalorder %s97, 0
    %p796 = por %p794, %p795
    %s798 = sadd.s32 %s797, 1
    %p801 = scmp.eq.s32.totalorder %s91, 1
    %p802 = scmp.ne.s32.totalorder %s797, %s799
    %p803 = scmp.eq.s32.totalorder %s91, 0
    %p804 = por %p802, %p803
    %p805 = scmp.ne.s32.totalorder %s797, %s799
    %p806 = scmp.eq.s32.totalorder %s96, 1
    %p807 = por %p805, %p806
    %p808 = scmp.ne.s32.totalorder %s799, %s800
    %p809 = scmp.eq.s32.totalorder %s96, 0
    %p810 = por %p808, %p809
    %p811 = scmp.ne.s32.totalorder %s799, %s800
    %p812 = scmp.eq.s32.totalorder %s97, 1
    %p813 = por %p811, %p812
    %p815 = scmp.ne.s32.totalorder %s800, %s814
    %p816 = scmp.eq.s32.totalorder %s97, 0
    %p817 = por %p815, %p816
    %s819 = sadd.s32 %s818, 1
    %p822 = scmp.eq.s32.totalorder %s91, 1
    %p823 = scmp.ne.s32.totalorder %s818, %s820
    %p824 = scmp.eq.s32.totalorder %s91, 0
    %p825 = por %p823, %p824
    %p826 = scmp.ne.s32.totalorder %s818, %s820
    %p827 = scmp.eq.s32.totalorder %s96, 1
    %p828 = por %p826, %p827
    %p829 = scmp.ne.s32.totalorder %s820, %s821
    %p830 = scmp.eq.s32.totalorder %s96, 0
    %p831 = por %p829, %p830
    %p832 = scmp.ne.s32.totalorder %s820, %s821
    %p833 = scmp.eq.s32.totalorder %s97, 1
    %p834 = por %p832, %p833
    %p836 = scmp.ne.s32.totalorder %s821, %s835
    %p837 = scmp.eq.s32.totalorder %s97, 0
    %p838 = por %p836, %p837
    %s840 = sadd.s32 %s839, 1
    %p843 = scmp.eq.s32.totalorder %s91, 1
    %p844 = scmp.ne.s32.totalorder %s839, %s841
    %p845 = scmp.eq.s32.totalorder %s91, 0
    %p846 = por %p844, %p845
    %p847 = scmp.ne.s32.totalorder %s839, %s841
    %p848 = scmp.eq.s32.totalorder %s96, 1
    %p849 = por %p847, %p848
    %p850 = scmp.ne.s32.totalorder %s841, %s842
    %p851 = scmp.eq.s32.totalorder %s96, 0
    %p852 = por %p850, %p851
    %p853 = scmp.ne.s32.totalorder %s841, %s842
    %p854 = scmp.eq.s32.totalorder %s97, 1
    %p855 = por %p853, %p854
    %p857 = scmp.ne.s32.totalorder %s842, %s856
    %p858 = scmp.eq.s32.totalorder %s97, 0
    %p859 = por %p857, %p858
    %s861 = sadd.s32 %s860, 1
    %p864 = scmp.eq.s32.totalorder %s91, 1
    %p865 = scmp.ne.s32.totalorder %s860, %s862
    %p866 = scmp.eq.s32.totalorder %s91, 0
    %p867 = por %p865, %p866
    %p868 = scmp.ne.s32.totalorder %s860, %s862
    %p869 = scmp.eq.s32.totalorder %s96, 1
    %p870 = por %p868, %p869
    %p871 = scmp.ne.s32.totalorder %s862, %s863
    %p872 = scmp.eq.s32.totalorder %s96, 0
    %p873 = por %p871, %p872
    %p874 = scmp.ne.s32.totalorder %s862, %s863
    %p875 = scmp.eq.s32.totalorder %s97, 1
    %p876 = por %p874, %p875
    %p878 = scmp.ne.s32.totalorder %s863, %s877
    %p879 = scmp.eq.s32.totalorder %s97, 0
    %p880 = por %p878, %p879
    %s882 = sadd.s32 %s881, 1
    %p885 = scmp.eq.s32.totalorder %s91, 1
    %p886 = scmp.ne.s32.totalorder %s881, %s883
    %p887 = scmp.eq.s32.totalorder %s91, 0
    %p888 = por %p886, %p887
    %p889 = scmp.ne.s32.totalorder %s881, %s883
    %p890 = scmp.eq.s32.totalorder %s96, 1
    %p891 = por %p889, %p890
    %p892 = scmp.ne.s32.totalorder %s883, %s884
    %p893 = scmp.eq.s32.totalorder %s96, 0
    %p894 = por %p892, %p893
    %p895 = scmp.ne.s32.totalorder %s883, %s884
    %p896 = scmp.eq.s32.totalorder %s97, 1
    %p897 = por %p895, %p896
    %p899 = scmp.ne.s32.totalorder %s884, %s898
    %p900 = scmp.eq.s32.totalorder %s97, 0
    %p901 = por %p899, %p900
    %s903 = sadd.s32 %s902, 1
    %p906 = scmp.eq.s32.totalorder %s91, 1
    %p907 = scmp.ne.s32.totalorder %s902, %s904
    %p908 = scmp.eq.s32.totalorder %s91, 0
    %p909 = por %p907, %p908
    %p910 = scmp.ne.s32.totalorder %s902, %s904
    %p911 = scmp.eq.s32.totalorder %s96, 1
    %p912 = por %p910, %p911
    %p913 = scmp.ne.s32.totalorder %s904, %s905
    %p914 = scmp.eq.s32.totalorder %s96, 0
    %p915 = por %p913, %p914
    %p916 = scmp.ne.s32.totalorder %s904, %s905
    %p917 = scmp.eq.s32.totalorder %s97, 1
    %p918 = por %p916, %p917
    %p920 = scmp.ne.s32.totalorder %s905, %s919
    %p921 = scmp.eq.s32.totalorder %s97, 0
    %p922 = por %p920, %p921
    %s924 = sadd.s32 %s923, 1
    %p927 = scmp.eq.s32.totalorder %s91, 1
    %p928 = scmp.ne.s32.totalorder %s923, %s925
    %p929 = scmp.eq.s32.totalorder %s91, 0
    %p930 = por %p928, %p929
    %p931 = scmp.ne.s32.totalorder %s923, %s925
    %p932 = scmp.eq.s32.totalorder %s96, 1
    %p933 = por %p931, %p932
    %p934 = scmp.ne.s32.totalorder %s925, %s926
    %p935 = scmp.eq.s32.totalorder %s96, 0
    %p936 = por %p934, %p935
    %p937 = scmp.ne.s32.totalorder %s925, %s926
    %p938 = scmp.eq.s32.totalorder %s97, 1
    %p939 = por %p937, %p938
    %p941 = scmp.ne.s32.totalorder %s926, %s940
    %p942 = scmp.eq.s32.totalorder %s97, 0
    %p943 = por %p941, %p942
    %s945 = sadd.s32 %s944, 1
    %p948 = scmp.eq.s32.totalorder %s91, 1
    %p949 = scmp.ne.s32.totalorder %s944, %s946
    %p950 = scmp.eq.s32.totalorder %s91, 0
    %p951 = por %p949, %p950
    %p952 = scmp.ne.s32.totalorder %s944, %s946
    %p953 = scmp.eq.s32.totalorder %s96, 1
    %p954 = por %p952, %p953
    %p955 = scmp.ne.s32.totalorder %s946, %s947
    %p956 = scmp.eq.s32.totalorder %s96, 0
    %p957 = por %p955, %p956
    %p958 = scmp.ne.s32.totalorder %s946, %s947
    %p959 = scmp.eq.s32.totalorder %s97, 1
    %p960 = por %p958, %p959
    %p962 = scmp.ne.s32.totalorder %s947, %s961
    %p963 = scmp.eq.s32.totalorder %s97, 0
    %p964 = por %p962, %p963
    %s966 = sadd.s32 %s965, 1
    %p969 = scmp.eq.s32.totalorder %s91, 1
    %p970 = scmp.ne.s32.totalorder %s965, %s967
    %p971 = scmp.eq.s32.totalorder %s91, 0
    %p972 = por %p970, %p971
    %p973 = scmp.ne.s32.totalorder %s965, %s967
    %p974 = scmp.eq.s32.totalorder %s96, 1
    %p975 = por %p973, %p974
    %p976 = scmp.ne.s32.totalorder %s967, %s968
    %p977 = scmp.eq.s32.totalorder %s96, 0
    %p978 = por %p976, %p977
    %p979 = scmp.ne.s32.totalorder %s967, %s968
    %p980 = scmp.eq.s32.totalorder %s97, 1
    %p981 = por %p979, %p980
    %p983 = scmp.ne.s32.totalorder %s968, %s982
    %p984 = scmp.eq.s32.totalorder %s97, 0
    %p985 = por %p983, %p984
    %s986 = ssub.s32 %s91, %s98
    %p987 = scmp.eq.s32.totalorder %s986, 0
    %s989 = sadd.s32 %s988, 1
    %s990 = scalar_select %p987, %s988, %s989
    %p993 = pneg %p987
    %p994 = scmp.eq.s32.totalorder %s91, 1
    %p995 = por %p993, %p994
    %p996 = scmp.ne.s32.totalorder %s988, %s991
    %p997 = scmp.eq.s32.totalorder %s91, 0
    %p998 = por %p996, %p997
    %p999 = scmp.ne.s32.totalorder %s988, %s991
    %p1000 = scmp.eq.s32.totalorder %s96, 1
    %p1001 = por %p999, %p1000
    %p1002 = scmp.ne.s32.totalorder %s991, %s992
    %p1003 = scmp.eq.s32.totalorder %s96, 0
    %p1004 = por %p1002, %p1003
    %p1005 = scmp.ne.s32.totalorder %s991, %s992
    %p1006 = scmp.eq.s32.totalorder %s97, 1
    %p1007 = por %p1005, %p1006
    %p1009 = scmp.ne.s32.totalorder %s992, %s1008
    %p1010 = scmp.eq.s32.totalorder %s97, 0
    %p1011 = por %p1009, %p1010
    %p1012 = scmp.le.s32.totalorder 1, %s91
    %p1013 = scmp.lt.s32.totalorder %s91, 3
    %p1014 = pnand %p1012, %p1013
    %p1015 = pneg %p1014
    // Predicated region
    $region9: #{convresnet_forward.1} parent=5 // pred_check
      _
    $region10: #{convresnet_forward.1} parent=5 // pred_check_branch
      %1017 = sbr.rel (%p1014) target = $region12
    $region11: #{convresnet_forward.1} parent=5 // pred_region
      %s1018 = ssub.s32 %s91, 1
      // Predicated region
      $region13: #{convresnet_forward.1} parent=11 // pred_check
        %p1019 = pneg %p138
      $region14: #{convresnet_forward.1} parent=11 // pred_check_branch
        %1021 = sbr.rel (%p1019) target = $region16
      $region15: #{convresnet_forward.1} parent=11 // pred_region
        _
      $region16: #{convresnet_forward.1} parent=11 // pred_fallthru
        _
      // Predicated region
      $region17: #{convresnet_forward.1} parent=11 // pred_check
        %p1022 = pneg %p159
      $region18: #{convresnet_forward.1} parent=11 // pred_check_branch
        %1024 = sbr.rel (%p1022) target = $region20
      $region19: #{convresnet_forward.1} parent=11 // pred_region
        _
      $region20: #{convresnet_forward.1} parent=11 // pred_fallthru
        _
      // Predicated region
      $region21: #{convresnet_forward.1} parent=11 // pred_check
        %p1025 = pneg %p180
      $region22: #{convresnet_forward.1} parent=11 // pred_check_branch
        %1027 = sbr.rel (%p1025) target = $region24
      $region23: #{convresnet_forward.1} parent=11 // pred_region
        _
      $region24: #{convresnet_forward.1} parent=11 // pred_fallthru
        _
      // Predicated region
      $region25: #{convresnet_forward.1} parent=11 // pred_check
        %p1028 = pneg %p201
      $region26: #{convresnet_forward.1} parent=11 // pred_check_branch
        %1030 = sbr.rel (%p1028) target = $region28
      $region27: #{convresnet_forward.1} parent=11 // pred_region
        _
      $region28: #{convresnet_forward.1} parent=11 // pred_fallthru
        _
      // Predicated region
      $region29: #{convresnet_forward.1} parent=11 // pred_check
        %p1031 = pneg %p222
      $region30: #{convresnet_forward.1} parent=11 // pred_check_branch
        %1033 = sbr.rel (%p1031) target = $region32
      $region31: #{convresnet_forward.1} parent=11 // pred_region
        _
      $region32: #{convresnet_forward.1} parent=11 // pred_fallthru
        _
      // Predicated region
      $region33: #{convresnet_forward.1} parent=11 // pred_check
        %p1034 = pneg %p243
      $region34: #{convresnet_forward.1} parent=11 // pred_check_branch
        %1036 = sbr.rel (%p1034) target = $region36
      $region35: #{convresnet_forward.1} parent=11 // pred_region
        _
      $region36: #{convresnet_forward.1} parent=11 // pred_fallthru
        _
      // Predicated region
      $region37: #{convresnet_forward.1} parent=11 // pred_check
        %p1037 = pneg %p264
      $region38: #{convresnet_forward.1} parent=11 // pred_check_branch
        %1039 = sbr.rel (%p1037) target = $region40
      $region39: #{convresnet_forward.1} parent=11 // pred_region
        _
      $region40: #{convresnet_forward.1} parent=11 // pred_fallthru
        _
      // Predicated region
      $region41: #{convresnet_forward.1} parent=11 // pred_check
        %p1040 = pneg %p285
      $region42: #{convresnet_forward.1} parent=11 // pred_check_branch
        %1042 = sbr.rel (%p1040) target = $region44
      $region43: #{convresnet_forward.1} parent=11 // pred_region
        _
      $region44: #{convresnet_forward.1} parent=11 // pred_fallthru
        _
      // Predicated region
      $region45: #{convresnet_forward.1} parent=11 // pred_check
        %p1043 = pneg %p306
      $region46: #{convresnet_forward.1} parent=11 // pred_check_branch
        %1045 = sbr.rel (%p1043) target = $region48
      $region47: #{convresnet_forward.1} parent=11 // pred_region
        _
      $region48: #{convresnet_forward.1} parent=11 // pred_fallthru
        _
      // Predicated region
      $region49: #{convresnet_forward.1} parent=11 // pred_check
        %p1046 = pneg %p327
      $region50: #{convresnet_forward.1} parent=11 // pred_check_branch
        %1048 = sbr.rel (%p1046) target = $region52
      $region51: #{convresnet_forward.1} parent=11 // pred_region
        _
      $region52: #{convresnet_forward.1} parent=11 // pred_fallthru
        _
      // Predicated region
      $region53: #{convresnet_forward.1} parent=11 // pred_check
        %p1049 = pneg %p348
      $region54: #{convresnet_forward.1} parent=11 // pred_check_branch
        %1051 = sbr.rel (%p1049) target = $region56
      $region55: #{convresnet_forward.1} parent=11 // pred_region
        _
      $region56: #{convresnet_forward.1} parent=11 // pred_fallthru
        _
      // Predicated region
      $region57: #{convresnet_forward.1} parent=11 // pred_check
        %p1052 = pneg %p369
      $region58: #{convresnet_forward.1} parent=11 // pred_check_branch
        %1054 = sbr.rel (%p1052) target = $region60
      $region59: #{convresnet_forward.1} parent=11 // pred_region
        _
      $region60: #{convresnet_forward.1} parent=11 // pred_fallthru
        _
      // Predicated region
      $region61: #{convresnet_forward.1} parent=11 // pred_check
        %p1055 = pneg %p390
      $region62: #{convresnet_forward.1} parent=11 // pred_check_branch
        %1057 = sbr.rel (%p1055) target = $region64
      $region63: #{convresnet_forward.1} parent=11 // pred_region
        _
      $region64: #{convresnet_forward.1} parent=11 // pred_fallthru
        _
      // Predicated region
      $region65: #{convresnet_forward.1} parent=11 // pred_check
        %p1058 = pneg %p411
      $region66: #{convresnet_forward.1} parent=11 // pred_check_branch
        %1060 = sbr.rel (%p1058) target = $region68
      $region67: #{convresnet_forward.1} parent=11 // pred_region
        _
      $region68: #{convresnet_forward.1} parent=11 // pred_fallthru
        _
      // Predicated region
      $region69: #{convresnet_forward.1} parent=11 // pred_check
        %p1061 = pneg %p432
      $region70: #{convresnet_forward.1} parent=11 // pred_check_branch
        %1063 = sbr.rel (%p1061) target = $region72
      $region71: #{convresnet_forward.1} parent=11 // pred_region
        _
      $region72: #{convresnet_forward.1} parent=11 // pred_fallthru
        _
      // Predicated region
      $region73: #{convresnet_forward.1} parent=11 // pred_check
        %p1064 = pneg %p453
      $region74: #{convresnet_forward.1} parent=11 // pred_check_branch
        %1066 = sbr.rel (%p1064) target = $region76
      $region75: #{convresnet_forward.1} parent=11 // pred_region
        _
      $region76: #{convresnet_forward.1} parent=11 // pred_fallthru
        _
      // Predicated region
      $region77: #{convresnet_forward.1} parent=11 // pred_check
        %p1067 = pneg %p474
      $region78: #{convresnet_forward.1} parent=11 // pred_check_branch
        %1069 = sbr.rel (%p1067) target = $region80
      $region79: #{convresnet_forward.1} parent=11 // pred_region
        _
      $region80: #{convresnet_forward.1} parent=11 // pred_fallthru
        _
      // Predicated region
      $region81: #{convresnet_forward.1} parent=11 // pred_check
        %p1070 = pneg %p495
      $region82: #{convresnet_forward.1} parent=11 // pred_check_branch
        %1072 = sbr.rel (%p1070) target = $region84
      $region83: #{convresnet_forward.1} parent=11 // pred_region
        _
      $region84: #{convresnet_forward.1} parent=11 // pred_fallthru
        _
      // Predicated region
      $region85: #{convresnet_forward.1} parent=11 // pred_check
        %p1073 = pneg %p516
      $region86: #{convresnet_forward.1} parent=11 // pred_check_branch
        %1075 = sbr.rel (%p1073) target = $region88
      $region87: #{convresnet_forward.1} parent=11 // pred_region
        _
      $region88: #{convresnet_forward.1} parent=11 // pred_fallthru
        _
      // Predicated region
      $region89: #{convresnet_forward.1} parent=11 // pred_check
        %p1076 = pneg %p537
      $region90: #{convresnet_forward.1} parent=11 // pred_check_branch
        %1078 = sbr.rel (%p1076) target = $region92
      $region91: #{convresnet_forward.1} parent=11 // pred_region
        _
      $region92: #{convresnet_forward.1} parent=11 // pred_fallthru
        _
      // Predicated region
      $region93: #{convresnet_forward.1} parent=11 // pred_check
        %p1079 = pneg %p558
      $region94: #{convresnet_forward.1} parent=11 // pred_check_branch
        %1081 = sbr.rel (%p1079) target = $region96
      $region95: #{convresnet_forward.1} parent=11 // pred_region
        _
      $region96: #{convresnet_forward.1} parent=11 // pred_fallthru
        _
      // Predicated region
      $region97: #{convresnet_forward.1} parent=11 // pred_check
        %p1082 = pneg %p579
      $region98: #{convresnet_forward.1} parent=11 // pred_check_branch
        %1084 = sbr.rel (%p1082) target = $region100
      $region99: #{convresnet_forward.1} parent=11 // pred_region
        _
      $region100: #{convresnet_forward.1} parent=11 // pred_fallthru
        _
      // Predicated region
      $region101: #{convresnet_forward.1} parent=11 // pred_check
        %p1085 = pneg %p600
      $region102: #{convresnet_forward.1} parent=11 // pred_check_branch
        %1087 = sbr.rel (%p1085) target = $region104
      $region103: #{convresnet_forward.1} parent=11 // pred_region
        _
      $region104: #{convresnet_forward.1} parent=11 // pred_fallthru
        _
      // Predicated region
      $region105: #{convresnet_forward.1} parent=11 // pred_check
        %p1088 = pneg %p621
      $region106: #{convresnet_forward.1} parent=11 // pred_check_branch
        %1090 = sbr.rel (%p1088) target = $region108
      $region107: #{convresnet_forward.1} parent=11 // pred_region
        _
      $region108: #{convresnet_forward.1} parent=11 // pred_fallthru
        _
      // Predicated region
      $region109: #{convresnet_forward.1} parent=11 // pred_check
        %p1091 = pneg %p642
      $region110: #{convresnet_forward.1} parent=11 // pred_check_branch
        %1093 = sbr.rel (%p1091) target = $region112
      $region111: #{convresnet_forward.1} parent=11 // pred_region
        _
      $region112: #{convresnet_forward.1} parent=11 // pred_fallthru
        _
      // Predicated region
      $region113: #{convresnet_forward.1} parent=11 // pred_check
        %p1094 = pneg %p663
      $region114: #{convresnet_forward.1} parent=11 // pred_check_branch
        %1096 = sbr.rel (%p1094) target = $region116
      $region115: #{convresnet_forward.1} parent=11 // pred_region
        _
      $region116: #{convresnet_forward.1} parent=11 // pred_fallthru
        _
      // Predicated region
      $region117: #{convresnet_forward.1} parent=11 // pred_check
        %p1097 = pneg %p684
      $region118: #{convresnet_forward.1} parent=11 // pred_check_branch
        %1099 = sbr.rel (%p1097) target = $region120
      $region119: #{convresnet_forward.1} parent=11 // pred_region
        _
      $region120: #{convresnet_forward.1} parent=11 // pred_fallthru
        _
      // Predicated region
      $region121: #{convresnet_forward.1} parent=11 // pred_check
        %p1100 = pneg %p705
      $region122: #{convresnet_forward.1} parent=11 // pred_check_branch
        %1102 = sbr.rel (%p1100) target = $region124
      $region123: #{convresnet_forward.1} parent=11 // pred_region
        _
      $region124: #{convresnet_forward.1} parent=11 // pred_fallthru
        _
      // Predicated region
      $region125: #{convresnet_forward.1} parent=11 // pred_check
        %p1103 = pneg %p726
      $region126: #{convresnet_forward.1} parent=11 // pred_check_branch
        %1105 = sbr.rel (%p1103) target = $region128
      $region127: #{convresnet_forward.1} parent=11 // pred_region
        _
      $region128: #{convresnet_forward.1} parent=11 // pred_fallthru
        _
      // Predicated region
      $region129: #{convresnet_forward.1} parent=11 // pred_check
        %p1106 = pneg %p747
      $region130: #{convresnet_forward.1} parent=11 // pred_check_branch
        %1108 = sbr.rel (%p1106) target = $region132
      $region131: #{convresnet_forward.1} parent=11 // pred_region
        _
      $region132: #{convresnet_forward.1} parent=11 // pred_fallthru
        _
      // Predicated region
      $region133: #{convresnet_forward.1} parent=11 // pred_check
        %p1109 = pneg %p768
      $region134: #{convresnet_forward.1} parent=11 // pred_check_branch
        %1111 = sbr.rel (%p1109) target = $region136
      $region135: #{convresnet_forward.1} parent=11 // pred_region
        _
      $region136: #{convresnet_forward.1} parent=11 // pred_fallthru
        _
      // Predicated region
      $region137: #{convresnet_forward.1} parent=11 // pred_check
        %p1112 = pneg %p789
      $region138: #{convresnet_forward.1} parent=11 // pred_check_branch
        %1114 = sbr.rel (%p1112) target = $region140
      $region139: #{convresnet_forward.1} parent=11 // pred_region
        _
      $region140: #{convresnet_forward.1} parent=11 // pred_fallthru
        _
      // Predicated region
      $region141: #{convresnet_forward.1} parent=11 // pred_check
        %p1115 = pneg %p810
      $region142: #{convresnet_forward.1} parent=11 // pred_check_branch
        %1117 = sbr.rel (%p1115) target = $region144
      $region143: #{convresnet_forward.1} parent=11 // pred_region
        _
      $region144: #{convresnet_forward.1} parent=11 // pred_fallthru
        _
      // Predicated region
      $region145: #{convresnet_forward.1} parent=11 // pred_check
        %p1118 = pneg %p831
      $region146: #{convresnet_forward.1} parent=11 // pred_check_branch
        %1120 = sbr.rel (%p1118) target = $region148
      $region147: #{convresnet_forward.1} parent=11 // pred_region
        _
      $region148: #{convresnet_forward.1} parent=11 // pred_fallthru
        _
      // Predicated region
      $region149: #{convresnet_forward.1} parent=11 // pred_check
        %p1121 = pneg %p852
      $region150: #{convresnet_forward.1} parent=11 // pred_check_branch
        %1123 = sbr.rel (%p1121) target = $region152
      $region151: #{convresnet_forward.1} parent=11 // pred_region
        _
      $region152: #{convresnet_forward.1} parent=11 // pred_fallthru
        _
      // Predicated region
      $region153: #{convresnet_forward.1} parent=11 // pred_check
        %p1124 = pneg %p873
      $region154: #{convresnet_forward.1} parent=11 // pred_check_branch
        %1126 = sbr.rel (%p1124) target = $region156
      $region155: #{convresnet_forward.1} parent=11 // pred_region
        _
      $region156: #{convresnet_forward.1} parent=11 // pred_fallthru
        _
      // Predicated region
      $region157: #{convresnet_forward.1} parent=11 // pred_check
        %p1127 = pneg %p894
      $region158: #{convresnet_forward.1} parent=11 // pred_check_branch
        %1129 = sbr.rel (%p1127) target = $region160
      $region159: #{convresnet_forward.1} parent=11 // pred_region
        _
      $region160: #{convresnet_forward.1} parent=11 // pred_fallthru
        _
      // Predicated region
      $region161: #{convresnet_forward.1} parent=11 // pred_check
        %p1130 = pneg %p915
      $region162: #{convresnet_forward.1} parent=11 // pred_check_branch
        %1132 = sbr.rel (%p1130) target = $region164
      $region163: #{convresnet_forward.1} parent=11 // pred_region
        _
      $region164: #{convresnet_forward.1} parent=11 // pred_fallthru
        _
      // Predicated region
      $region165: #{convresnet_forward.1} parent=11 // pred_check
        %p1133 = pneg %p936
      $region166: #{convresnet_forward.1} parent=11 // pred_check_branch
        %1135 = sbr.rel (%p1133) target = $region168
      $region167: #{convresnet_forward.1} parent=11 // pred_region
        _
      $region168: #{convresnet_forward.1} parent=11 // pred_fallthru
        _
      // Predicated region
      $region169: #{convresnet_forward.1} parent=11 // pred_check
        %p1136 = pneg %p957
      $region170: #{convresnet_forward.1} parent=11 // pred_check_branch
        %1138 = sbr.rel (%p1136) target = $region172
      $region171: #{convresnet_forward.1} parent=11 // pred_region
        _
      $region172: #{convresnet_forward.1} parent=11 // pred_fallthru
        _
      // Predicated region
      $region173: #{convresnet_forward.1} parent=11 // pred_check
        %p1139 = pneg %p978
      $region174: #{convresnet_forward.1} parent=11 // pred_check_branch
        %1141 = sbr.rel (%p1139) target = $region176
      $region175: #{convresnet_forward.1} parent=11 // pred_region
        _
      $region176: #{convresnet_forward.1} parent=11 // pred_fallthru
        _
    $region12: #{convresnet_forward.1} parent=5 // pred_fallthru
      _
    %p1142 = scmp.lt.s32.totalorder %s91, 2
    // Predicated region
    $region177: #{convresnet_forward.1} parent=5 // pred_check
      %p1143 = pneg %p1142
    $region178: #{convresnet_forward.1} parent=5 // pred_check_branch
      %1145 = sbr.rel (%p1143) target = $region180
    $region179: #{convresnet_forward.1} parent=5 // pred_region
      // Predicated region
      $region181: #{convresnet_forward.1} parent=179 // pred_check
        %p1146 = pneg %p111
      $region182: #{convresnet_forward.1} parent=179 // pred_check_branch
        %1148 = sbr.rel (%p1146) target = $region184
      $region183: #{convresnet_forward.1} parent=179 // pred_region
        %p1149 = scmp.lt.s32.totalorder %s91, 1
        %s1150 = scalar_select %p1149, %s91, 1
        %s1151 = smul.addr %s1150, 4
        %s1152 = scalar_lea.vmem %s1, %s1151
      $region184: #{convresnet_forward.1} parent=179 // pred_fallthru
        _
    $region180: #{convresnet_forward.1} parent=5 // pred_fallthru
      _
    %p1153 = scmp.le.s32.totalorder 1, %s91
    %p1154 = scmp.lt.s32.totalorder %s91, 3
    %p1155 = pnand %p1153, %p1154
    %p1156 = pneg %p1155
    // Predicated region
    $region185: #{convresnet_forward.1} parent=5 // pred_check
      _
    $region186: #{convresnet_forward.1} parent=5 // pred_check_branch
      %1158 = sbr.rel (%p1155) target = $region188
    $region187: #{convresnet_forward.1} parent=5 // pred_region
      %s1159 = ssub.s32 %s91, 1
      %p1160 = scmp.lt.s32.totalorder %s96, 1
      %s1161 = scalar_select %p1160, %s96, 1
      %s1162 = smul.addr %s1161, 4
      %s1163 = scalar_lea.vmem %s1, %s1162
      %p1164 = pneg %p117
      %p1165 = pneg %p114
      %p1166 = pneg %p138
      %p1167 = pneg %p135
      %p1168 = pneg %p159
      %p1169 = pneg %p156
      %p1170 = pneg %p180
      %p1171 = pneg %p177
      %p1172 = pneg %p201
      %p1173 = pneg %p198
      %p1174 = pneg %p222
      %p1175 = pneg %p219
      %p1176 = pneg %p243
      %p1177 = pneg %p240
      %p1178 = pneg %p264
      %p1179 = pneg %p261
      %p1180 = pneg %p285
      %p1181 = pneg %p282
      %p1182 = pneg %p306
      %p1183 = pneg %p303
      %p1184 = pneg %p327
      %p1185 = pneg %p324
      %p1186 = pneg %p348
      %p1187 = pneg %p345
      %p1188 = pneg %p369
      %p1189 = pneg %p366
      %p1190 = pneg %p390
      %p1191 = pneg %p387
      %p1192 = pneg %p411
      %p1193 = pneg %p408
      %p1194 = pneg %p432
      %p1195 = pneg %p429
      %p1196 = pneg %p453
      %p1197 = pneg %p450
      %p1198 = pneg %p474
      %p1199 = pneg %p471
      %p1200 = pneg %p495
      %p1201 = pneg %p492
      %p1202 = pneg %p516
      %p1203 = pneg %p513
      %p1204 = pneg %p537
      %p1205 = pneg %p534
      %p1206 = pneg %p558
      %p1207 = pneg %p555
      %p1208 = pneg %p579
      %p1209 = pneg %p576
      %p1210 = pneg %p600
      %p1211 = pneg %p597
      %p1212 = pneg %p621
      %p1213 = pneg %p618
      %p1214 = pneg %p642
      %p1215 = pneg %p639
      %p1216 = pneg %p663
      %p1217 = pneg %p660
      %p1218 = pneg %p684
      %p1219 = pneg %p681
      %p1220 = pneg %p705
      %p1221 = pneg %p702
      %p1222 = pneg %p726
      %p1223 = pneg %p723
      %p1224 = pneg %p747
      %p1225 = pneg %p744
      %p1226 = pneg %p768
      %p1227 = pneg %p765
      %p1228 = pneg %p789
      %p1229 = pneg %p786
      %p1230 = pneg %p810
      %p1231 = pneg %p807
      %p1232 = pneg %p831
      %p1233 = pneg %p828
      %p1234 = pneg %p852
      %p1235 = pneg %p849
      %p1236 = pneg %p873
      %p1237 = pneg %p870
      %p1238 = pneg %p894
      %p1239 = pneg %p891
      %p1240 = pneg %p915
      %p1241 = pneg %p912
      %p1242 = pneg %p936
      %p1243 = pneg %p933
      %p1244 = pneg %p957
      %p1245 = pneg %p954
      %p1246 = pneg %p978
      %p1247 = pneg %p975
      %p1248 = pneg %p1004
      %p1249 = pneg %p1001
      %p1250 = scmp.lt.s32.totalorder %s96, 1
      %s1251 = scalar_select %p1250, %s96, 1
      %s1252 = smul.addr %s1251, 32
      %s1253 = smul.addr %s1252, 8
      %s1254 = scalar_lea.vmem %s85, %s1253
      %p1255 = scmp.lt.s32.totalorder %s96, 1
      %s1256 = scalar_select %p1255, %s96, 1
      %s1257 = smul.addr %s1256, 4
      %s1258 = scalar_lea.vmem %s1, %s1257
      %p1259 = scmp.lt.s32.totalorder %s96, 1
      %s1260 = scalar_select %p1259, %s96, 1
      %s1261 = smul.addr %s1260, 32
      %s1262 = smul.addr %s1261, 8
      %s1263 = scalar_lea.vmem %s85, %s1262
      %v1264 = vld [vmem:[%s1258] sm:$0xf]
      %v1265 = vld [vmem:[%s7] sm:$0xff]
      %v1266 = vld [vmem:[%s7 + $0x8] sm:$0xff]
      %v1267 = vld [vmem:[%s7 + $0x10] sm:$0xff]
      %v1268 = vld [vmem:[%s7 + $0x18] sm:$0xff]
      %v1269 = vld [vmem:[%s7 + $0x20] sm:$0xff]
      %v1270 = vld [vmem:[%s7 + $0x28] sm:$0xff]
      %v1271 = vld [vmem:[%s7 + $0x30] sm:$0xff]
      %v1272 = vld [vmem:[%s7 + $0x38] sm:$0xff]
      %vm1273 = vcmask 523264
      %v1275 = vsel %vm1273, %v1264, 0
      %1277 = vmatpush.msra.mxu0 0.0
      %1278 = vmatpush.msra.mxu0 0.0
      %1279 = vmatpush.msra.mxu0 0.0
      %1280 = vmatpush.msra.mxu0 0.0
      %1281 = vmatpush.msra.mxu0 0.0
      %1282 = vmatpush.msra.mxu0 0.0
      %1283 = vmatpush.msra.mxu0 0.0
      %1284 = vmatpush.msra.mxu0 0.0
      %1285 = vmatpush.msra.mxu0 %v1272
      %1286 = vmatpush.msra.mxu0 %v1271
      %1287 = vmatpush.msra.mxu0 %v1270
      %1288 = vmatpush.msra.mxu0 %v1269
      %1289 = vmatpush.msra.mxu0 %v1268
      %1290 = vmatpush.msra.mxu0 %v1267
      %1291 = vmatpush.msra.mxu0 %v1266
      %1292 = vmatpush.msra.mxu0 %v1265
      %1293 = vmatmul.f32.gmra.mxu0 %v1275
      %v1294 = vpop.f32.mrf.mxu0
      %v1295 = vadd.f32 0.0, %v1294
      %1296 = vdwg.mxu0
      %v1297 = vld [vmem:[%s3] sm:$0xff]
      %v1298 = vld [vmem:[%s3 + $0x8] sm:$0xff]
      %s1299 = scalar_lea.vmem %s7, 64
      %v1300 = vld [vmem:[%s1299] sm:$0xff]
      %v1301 = vld [vmem:[%s1299 + $0x8] sm:$0xff]
      %v1302 = vld [vmem:[%s1299 + $0x10] sm:$0xff]
      %v1303 = vld [vmem:[%s1299 + $0x18] sm:$0xff]
      %v1304 = vld [vmem:[%s1299 + $0x20] sm:$0xff]
      %v1305 = vld [vmem:[%s1299 + $0x28] sm:$0xff]
      %v1306 = vld [vmem:[%s1299 + $0x30] sm:$0xff]
      %v1307 = vld [vmem:[%s1299 + $0x38] sm:$0xff]
      %1308 = vmatpush.msra.mxu0 0.0
      %1309 = vmatpush.msra.mxu0 0.0
      %1310 = vmatpush.msra.mxu0 0.0
      %1311 = vmatpush.msra.mxu0 0.0
      %1312 = vmatpush.msra.mxu0 0.0
      %1313 = vmatpush.msra.mxu0 0.0
      %1314 = vmatpush.msra.mxu0 0.0
      %1315 = vmatpush.msra.mxu0 0.0
      %1316 = vmatpush.msra.mxu0 %v1307
      %1317 = vmatpush.msra.mxu0 %v1306
      %1318 = vmatpush.msra.mxu0 %v1305
      %1319 = vmatpush.msra.mxu0 %v1304
      %1320 = vmatpush.msra.mxu0 %v1303
      %1321 = vmatpush.msra.mxu0 %v1302
      %1322 = vmatpush.msra.mxu0 %v1301
      %1323 = vmatpush.msra.mxu0 %v1300
      %1324 = vmatmul.f32.gmra.mxu0 %v1275
      %v1325 = vpop.f32.mrf.mxu0
      %v1326 = vadd.f32 0.0, %v1325
      %1327 = vdwg.mxu0
      %s1328 = scalar_lea.vmem %s3, 16
      %v1329 = vld [vmem:[%s1328] sm:$0xff]
      %v1330 = vld [vmem:[%s1328 + $0x8] sm:$0xff]
      %vm1331 = vcmask 31744
      %v1333 = vsel %vm1331, %v1329, 0
      %v1336 = vsel %vm1331, %v1330, 0
      %vm1338 = vcmask 1043456
      %v1340 = vsel %vm1338, %v1326, 0
      %1342 = vmatpush.msra.mxu0 0.0
      %1343 = vmatpush.msra.mxu0 0.0
      %1344 = vmatpush.msra.mxu0 0.0
      %1345 = vmatpush.msra.mxu0 0.0
      %1346 = vmatpush.msra.mxu0 0.0
      %1347 = vmatpush.msra.mxu0 0.0
      %1348 = vmatpush.msra.mxu0 0.0
      %1349 = vmatpush.msra.mxu0 0.0
      %1350 = vmatpush.msra.mxu0 0.0
      %1351 = vmatpush.msra.mxu0 0.0
      %1352 = vmatpush.msra.mxu0 0.0
      %1353 = vmatpush.msra.mxu0 0.0
      %1354 = vmatpush.msra.mxu0 0.0
      %1355 = vmatpush.msra.mxu0 0.0
      %1356 = vmatpush.msra.mxu0 0.0
      %1357 = vmatpush.msra.mxu0 %v1340
      %1358 = vmatmul.f32.gmra.mxu0 %v1333
      %v1359 = vpop.f32.mrf.mxu0
      %v1360 = vadd.f32 0.0, %v1359
      %1361 = vmatmul.f32.gmra.mxu0 %v1336
      %v1362 = vpop.f32.mrf.mxu0
      %v1363 = vadd.f32 0.0, %v1362
      %1364 = vdwg.mxu0
      %v1366 = vsel %vm1331, %v1297, 0
      %v1369 = vsel %vm1331, %v1298, 0
      %v1372 = vsel %vm1338, %v1295, 0
      %1374 = vmatpush.msra.mxu0 0.0
      %1375 = vmatpush.msra.mxu0 0.0
      %1376 = vmatpush.msra.mxu0 0.0
      %1377 = vmatpush.msra.mxu0 0.0
      %1378 = vmatpush.msra.mxu0 0.0
      %1379 = vmatpush.msra.mxu0 0.0
      %1380 = vmatpush.msra.mxu0 0.0
      %1381 = vmatpush.msra.mxu0 0.0
      %1382 = vmatpush.msra.mxu0 0.0
      %1383 = vmatpush.msra.mxu0 0.0
      %1384 = vmatpush.msra.mxu0 0.0
      %1385 = vmatpush.msra.mxu0 0.0
      %1386 = vmatpush.msra.mxu0 0.0
      %1387 = vmatpush.msra.mxu0 0.0
      %1388 = vmatpush.msra.mxu0 0.0
      %1389 = vmatpush.msra.mxu0 %v1372
      %1390 = vmatmul.f32.gmra.mxu0 %v1366
      %v1391 = vpop.f32.mrf.mxu0
      %v1392 = vadd.f32 %v1360, %v1391
      %1393 = vmatmul.f32.gmra.mxu0 %v1369
      %v1394 = vpop.f32.mrf.mxu0
      %v1395 = vadd.f32 %v1363, %v1394
      %1396 = vdwg.mxu0
      %s1397 = scalar_lea.vmem %s7, 128
      %v1398 = vld [vmem:[%s1397] sm:$0xff]
      %v1399 = vld [vmem:[%s1397 + $0x8] sm:$0xff]
      %v1400 = vld [vmem:[%s1397 + $0x10] sm:$0xff]
      %v1401 = vld [vmem:[%s1397 + $0x18] sm:$0xff]
      %v1402 = vld [vmem:[%s1397 + $0x20] sm:$0xff]
      %v1403 = vld [vmem:[%s1397 + $0x28] sm:$0xff]
      %v1404 = vld [vmem:[%s1397 + $0x30] sm:$0xff]
      %v1405 = vld [vmem:[%s1397 + $0x38] sm:$0xff]
      %1406 = vmatpush.msra.mxu0 0.0
      %1407 = vmatpush.msra.mxu0 0.0
      %1408 = vmatpush.msra.mxu0 0.0
      %1409 = vmatpush.msra.mxu0 0.0
      %1410 = vmatpush.msra.mxu0 0.0
      %1411 = vmatpush.msra.mxu0 0.0
      %1412 = vmatpush.msra.mxu0 0.0
      %1413 = vmatpush.msra.mxu0 0.0
      %1414 = vmatpush.msra.mxu0 %v1405
      %1415 = vmatpush.msra.mxu0 %v1404
      %1416 = vmatpush.msra.mxu0 %v1403
      %1417 = vmatpush.msra.mxu0 %v1402
      %1418 = vmatpush.msra.mxu0 %v1401
      %1419 = vmatpush.msra.mxu0 %v1400
      %1420 = vmatpush.msra.mxu0 %v1399
      %1421 = vmatpush.msra.mxu0 %v1398
      %1422 = vmatmul.f32.gmra.mxu0 %v1275
      %v1423 = vpop.f32.mrf.mxu0
      %v1424 = vadd.f32 0.0, %v1423
      %1425 = vdwg.mxu0
      %s1426 = scalar_lea.vmem %s3, 32
      %v1427 = vld [vmem:[%s1426] sm:$0xff]
      %v1428 = vld [vmem:[%s1426 + $0x8] sm:$0xff]
      %v1430 = vsel %vm1331, %v1427, 0
      %v1433 = vsel %vm1331, %v1428, 0
      %v1436 = vsel %vm1338, %v1424, 0
      %1438 = vmatpush.msra.mxu0 0.0
      %1439 = vmatpush.msra.mxu0 0.0
      %1440 = vmatpush.msra.mxu0 0.0
      %1441 = vmatpush.msra.mxu0 0.0
      %1442 = vmatpush.msra.mxu0 0.0
      %1443 = vmatpush.msra.mxu0 0.0
      %1444 = vmatpush.msra.mxu0 0.0
      %1445 = vmatpush.msra.mxu0 0.0
      %1446 = vmatpush.msra.mxu0 0.0
      %1447 = vmatpush.msra.mxu0 0.0
      %1448 = vmatpush.msra.mxu0 0.0
      %1449 = vmatpush.msra.mxu0 0.0
      %1450 = vmatpush.msra.mxu0 0.0
      %1451 = vmatpush.msra.mxu0 0.0
      %1452 = vmatpush.msra.mxu0 0.0
      %1453 = vmatpush.msra.mxu0 %v1436
      %1454 = vmatmul.f32.gmra.mxu0 %v1430
      %v1455 = vpop.f32.mrf.mxu0
      %v1456 = vadd.f32 0.0, %v1455
      %1457 = vmatmul.f32.gmra.mxu0 %v1433
      %v1458 = vpop.f32.mrf.mxu0
      %v1459 = vadd.f32 0.0, %v1458
      %1460 = vdwg.mxu0
      %v1461 = vadd.f32 %v1392, %v1456
      %v1462 = vadd.f32 %v1395, %v1459
      %s1463 = scalar_lea.vmem %s7, 192
      %v1464 = vld [vmem:[%s1463] sm:$0xff]
      %v1465 = vld [vmem:[%s1463 + $0x8] sm:$0xff]
      %v1466 = vld [vmem:[%s1463 + $0x10] sm:$0xff]
      %v1467 = vld [vmem:[%s1463 + $0x18] sm:$0xff]
      %v1468 = vld [vmem:[%s1463 + $0x20] sm:$0xff]
      %v1469 = vld [vmem:[%s1463 + $0x28] sm:$0xff]
      %v1470 = vld [vmem:[%s1463 + $0x30] sm:$0xff]
      %v1471 = vld [vmem:[%s1463 + $0x38] sm:$0xff]
      %1472 = vmatpush.msra.mxu0 0.0
      %1473 = vmatpush.msra.mxu0 0.0
      %1474 = vmatpush.msra.mxu0 0.0
      %1475 = vmatpush.msra.mxu0 0.0
      %1476 = vmatpush.msra.mxu0 0.0
      %1477 = vmatpush.msra.mxu0 0.0
      %1478 = vmatpush.msra.mxu0 0.0
      %1479 = vmatpush.msra.mxu0 0.0
      %1480 = vmatpush.msra.mxu0 %v1471
      %1481 = vmatpush.msra.mxu0 %v1470
      %1482 = vmatpush.msra.mxu0 %v1469
      %1483 = vmatpush.msra.mxu0 %v1468
      %1484 = vmatpush.msra.mxu0 %v1467
      %1485 = vmatpush.msra.mxu0 %v1466
      %1486 = vmatpush.msra.mxu0 %v1465
      %1487 = vmatpush.msra.mxu0 %v1464
      %1488 = vmatmul.f32.gmra.mxu0 %v1275
      %v1489 = vpop.f32.mrf.mxu0
      %v1490 = vadd.f32 0.0, %v1489
      %1491 = vdwg.mxu0
      %s1492 = scalar_lea.vmem %s3, 48
      %v1493 = vld [vmem:[%s1492] sm:$0xff]
      %v1494 = vld [vmem:[%s1492 + $0x8] sm:$0xff]
      %v1496 = vsel %vm1331, %v1493, 0
      %v1499 = vsel %vm1331, %v1494, 0
      %v1502 = vsel %vm1338, %v1490, 0
      %1504 = vmatpush.msra.mxu0 0.0
      %1505 = vmatpush.msra.mxu0 0.0
      %1506 = vmatpush.msra.mxu0 0.0
      %1507 = vmatpush.msra.mxu0 0.0
      %1508 = vmatpush.msra.mxu0 0.0
      %1509 = vmatpush.msra.mxu0 0.0
      %1510 = vmatpush.msra.mxu0 0.0
      %1511 = vmatpush.msra.mxu0 0.0
      %1512 = vmatpush.msra.mxu0 0.0
      %1513 = vmatpush.msra.mxu0 0.0
      %1514 = vmatpush.msra.mxu0 0.0
      %1515 = vmatpush.msra.mxu0 0.0
      %1516 = vmatpush.msra.mxu0 0.0
      %1517 = vmatpush.msra.mxu0 0.0
      %1518 = vmatpush.msra.mxu0 0.0
      %1519 = vmatpush.msra.mxu0 %v1502
      %1520 = vmatmul.f32.gmra.mxu0 %v1496
      %v1521 = vpop.f32.mrf.mxu0
      %v1522 = vadd.f32 0.0, %v1521
      %1523 = vmatmul.f32.gmra.mxu0 %v1499
      %v1524 = vpop.f32.mrf.mxu0
      %v1525 = vadd.f32 0.0, %v1524
      %1526 = vdwg.mxu0
      %v1527 = vadd.f32 %v1461, %v1522
      %v1528 = vadd.f32 %v1462, %v1525
      %s1529 = scalar_lea.vmem %s7, 256
      %v1530 = vld [vmem:[%s1529] sm:$0xff]
      %v1531 = vld [vmem:[%s1529 + $0x8] sm:$0xff]
      %v1532 = vld [vmem:[%s1529 + $0x10] sm:$0xff]
      %v1533 = vld [vmem:[%s1529 + $0x18] sm:$0xff]
      %v1534 = vld [vmem:[%s1529 + $0x20] sm:$0xff]
      %v1535 = vld [vmem:[%s1529 + $0x28] sm:$0xff]
      %v1536 = vld [vmem:[%s1529 + $0x30] sm:$0xff]
      %v1537 = vld [vmem:[%s1529 + $0x38] sm:$0xff]
      %1538 = vmatpush.msra.mxu0 0.0
      %1539 = vmatpush.msra.mxu0 0.0
      %1540 = vmatpush.msra.mxu0 0.0
      %1541 = vmatpush.msra.mxu0 0.0
      %1542 = vmatpush.msra.mxu0 0.0
      %1543 = vmatpush.msra.mxu0 0.0
      %1544 = vmatpush.msra.mxu0 0.0
      %1545 = vmatpush.msra.mxu0 0.0
      %1546 = vmatpush.msra.mxu0 %v1537
      %1547 = vmatpush.msra.mxu0 %v1536
      %1548 = vmatpush.msra.mxu0 %v1535
      %1549 = vmatpush.msra.mxu0 %v1534
      %1550 = vmatpush.msra.mxu0 %v1533
      %1551 = vmatpush.msra.mxu0 %v1532
      %1552 = vmatpush.msra.mxu0 %v1531
      %1553 = vmatpush.msra.mxu0 %v1530
      %1554 = vmatmul.f32.gmra.mxu0 %v1275
      %v1555 = vpop.f32.mrf.mxu0
      %v1556 = vadd.f32 0.0, %v1555
      %1557 = vdwg.mxu0
      %s1558 = scalar_lea.vmem %s3, 64
      %v1559 = vld [vmem:[%s1558] sm:$0xff]
      %v1560 = vld [vmem:[%s1558 + $0x8] sm:$0xff]
      %v1562 = vsel %vm1331, %v1559, 0
      %v1565 = vsel %vm1331, %v1560, 0
      %v1568 = vsel %vm1338, %v1556, 0
      %1570 = vmatpush.msra.mxu0 0.0
      %1571 = vmatpush.msra.mxu0 0.0
      %1572 = vmatpush.msra.mxu0 0.0
      %1573 = vmatpush.msra.mxu0 0.0
      %1574 = vmatpush.msra.mxu0 0.0
      %1575 = vmatpush.msra.mxu0 0.0
      %1576 = vmatpush.msra.mxu0 0.0
      %1577 = vmatpush.msra.mxu0 0.0
      %1578 = vmatpush.msra.mxu0 0.0
      %1579 = vmatpush.msra.mxu0 0.0
      %1580 = vmatpush.msra.mxu0 0.0
      %1581 = vmatpush.msra.mxu0 0.0
      %1582 = vmatpush.msra.mxu0 0.0
      %1583 = vmatpush.msra.mxu0 0.0
      %1584 = vmatpush.msra.mxu0 0.0
      %1585 = vmatpush.msra.mxu0 %v1568
      %1586 = vmatmul.f32.gmra.mxu0 %v1562
      %v1587 = vpop.f32.mrf.mxu0
      %v1588 = vadd.f32 0.0, %v1587
      %1589 = vmatmul.f32.gmra.mxu0 %v1565
      %v1590 = vpop.f32.mrf.mxu0
      %v1591 = vadd.f32 0.0, %v1590
      %1592 = vdwg.mxu0
      %v1593 = vadd.f32 %v1527, %v1588
      %v1594 = vadd.f32 %v1528, %v1591
      %s1595 = scalar_lea.vmem %s7, 320
      %v1596 = vld [vmem:[%s1595] sm:$0xff]
      %v1597 = vld [vmem:[%s1595 + $0x8] sm:$0xff]
      %v1598 = vld [vmem:[%s1595 + $0x10] sm:$0xff]
      %v1599 = vld [vmem:[%s1595 + $0x18] sm:$0xff]
      %v1600 = vld [vmem:[%s1595 + $0x20] sm:$0xff]
      %v1601 = vld [vmem:[%s1595 + $0x28] sm:$0xff]
      %v1602 = vld [vmem:[%s1595 + $0x30] sm:$0xff]
      %v1603 = vld [vmem:[%s1595 + $0x38] sm:$0xff]
      %1604 = vmatpush.msra.mxu0 0.0
      %1605 = vmatpush.msra.mxu0 0.0
      %1606 = vmatpush.msra.mxu0 0.0
      %1607 = vmatpush.msra.mxu0 0.0
      %1608 = vmatpush.msra.mxu0 0.0
      %1609 = vmatpush.msra.mxu0 0.0
      %1610 = vmatpush.msra.mxu0 0.0
      %1611 = vmatpush.msra.mxu0 0.0
      %1612 = vmatpush.msra.mxu0 %v1603
      %1613 = vmatpush.msra.mxu0 %v1602
      %1614 = vmatpush.msra.mxu0 %v1601
      %1615 = vmatpush.msra.mxu0 %v1600
      %1616 = vmatpush.msra.mxu0 %v1599
      %1617 = vmatpush.msra.mxu0 %v1598
      %1618 = vmatpush.msra.mxu0 %v1597
      %1619 = vmatpush.msra.mxu0 %v1596
      %1620 = vmatmul.f32.gmra.mxu0 %v1275
      %v1621 = vpop.f32.mrf.mxu0
      %v1622 = vadd.f32 0.0, %v1621
      %1623 = vdwg.mxu0
      %s1624 = scalar_lea.vmem %s3, 80
      %v1625 = vld [vmem:[%s1624] sm:$0xff]
      %v1626 = vld [vmem:[%s1624 + $0x8] sm:$0xff]
      %v1628 = vsel %vm1331, %v1625, 0
      %v1631 = vsel %vm1331, %v1626, 0
      %v1634 = vsel %vm1338, %v1622, 0
      %1636 = vmatpush.msra.mxu0 0.0
      %1637 = vmatpush.msra.mxu0 0.0
      %1638 = vmatpush.msra.mxu0 0.0
      %1639 = vmatpush.msra.mxu0 0.0
      %1640 = vmatpush.msra.mxu0 0.0
      %1641 = vmatpush.msra.mxu0 0.0
      %1642 = vmatpush.msra.mxu0 0.0
      %1643 = vmatpush.msra.mxu0 0.0
      %1644 = vmatpush.msra.mxu0 0.0
      %1645 = vmatpush.msra.mxu0 0.0
      %1646 = vmatpush.msra.mxu0 0.0
      %1647 = vmatpush.msra.mxu0 0.0
      %1648 = vmatpush.msra.mxu0 0.0
      %1649 = vmatpush.msra.mxu0 0.0
      %1650 = vmatpush.msra.mxu0 0.0
      %1651 = vmatpush.msra.mxu0 %v1634
      %1652 = vmatmul.f32.gmra.mxu0 %v1628
      %v1653 = vpop.f32.mrf.mxu0
      %v1654 = vadd.f32 0.0, %v1653
      %1655 = vmatmul.f32.gmra.mxu0 %v1631
      %v1656 = vpop.f32.mrf.mxu0
      %v1657 = vadd.f32 0.0, %v1656
      %1658 = vdwg.mxu0
      %v1659 = vadd.f32 %v1593, %v1654
      %v1660 = vadd.f32 %v1594, %v1657
      %s1661 = scalar_lea.vmem %s7, 384
      %v1662 = vld [vmem:[%s1661] sm:$0xff]
      %v1663 = vld [vmem:[%s1661 + $0x8] sm:$0xff]
      %v1664 = vld [vmem:[%s1661 + $0x10] sm:$0xff]
      %v1665 = vld [vmem:[%s1661 + $0x18] sm:$0xff]
      %v1666 = vld [vmem:[%s1661 + $0x20] sm:$0xff]
      %v1667 = vld [vmem:[%s1661 + $0x28] sm:$0xff]
      %v1668 = vld [vmem:[%s1661 + $0x30] sm:$0xff]
      %v1669 = vld [vmem:[%s1661 + $0x38] sm:$0xff]
      %1670 = vmatpush.msra.mxu0 0.0
      %1671 = vmatpush.msra.mxu0 0.0
      %1672 = vmatpush.msra.mxu0 0.0
      %1673 = vmatpush.msra.mxu0 0.0
      %1674 = vmatpush.msra.mxu0 0.0
      %1675 = vmatpush.msra.mxu0 0.0
      %1676 = vmatpush.msra.mxu0 0.0
      %1677 = vmatpush.msra.mxu0 0.0
      %1678 = vmatpush.msra.mxu0 %v1669
      %1679 = vmatpush.msra.mxu0 %v1668
      %1680 = vmatpush.msra.mxu0 %v1667
      %1681 = vmatpush.msra.mxu0 %v1666
      %1682 = vmatpush.msra.mxu0 %v1665
      %1683 = vmatpush.msra.mxu0 %v1664
      %1684 = vmatpush.msra.mxu0 %v1663
      %1685 = vmatpush.msra.mxu0 %v1662
      %1686 = vmatmul.f32.gmra.mxu0 %v1275
      %v1687 = vpop.f32.mrf.mxu0
      %v1688 = vadd.f32 0.0, %v1687
      %1689 = vdwg.mxu0
      %s1690 = scalar_lea.vmem %s3, 96
      %v1691 = vld [vmem:[%s1690] sm:$0xff]
      %v1692 = vld [vmem:[%s1690 + $0x8] sm:$0xff]
      %v1694 = vsel %vm1331, %v1691, 0
      %v1697 = vsel %vm1331, %v1692, 0
      %v1700 = vsel %vm1338, %v1688, 0
      %1702 = vmatpush.msra.mxu0 0.0
      %1703 = vmatpush.msra.mxu0 0.0
      %1704 = vmatpush.msra.mxu0 0.0
      %1705 = vmatpush.msra.mxu0 0.0
      %1706 = vmatpush.msra.mxu0 0.0
      %1707 = vmatpush.msra.mxu0 0.0
      %1708 = vmatpush.msra.mxu0 0.0
      %1709 = vmatpush.msra.mxu0 0.0
      %1710 = vmatpush.msra.mxu0 0.0
      %1711 = vmatpush.msra.mxu0 0.0
      %1712 = vmatpush.msra.mxu0 0.0
      %1713 = vmatpush.msra.mxu0 0.0
      %1714 = vmatpush.msra.mxu0 0.0
      %1715 = vmatpush.msra.mxu0 0.0
      %1716 = vmatpush.msra.mxu0 0.0
      %1717 = vmatpush.msra.mxu0 %v1700
      %1718 = vmatmul.f32.gmra.mxu0 %v1694
      %v1719 = vpop.f32.mrf.mxu0
      %v1720 = vadd.f32 0.0, %v1719
      %1721 = vmatmul.f32.gmra.mxu0 %v1697
      %v1722 = vpop.f32.mrf.mxu0
      %v1723 = vadd.f32 0.0, %v1722
      %1724 = vdwg.mxu0
      %v1725 = vadd.f32 %v1659, %v1720
      %v1726 = vadd.f32 %v1660, %v1723
      %v1727 = vld [vmem:[%s5] sm:$0xff]
      %v1728 = vld [vmem:[%s5 + $0x8] sm:$0xff]
      %1730 = vset.pattern.permute.xlu0 0
      %1731 = vperm.xlu0 %1730, %v1727
      %v1732 = vpop.permute.xlu0 %1731
      %1735 = vset.pattern.permute.xlu0 0
      %1736 = vperm.xlu0 %1735, %v1728
      %v1737 = vpop.permute.xlu0 %1736
      %v1739 = vadd.f32 %v1725, %v1732
      %v1740 = vadd.f32 %v1726, %v1737
      %v1741 = vmax.f32 %v1739, 0.0
      %v1742 = vmax.f32 %v1740, 0.0
      %v1743 = vld [vmem:[%s9] sm:$0xff]
      %v1744 = vld [vmem:[%s9 + $0x8] sm:$0xff]
      %v1745 = vld [vmem:[%s9 + $0x10] sm:$0xff]
      %v1746 = vld [vmem:[%s9 + $0x18] sm:$0xff]
      %vm1747 = vcmask 261120
      %v1749 = vsel %vm1747, %v1741, 0
      %v1752 = vsel %vm1747, %v1742, 0
      %1754 = vmatpush.msra.mxu0 0.0
      %1755 = vmatpush.msra.mxu0 0.0
      %1756 = vmatpush.msra.mxu0 0.0
      %1757 = vmatpush.msra.mxu0 0.0
      %1758 = vmatpush.msra.mxu0 0.0
      %1759 = vmatpush.msra.mxu0 0.0
      %1760 = vmatpush.msra.mxu0 0.0
      %1761 = vmatpush.msra.mxu0 0.0
      %1762 = vmatpush.msra.mxu0 0.0
      %1763 = vmatpush.msra.mxu0 0.0
      %1764 = vmatpush.msra.mxu0 0.0
      %1765 = vmatpush.msra.mxu0 0.0
      %1766 = vmatpush.msra.mxu0 %v1746
      %1767 = vmatpush.msra.mxu0 %v1745
      %1768 = vmatpush.msra.mxu0 %v1744
      %1769 = vmatpush.msra.mxu0 %v1743
      %1770 = vmatmul.f32.gmra.mxu0 %v1749
      %v1771 = vpop.f32.mrf.mxu0
      %v1772 = vadd.f32 0.0, %v1771
      %1773 = vmatmul.f32.gmra.mxu0 %v1752
      %v1774 = vpop.f32.mrf.mxu0
      %v1775 = vadd.f32 0.0, %v1774
      %1776 = vdwg.mxu0
      %s1777 = scalar_lea.vmem %s9, 32
      %v1778 = vld [vmem:[%s1777] sm:$0xff]
      %v1779 = vld [vmem:[%s1777 + $0x8] sm:$0xff]
      %v1780 = vld [vmem:[%s1777 + $0x10] sm:$0xff]
      %v1781 = vld [vmem:[%s1777 + $0x18] sm:$0xff]
      %1782 = vmatpush.msra.mxu0 0.0
      %1783 = vmatpush.msra.mxu0 0.0
      %1784 = vmatpush.msra.mxu0 0.0
      %1785 = vmatpush.msra.mxu0 0.0
      %1786 = vmatpush.msra.mxu0 0.0
      %1787 = vmatpush.msra.mxu0 0.0
      %1788 = vmatpush.msra.mxu0 0.0
      %1789 = vmatpush.msra.mxu0 0.0
      %1790 = vmatpush.msra.mxu0 0.0
      %1791 = vmatpush.msra.mxu0 0.0
      %1792 = vmatpush.msra.mxu0 0.0
      %1793 = vmatpush.msra.mxu0 0.0
      %1794 = vmatpush.msra.mxu0 %v1781
      %1795 = vmatpush.msra.mxu0 %v1780
      %1796 = vmatpush.msra.mxu0 %v1779
      %1797 = vmatpush.msra.mxu0 %v1778
      %1798 = vmatmul.f32.gmra.mxu0 %v1749
      %v1799 = vpop.f32.mrf.mxu0
      %v1800 = vadd.f32 0.0, %v1799
      %1801 = vmatmul.f32.gmra.mxu0 %v1752
      %v1802 = vpop.f32.mrf.mxu0
      %v1803 = vadd.f32 0.0, %v1802
      %1804 = vdwg.mxu0
      %v1805 = vmax.f32 %v1772, %v1800
      %v1806 = vmax.f32 %v1775, %v1803
      %s1807 = scalar_lea.vmem %s9, 64
      %v1808 = vld [vmem:[%s1807] sm:$0xff]
      %v1809 = vld [vmem:[%s1807 + $0x8] sm:$0xff]
      %v1810 = vld [vmem:[%s1807 + $0x10] sm:$0xff]
      %v1811 = vld [vmem:[%s1807 + $0x18] sm:$0xff]
      %1812 = vmatpush.msra.mxu0 0.0
      %1813 = vmatpush.msra.mxu0 0.0
      %1814 = vmatpush.msra.mxu0 0.0
      %1815 = vmatpush.msra.mxu0 0.0
      %1816 = vmatpush.msra.mxu0 0.0
      %1817 = vmatpush.msra.mxu0 0.0
      %1818 = vmatpush.msra.mxu0 0.0
      %1819 = vmatpush.msra.mxu0 0.0
      %1820 = vmatpush.msra.mxu0 0.0
      %1821 = vmatpush.msra.mxu0 0.0
      %1822 = vmatpush.msra.mxu0 0.0
      %1823 = vmatpush.msra.mxu0 0.0
      %1824 = vmatpush.msra.mxu0 %v1811
      %1825 = vmatpush.msra.mxu0 %v1810
      %1826 = vmatpush.msra.mxu0 %v1809
      %1827 = vmatpush.msra.mxu0 %v1808
      %1828 = vmatmul.f32.gmra.mxu0 %v1749
      %v1829 = vpop.f32.mrf.mxu0
      %v1830 = vadd.f32 0.0, %v1829
      %1831 = vmatmul.f32.gmra.mxu0 %v1752
      %v1832 = vpop.f32.mrf.mxu0
      %v1833 = vadd.f32 0.0, %v1832
      %1834 = vdwg.mxu0
      %v1835 = vmax.f32 %v1805, %v1830
      %v1836 = vmax.f32 %v1806, %v1833
      %v1837 = vld [vmem:[%s15] sm:$0xff]
      %v1838 = vld [vmem:[%s15 + $0x8] sm:$0xff]
      %vm1839 = vcmask 130048
      %v1841 = vsel %vm1839, %v1835, 0
      %v1844 = vsel %vm1839, %v1836, 0
      %1846 = vmatpush.msra.mxu0 0.0
      %1847 = vmatpush.msra.mxu0 0.0
      %1848 = vmatpush.msra.mxu0 0.0
      %1849 = vmatpush.msra.mxu0 0.0
      %1850 = vmatpush.msra.mxu0 0.0
      %1851 = vmatpush.msra.mxu0 0.0
      %1852 = vmatpush.msra.mxu0 0.0
      %1853 = vmatpush.msra.mxu0 0.0
      %1854 = vmatpush.msra.mxu0 0.0
      %1855 = vmatpush.msra.mxu0 0.0
      %1856 = vmatpush.msra.mxu0 0.0
      %1857 = vmatpush.msra.mxu0 0.0
      %1858 = vmatpush.msra.mxu0 0.0
      %1859 = vmatpush.msra.mxu0 0.0
      %1860 = vmatpush.msra.mxu0 %v1838
      %1861 = vmatpush.msra.mxu0 %v1837
      %1862 = vmatmul.f32.gmra.mxu0 %v1841
      %v1863 = vpop.f32.mrf.mxu0
      %v1864 = vadd.f32 0.0, %v1863
      %1865 = vmatmul.f32.gmra.mxu0 %v1844
      %v1866 = vpop.f32.mrf.mxu0
      %v1867 = vadd.f32 0.0, %v1866
      %1868 = vdwg.mxu0
      %v1869 = vld [vmem:[%s11] sm:$0xff]
      %v1870 = vld [vmem:[%s11 + $0x8] sm:$0xff]
      %v1871 = vld [vmem:[%s11 + $0x10] sm:$0xff]
      %v1872 = vld [vmem:[%s11 + $0x18] sm:$0xff]
      %s1873 = scalar_lea.vmem %s15, 16
      %v1874 = vld [vmem:[%s1873] sm:$0xff]
      %v1875 = vld [vmem:[%s1873 + $0x8] sm:$0xff]
      %1876 = vmatpush.msra.mxu0 0.0
      %1877 = vmatpush.msra.mxu0 0.0
      %1878 = vmatpush.msra.mxu0 0.0
      %1879 = vmatpush.msra.mxu0 0.0
      %1880 = vmatpush.msra.mxu0 0.0
      %1881 = vmatpush.msra.mxu0 0.0
      %1882 = vmatpush.msra.mxu0 0.0
      %1883 = vmatpush.msra.mxu0 0.0
      %1884 = vmatpush.msra.mxu0 0.0
      %1885 = vmatpush.msra.mxu0 0.0
      %1886 = vmatpush.msra.mxu0 0.0
      %1887 = vmatpush.msra.mxu0 0.0
      %1888 = vmatpush.msra.mxu0 0.0
      %1889 = vmatpush.msra.mxu0 0.0
      %1890 = vmatpush.msra.mxu0 %v1875
      %1891 = vmatpush.msra.mxu0 %v1874
      %1892 = vmatmul.f32.gmra.mxu0 %v1841
      %v1893 = vpop.f32.mrf.mxu0
      %v1894 = vadd.f32 0.0, %v1893
      %1895 = vmatmul.f32.gmra.mxu0 %v1844
      %v1896 = vpop.f32.mrf.mxu0
      %v1897 = vadd.f32 0.0, %v1896
      %1898 = vdwg.mxu0
      %s1899 = scalar_lea.vmem %s11, 32
      %v1900 = vld [vmem:[%s1899] sm:$0xff]
      %v1901 = vld [vmem:[%s1899 + $0x8] sm:$0xff]
      %v1902 = vld [vmem:[%s1899 + $0x10] sm:$0xff]
      %v1903 = vld [vmem:[%s1899 + $0x18] sm:$0xff]
      %v1905 = vsel %vm1839, %v1900, 0
      %v1908 = vsel %vm1839, %v1901, 0
      %v1911 = vsel %vm1839, %v1902, 0
      %v1914 = vsel %vm1839, %v1903, 0
      %1916 = vmatpush.msra.mxu0 0.0
      %1917 = vmatpush.msra.mxu0 0.0
      %1918 = vmatpush.msra.mxu0 0.0
      %1919 = vmatpush.msra.mxu0 0.0
      %1920 = vmatpush.msra.mxu0 0.0
      %1921 = vmatpush.msra.mxu0 0.0
      %1922 = vmatpush.msra.mxu0 0.0
      %1923 = vmatpush.msra.mxu0 0.0
      %1924 = vmatpush.msra.mxu0 0.0
      %1925 = vmatpush.msra.mxu0 0.0
      %1926 = vmatpush.msra.mxu0 0.0
      %1927 = vmatpush.msra.mxu0 0.0
      %1928 = vmatpush.msra.mxu0 0.0
      %1929 = vmatpush.msra.mxu0 0.0
      %1930 = vmatpush.msra.mxu0 %v1897
      %1931 = vmatpush.msra.mxu0 %v1894
      %1932 = vmatmul.f32.gmra.mxu0 %v1905
      %v1933 = vpop.f32.mrf.mxu0
      %v1934 = vadd.f32 0.0, %v1933
      %1935 = vmatmul.f32.gmra.mxu0 %v1908
      %v1936 = vpop.f32.mrf.mxu0
      %v1937 = vadd.f32 0.0, %v1936
      %1938 = vmatmul.f32.gmra.mxu0 %v1911
      %v1939 = vpop.f32.mrf.mxu0
      %v1940 = vadd.f32 0.0, %v1939
      %1941 = vmatmul.f32.gmra.mxu0 %v1914
      %v1942 = vpop.f32.mrf.mxu0
      %v1943 = vadd.f32 0.0, %v1942
      %1944 = vdwg.mxu0
      %v1946 = vsel %vm1839, %v1869, 0
      %v1949 = vsel %vm1839, %v1870, 0
      %v1952 = vsel %vm1839, %v1871, 0
      %v1955 = vsel %vm1839, %v1872, 0
      %1957 = vmatpush.msra.mxu0 0.0
      %1958 = vmatpush.msra.mxu0 0.0
      %1959 = vmatpush.msra.mxu0 0.0
      %1960 = vmatpush.msra.mxu0 0.0
      %1961 = vmatpush.msra.mxu0 0.0
      %1962 = vmatpush.msra.mxu0 0.0
      %1963 = vmatpush.msra.mxu0 0.0
      %1964 = vmatpush.msra.mxu0 0.0
      %1965 = vmatpush.msra.mxu0 0.0
      %1966 = vmatpush.msra.mxu0 0.0
      %1967 = vmatpush.msra.mxu0 0.0
      %1968 = vmatpush.msra.mxu0 0.0
      %1969 = vmatpush.msra.mxu0 0.0
      %1970 = vmatpush.msra.mxu0 0.0
      %1971 = vmatpush.msra.mxu0 %v1867
      %1972 = vmatpush.msra.mxu0 %v1864
      %1973 = vmatmul.f32.gmra.mxu0 %v1946
      %v1974 = vpop.f32.mrf.mxu0
      %v1975 = vadd.f32 %v1934, %v1974
      %1976 = vmatmul.f32.gmra.mxu0 %v1949
      %v1977 = vpop.f32.mrf.mxu0
      %v1978 = vadd.f32 %v1937, %v1977
      %1979 = vmatmul.f32.gmra.mxu0 %v1952
      %v1980 = vpop.f32.mrf.mxu0
      %v1981 = vadd.f32 %v1940, %v1980
      %1982 = vmatmul.f32.gmra.mxu0 %v1955
      %v1983 = vpop.f32.mrf.mxu0
      %v1984 = vadd.f32 %v1943, %v1983
      %1985 = vdwg.mxu0
      %s1986 = scalar_lea.vmem %s15, 32
      %v1987 = vld [vmem:[%s1986] sm:$0xff]
      %v1988 = vld [vmem:[%s1986 + $0x8] sm:$0xff]
      %1989 = vmatpush.msra.mxu0 0.0
      %1990 = vmatpush.msra.mxu0 0.0
      %1991 = vmatpush.msra.mxu0 0.0
      %1992 = vmatpush.msra.mxu0 0.0
      %1993 = vmatpush.msra.mxu0 0.0
      %1994 = vmatpush.msra.mxu0 0.0
      %1995 = vmatpush.msra.mxu0 0.0
      %1996 = vmatpush.msra.mxu0 0.0
      %1997 = vmatpush.msra.mxu0 0.0
      %1998 = vmatpush.msra.mxu0 0.0
      %1999 = vmatpush.msra.mxu0 0.0
      %2000 = vmatpush.msra.mxu0 0.0
      %2001 = vmatpush.msra.mxu0 0.0
      %2002 = vmatpush.msra.mxu0 0.0
      %2003 = vmatpush.msra.mxu0 %v1988
      %2004 = vmatpush.msra.mxu0 %v1987
      %2005 = vmatmul.f32.gmra.mxu0 %v1841
      %v2006 = vpop.f32.mrf.mxu0
      %v2007 = vadd.f32 0.0, %v2006
      %2008 = vmatmul.f32.gmra.mxu0 %v1844
      %v2009 = vpop.f32.mrf.mxu0
      %v2010 = vadd.f32 0.0, %v2009
      %2011 = vdwg.mxu0
      %s2012 = scalar_lea.vmem %s11, 64
      %v2013 = vld [vmem:[%s2012] sm:$0xff]
      %v2014 = vld [vmem:[%s2012 + $0x8] sm:$0xff]
      %v2015 = vld [vmem:[%s2012 + $0x10] sm:$0xff]
      %v2016 = vld [vmem:[%s2012 + $0x18] sm:$0xff]
      %v2018 = vsel %vm1839, %v2013, 0
      %v2021 = vsel %vm1839, %v2014, 0
      %v2024 = vsel %vm1839, %v2015, 0
      %v2027 = vsel %vm1839, %v2016, 0
      %2029 = vmatpush.msra.mxu0 0.0
      %2030 = vmatpush.msra.mxu0 0.0
      %2031 = vmatpush.msra.mxu0 0.0
      %2032 = vmatpush.msra.mxu0 0.0
      %2033 = vmatpush.msra.mxu0 0.0
      %2034 = vmatpush.msra.mxu0 0.0
      %2035 = vmatpush.msra.mxu0 0.0
      %2036 = vmatpush.msra.mxu0 0.0
      %2037 = vmatpush.msra.mxu0 0.0
      %2038 = vmatpush.msra.mxu0 0.0
      %2039 = vmatpush.msra.mxu0 0.0
      %2040 = vmatpush.msra.mxu0 0.0
      %2041 = vmatpush.msra.mxu0 0.0
      %2042 = vmatpush.msra.mxu0 0.0
      %2043 = vmatpush.msra.mxu0 %v2010
      %2044 = vmatpush.msra.mxu0 %v2007
      %2045 = vmatmul.f32.gmra.mxu0 %v2018
      %v2046 = vpop.f32.mrf.mxu0
      %v2047 = vadd.f32 0.0, %v2046
      %2048 = vmatmul.f32.gmra.mxu0 %v2021
      %v2049 = vpop.f32.mrf.mxu0
      %v2050 = vadd.f32 0.0, %v2049
      %2051 = vmatmul.f32.gmra.mxu0 %v2024
      %v2052 = vpop.f32.mrf.mxu0
      %v2053 = vadd.f32 0.0, %v2052
      %2054 = vmatmul.f32.gmra.mxu0 %v2027
      %v2055 = vpop.f32.mrf.mxu0
      %v2056 = vadd.f32 0.0, %v2055
      %2057 = vdwg.mxu0
      %v2058 = vadd.f32 %v1975, %v2047
      %v2059 = vadd.f32 %v1978, %v2050
      %v2060 = vadd.f32 %v1981, %v2053
      %v2061 = vadd.f32 %v1984, %v2056
      %v2062 = vld [vmem:[%s13] sm:$0xff]
      %v2063 = vld [vmem:[%s13 + $0x8] sm:$0xff]
      %v2064 = vld [vmem:[%s13 + $0x10] sm:$0xff]
      %v2065 = vld [vmem:[%s13 + $0x18] sm:$0xff]
      %2067 = vset.pattern.permute.xlu0 0
      %2068 = vperm.xlu0 %2067, %v2062
      %v2069 = vpop.permute.xlu0 %2068
      %2072 = vset.pattern.permute.xlu0 0
      %2073 = vperm.xlu0 %2072, %v2063
      %v2074 = vpop.permute.xlu0 %2073
      %2077 = vset.pattern.permute.xlu0 0
      %2078 = vperm.xlu0 %2077, %v2064
      %v2079 = vpop.permute.xlu0 %2078
      %2082 = vset.pattern.permute.xlu0 0
      %2083 = vperm.xlu0 %2082, %v2065
      %v2084 = vpop.permute.xlu0 %2083
      %v2086 = vadd.f32 %v2058, %v2069
      %v2087 = vadd.f32 %v2059, %v2074
      %v2088 = vadd.f32 %v2060, %v2079
      %v2089 = vadd.f32 %v2061, %v2084
      %v2090 = vmax.f32 %v2086, 0.0
      %v2091 = vmax.f32 %v2087, 0.0
      %v2092 = vmax.f32 %v2088, 0.0
      %v2093 = vmax.f32 %v2089, 0.0
      %v2094 = vld [vmem:[%s21] sm:$0xff]
      %v2095 = vld [vmem:[%s21 + $0x8] sm:$0xff]
      %v2097 = vsel %vm1839, %v2090, 0
      %v2100 = vsel %vm1839, %v2091, 0
      %v2103 = vsel %vm1839, %v2092, 0
      %v2106 = vsel %vm1839, %v2093, 0
      %2108 = vmatpush.msra.mxu0 0.0
      %2109 = vmatpush.msra.mxu0 0.0
      %2110 = vmatpush.msra.mxu0 0.0
      %2111 = vmatpush.msra.mxu0 0.0
      %2112 = vmatpush.msra.mxu0 0.0
      %2113 = vmatpush.msra.mxu0 0.0
      %2114 = vmatpush.msra.mxu0 0.0
      %2115 = vmatpush.msra.mxu0 0.0
      %2116 = vmatpush.msra.mxu0 0.0
      %2117 = vmatpush.msra.mxu0 0.0
      %2118 = vmatpush.msra.mxu0 0.0
      %2119 = vmatpush.msra.mxu0 0.0
      %2120 = vmatpush.msra.mxu0 0.0
      %2121 = vmatpush.msra.mxu0 0.0
      %2122 = vmatpush.msra.mxu0 %v2095
      %2123 = vmatpush.msra.mxu0 %v2094
      %2124 = vmatmul.f32.gmra.mxu0 %v2097
      %v2125 = vpop.f32.mrf.mxu0
      %v2126 = vadd.f32 0.0, %v2125
      %2127 = vmatmul.f32.gmra.mxu0 %v2100
      %v2128 = vpop.f32.mrf.mxu0
      %v2129 = vadd.f32 0.0, %v2128
      %2130 = vmatmul.f32.gmra.mxu0 %v2103
      %v2131 = vpop.f32.mrf.mxu0
      %v2132 = vadd.f32 0.0, %v2131
      %2133 = vmatmul.f32.gmra.mxu0 %v2106
      %v2134 = vpop.f32.mrf.mxu0
      %v2135 = vadd.f32 0.0, %v2134
      %2136 = vdwg.mxu0
      %v2137 = vld [vmem:[%s17] sm:$0xff]
      %v2138 = vld [vmem:[%s17 + $0x8] sm:$0xff]
      %v2139 = vld [vmem:[%s17 + $0x10] sm:$0xff]
      %v2140 = vld [vmem:[%s17 + $0x18] sm:$0xff]
      %s2141 = scalar_lea.vmem %s21, 16
      %v2142 = vld [vmem:[%s2141] sm:$0xff]
      %v2143 = vld [vmem:[%s2141 + $0x8] sm:$0xff]
      %2144 = vmatpush.msra.mxu0 0.0
      %2145 = vmatpush.msra.mxu0 0.0
      %2146 = vmatpush.msra.mxu0 0.0
      %2147 = vmatpush.msra.mxu0 0.0
      %2148 = vmatpush.msra.mxu0 0.0
      %2149 = vmatpush.msra.mxu0 0.0
      %2150 = vmatpush.msra.mxu0 0.0
      %2151 = vmatpush.msra.mxu0 0.0
      %2152 = vmatpush.msra.mxu0 0.0
      %2153 = vmatpush.msra.mxu0 0.0
      %2154 = vmatpush.msra.mxu0 0.0
      %2155 = vmatpush.msra.mxu0 0.0
      %2156 = vmatpush.msra.mxu0 0.0
      %2157 = vmatpush.msra.mxu0 0.0
      %2158 = vmatpush.msra.mxu0 %v2143
      %2159 = vmatpush.msra.mxu0 %v2142
      %2160 = vmatmul.f32.gmra.mxu0 %v2097
      %v2161 = vpop.f32.mrf.mxu0
      %v2162 = vadd.f32 0.0, %v2161
      %2163 = vmatmul.f32.gmra.mxu0 %v2100
      %v2164 = vpop.f32.mrf.mxu0
      %v2165 = vadd.f32 0.0, %v2164
      %2166 = vmatmul.f32.gmra.mxu0 %v2103
      %v2167 = vpop.f32.mrf.mxu0
      %v2168 = vadd.f32 0.0, %v2167
      %2169 = vmatmul.f32.gmra.mxu0 %v2106
      %v2170 = vpop.f32.mrf.mxu0
      %v2171 = vadd.f32 0.0, %v2170
      %2172 = vdwg.mxu0
      %s2173 = scalar_lea.vmem %s17, 32
      %v2174 = vld [vmem:[%s2173] sm:$0xff]
      %v2175 = vld [vmem:[%s2173 + $0x8] sm:$0xff]
      %v2176 = vld [vmem:[%s2173 + $0x10] sm:$0xff]
      %v2177 = vld [vmem:[%s2173 + $0x18] sm:$0xff]
      %v2179 = vsel %vm1747, %v2174, 0
      %v2182 = vsel %vm1747, %v2175, 0
      %v2185 = vsel %vm1747, %v2176, 0
      %v2188 = vsel %vm1747, %v2177, 0
      %2190 = vmatpush.msra.mxu0 0.0
      %2191 = vmatpush.msra.mxu0 0.0
      %2192 = vmatpush.msra.mxu0 0.0
      %2193 = vmatpush.msra.mxu0 0.0
      %2194 = vmatpush.msra.mxu0 0.0
      %2195 = vmatpush.msra.mxu0 0.0
      %2196 = vmatpush.msra.mxu0 0.0
      %2197 = vmatpush.msra.mxu0 0.0
      %2198 = vmatpush.msra.mxu0 0.0
      %2199 = vmatpush.msra.mxu0 0.0
      %2200 = vmatpush.msra.mxu0 0.0
      %2201 = vmatpush.msra.mxu0 0.0
      %2202 = vmatpush.msra.mxu0 %v2171
      %2203 = vmatpush.msra.mxu0 %v2168
      %2204 = vmatpush.msra.mxu0 %v2165
      %2205 = vmatpush.msra.mxu0 %v2162
      %2206 = vmatmul.f32.gmra.mxu0 %v2179
      %v2207 = vpop.f32.mrf.mxu0
      %v2208 = vadd.f32 0.0, %v2207
      %2209 = vmatmul.f32.gmra.mxu0 %v2182
      %v2210 = vpop.f32.mrf.mxu0
      %v2211 = vadd.f32 0.0, %v2210
      %2212 = vmatmul.f32.gmra.mxu0 %v2185
      %v2213 = vpop.f32.mrf.mxu0
      %v2214 = vadd.f32 0.0, %v2213
      %2215 = vmatmul.f32.gmra.mxu0 %v2188
      %v2216 = vpop.f32.mrf.mxu0
      %v2217 = vadd.f32 0.0, %v2216
      %2218 = vdwg.mxu0
      %v2220 = vsel %vm1747, %v2137, 0
      %v2223 = vsel %vm1747, %v2138, 0
      %v2226 = vsel %vm1747, %v2139, 0
      %v2229 = vsel %vm1747, %v2140, 0
      %2231 = vmatpush.msra.mxu0 0.0
      %2232 = vmatpush.msra.mxu0 0.0
      %2233 = vmatpush.msra.mxu0 0.0
      %2234 = vmatpush.msra.mxu0 0.0
      %2235 = vmatpush.msra.mxu0 0.0
      %2236 = vmatpush.msra.mxu0 0.0
      %2237 = vmatpush.msra.mxu0 0.0
      %2238 = vmatpush.msra.mxu0 0.0
      %2239 = vmatpush.msra.mxu0 0.0
      %2240 = vmatpush.msra.mxu0 0.0
      %2241 = vmatpush.msra.mxu0 0.0
      %2242 = vmatpush.msra.mxu0 0.0
      %2243 = vmatpush.msra.mxu0 %v2135
      %2244 = vmatpush.msra.mxu0 %v2132
      %2245 = vmatpush.msra.mxu0 %v2129
      %2246 = vmatpush.msra.mxu0 %v2126
      %2247 = vmatmul.f32.gmra.mxu0 %v2220
      %v2248 = vpop.f32.mrf.mxu0
      %v2249 = vadd.f32 %v2208, %v2248
      %2250 = vmatmul.f32.gmra.mxu0 %v2223
      %v2251 = vpop.f32.mrf.mxu0
      %v2252 = vadd.f32 %v2211, %v2251
      %2253 = vmatmul.f32.gmra.mxu0 %v2226
      %v2254 = vpop.f32.mrf.mxu0
      %v2255 = vadd.f32 %v2214, %v2254
      %2256 = vmatmul.f32.gmra.mxu0 %v2229
      %v2257 = vpop.f32.mrf.mxu0
      %v2258 = vadd.f32 %v2217, %v2257
      %2259 = vdwg.mxu0
      %s2260 = scalar_lea.vmem %s21, 32
      %v2261 = vld [vmem:[%s2260] sm:$0xff]
      %v2262 = vld [vmem:[%s2260 + $0x8] sm:$0xff]
      %2263 = vmatpush.msra.mxu0 0.0
      %2264 = vmatpush.msra.mxu0 0.0
      %2265 = vmatpush.msra.mxu0 0.0
      %2266 = vmatpush.msra.mxu0 0.0
      %2267 = vmatpush.msra.mxu0 0.0
      %2268 = vmatpush.msra.mxu0 0.0
      %2269 = vmatpush.msra.mxu0 0.0
      %2270 = vmatpush.msra.mxu0 0.0
      %2271 = vmatpush.msra.mxu0 0.0
      %2272 = vmatpush.msra.mxu0 0.0
      %2273 = vmatpush.msra.mxu0 0.0
      %2274 = vmatpush.msra.mxu0 0.0
      %2275 = vmatpush.msra.mxu0 0.0
      %2276 = vmatpush.msra.mxu0 0.0
      %2277 = vmatpush.msra.mxu0 %v2262
      %2278 = vmatpush.msra.mxu0 %v2261
      %2279 = vmatmul.f32.gmra.mxu0 %v2097
      %v2280 = vpop.f32.mrf.mxu0
      %v2281 = vadd.f32 0.0, %v2280
      %2282 = vmatmul.f32.gmra.mxu0 %v2100
      %v2283 = vpop.f32.mrf.mxu0
      %v2284 = vadd.f32 0.0, %v2283
      %2285 = vmatmul.f32.gmra.mxu0 %v2103
      %v2286 = vpop.f32.mrf.mxu0
      %v2287 = vadd.f32 0.0, %v2286
      %2288 = vmatmul.f32.gmra.mxu0 %v2106
      %v2289 = vpop.f32.mrf.mxu0
      %v2290 = vadd.f32 0.0, %v2289
      %2291 = vdwg.mxu0
      %s2292 = scalar_lea.vmem %s17, 64
      %v2293 = vld [vmem:[%s2292] sm:$0xff]
      %v2294 = vld [vmem:[%s2292 + $0x8] sm:$0xff]
      %v2295 = vld [vmem:[%s2292 + $0x10] sm:$0xff]
      %v2296 = vld [vmem:[%s2292 + $0x18] sm:$0xff]
      %v2298 = vsel %vm1747, %v2293, 0
      %v2301 = vsel %vm1747, %v2294, 0
      %v2304 = vsel %vm1747, %v2295, 0
      %v2307 = vsel %vm1747, %v2296, 0
      %2309 = vmatpush.msra.mxu0 0.0
      %2310 = vmatpush.msra.mxu0 0.0
      %2311 = vmatpush.msra.mxu0 0.0
      %2312 = vmatpush.msra.mxu0 0.0
      %2313 = vmatpush.msra.mxu0 0.0
      %2314 = vmatpush.msra.mxu0 0.0
      %2315 = vmatpush.msra.mxu0 0.0
      %2316 = vmatpush.msra.mxu0 0.0
      %2317 = vmatpush.msra.mxu0 0.0
      %2318 = vmatpush.msra.mxu0 0.0
      %2319 = vmatpush.msra.mxu0 0.0
      %2320 = vmatpush.msra.mxu0 0.0
      %2321 = vmatpush.msra.mxu0 %v2290
      %2322 = vmatpush.msra.mxu0 %v2287
      %2323 = vmatpush.msra.mxu0 %v2284
      %2324 = vmatpush.msra.mxu0 %v2281
      %2325 = vmatmul.f32.gmra.mxu0 %v2298
      %v2326 = vpop.f32.mrf.mxu0
      %v2327 = vadd.f32 0.0, %v2326
      %2328 = vmatmul.f32.gmra.mxu0 %v2301
      %v2329 = vpop.f32.mrf.mxu0
      %v2330 = vadd.f32 0.0, %v2329
      %2331 = vmatmul.f32.gmra.mxu0 %v2304
      %v2332 = vpop.f32.mrf.mxu0
      %v2333 = vadd.f32 0.0, %v2332
      %2334 = vmatmul.f32.gmra.mxu0 %v2307
      %v2335 = vpop.f32.mrf.mxu0
      %v2336 = vadd.f32 0.0, %v2335
      %2337 = vdwg.mxu0
      %v2338 = vadd.f32 %v2249, %v2327
      %v2339 = vadd.f32 %v2252, %v2330
      %v2340 = vadd.f32 %v2255, %v2333
      %v2341 = vadd.f32 %v2258, %v2336
      %v2342 = vld [vmem:[%s19] sm:$0xff]
      %v2343 = vld [vmem:[%s19 + $0x8] sm:$0xff]
      %v2344 = vld [vmem:[%s19 + $0x10] sm:$0xff]
      %v2345 = vld [vmem:[%s19 + $0x18] sm:$0xff]
      %2347 = vset.pattern.permute.xlu0 0
      %2348 = vperm.xlu0 %2347, %v2342
      %v2349 = vpop.permute.xlu0 %2348
      %2352 = vset.pattern.permute.xlu0 0
      %2353 = vperm.xlu0 %2352, %v2343
      %v2354 = vpop.permute.xlu0 %2353
      %2357 = vset.pattern.permute.xlu0 0
      %2358 = vperm.xlu0 %2357, %v2344
      %v2359 = vpop.permute.xlu0 %2358
      %2362 = vset.pattern.permute.xlu0 0
      %2363 = vperm.xlu0 %2362, %v2345
      %v2364 = vpop.permute.xlu0 %2363
      %v2366 = vadd.f32 %v2338, %v2349
      %v2367 = vadd.f32 %v2339, %v2354
      %v2368 = vadd.f32 %v2340, %v2359
      %v2369 = vadd.f32 %v2341, %v2364
      %v2370 = vld [vmem:[%s23] sm:$0xff]
      %v2371 = vld [vmem:[%s23 + $0x8] sm:$0xff]
      %v2372 = vld [vmem:[%s23 + $0x10] sm:$0xff]
      %v2373 = vld [vmem:[%s23 + $0x18] sm:$0xff]
      %v2374 = vld [vmem:[%s25] sm:$0xff]
      %v2375 = vld [vmem:[%s25 + $0x8] sm:$0xff]
      %v2376 = vld [vmem:[%s25 + $0x10] sm:$0xff]
      %v2377 = vld [vmem:[%s25 + $0x18] sm:$0xff]
      %2379 = vset.pattern.permute.xlu0 0
      %2380 = vperm.xlu0 %2379, %v2374
      %v2381 = vpop.permute.xlu0 %2380
      %2384 = vset.pattern.permute.xlu0 0
      %2385 = vperm.xlu0 %2384, %v2375
      %v2386 = vpop.permute.xlu0 %2385
      %2389 = vset.pattern.permute.xlu0 0
      %2390 = vperm.xlu0 %2389, %v2376
      %v2391 = vpop.permute.xlu0 %2390
      %2394 = vset.pattern.permute.xlu0 0
      %2395 = vperm.xlu0 %2394, %v2377
      %v2396 = vpop.permute.xlu0 %2395
      %v2399 = vsel %vm1839, %v2370, 0
      %v2402 = vsel %vm1839, %v2371, 0
      %v2405 = vsel %vm1839, %v2372, 0
      %v2408 = vsel %vm1839, %v2373, 0
      %2410 = vmatpush.msra.mxu0 0.0
      %2411 = vmatpush.msra.mxu0 0.0
      %2412 = vmatpush.msra.mxu0 0.0
      %2413 = vmatpush.msra.mxu0 0.0
      %2414 = vmatpush.msra.mxu0 0.0
      %2415 = vmatpush.msra.mxu0 0.0
      %2416 = vmatpush.msra.mxu0 0.0
      %2417 = vmatpush.msra.mxu0 0.0
      %2418 = vmatpush.msra.mxu0 0.0
      %2419 = vmatpush.msra.mxu0 0.0
      %2420 = vmatpush.msra.mxu0 0.0
      %2421 = vmatpush.msra.mxu0 0.0
      %2422 = vmatpush.msra.mxu0 0.0
      %2423 = vmatpush.msra.mxu0 0.0
      %2424 = vmatpush.msra.mxu0 %v1836
      %2425 = vmatpush.msra.mxu0 %v1835
      %2426 = vmatmul.f32.gmra.mxu0 %v2399
      %v2427 = vpop.f32.mrf.mxu0
      %v2428 = vadd.f32 %v2381, %v2427
      %2429 = vmatmul.f32.gmra.mxu0 %v2402
      %v2430 = vpop.f32.mrf.mxu0
      %v2431 = vadd.f32 %v2386, %v2430
      %2432 = vmatmul.f32.gmra.mxu0 %v2405
      %v2433 = vpop.f32.mrf.mxu0
      %v2434 = vadd.f32 %v2391, %v2433
      %2435 = vmatmul.f32.gmra.mxu0 %v2408
      %v2436 = vpop.f32.mrf.mxu0
      %v2437 = vadd.f32 %v2396, %v2436
      %2438 = vdwg.mxu0
      %v2439 = vadd.f32 %v2366, %v2428
      %v2440 = vadd.f32 %v2367, %v2431
      %v2441 = vadd.f32 %v2368, %v2434
      %v2442 = vadd.f32 %v2369, %v2437
      %v2443 = vmax.f32 %v2439, 0.0
      %v2444 = vmax.f32 %v2440, 0.0
      %v2445 = vmax.f32 %v2441, 0.0
      %v2446 = vmax.f32 %v2442, 0.0
      %v2447 = vld [vmem:[%s31] sm:$0xff]
      %v2448 = vld [vmem:[%s31 + $0x8] sm:$0xff]
      %v2450 = vsel %vm1839, %v2443, 0
      %v2453 = vsel %vm1839, %v2444, 0
      %v2456 = vsel %vm1839, %v2445, 0
      %v2459 = vsel %vm1839, %v2446, 0
      %2461 = vmatpush.msra.mxu0 0.0
      %2462 = vmatpush.msra.mxu0 0.0
      %2463 = vmatpush.msra.mxu0 0.0
      %2464 = vmatpush.msra.mxu0 0.0
      %2465 = vmatpush.msra.mxu0 0.0
      %2466 = vmatpush.msra.mxu0 0.0
      %2467 = vmatpush.msra.mxu0 0.0
      %2468 = vmatpush.msra.mxu0 0.0
      %2469 = vmatpush.msra.mxu0 0.0
      %2470 = vmatpush.msra.mxu0 0.0
      %2471 = vmatpush.msra.mxu0 0.0
      %2472 = vmatpush.msra.mxu0 0.0
      %2473 = vmatpush.msra.mxu0 0.0
      %2474 = vmatpush.msra.mxu0 0.0
      %2475 = vmatpush.msra.mxu0 %v2448
      %2476 = vmatpush.msra.mxu0 %v2447
      %2477 = vmatmul.f32.gmra.mxu0 %v2450
      %v2478 = vpop.f32.mrf.mxu0
      %v2479 = vadd.f32 0.0, %v2478
      %2480 = vmatmul.f32.gmra.mxu0 %v2453
      %v2481 = vpop.f32.mrf.mxu0
      %v2482 = vadd.f32 0.0, %v2481
      %2483 = vmatmul.f32.gmra.mxu0 %v2456
      %v2484 = vpop.f32.mrf.mxu0
      %v2485 = vadd.f32 0.0, %v2484
      %2486 = vmatmul.f32.gmra.mxu0 %v2459
      %v2487 = vpop.f32.mrf.mxu0
      %v2488 = vadd.f32 0.0, %v2487
      %2489 = vdwg.mxu0
      %v2490 = vld [vmem:[%s27] sm:$0xff]
      %v2491 = vld [vmem:[%s27 + $0x8] sm:$0xff]
      %v2492 = vld [vmem:[%s27 + $0x10] sm:$0xff]
      %v2493 = vld [vmem:[%s27 + $0x18] sm:$0xff]
      %v2494 = vld [vmem:[%s27 + $0x20] sm:$0xff]
      %v2495 = vld [vmem:[%s27 + $0x28] sm:$0xff]
      %v2496 = vld [vmem:[%s27 + $0x30] sm:$0xff]
      %v2497 = vld [vmem:[%s27 + $0x38] sm:$0xff]
      %s2498 = scalar_lea.vmem %s31, 16
      %v2499 = vld [vmem:[%s2498] sm:$0xff]
      %v2500 = vld [vmem:[%s2498 + $0x8] sm:$0xff]
      %2501 = vmatpush.msra.mxu0 0.0
      %2502 = vmatpush.msra.mxu0 0.0
      %2503 = vmatpush.msra.mxu0 0.0
      %2504 = vmatpush.msra.mxu0 0.0
      %2505 = vmatpush.msra.mxu0 0.0
      %2506 = vmatpush.msra.mxu0 0.0
      %2507 = vmatpush.msra.mxu0 0.0
      %2508 = vmatpush.msra.mxu0 0.0
      %2509 = vmatpush.msra.mxu0 0.0
      %2510 = vmatpush.msra.mxu0 0.0
      %2511 = vmatpush.msra.mxu0 0.0
      %2512 = vmatpush.msra.mxu0 0.0
      %2513 = vmatpush.msra.mxu0 0.0
      %2514 = vmatpush.msra.mxu0 0.0
      %2515 = vmatpush.msra.mxu0 %v2500
      %2516 = vmatpush.msra.mxu0 %v2499
      %2517 = vmatmul.f32.gmra.mxu0 %v2450
      %v2518 = vpop.f32.mrf.mxu0
      %v2519 = vadd.f32 0.0, %v2518
      %2520 = vmatmul.f32.gmra.mxu0 %v2453
      %v2521 = vpop.f32.mrf.mxu0
      %v2522 = vadd.f32 0.0, %v2521
      %2523 = vmatmul.f32.gmra.mxu0 %v2456
      %v2524 = vpop.f32.mrf.mxu0
      %v2525 = vadd.f32 0.0, %v2524
      %2526 = vmatmul.f32.gmra.mxu0 %v2459
      %v2527 = vpop.f32.mrf.mxu0
      %v2528 = vadd.f32 0.0, %v2527
      %2529 = vdwg.mxu0
      %s2530 = scalar_lea.vmem %s27, 64
      %v2531 = vld [vmem:[%s2530] sm:$0xff]
      %v2532 = vld [vmem:[%s2530 + $0x8] sm:$0xff]
      %v2533 = vld [vmem:[%s2530 + $0x10] sm:$0xff]
      %v2534 = vld [vmem:[%s2530 + $0x18] sm:$0xff]
      %v2535 = vld [vmem:[%s2530 + $0x20] sm:$0xff]
      %v2536 = vld [vmem:[%s2530 + $0x28] sm:$0xff]
      %v2537 = vld [vmem:[%s2530 + $0x30] sm:$0xff]
      %v2538 = vld [vmem:[%s2530 + $0x38] sm:$0xff]
      %v2540 = vsel %vm1747, %v2531, 0
      %v2543 = vsel %vm1747, %v2532, 0
      %v2546 = vsel %vm1747, %v2533, 0
      %v2549 = vsel %vm1747, %v2534, 0
      %v2552 = vsel %vm1747, %v2535, 0
      %v2555 = vsel %vm1747, %v2536, 0
      %v2558 = vsel %vm1747, %v2537, 0
      %v2561 = vsel %vm1747, %v2538, 0
      %2563 = vmatpush.msra.mxu0 0.0
      %2564 = vmatpush.msra.mxu0 0.0
      %2565 = vmatpush.msra.mxu0 0.0
      %2566 = vmatpush.msra.mxu0 0.0
      %2567 = vmatpush.msra.mxu0 0.0
      %2568 = vmatpush.msra.mxu0 0.0
      %2569 = vmatpush.msra.mxu0 0.0
      %2570 = vmatpush.msra.mxu0 0.0
      %2571 = vmatpush.msra.mxu0 0.0
      %2572 = vmatpush.msra.mxu0 0.0
      %2573 = vmatpush.msra.mxu0 0.0
      %2574 = vmatpush.msra.mxu0 0.0
      %2575 = vmatpush.msra.mxu0 %v2528
      %2576 = vmatpush.msra.mxu0 %v2525
      %2577 = vmatpush.msra.mxu0 %v2522
      %2578 = vmatpush.msra.mxu0 %v2519
      %2579 = vmatmul.f32.gmra.mxu0 %v2540
      %v2580 = vpop.f32.mrf.mxu0
      %v2581 = vadd.f32 0.0, %v2580
      %2582 = vmatmul.f32.gmra.mxu0 %v2543
      %v2583 = vpop.f32.mrf.mxu0
      %v2584 = vadd.f32 0.0, %v2583
      %2585 = vmatmul.f32.gmra.mxu0 %v2546
      %v2586 = vpop.f32.mrf.mxu0
      %v2587 = vadd.f32 0.0, %v2586
      %2588 = vmatmul.f32.gmra.mxu0 %v2549
      %v2589 = vpop.f32.mrf.mxu0
      %v2590 = vadd.f32 0.0, %v2589
      %2591 = vmatmul.f32.gmra.mxu0 %v2552
      %v2592 = vpop.f32.mrf.mxu0
      %v2593 = vadd.f32 0.0, %v2592
      %2594 = vmatmul.f32.gmra.mxu0 %v2555
      %v2595 = vpop.f32.mrf.mxu0
      %v2596 = vadd.f32 0.0, %v2595
      %2597 = vmatmul.f32.gmra.mxu0 %v2558
      %v2598 = vpop.f32.mrf.mxu0
      %v2599 = vadd.f32 0.0, %v2598
      %2600 = vmatmul.f32.gmra.mxu0 %v2561
      %v2601 = vpop.f32.mrf.mxu0
      %v2602 = vadd.f32 0.0, %v2601
      %2603 = vdwg.mxu0
      %v2605 = vsel %vm1747, %v2490, 0
      %v2608 = vsel %vm1747, %v2491, 0
      %v2611 = vsel %vm1747, %v2492, 0
      %v2614 = vsel %vm1747, %v2493, 0
      %v2617 = vsel %vm1747, %v2494, 0
      %v2620 = vsel %vm1747, %v2495, 0
      %v2623 = vsel %vm1747, %v2496, 0
      %v2626 = vsel %vm1747, %v2497, 0
      %2628 = vmatpush.msra.mxu0 0.0
      %2629 = vmatpush.msra.mxu0 0.0
      %2630 = vmatpush.msra.mxu0 0.0
      %2631 = vmatpush.msra.mxu0 0.0
      %2632 = vmatpush.msra.mxu0 0.0
      %2633 = vmatpush.msra.mxu0 0.0
      %2634 = vmatpush.msra.mxu0 0.0
      %2635 = vmatpush.msra.mxu0 0.0
      %2636 = vmatpush.msra.mxu0 0.0
      %2637 = vmatpush.msra.mxu0 0.0
      %2638 = vmatpush.msra.mxu0 0.0
      %2639 = vmatpush.msra.mxu0 0.0
      %2640 = vmatpush.msra.mxu0 %v2488
      %2641 = vmatpush.msra.mxu0 %v2485
      %2642 = vmatpush.msra.mxu0 %v2482
      %2643 = vmatpush.msra.mxu0 %v2479
      %2644 = vmatmul.f32.gmra.mxu0 %v2605
      %v2645 = vpop.f32.mrf.mxu0
      %v2646 = vadd.f32 %v2581, %v2645
      %2647 = vmatmul.f32.gmra.mxu0 %v2608
      %v2648 = vpop.f32.mrf.mxu0
      %v2649 = vadd.f32 %v2584, %v2648
      %2650 = vmatmul.f32.gmra.mxu0 %v2611
      %v2651 = vpop.f32.mrf.mxu0
      %v2652 = vadd.f32 %v2587, %v2651
      %2653 = vmatmul.f32.gmra.mxu0 %v2614
      %v2654 = vpop.f32.mrf.mxu0
      %v2655 = vadd.f32 %v2590, %v2654
      %2656 = vmatmul.f32.gmra.mxu0 %v2617
      %v2657 = vpop.f32.mrf.mxu0
      %v2658 = vadd.f32 %v2593, %v2657
      %2659 = vmatmul.f32.gmra.mxu0 %v2620
      %v2660 = vpop.f32.mrf.mxu0
      %v2661 = vadd.f32 %v2596, %v2660
      %2662 = vmatmul.f32.gmra.mxu0 %v2623
      %v2663 = vpop.f32.mrf.mxu0
      %v2664 = vadd.f32 %v2599, %v2663
      %2665 = vmatmul.f32.gmra.mxu0 %v2626
      %v2666 = vpop.f32.mrf.mxu0
      %v2667 = vadd.f32 %v2602, %v2666
      %2668 = vdwg.mxu0
      %s2669 = scalar_lea.vmem %s31, 32
      %v2670 = vld [vmem:[%s2669] sm:$0xff]
      %v2671 = vld [vmem:[%s2669 + $0x8] sm:$0xff]
      %2672 = vmatpush.msra.mxu0 0.0
      %2673 = vmatpush.msra.mxu0 0.0
      %2674 = vmatpush.msra.mxu0 0.0
      %2675 = vmatpush.msra.mxu0 0.0
      %2676 = vmatpush.msra.mxu0 0.0
      %2677 = vmatpush.msra.mxu0 0.0
      %2678 = vmatpush.msra.mxu0 0.0
      %2679 = vmatpush.msra.mxu0 0.0
      %2680 = vmatpush.msra.mxu0 0.0
      %2681 = vmatpush.msra.mxu0 0.0
      %2682 = vmatpush.msra.mxu0 0.0
      %2683 = vmatpush.msra.mxu0 0.0
      %2684 = vmatpush.msra.mxu0 0.0
      %2685 = vmatpush.msra.mxu0 0.0
      %2686 = vmatpush.msra.mxu0 %v2671
      %2687 = vmatpush.msra.mxu0 %v2670
      %2688 = vmatmul.f32.gmra.mxu0 %v2450
      %v2689 = vpop.f32.mrf.mxu0
      %v2690 = vadd.f32 0.0, %v2689
      %2691 = vmatmul.f32.gmra.mxu0 %v2453
      %v2692 = vpop.f32.mrf.mxu0
      %v2693 = vadd.f32 0.0, %v2692
      %2694 = vmatmul.f32.gmra.mxu0 %v2456
      %v2695 = vpop.f32.mrf.mxu0
      %v2696 = vadd.f32 0.0, %v2695
      %2697 = vmatmul.f32.gmra.mxu0 %v2459
      %v2698 = vpop.f32.mrf.mxu0
      %v2699 = vadd.f32 0.0, %v2698
      %2700 = vdwg.mxu0
      %s2701 = scalar_lea.vmem %s27, 128
      %v2702 = vld [vmem:[%s2701] sm:$0xff]
      %v2703 = vld [vmem:[%s2701 + $0x8] sm:$0xff]
      %v2704 = vld [vmem:[%s2701 + $0x10] sm:$0xff]
      %v2705 = vld [vmem:[%s2701 + $0x18] sm:$0xff]
      %v2706 = vld [vmem:[%s2701 + $0x20] sm:$0xff]
      %v2707 = vld [vmem:[%s2701 + $0x28] sm:$0xff]
      %v2708 = vld [vmem:[%s2701 + $0x30] sm:$0xff]
      %v2709 = vld [vmem:[%s2701 + $0x38] sm:$0xff]
      %v2711 = vsel %vm1747, %v2702, 0
      %v2714 = vsel %vm1747, %v2703, 0
      %v2717 = vsel %vm1747, %v2704, 0
      %v2720 = vsel %vm1747, %v2705, 0
      %v2723 = vsel %vm1747, %v2706, 0
      %v2726 = vsel %vm1747, %v2707, 0
      %v2729 = vsel %vm1747, %v2708, 0
      %v2732 = vsel %vm1747, %v2709, 0
      %2734 = vmatpush.msra.mxu0 0.0
      %2735 = vmatpush.msra.mxu0 0.0
      %2736 = vmatpush.msra.mxu0 0.0
      %2737 = vmatpush.msra.mxu0 0.0
      %2738 = vmatpush.msra.mxu0 0.0
      %2739 = vmatpush.msra.mxu0 0.0
      %2740 = vmatpush.msra.mxu0 0.0
      %2741 = vmatpush.msra.mxu0 0.0
      %2742 = vmatpush.msra.mxu0 0.0
      %2743 = vmatpush.msra.mxu0 0.0
      %2744 = vmatpush.msra.mxu0 0.0
      %2745 = vmatpush.msra.mxu0 0.0
      %2746 = vmatpush.msra.mxu0 %v2699
      %2747 = vmatpush.msra.mxu0 %v2696
      %2748 = vmatpush.msra.mxu0 %v2693
      %2749 = vmatpush.msra.mxu0 %v2690
      %2750 = vmatmul.f32.gmra.mxu0 %v2711
      %v2751 = vpop.f32.mrf.mxu0
      %v2752 = vadd.f32 0.0, %v2751
      %2753 = vmatmul.f32.gmra.mxu0 %v2714
      %v2754 = vpop.f32.mrf.mxu0
      %v2755 = vadd.f32 0.0, %v2754
      %2756 = vmatmul.f32.gmra.mxu0 %v2717
      %v2757 = vpop.f32.mrf.mxu0
      %v2758 = vadd.f32 0.0, %v2757
      %2759 = vmatmul.f32.gmra.mxu0 %v2720
      %v2760 = vpop.f32.mrf.mxu0
      %v2761 = vadd.f32 0.0, %v2760
      %2762 = vmatmul.f32.gmra.mxu0 %v2723
      %v2763 = vpop.f32.mrf.mxu0
      %v2764 = vadd.f32 0.0, %v2763
      %2765 = vmatmul.f32.gmra.mxu0 %v2726
      %v2766 = vpop.f32.mrf.mxu0
      %v2767 = vadd.f32 0.0, %v2766
      %2768 = vmatmul.f32.gmra.mxu0 %v2729
      %v2769 = vpop.f32.mrf.mxu0
      %v2770 = vadd.f32 0.0, %v2769
      %2771 = vmatmul.f32.gmra.mxu0 %v2732
      %v2772 = vpop.f32.mrf.mxu0
      %v2773 = vadd.f32 0.0, %v2772
      %2774 = vdwg.mxu0
      %v2775 = vadd.f32 %v2646, %v2752
      %v2776 = vadd.f32 %v2649, %v2755
      %v2777 = vadd.f32 %v2652, %v2758
      %v2778 = vadd.f32 %v2655, %v2761
      %v2779 = vadd.f32 %v2658, %v2764
      %v2780 = vadd.f32 %v2661, %v2767
      %v2781 = vadd.f32 %v2664, %v2770
      %v2782 = vadd.f32 %v2667, %v2773
      %v2783 = vld [vmem:[%s29] sm:$0xff]
      %v2784 = vld [vmem:[%s29 + $0x8] sm:$0xff]
      %v2785 = vld [vmem:[%s29 + $0x10] sm:$0xff]
      %v2786 = vld [vmem:[%s29 + $0x18] sm:$0xff]
      %v2787 = vld [vmem:[%s29 + $0x20] sm:$0xff]
      %v2788 = vld [vmem:[%s29 + $0x28] sm:$0xff]
      %v2789 = vld [vmem:[%s29 + $0x30] sm:$0xff]
      %v2790 = vld [vmem:[%s29 + $0x38] sm:$0xff]
      %2792 = vset.pattern.permute.xlu0 0
      %2793 = vperm.xlu0 %2792, %v2783
      %v2794 = vpop.permute.xlu0 %2793
      %2797 = vset.pattern.permute.xlu0 0
      %2798 = vperm.xlu0 %2797, %v2784
      %v2799 = vpop.permute.xlu0 %2798
      %2802 = vset.pattern.permute.xlu0 0
      %2803 = vperm.xlu0 %2802, %v2785
      %v2804 = vpop.permute.xlu0 %2803
      %2807 = vset.pattern.permute.xlu0 0
      %2808 = vperm.xlu0 %2807, %v2786
      %v2809 = vpop.permute.xlu0 %2808
      %2812 = vset.pattern.permute.xlu0 0
      %2813 = vperm.xlu0 %2812, %v2787
      %v2814 = vpop.permute.xlu0 %2813
      %2817 = vset.pattern.permute.xlu0 0
      %2818 = vperm.xlu0 %2817, %v2788
      %v2819 = vpop.permute.xlu0 %2818
      %2822 = vset.pattern.permute.xlu0 0
      %2823 = vperm.xlu0 %2822, %v2789
      %v2824 = vpop.permute.xlu0 %2823
      %2827 = vset.pattern.permute.xlu0 0
      %2828 = vperm.xlu0 %2827, %v2790
      %v2829 = vpop.permute.xlu0 %2828
      %v2831 = vadd.f32 %v2775, %v2794
      %v2832 = vadd.f32 %v2776, %v2799
      %v2833 = vadd.f32 %v2777, %v2804
      %v2834 = vadd.f32 %v2778, %v2809
      %v2835 = vadd.f32 %v2779, %v2814
      %v2836 = vadd.f32 %v2780, %v2819
      %v2837 = vadd.f32 %v2781, %v2824
      %v2838 = vadd.f32 %v2782, %v2829
      %v2839 = vmax.f32 %v2831, 0.0
      %v2840 = vmax.f32 %v2832, 0.0
      %v2841 = vmax.f32 %v2833, 0.0
      %v2842 = vmax.f32 %v2834, 0.0
      %v2843 = vmax.f32 %v2835, 0.0
      %v2844 = vmax.f32 %v2836, 0.0
      %v2845 = vmax.f32 %v2837, 0.0
      %v2846 = vmax.f32 %v2838, 0.0
      %v2847 = vld [vmem:[%s37] sm:$0xff]
      %vm2848 = vcmask 64512
      %v2850 = vsel %vm2848, %v2839, 0
      %v2853 = vsel %vm2848, %v2840, 0
      %v2856 = vsel %vm2848, %v2841, 0
      %v2859 = vsel %vm2848, %v2842, 0
      %v2862 = vsel %vm2848, %v2843, 0
      %v2865 = vsel %vm2848, %v2844, 0
      %v2868 = vsel %vm2848, %v2845, 0
      %v2871 = vsel %vm2848, %v2846, 0
      %2873 = vmatpush.msra.mxu0 0.0
      %2874 = vmatpush.msra.mxu0 0.0
      %2875 = vmatpush.msra.mxu0 0.0
      %2876 = vmatpush.msra.mxu0 0.0
      %2877 = vmatpush.msra.mxu0 0.0
      %2878 = vmatpush.msra.mxu0 0.0
      %2879 = vmatpush.msra.mxu0 0.0
      %2880 = vmatpush.msra.mxu0 0.0
      %2881 = vmatpush.msra.mxu0 0.0
      %2882 = vmatpush.msra.mxu0 0.0
      %2883 = vmatpush.msra.mxu0 0.0
      %2884 = vmatpush.msra.mxu0 0.0
      %2885 = vmatpush.msra.mxu0 0.0
      %2886 = vmatpush.msra.mxu0 0.0
      %2887 = vmatpush.msra.mxu0 0.0
      %2888 = vmatpush.msra.mxu0 %v2847
      %2889 = vmatmul.f32.gmra.mxu0 %v2850
      %v2890 = vpop.f32.mrf.mxu0
      %v2891 = vadd.f32 0.0, %v2890
      %2892 = vmatmul.f32.gmra.mxu0 %v2853
      %v2893 = vpop.f32.mrf.mxu0
      %v2894 = vadd.f32 0.0, %v2893
      %2895 = vmatmul.f32.gmra.mxu0 %v2856
      %v2896 = vpop.f32.mrf.mxu0
      %v2897 = vadd.f32 0.0, %v2896
      %2898 = vmatmul.f32.gmra.mxu0 %v2859
      %v2899 = vpop.f32.mrf.mxu0
      %v2900 = vadd.f32 0.0, %v2899
      %2901 = vmatmul.f32.gmra.mxu0 %v2862
      %v2902 = vpop.f32.mrf.mxu0
      %v2903 = vadd.f32 0.0, %v2902
      %2904 = vmatmul.f32.gmra.mxu0 %v2865
      %v2905 = vpop.f32.mrf.mxu0
      %v2906 = vadd.f32 0.0, %v2905
      %2907 = vmatmul.f32.gmra.mxu0 %v2868
      %v2908 = vpop.f32.mrf.mxu0
      %v2909 = vadd.f32 0.0, %v2908
      %2910 = vmatmul.f32.gmra.mxu0 %v2871
      %v2911 = vpop.f32.mrf.mxu0
      %v2912 = vadd.f32 0.0, %v2911
      %2913 = vdwg.mxu0
      %v2914 = vld [vmem:[%s33] sm:$0xff]
      %v2915 = vld [vmem:[%s33 + $0x8] sm:$0xff]
      %v2916 = vld [vmem:[%s33 + $0x10] sm:$0xff]
      %v2917 = vld [vmem:[%s33 + $0x18] sm:$0xff]
      %v2918 = vld [vmem:[%s33 + $0x20] sm:$0xff]
      %v2919 = vld [vmem:[%s33 + $0x28] sm:$0xff]
      %v2920 = vld [vmem:[%s33 + $0x30] sm:$0xff]
      %v2921 = vld [vmem:[%s33 + $0x38] sm:$0xff]
      %s2922 = scalar_lea.vmem %s37, 8
      %v2923 = vld [vmem:[%s2922] sm:$0xff]
      %2924 = vmatpush.msra.mxu0 0.0
      %2925 = vmatpush.msra.mxu0 0.0
      %2926 = vmatpush.msra.mxu0 0.0
      %2927 = vmatpush.msra.mxu0 0.0
      %2928 = vmatpush.msra.mxu0 0.0
      %2929 = vmatpush.msra.mxu0 0.0
      %2930 = vmatpush.msra.mxu0 0.0
      %2931 = vmatpush.msra.mxu0 0.0
      %2932 = vmatpush.msra.mxu0 0.0
      %2933 = vmatpush.msra.mxu0 0.0
      %2934 = vmatpush.msra.mxu0 0.0
      %2935 = vmatpush.msra.mxu0 0.0
      %2936 = vmatpush.msra.mxu0 0.0
      %2937 = vmatpush.msra.mxu0 0.0
      %2938 = vmatpush.msra.mxu0 0.0
      %2939 = vmatpush.msra.mxu0 %v2923
      %2940 = vmatmul.f32.gmra.mxu0 %v2850
      %v2941 = vpop.f32.mrf.mxu0
      %v2942 = vadd.f32 0.0, %v2941
      %2943 = vmatmul.f32.gmra.mxu0 %v2853
      %v2944 = vpop.f32.mrf.mxu0
      %v2945 = vadd.f32 0.0, %v2944
      %2946 = vmatmul.f32.gmra.mxu0 %v2856
      %v2947 = vpop.f32.mrf.mxu0
      %v2948 = vadd.f32 0.0, %v2947
      %2949 = vmatmul.f32.gmra.mxu0 %v2859
      %v2950 = vpop.f32.mrf.mxu0
      %v2951 = vadd.f32 0.0, %v2950
      %2952 = vmatmul.f32.gmra.mxu0 %v2862
      %v2953 = vpop.f32.mrf.mxu0
      %v2954 = vadd.f32 0.0, %v2953
      %2955 = vmatmul.f32.gmra.mxu0 %v2865
      %v2956 = vpop.f32.mrf.mxu0
      %v2957 = vadd.f32 0.0, %v2956
      %2958 = vmatmul.f32.gmra.mxu0 %v2868
      %v2959 = vpop.f32.mrf.mxu0
      %v2960 = vadd.f32 0.0, %v2959
      %2961 = vmatmul.f32.gmra.mxu0 %v2871
      %v2962 = vpop.f32.mrf.mxu0
      %v2963 = vadd.f32 0.0, %v2962
      %2964 = vdwg.mxu0
      %s2965 = scalar_lea.vmem %s33, 64
      %v2966 = vld [vmem:[%s2965] sm:$0xff]
      %v2967 = vld [vmem:[%s2965 + $0x8] sm:$0xff]
      %v2968 = vld [vmem:[%s2965 + $0x10] sm:$0xff]
      %v2969 = vld [vmem:[%s2965 + $0x18] sm:$0xff]
      %v2970 = vld [vmem:[%s2965 + $0x20] sm:$0xff]
      %v2971 = vld [vmem:[%s2965 + $0x28] sm:$0xff]
      %v2972 = vld [vmem:[%s2965 + $0x30] sm:$0xff]
      %v2973 = vld [vmem:[%s2965 + $0x38] sm:$0xff]
      %v2975 = vsel %vm1273, %v2966, 0
      %v2978 = vsel %vm1273, %v2967, 0
      %v2981 = vsel %vm1273, %v2968, 0
      %v2984 = vsel %vm1273, %v2969, 0
      %v2987 = vsel %vm1273, %v2970, 0
      %v2990 = vsel %vm1273, %v2971, 0
      %v2993 = vsel %vm1273, %v2972, 0
      %v2996 = vsel %vm1273, %v2973, 0
      %2998 = vmatpush.msra.mxu0 0.0
      %2999 = vmatpush.msra.mxu0 0.0
      %3000 = vmatpush.msra.mxu0 0.0
      %3001 = vmatpush.msra.mxu0 0.0
      %3002 = vmatpush.msra.mxu0 0.0
      %3003 = vmatpush.msra.mxu0 0.0
      %3004 = vmatpush.msra.mxu0 0.0
      %3005 = vmatpush.msra.mxu0 0.0
      %3006 = vmatpush.msra.mxu0 %v2963
      %3007 = vmatpush.msra.mxu0 %v2960
      %3008 = vmatpush.msra.mxu0 %v2957
      %3009 = vmatpush.msra.mxu0 %v2954
      %3010 = vmatpush.msra.mxu0 %v2951
      %3011 = vmatpush.msra.mxu0 %v2948
      %3012 = vmatpush.msra.mxu0 %v2945
      %3013 = vmatpush.msra.mxu0 %v2942
      %3014 = vmatmul.f32.gmra.mxu0 %v2975
      %v3015 = vpop.f32.mrf.mxu0
      %v3016 = vadd.f32 0.0, %v3015
      %3017 = vmatmul.f32.gmra.mxu0 %v2978
      %v3018 = vpop.f32.mrf.mxu0
      %v3019 = vadd.f32 0.0, %v3018
      %3020 = vmatmul.f32.gmra.mxu0 %v2981
      %v3021 = vpop.f32.mrf.mxu0
      %v3022 = vadd.f32 0.0, %v3021
      %3023 = vmatmul.f32.gmra.mxu0 %v2984
      %v3024 = vpop.f32.mrf.mxu0
      %v3025 = vadd.f32 0.0, %v3024
      %3026 = vmatmul.f32.gmra.mxu0 %v2987
      %v3027 = vpop.f32.mrf.mxu0
      %v3028 = vadd.f32 0.0, %v3027
      %3029 = vmatmul.f32.gmra.mxu0 %v2990
      %v3030 = vpop.f32.mrf.mxu0
      %v3031 = vadd.f32 0.0, %v3030
      %3032 = vmatmul.f32.gmra.mxu0 %v2993
      %v3033 = vpop.f32.mrf.mxu0
      %v3034 = vadd.f32 0.0, %v3033
      %3035 = vmatmul.f32.gmra.mxu0 %v2996
      %v3036 = vpop.f32.mrf.mxu0
      %v3037 = vadd.f32 0.0, %v3036
      %3038 = vdwg.mxu0
      %v3040 = vsel %vm1273, %v2914, 0
      %v3043 = vsel %vm1273, %v2915, 0
      %v3046 = vsel %vm1273, %v2916, 0
      %v3049 = vsel %vm1273, %v2917, 0
      %v3052 = vsel %vm1273, %v2918, 0
      %v3055 = vsel %vm1273, %v2919, 0
      %v3058 = vsel %vm1273, %v2920, 0
      %v3061 = vsel %vm1273, %v2921, 0
      %3063 = vmatpush.msra.mxu0 0.0
      %3064 = vmatpush.msra.mxu0 0.0
      %3065 = vmatpush.msra.mxu0 0.0
      %3066 = vmatpush.msra.mxu0 0.0
      %3067 = vmatpush.msra.mxu0 0.0
      %3068 = vmatpush.msra.mxu0 0.0
      %3069 = vmatpush.msra.mxu0 0.0
      %3070 = vmatpush.msra.mxu0 0.0
      %3071 = vmatpush.msra.mxu0 %v2912
      %3072 = vmatpush.msra.mxu0 %v2909
      %3073 = vmatpush.msra.mxu0 %v2906
      %3074 = vmatpush.msra.mxu0 %v2903
      %3075 = vmatpush.msra.mxu0 %v2900
      %3076 = vmatpush.msra.mxu0 %v2897
      %3077 = vmatpush.msra.mxu0 %v2894
      %3078 = vmatpush.msra.mxu0 %v2891
      %3079 = vmatmul.f32.gmra.mxu0 %v3040
      %v3080 = vpop.f32.mrf.mxu0
      %v3081 = vadd.f32 %v3016, %v3080
      %3082 = vmatmul.f32.gmra.mxu0 %v3043
      %v3083 = vpop.f32.mrf.mxu0
      %v3084 = vadd.f32 %v3019, %v3083
      %3085 = vmatmul.f32.gmra.mxu0 %v3046
      %v3086 = vpop.f32.mrf.mxu0
      %v3087 = vadd.f32 %v3022, %v3086
      %3088 = vmatmul.f32.gmra.mxu0 %v3049
      %v3089 = vpop.f32.mrf.mxu0
      %v3090 = vadd.f32 %v3025, %v3089
      %3091 = vmatmul.f32.gmra.mxu0 %v3052
      %v3092 = vpop.f32.mrf.mxu0
      %v3093 = vadd.f32 %v3028, %v3092
      %3094 = vmatmul.f32.gmra.mxu0 %v3055
      %v3095 = vpop.f32.mrf.mxu0
      %v3096 = vadd.f32 %v3031, %v3095
      %3097 = vmatmul.f32.gmra.mxu0 %v3058
      %v3098 = vpop.f32.mrf.mxu0
      %v3099 = vadd.f32 %v3034, %v3098
      %3100 = vmatmul.f32.gmra.mxu0 %v3061
      %v3101 = vpop.f32.mrf.mxu0
      %v3102 = vadd.f32 %v3037, %v3101
      %3103 = vdwg.mxu0
      %s3104 = scalar_lea.vmem %s37, 16
      %v3105 = vld [vmem:[%s3104] sm:$0xff]
      %3106 = vmatpush.msra.mxu0 0.0
      %3107 = vmatpush.msra.mxu0 0.0
      %3108 = vmatpush.msra.mxu0 0.0
      %3109 = vmatpush.msra.mxu0 0.0
      %3110 = vmatpush.msra.mxu0 0.0
      %3111 = vmatpush.msra.mxu0 0.0
      %3112 = vmatpush.msra.mxu0 0.0
      %3113 = vmatpush.msra.mxu0 0.0
      %3114 = vmatpush.msra.mxu0 0.0
      %3115 = vmatpush.msra.mxu0 0.0
      %3116 = vmatpush.msra.mxu0 0.0
      %3117 = vmatpush.msra.mxu0 0.0
      %3118 = vmatpush.msra.mxu0 0.0
      %3119 = vmatpush.msra.mxu0 0.0
      %3120 = vmatpush.msra.mxu0 0.0
      %3121 = vmatpush.msra.mxu0 %v3105
      %3122 = vmatmul.f32.gmra.mxu0 %v2850
      %v3123 = vpop.f32.mrf.mxu0
      %v3124 = vadd.f32 0.0, %v3123
      %3125 = vmatmul.f32.gmra.mxu0 %v2853
      %v3126 = vpop.f32.mrf.mxu0
      %v3127 = vadd.f32 0.0, %v3126
      %3128 = vmatmul.f32.gmra.mxu0 %v2856
      %v3129 = vpop.f32.mrf.mxu0
      %v3130 = vadd.f32 0.0, %v3129
      %3131 = vmatmul.f32.gmra.mxu0 %v2859
      %v3132 = vpop.f32.mrf.mxu0
      %v3133 = vadd.f32 0.0, %v3132
      %3134 = vmatmul.f32.gmra.mxu0 %v2862
      %v3135 = vpop.f32.mrf.mxu0
      %v3136 = vadd.f32 0.0, %v3135
      %3137 = vmatmul.f32.gmra.mxu0 %v2865
      %v3138 = vpop.f32.mrf.mxu0
      %v3139 = vadd.f32 0.0, %v3138
      %3140 = vmatmul.f32.gmra.mxu0 %v2868
      %v3141 = vpop.f32.mrf.mxu0
      %v3142 = vadd.f32 0.0, %v3141
      %3143 = vmatmul.f32.gmra.mxu0 %v2871
      %v3144 = vpop.f32.mrf.mxu0
      %v3145 = vadd.f32 0.0, %v3144
      %3146 = vdwg.mxu0
      %s3147 = scalar_lea.vmem %s33, 128
      %v3148 = vld [vmem:[%s3147] sm:$0xff]
      %v3149 = vld [vmem:[%s3147 + $0x8] sm:$0xff]
      %v3150 = vld [vmem:[%s3147 + $0x10] sm:$0xff]
      %v3151 = vld [vmem:[%s3147 + $0x18] sm:$0xff]
      %v3152 = vld [vmem:[%s3147 + $0x20] sm:$0xff]
      %v3153 = vld [vmem:[%s3147 + $0x28] sm:$0xff]
      %v3154 = vld [vmem:[%s3147 + $0x30] sm:$0xff]
      %v3155 = vld [vmem:[%s3147 + $0x38] sm:$0xff]
      %v3157 = vsel %vm1273, %v3148, 0
      %v3160 = vsel %vm1273, %v3149, 0
      %v3163 = vsel %vm1273, %v3150, 0
      %v3166 = vsel %vm1273, %v3151, 0
      %v3169 = vsel %vm1273, %v3152, 0
      %v3172 = vsel %vm1273, %v3153, 0
      %v3175 = vsel %vm1273, %v3154, 0
      %v3178 = vsel %vm1273, %v3155, 0
      %3180 = vmatpush.msra.mxu0 0.0
      %3181 = vmatpush.msra.mxu0 0.0
      %3182 = vmatpush.msra.mxu0 0.0
      %3183 = vmatpush.msra.mxu0 0.0
      %3184 = vmatpush.msra.mxu0 0.0
      %3185 = vmatpush.msra.mxu0 0.0
      %3186 = vmatpush.msra.mxu0 0.0
      %3187 = vmatpush.msra.mxu0 0.0
      %3188 = vmatpush.msra.mxu0 %v3145
      %3189 = vmatpush.msra.mxu0 %v3142
      %3190 = vmatpush.msra.mxu0 %v3139
      %3191 = vmatpush.msra.mxu0 %v3136
      %3192 = vmatpush.msra.mxu0 %v3133
      %3193 = vmatpush.msra.mxu0 %v3130
      %3194 = vmatpush.msra.mxu0 %v3127
      %3195 = vmatpush.msra.mxu0 %v3124
      %3196 = vmatmul.f32.gmra.mxu0 %v3157
      %v3197 = vpop.f32.mrf.mxu0
      %v3198 = vadd.f32 0.0, %v3197
      %3199 = vmatmul.f32.gmra.mxu0 %v3160
      %v3200 = vpop.f32.mrf.mxu0
      %v3201 = vadd.f32 0.0, %v3200
      %3202 = vmatmul.f32.gmra.mxu0 %v3163
      %v3203 = vpop.f32.mrf.mxu0
      %v3204 = vadd.f32 0.0, %v3203
      %3205 = vmatmul.f32.gmra.mxu0 %v3166
      %v3206 = vpop.f32.mrf.mxu0
      %v3207 = vadd.f32 0.0, %v3206
      %3208 = vmatmul.f32.gmra.mxu0 %v3169
      %v3209 = vpop.f32.mrf.mxu0
      %v3210 = vadd.f32 0.0, %v3209
      %3211 = vmatmul.f32.gmra.mxu0 %v3172
      %v3212 = vpop.f32.mrf.mxu0
      %v3213 = vadd.f32 0.0, %v3212
      %3214 = vmatmul.f32.gmra.mxu0 %v3175
      %v3215 = vpop.f32.mrf.mxu0
      %v3216 = vadd.f32 0.0, %v3215
      %3217 = vmatmul.f32.gmra.mxu0 %v3178
      %v3218 = vpop.f32.mrf.mxu0
      %v3219 = vadd.f32 0.0, %v3218
      %3220 = vdwg.mxu0
      %v3221 = vadd.f32 %v3081, %v3198
      %v3222 = vadd.f32 %v3084, %v3201
      %v3223 = vadd.f32 %v3087, %v3204
      %v3224 = vadd.f32 %v3090, %v3207
      %v3225 = vadd.f32 %v3093, %v3210
      %v3226 = vadd.f32 %v3096, %v3213
      %v3227 = vadd.f32 %v3099, %v3216
      %v3228 = vadd.f32 %v3102, %v3219
      %v3229 = vld [vmem:[%s35] sm:$0xff]
      %v3230 = vld [vmem:[%s35 + $0x8] sm:$0xff]
      %v3231 = vld [vmem:[%s35 + $0x10] sm:$0xff]
      %v3232 = vld [vmem:[%s35 + $0x18] sm:$0xff]
      %v3233 = vld [vmem:[%s35 + $0x20] sm:$0xff]
      %v3234 = vld [vmem:[%s35 + $0x28] sm:$0xff]
      %v3235 = vld [vmem:[%s35 + $0x30] sm:$0xff]
      %v3236 = vld [vmem:[%s35 + $0x38] sm:$0xff]
      %3238 = vset.pattern.permute.xlu0 0
      %3239 = vperm.xlu0 %3238, %v3229
      %v3240 = vpop.permute.xlu0 %3239
      %3243 = vset.pattern.permute.xlu0 0
      %3244 = vperm.xlu0 %3243, %v3230
      %v3245 = vpop.permute.xlu0 %3244
      %3248 = vset.pattern.permute.xlu0 0
      %3249 = vperm.xlu0 %3248, %v3231
      %v3250 = vpop.permute.xlu0 %3249
      %3253 = vset.pattern.permute.xlu0 0
      %3254 = vperm.xlu0 %3253, %v3232
      %v3255 = vpop.permute.xlu0 %3254
      %3258 = vset.pattern.permute.xlu0 0
      %3259 = vperm.xlu0 %3258, %v3233
      %v3260 = vpop.permute.xlu0 %3259
      %3263 = vset.pattern.permute.xlu0 0
      %3264 = vperm.xlu0 %3263, %v3234
      %v3265 = vpop.permute.xlu0 %3264
      %3268 = vset.pattern.permute.xlu0 0
      %3269 = vperm.xlu0 %3268, %v3235
      %v3270 = vpop.permute.xlu0 %3269
      %3273 = vset.pattern.permute.xlu0 0
      %3274 = vperm.xlu0 %3273, %v3236
      %v3275 = vpop.permute.xlu0 %3274
      %v3277 = vadd.f32 %v3221, %v3240
      %v3278 = vadd.f32 %v3222, %v3245
      %v3279 = vadd.f32 %v3223, %v3250
      %v3280 = vadd.f32 %v3224, %v3255
      %v3281 = vadd.f32 %v3225, %v3260
      %v3282 = vadd.f32 %v3226, %v3265
      %v3283 = vadd.f32 %v3227, %v3270
      %v3284 = vadd.f32 %v3228, %v3275
      %v3285 = vld [vmem:[%s43] sm:$0xff]
      %v3286 = vld [vmem:[%s43 + $0x8] sm:$0xff]
      %3287 = vmatpush.msra.mxu0 0.0
      %3288 = vmatpush.msra.mxu0 0.0
      %3289 = vmatpush.msra.mxu0 0.0
      %3290 = vmatpush.msra.mxu0 0.0
      %3291 = vmatpush.msra.mxu0 0.0
      %3292 = vmatpush.msra.mxu0 0.0
      %3293 = vmatpush.msra.mxu0 0.0
      %3294 = vmatpush.msra.mxu0 0.0
      %3295 = vmatpush.msra.mxu0 0.0
      %3296 = vmatpush.msra.mxu0 0.0
      %3297 = vmatpush.msra.mxu0 0.0
      %3298 = vmatpush.msra.mxu0 0.0
      %3299 = vmatpush.msra.mxu0 0.0
      %3300 = vmatpush.msra.mxu0 0.0
      %3301 = vmatpush.msra.mxu0 %v3286
      %3302 = vmatpush.msra.mxu0 %v3285
      %3303 = vmatmul.f32.gmra.mxu0 %v2450
      %v3304 = vpop.f32.mrf.mxu0
      %v3305 = vadd.f32 0.0, %v3304
      %3306 = vmatmul.f32.gmra.mxu0 %v2453
      %v3307 = vpop.f32.mrf.mxu0
      %v3308 = vadd.f32 0.0, %v3307
      %3309 = vmatmul.f32.gmra.mxu0 %v2456
      %v3310 = vpop.f32.mrf.mxu0
      %v3311 = vadd.f32 0.0, %v3310
      %3312 = vmatmul.f32.gmra.mxu0 %v2459
      %v3313 = vpop.f32.mrf.mxu0
      %v3314 = vadd.f32 0.0, %v3313
      %3315 = vdwg.mxu0
      %v3316 = vld [vmem:[%s39] sm:$0xff]
      %v3317 = vld [vmem:[%s39 + $0x8] sm:$0xff]
      %v3318 = vld [vmem:[%s39 + $0x10] sm:$0xff]
      %v3319 = vld [vmem:[%s39 + $0x18] sm:$0xff]
      %v3320 = vld [vmem:[%s39 + $0x20] sm:$0xff]
      %v3321 = vld [vmem:[%s39 + $0x28] sm:$0xff]
      %v3322 = vld [vmem:[%s39 + $0x30] sm:$0xff]
      %v3323 = vld [vmem:[%s39 + $0x38] sm:$0xff]
      %v3324 = vld [vmem:[%s41] sm:$0xff]
      %v3325 = vld [vmem:[%s41 + $0x8] sm:$0xff]
      %v3326 = vld [vmem:[%s41 + $0x10] sm:$0xff]
      %v3327 = vld [vmem:[%s41 + $0x18] sm:$0xff]
      %v3328 = vld [vmem:[%s41 + $0x20] sm:$0xff]
      %v3329 = vld [vmem:[%s41 + $0x28] sm:$0xff]
      %v3330 = vld [vmem:[%s41 + $0x30] sm:$0xff]
      %v3331 = vld [vmem:[%s41 + $0x38] sm:$0xff]
      %3333 = vset.pattern.permute.xlu0 0
      %3334 = vperm.xlu0 %3333, %v3324
      %v3335 = vpop.permute.xlu0 %3334
      %3338 = vset.pattern.permute.xlu0 0
      %3339 = vperm.xlu0 %3338, %v3325
      %v3340 = vpop.permute.xlu0 %3339
      %3343 = vset.pattern.permute.xlu0 0
      %3344 = vperm.xlu0 %3343, %v3326
      %v3345 = vpop.permute.xlu0 %3344
      %3348 = vset.pattern.permute.xlu0 0
      %3349 = vperm.xlu0 %3348, %v3327
      %v3350 = vpop.permute.xlu0 %3349
      %3353 = vset.pattern.permute.xlu0 0
      %3354 = vperm.xlu0 %3353, %v3328
      %v3355 = vpop.permute.xlu0 %3354
      %3358 = vset.pattern.permute.xlu0 0
      %3359 = vperm.xlu0 %3358, %v3329
      %v3360 = vpop.permute.xlu0 %3359
      %3363 = vset.pattern.permute.xlu0 0
      %3364 = vperm.xlu0 %3363, %v3330
      %v3365 = vpop.permute.xlu0 %3364
      %3368 = vset.pattern.permute.xlu0 0
      %3369 = vperm.xlu0 %3368, %v3331
      %v3370 = vpop.permute.xlu0 %3369
      %v3373 = vsel %vm1747, %v3316, 0
      %v3376 = vsel %vm1747, %v3317, 0
      %v3379 = vsel %vm1747, %v3318, 0
      %v3382 = vsel %vm1747, %v3319, 0
      %v3385 = vsel %vm1747, %v3320, 0
      %v3388 = vsel %vm1747, %v3321, 0
      %v3391 = vsel %vm1747, %v3322, 0
      %v3394 = vsel %vm1747, %v3323, 0
      %3396 = vmatpush.msra.mxu0 0.0
      %3397 = vmatpush.msra.mxu0 0.0
      %3398 = vmatpush.msra.mxu0 0.0
      %3399 = vmatpush.msra.mxu0 0.0
      %3400 = vmatpush.msra.mxu0 0.0
      %3401 = vmatpush.msra.mxu0 0.0
      %3402 = vmatpush.msra.mxu0 0.0
      %3403 = vmatpush.msra.mxu0 0.0
      %3404 = vmatpush.msra.mxu0 0.0
      %3405 = vmatpush.msra.mxu0 0.0
      %3406 = vmatpush.msra.mxu0 0.0
      %3407 = vmatpush.msra.mxu0 0.0
      %3408 = vmatpush.msra.mxu0 %v3314
      %3409 = vmatpush.msra.mxu0 %v3311
      %3410 = vmatpush.msra.mxu0 %v3308
      %3411 = vmatpush.msra.mxu0 %v3305
      %3412 = vmatmul.f32.gmra.mxu0 %v3373
      %v3413 = vpop.f32.mrf.mxu0
      %v3414 = vadd.f32 %v3335, %v3413
      %3415 = vmatmul.f32.gmra.mxu0 %v3376
      %v3416 = vpop.f32.mrf.mxu0
      %v3417 = vadd.f32 %v3340, %v3416
      %3418 = vmatmul.f32.gmra.mxu0 %v3379
      %v3419 = vpop.f32.mrf.mxu0
      %v3420 = vadd.f32 %v3345, %v3419
      %3421 = vmatmul.f32.gmra.mxu0 %v3382
      %v3422 = vpop.f32.mrf.mxu0
      %v3423 = vadd.f32 %v3350, %v3422
      %3424 = vmatmul.f32.gmra.mxu0 %v3385
      %v3425 = vpop.f32.mrf.mxu0
      %v3426 = vadd.f32 %v3355, %v3425
      %3427 = vmatmul.f32.gmra.mxu0 %v3388
      %v3428 = vpop.f32.mrf.mxu0
      %v3429 = vadd.f32 %v3360, %v3428
      %3430 = vmatmul.f32.gmra.mxu0 %v3391
      %v3431 = vpop.f32.mrf.mxu0
      %v3432 = vadd.f32 %v3365, %v3431
      %3433 = vmatmul.f32.gmra.mxu0 %v3394
      %v3434 = vpop.f32.mrf.mxu0
      %v3435 = vadd.f32 %v3370, %v3434
      %3436 = vdwg.mxu0
      %v3437 = vadd.f32 %v3277, %v3414
      %v3438 = vadd.f32 %v3278, %v3417
      %v3439 = vadd.f32 %v3279, %v3420
      %v3440 = vadd.f32 %v3280, %v3423
      %v3441 = vadd.f32 %v3281, %v3426
      %v3442 = vadd.f32 %v3282, %v3429
      %v3443 = vadd.f32 %v3283, %v3432
      %v3444 = vadd.f32 %v3284, %v3435
      %v3445 = vmax.f32 %v3437, 0.0
      %v3446 = vmax.f32 %v3438, 0.0
      %v3447 = vmax.f32 %v3439, 0.0
      %v3448 = vmax.f32 %v3440, 0.0
      %v3449 = vmax.f32 %v3441, 0.0
      %v3450 = vmax.f32 %v3442, 0.0
      %v3451 = vmax.f32 %v3443, 0.0
      %v3452 = vmax.f32 %v3444, 0.0
      %v3453 = vld [vmem:[%s49] sm:$0xff]
      %v3455 = vsel %vm2848, %v3445, 0
      %v3458 = vsel %vm2848, %v3446, 0
      %v3461 = vsel %vm2848, %v3447, 0
      %v3464 = vsel %vm2848, %v3448, 0
      %v3467 = vsel %vm2848, %v3449, 0
      %v3470 = vsel %vm2848, %v3450, 0
      %v3473 = vsel %vm2848, %v3451, 0
      %v3476 = vsel %vm2848, %v3452, 0
      %3478 = vmatpush.msra.mxu0 0.0
      %3479 = vmatpush.msra.mxu0 0.0
      %3480 = vmatpush.msra.mxu0 0.0
      %3481 = vmatpush.msra.mxu0 0.0
      %3482 = vmatpush.msra.mxu0 0.0
      %3483 = vmatpush.msra.mxu0 0.0
      %3484 = vmatpush.msra.mxu0 0.0
      %3485 = vmatpush.msra.mxu0 0.0
      %3486 = vmatpush.msra.mxu0 0.0
      %3487 = vmatpush.msra.mxu0 0.0
      %3488 = vmatpush.msra.mxu0 0.0
      %3489 = vmatpush.msra.mxu0 0.0
      %3490 = vmatpush.msra.mxu0 0.0
      %3491 = vmatpush.msra.mxu0 0.0
      %3492 = vmatpush.msra.mxu0 0.0
      %3493 = vmatpush.msra.mxu0 %v3453
      %3494 = vmatmul.f32.gmra.mxu0 %v3455
      %v3495 = vpop.f32.mrf.mxu0
      %v3496 = vadd.f32 0.0, %v3495
      %3497 = vmatmul.f32.gmra.mxu0 %v3458
      %v3498 = vpop.f32.mrf.mxu0
      %v3499 = vadd.f32 0.0, %v3498
      %3500 = vmatmul.f32.gmra.mxu0 %v3461
      %v3501 = vpop.f32.mrf.mxu0
      %v3502 = vadd.f32 0.0, %v3501
      %3503 = vmatmul.f32.gmra.mxu0 %v3464
      %v3504 = vpop.f32.mrf.mxu0
      %v3505 = vadd.f32 0.0, %v3504
      %3506 = vmatmul.f32.gmra.mxu0 %v3467
      %v3507 = vpop.f32.mrf.mxu0
      %v3508 = vadd.f32 0.0, %v3507
      %3509 = vmatmul.f32.gmra.mxu0 %v3470
      %v3510 = vpop.f32.mrf.mxu0
      %v3511 = vadd.f32 0.0, %v3510
      %3512 = vmatmul.f32.gmra.mxu0 %v3473
      %v3513 = vpop.f32.mrf.mxu0
      %v3514 = vadd.f32 0.0, %v3513
      %3515 = vmatmul.f32.gmra.mxu0 %v3476
      %v3516 = vpop.f32.mrf.mxu0
      %v3517 = vadd.f32 0.0, %v3516
      %3518 = vdwg.mxu0
      %v3519 = vld [vmem:[%s45] sm:$0xff]
      %v3520 = vld [vmem:[%s45 + $0x8] sm:$0xff]
      %v3521 = vld [vmem:[%s45 + $0x10] sm:$0xff]
      %v3522 = vld [vmem:[%s45 + $0x18] sm:$0xff]
      %v3523 = vld [vmem:[%s45 + $0x20] sm:$0xff]
      %v3524 = vld [vmem:[%s45 + $0x28] sm:$0xff]
      %v3525 = vld [vmem:[%s45 + $0x30] sm:$0xff]
      %v3526 = vld [vmem:[%s45 + $0x38] sm:$0xff]
      %v3527 = vld [vmem:[%s45 + $0x40] sm:$0xff]
      %v3528 = vld [vmem:[%s45 + $0x48] sm:$0xff]
      %v3529 = vld [vmem:[%s45 + $0x50] sm:$0xff]
      %v3530 = vld [vmem:[%s45 + $0x58] sm:$0xff]
      %v3531 = vld [vmem:[%s45 + $0x60] sm:$0xff]
      %v3532 = vld [vmem:[%s45 + $0x68] sm:$0xff]
      %v3533 = vld [vmem:[%s45 + $0x70] sm:$0xff]
      %v3534 = vld [vmem:[%s45 + $0x78] sm:$0xff]
      %s3535 = scalar_lea.vmem %s49, 8
      %v3536 = vld [vmem:[%s3535] sm:$0xff]
      %3537 = vmatpush.msra.mxu0 0.0
      %3538 = vmatpush.msra.mxu0 0.0
      %3539 = vmatpush.msra.mxu0 0.0
      %3540 = vmatpush.msra.mxu0 0.0
      %3541 = vmatpush.msra.mxu0 0.0
      %3542 = vmatpush.msra.mxu0 0.0
      %3543 = vmatpush.msra.mxu0 0.0
      %3544 = vmatpush.msra.mxu0 0.0
      %3545 = vmatpush.msra.mxu0 0.0
      %3546 = vmatpush.msra.mxu0 0.0
      %3547 = vmatpush.msra.mxu0 0.0
      %3548 = vmatpush.msra.mxu0 0.0
      %3549 = vmatpush.msra.mxu0 0.0
      %3550 = vmatpush.msra.mxu0 0.0
      %3551 = vmatpush.msra.mxu0 0.0
      %3552 = vmatpush.msra.mxu0 %v3536
      %3553 = vmatmul.f32.gmra.mxu0 %v3455
      %v3554 = vpop.f32.mrf.mxu0
      %v3555 = vadd.f32 0.0, %v3554
      %3556 = vmatmul.f32.gmra.mxu0 %v3458
      %v3557 = vpop.f32.mrf.mxu0
      %v3558 = vadd.f32 0.0, %v3557
      %3559 = vmatmul.f32.gmra.mxu0 %v3461
      %v3560 = vpop.f32.mrf.mxu0
      %v3561 = vadd.f32 0.0, %v3560
      %3562 = vmatmul.f32.gmra.mxu0 %v3464
      %v3563 = vpop.f32.mrf.mxu0
      %v3564 = vadd.f32 0.0, %v3563
      %3565 = vmatmul.f32.gmra.mxu0 %v3467
      %v3566 = vpop.f32.mrf.mxu0
      %v3567 = vadd.f32 0.0, %v3566
      %3568 = vmatmul.f32.gmra.mxu0 %v3470
      %v3569 = vpop.f32.mrf.mxu0
      %v3570 = vadd.f32 0.0, %v3569
      %3571 = vmatmul.f32.gmra.mxu0 %v3473
      %v3572 = vpop.f32.mrf.mxu0
      %v3573 = vadd.f32 0.0, %v3572
      %3574 = vmatmul.f32.gmra.mxu0 %v3476
      %v3575 = vpop.f32.mrf.mxu0
      %v3576 = vadd.f32 0.0, %v3575
      %3577 = vdwg.mxu0
      %s3578 = scalar_lea.vmem %s45, 128
      %v3579 = vld [vmem:[%s3578] sm:$0xff]
      %v3580 = vld [vmem:[%s3578 + $0x8] sm:$0xff]
      %v3581 = vld [vmem:[%s3578 + $0x10] sm:$0xff]
      %v3582 = vld [vmem:[%s3578 + $0x18] sm:$0xff]
      %v3583 = vld [vmem:[%s3578 + $0x20] sm:$0xff]
      %v3584 = vld [vmem:[%s3578 + $0x28] sm:$0xff]
      %v3585 = vld [vmem:[%s3578 + $0x30] sm:$0xff]
      %v3586 = vld [vmem:[%s3578 + $0x38] sm:$0xff]
      %v3587 = vld [vmem:[%s3578 + $0x40] sm:$0xff]
      %v3588 = vld [vmem:[%s3578 + $0x48] sm:$0xff]
      %v3589 = vld [vmem:[%s3578 + $0x50] sm:$0xff]
      %v3590 = vld [vmem:[%s3578 + $0x58] sm:$0xff]
      %v3591 = vld [vmem:[%s3578 + $0x60] sm:$0xff]
      %v3592 = vld [vmem:[%s3578 + $0x68] sm:$0xff]
      %v3593 = vld [vmem:[%s3578 + $0x70] sm:$0xff]
      %v3594 = vld [vmem:[%s3578 + $0x78] sm:$0xff]
      %v3596 = vsel %vm1273, %v3579, 0
      %v3599 = vsel %vm1273, %v3580, 0
      %v3602 = vsel %vm1273, %v3581, 0
      %v3605 = vsel %vm1273, %v3582, 0
      %v3608 = vsel %vm1273, %v3583, 0
      %v3611 = vsel %vm1273, %v3584, 0
      %v3614 = vsel %vm1273, %v3585, 0
      %v3617 = vsel %vm1273, %v3586, 0
      %v3620 = vsel %vm1273, %v3587, 0
      %v3623 = vsel %vm1273, %v3588, 0
      %v3626 = vsel %vm1273, %v3589, 0
      %v3629 = vsel %vm1273, %v3590, 0
      %v3632 = vsel %vm1273, %v3591, 0
      %v3635 = vsel %vm1273, %v3592, 0
      %v3638 = vsel %vm1273, %v3593, 0
      %v3641 = vsel %vm1273, %v3594, 0
      %3643 = vmatpush.msra.mxu0 0.0
      %3644 = vmatpush.msra.mxu0 0.0
      %3645 = vmatpush.msra.mxu0 0.0
      %3646 = vmatpush.msra.mxu0 0.0
      %3647 = vmatpush.msra.mxu0 0.0
      %3648 = vmatpush.msra.mxu0 0.0
      %3649 = vmatpush.msra.mxu0 0.0
      %3650 = vmatpush.msra.mxu0 0.0
      %3651 = vmatpush.msra.mxu0 %v3576
      %3652 = vmatpush.msra.mxu0 %v3573
      %3653 = vmatpush.msra.mxu0 %v3570
      %3654 = vmatpush.msra.mxu0 %v3567
      %3655 = vmatpush.msra.mxu0 %v3564
      %3656 = vmatpush.msra.mxu0 %v3561
      %3657 = vmatpush.msra.mxu0 %v3558
      %3658 = vmatpush.msra.mxu0 %v3555
      %3659 = vmatmul.f32.gmra.mxu0 %v3596
      %v3660 = vpop.f32.mrf.mxu0
      %v3661 = vadd.f32 0.0, %v3660
      %3662 = vmatmul.f32.gmra.mxu0 %v3599
      %v3663 = vpop.f32.mrf.mxu0
      %v3664 = vadd.f32 0.0, %v3663
      %3665 = vmatmul.f32.gmra.mxu0 %v3602
      %v3666 = vpop.f32.mrf.mxu0
      %v3667 = vadd.f32 0.0, %v3666
      %3668 = vmatmul.f32.gmra.mxu0 %v3605
      %v3669 = vpop.f32.mrf.mxu0
      %v3670 = vadd.f32 0.0, %v3669
      %3671 = vmatmul.f32.gmra.mxu0 %v3608
      %v3672 = vpop.f32.mrf.mxu0
      %v3673 = vadd.f32 0.0, %v3672
      %3674 = vmatmul.f32.gmra.mxu0 %v3611
      %v3675 = vpop.f32.mrf.mxu0
      %v3676 = vadd.f32 0.0, %v3675
      %3677 = vmatmul.f32.gmra.mxu0 %v3614
      %v3678 = vpop.f32.mrf.mxu0
      %v3679 = vadd.f32 0.0, %v3678
      %3680 = vmatmul.f32.gmra.mxu0 %v3617
      %v3681 = vpop.f32.mrf.mxu0
      %v3682 = vadd.f32 0.0, %v3681
      %3683 = vmatmul.f32.gmra.mxu0 %v3620
      %v3684 = vpop.f32.mrf.mxu0
      %v3685 = vadd.f32 0.0, %v3684
      %3686 = vmatmul.f32.gmra.mxu0 %v3623
      %v3687 = vpop.f32.mrf.mxu0
      %v3688 = vadd.f32 0.0, %v3687
      %3689 = vmatmul.f32.gmra.mxu0 %v3626
      %v3690 = vpop.f32.mrf.mxu0
      %v3691 = vadd.f32 0.0, %v3690
      %3692 = vmatmul.f32.gmra.mxu0 %v3629
      %v3693 = vpop.f32.mrf.mxu0
      %v3694 = vadd.f32 0.0, %v3693
      %3695 = vmatmul.f32.gmra.mxu0 %v3632
      %v3696 = vpop.f32.mrf.mxu0
      %v3697 = vadd.f32 0.0, %v3696
      %3698 = vmatmul.f32.gmra.mxu0 %v3635
      %v3699 = vpop.f32.mrf.mxu0
      %v3700 = vadd.f32 0.0, %v3699
      %3701 = vmatmul.f32.gmra.mxu0 %v3638
      %v3702 = vpop.f32.mrf.mxu0
      %v3703 = vadd.f32 0.0, %v3702
      %3704 = vmatmul.f32.gmra.mxu0 %v3641
      %v3705 = vpop.f32.mrf.mxu0
      %v3706 = vadd.f32 0.0, %v3705
      %3707 = vdwg.mxu0
      %v3709 = vsel %vm1273, %v3519, 0
      %v3712 = vsel %vm1273, %v3520, 0
      %v3715 = vsel %vm1273, %v3521, 0
      %v3718 = vsel %vm1273, %v3522, 0
      %v3721 = vsel %vm1273, %v3523, 0
      %v3724 = vsel %vm1273, %v3524, 0
      %v3727 = vsel %vm1273, %v3525, 0
      %v3730 = vsel %vm1273, %v3526, 0
      %v3733 = vsel %vm1273, %v3527, 0
      %v3736 = vsel %vm1273, %v3528, 0
      %v3739 = vsel %vm1273, %v3529, 0
      %v3742 = vsel %vm1273, %v3530, 0
      %v3745 = vsel %vm1273, %v3531, 0
      %v3748 = vsel %vm1273, %v3532, 0
      %v3751 = vsel %vm1273, %v3533, 0
      %v3754 = vsel %vm1273, %v3534, 0
      %3756 = vmatpush.msra.mxu0 0.0
      %3757 = vmatpush.msra.mxu0 0.0
      %3758 = vmatpush.msra.mxu0 0.0
      %3759 = vmatpush.msra.mxu0 0.0
      %3760 = vmatpush.msra.mxu0 0.0
      %3761 = vmatpush.msra.mxu0 0.0
      %3762 = vmatpush.msra.mxu0 0.0
      %3763 = vmatpush.msra.mxu0 0.0
      %3764 = vmatpush.msra.mxu0 %v3517
      %3765 = vmatpush.msra.mxu0 %v3514
      %3766 = vmatpush.msra.mxu0 %v3511
      %3767 = vmatpush.msra.mxu0 %v3508
      %3768 = vmatpush.msra.mxu0 %v3505
      %3769 = vmatpush.msra.mxu0 %v3502
      %3770 = vmatpush.msra.mxu0 %v3499
      %3771 = vmatpush.msra.mxu0 %v3496
      %3772 = vmatmul.f32.gmra.mxu0 %v3709
      %v3773 = vpop.f32.mrf.mxu0
      %v3774 = vadd.f32 %v3661, %v3773
      %3775 = vmatmul.f32.gmra.mxu0 %v3712
      %v3776 = vpop.f32.mrf.mxu0
      %v3777 = vadd.f32 %v3664, %v3776
      %3778 = vmatmul.f32.gmra.mxu0 %v3715
      %v3779 = vpop.f32.mrf.mxu0
      %v3780 = vadd.f32 %v3667, %v3779
      %3781 = vmatmul.f32.gmra.mxu0 %v3718
      %v3782 = vpop.f32.mrf.mxu0
      %v3783 = vadd.f32 %v3670, %v3782
      %3784 = vmatmul.f32.gmra.mxu0 %v3721
      %v3785 = vpop.f32.mrf.mxu0
      %v3786 = vadd.f32 %v3673, %v3785
      %3787 = vmatmul.f32.gmra.mxu0 %v3724
      %v3788 = vpop.f32.mrf.mxu0
      %v3789 = vadd.f32 %v3676, %v3788
      %3790 = vmatmul.f32.gmra.mxu0 %v3727
      %v3791 = vpop.f32.mrf.mxu0
      %v3792 = vadd.f32 %v3679, %v3791
      %3793 = vmatmul.f32.gmra.mxu0 %v3730
      %v3794 = vpop.f32.mrf.mxu0
      %v3795 = vadd.f32 %v3682, %v3794
      %3796 = vmatmul.f32.gmra.mxu0 %v3733
      %v3797 = vpop.f32.mrf.mxu0
      %v3798 = vadd.f32 %v3685, %v3797
      %3799 = vmatmul.f32.gmra.mxu0 %v3736
      %v3800 = vpop.f32.mrf.mxu0
      %v3801 = vadd.f32 %v3688, %v3800
      %3802 = vmatmul.f32.gmra.mxu0 %v3739
      %v3803 = vpop.f32.mrf.mxu0
      %v3804 = vadd.f32 %v3691, %v3803
      %3805 = vmatmul.f32.gmra.mxu0 %v3742
      %v3806 = vpop.f32.mrf.mxu0
      %v3807 = vadd.f32 %v3694, %v3806
      %3808 = vmatmul.f32.gmra.mxu0 %v3745
      %v3809 = vpop.f32.mrf.mxu0
      %v3810 = vadd.f32 %v3697, %v3809
      %3811 = vmatmul.f32.gmra.mxu0 %v3748
      %v3812 = vpop.f32.mrf.mxu0
      %v3813 = vadd.f32 %v3700, %v3812
      %3814 = vmatmul.f32.gmra.mxu0 %v3751
      %v3815 = vpop.f32.mrf.mxu0
      %v3816 = vadd.f32 %v3703, %v3815
      %3817 = vmatmul.f32.gmra.mxu0 %v3754
      %v3818 = vpop.f32.mrf.mxu0
      %v3819 = vadd.f32 %v3706, %v3818
      %3820 = vdwg.mxu0
      %s3821 = scalar_lea.vmem %s49, 16
      %v3822 = vld [vmem:[%s3821] sm:$0xff]
      %3823 = vmatpush.msra.mxu0 0.0
      %3824 = vmatpush.msra.mxu0 0.0
      %3825 = vmatpush.msra.mxu0 0.0
      %3826 = vmatpush.msra.mxu0 0.0
      %3827 = vmatpush.msra.mxu0 0.0
      %3828 = vmatpush.msra.mxu0 0.0
      %3829 = vmatpush.msra.mxu0 0.0
      %3830 = vmatpush.msra.mxu0 0.0
      %3831 = vmatpush.msra.mxu0 0.0
      %3832 = vmatpush.msra.mxu0 0.0
      %3833 = vmatpush.msra.mxu0 0.0
      %3834 = vmatpush.msra.mxu0 0.0
      %3835 = vmatpush.msra.mxu0 0.0
      %3836 = vmatpush.msra.mxu0 0.0
      %3837 = vmatpush.msra.mxu0 0.0
      %3838 = vmatpush.msra.mxu0 %v3822
      %3839 = vmatmul.f32.gmra.mxu0 %v3455
      %v3840 = vpop.f32.mrf.mxu0
      %v3841 = vadd.f32 0.0, %v3840
      %3842 = vmatmul.f32.gmra.mxu0 %v3458
      %v3843 = vpop.f32.mrf.mxu0
      %v3844 = vadd.f32 0.0, %v3843
      %3845 = vmatmul.f32.gmra.mxu0 %v3461
      %v3846 = vpop.f32.mrf.mxu0
      %v3847 = vadd.f32 0.0, %v3846
      %3848 = vmatmul.f32.gmra.mxu0 %v3464
      %v3849 = vpop.f32.mrf.mxu0
      %v3850 = vadd.f32 0.0, %v3849
      %3851 = vmatmul.f32.gmra.mxu0 %v3467
      %v3852 = vpop.f32.mrf.mxu0
      %v3853 = vadd.f32 0.0, %v3852
      %3854 = vmatmul.f32.gmra.mxu0 %v3470
      %v3855 = vpop.f32.mrf.mxu0
      %v3856 = vadd.f32 0.0, %v3855
      %3857 = vmatmul.f32.gmra.mxu0 %v3473
      %v3858 = vpop.f32.mrf.mxu0
      %v3859 = vadd.f32 0.0, %v3858
      %3860 = vmatmul.f32.gmra.mxu0 %v3476
      %v3861 = vpop.f32.mrf.mxu0
      %v3862 = vadd.f32 0.0, %v3861
      %3863 = vdwg.mxu0
      %s3864 = scalar_lea.vmem %s45, 256
      %v3865 = vld [vmem:[%s3864] sm:$0xff]
      %v3866 = vld [vmem:[%s3864 + $0x8] sm:$0xff]
      %v3867 = vld [vmem:[%s3864 + $0x10] sm:$0xff]
      %v3868 = vld [vmem:[%s3864 + $0x18] sm:$0xff]
      %v3869 = vld [vmem:[%s3864 + $0x20] sm:$0xff]
      %v3870 = vld [vmem:[%s3864 + $0x28] sm:$0xff]
      %v3871 = vld [vmem:[%s3864 + $0x30] sm:$0xff]
      %v3872 = vld [vmem:[%s3864 + $0x38] sm:$0xff]
      %v3873 = vld [vmem:[%s3864 + $0x40] sm:$0xff]
      %v3874 = vld [vmem:[%s3864 + $0x48] sm:$0xff]
      %v3875 = vld [vmem:[%s3864 + $0x50] sm:$0xff]
      %v3876 = vld [vmem:[%s3864 + $0x58] sm:$0xff]
      %v3877 = vld [vmem:[%s3864 + $0x60] sm:$0xff]
      %v3878 = vld [vmem:[%s3864 + $0x68] sm:$0xff]
      %v3879 = vld [vmem:[%s3864 + $0x70] sm:$0xff]
      %v3880 = vld [vmem:[%s3864 + $0x78] sm:$0xff]
      %v3882 = vsel %vm1273, %v3865, 0
      %v3885 = vsel %vm1273, %v3866, 0
      %v3888 = vsel %vm1273, %v3867, 0
      %v3891 = vsel %vm1273, %v3868, 0
      %v3894 = vsel %vm1273, %v3869, 0
      %v3897 = vsel %vm1273, %v3870, 0
      %v3900 = vsel %vm1273, %v3871, 0
      %v3903 = vsel %vm1273, %v3872, 0
      %v3906 = vsel %vm1273, %v3873, 0
      %v3909 = vsel %vm1273, %v3874, 0
      %v3912 = vsel %vm1273, %v3875, 0
      %v3915 = vsel %vm1273, %v3876, 0
      %v3918 = vsel %vm1273, %v3877, 0
      %v3921 = vsel %vm1273, %v3878, 0
      %v3924 = vsel %vm1273, %v3879, 0
      %v3927 = vsel %vm1273, %v3880, 0
      %3929 = vmatpush.msra.mxu0 0.0
      %3930 = vmatpush.msra.mxu0 0.0
      %3931 = vmatpush.msra.mxu0 0.0
      %3932 = vmatpush.msra.mxu0 0.0
      %3933 = vmatpush.msra.mxu0 0.0
      %3934 = vmatpush.msra.mxu0 0.0
      %3935 = vmatpush.msra.mxu0 0.0
      %3936 = vmatpush.msra.mxu0 0.0
      %3937 = vmatpush.msra.mxu0 %v3862
      %3938 = vmatpush.msra.mxu0 %v3859
      %3939 = vmatpush.msra.mxu0 %v3856
      %3940 = vmatpush.msra.mxu0 %v3853
      %3941 = vmatpush.msra.mxu0 %v3850
      %3942 = vmatpush.msra.mxu0 %v3847
      %3943 = vmatpush.msra.mxu0 %v3844
      %3944 = vmatpush.msra.mxu0 %v3841
      %3945 = vmatmul.f32.gmra.mxu0 %v3882
      %v3946 = vpop.f32.mrf.mxu0
      %v3947 = vadd.f32 0.0, %v3946
      %3948 = vmatmul.f32.gmra.mxu0 %v3885
      %v3949 = vpop.f32.mrf.mxu0
      %v3950 = vadd.f32 0.0, %v3949
      %3951 = vmatmul.f32.gmra.mxu0 %v3888
      %v3952 = vpop.f32.mrf.mxu0
      %v3953 = vadd.f32 0.0, %v3952
      %3954 = vmatmul.f32.gmra.mxu0 %v3891
      %v3955 = vpop.f32.mrf.mxu0
      %v3956 = vadd.f32 0.0, %v3955
      %3957 = vmatmul.f32.gmra.mxu0 %v3894
      %v3958 = vpop.f32.mrf.mxu0
      %v3959 = vadd.f32 0.0, %v3958
      %3960 = vmatmul.f32.gmra.mxu0 %v3897
      %v3961 = vpop.f32.mrf.mxu0
      %v3962 = vadd.f32 0.0, %v3961
      %3963 = vmatmul.f32.gmra.mxu0 %v3900
      %v3964 = vpop.f32.mrf.mxu0
      %v3965 = vadd.f32 0.0, %v3964
      %3966 = vmatmul.f32.gmra.mxu0 %v3903
      %v3967 = vpop.f32.mrf.mxu0
      %v3968 = vadd.f32 0.0, %v3967
      %3969 = vmatmul.f32.gmra.mxu0 %v3906
      %v3970 = vpop.f32.mrf.mxu0
      %v3971 = vadd.f32 0.0, %v3970
      %3972 = vmatmul.f32.gmra.mxu0 %v3909
      %v3973 = vpop.f32.mrf.mxu0
      %v3974 = vadd.f32 0.0, %v3973
      %3975 = vmatmul.f32.gmra.mxu0 %v3912
      %v3976 = vpop.f32.mrf.mxu0
      %v3977 = vadd.f32 0.0, %v3976
      %3978 = vmatmul.f32.gmra.mxu0 %v3915
      %v3979 = vpop.f32.mrf.mxu0
      %v3980 = vadd.f32 0.0, %v3979
      %3981 = vmatmul.f32.gmra.mxu0 %v3918
      %v3982 = vpop.f32.mrf.mxu0
      %v3983 = vadd.f32 0.0, %v3982
      %3984 = vmatmul.f32.gmra.mxu0 %v3921
      %v3985 = vpop.f32.mrf.mxu0
      %v3986 = vadd.f32 0.0, %v3985
      %3987 = vmatmul.f32.gmra.mxu0 %v3924
      %v3988 = vpop.f32.mrf.mxu0
      %v3989 = vadd.f32 0.0, %v3988
      %3990 = vmatmul.f32.gmra.mxu0 %v3927
      %v3991 = vpop.f32.mrf.mxu0
      %v3992 = vadd.f32 0.0, %v3991
      %3993 = vdwg.mxu0
      %v3994 = vadd.f32 %v3774, %v3947
      %v3995 = vadd.f32 %v3777, %v3950
      %v3996 = vadd.f32 %v3780, %v3953
      %v3997 = vadd.f32 %v3783, %v3956
      %v3998 = vadd.f32 %v3786, %v3959
      %v3999 = vadd.f32 %v3789, %v3962
      %v4000 = vadd.f32 %v3792, %v3965
      %v4001 = vadd.f32 %v3795, %v3968
      %v4002 = vadd.f32 %v3798, %v3971
      %v4003 = vadd.f32 %v3801, %v3974
      %v4004 = vadd.f32 %v3804, %v3977
      %v4005 = vadd.f32 %v3807, %v3980
      %v4006 = vadd.f32 %v3810, %v3983
      %v4007 = vadd.f32 %v3813, %v3986
      %v4008 = vadd.f32 %v3816, %v3989
      %v4009 = vadd.f32 %v3819, %v3992
      %v4010 = vld [vmem:[%s47] sm:$0xff]
      %v4011 = vld [vmem:[%s47 + $0x8] sm:$0xff]
      %v4012 = vld [vmem:[%s47 + $0x10] sm:$0xff]
      %v4013 = vld [vmem:[%s47 + $0x18] sm:$0xff]
      %v4014 = vld [vmem:[%s47 + $0x20] sm:$0xff]
      %v4015 = vld [vmem:[%s47 + $0x28] sm:$0xff]
      %v4016 = vld [vmem:[%s47 + $0x30] sm:$0xff]
      %v4017 = vld [vmem:[%s47 + $0x38] sm:$0xff]
      %v4018 = vld [vmem:[%s47 + $0x40] sm:$0xff]
      %v4019 = vld [vmem:[%s47 + $0x48] sm:$0xff]
      %v4020 = vld [vmem:[%s47 + $0x50] sm:$0xff]
      %v4021 = vld [vmem:[%s47 + $0x58] sm:$0xff]
      %v4022 = vld [vmem:[%s47 + $0x60] sm:$0xff]
      %v4023 = vld [vmem:[%s47 + $0x68] sm:$0xff]
      %v4024 = vld [vmem:[%s47 + $0x70] sm:$0xff]
      %v4025 = vld [vmem:[%s47 + $0x78] sm:$0xff]
      %4027 = vset.pattern.permute.xlu0 0
      %4028 = vperm.xlu0 %4027, %v4010
      %v4029 = vpop.permute.xlu0 %4028
      %4032 = vset.pattern.permute.xlu0 0
      %4033 = vperm.xlu0 %4032, %v4011
      %v4034 = vpop.permute.xlu0 %4033
      %4037 = vset.pattern.permute.xlu0 0
      %4038 = vperm.xlu0 %4037, %v4012
      %v4039 = vpop.permute.xlu0 %4038
      %4042 = vset.pattern.permute.xlu0 0
      %4043 = vperm.xlu0 %4042, %v4013
      %v4044 = vpop.permute.xlu0 %4043
      %4047 = vset.pattern.permute.xlu0 0
      %4048 = vperm.xlu0 %4047, %v4014
      %v4049 = vpop.permute.xlu0 %4048
      %4052 = vset.pattern.permute.xlu0 0
      %4053 = vperm.xlu0 %4052, %v4015
      %v4054 = vpop.permute.xlu0 %4053
      %4057 = vset.pattern.permute.xlu0 0
      %4058 = vperm.xlu0 %4057, %v4016
      %v4059 = vpop.permute.xlu0 %4058
      %4062 = vset.pattern.permute.xlu0 0
      %4063 = vperm.xlu0 %4062, %v4017
      %v4064 = vpop.permute.xlu0 %4063
      %4067 = vset.pattern.permute.xlu0 0
      %4068 = vperm.xlu0 %4067, %v4018
      %v4069 = vpop.permute.xlu0 %4068
      %4072 = vset.pattern.permute.xlu0 0
      %4073 = vperm.xlu0 %4072, %v4019
      %v4074 = vpop.permute.xlu0 %4073
      %4077 = vset.pattern.permute.xlu0 0
      %4078 = vperm.xlu0 %4077, %v4020
      %v4079 = vpop.permute.xlu0 %4078
      %4082 = vset.pattern.permute.xlu0 0
      %4083 = vperm.xlu0 %4082, %v4021
      %v4084 = vpop.permute.xlu0 %4083
      %4087 = vset.pattern.permute.xlu0 0
      %4088 = vperm.xlu0 %4087, %v4022
      %v4089 = vpop.permute.xlu0 %4088
      %4092 = vset.pattern.permute.xlu0 0
      %4093 = vperm.xlu0 %4092, %v4023
      %v4094 = vpop.permute.xlu0 %4093
      %4097 = vset.pattern.permute.xlu0 0
      %4098 = vperm.xlu0 %4097, %v4024
      %v4099 = vpop.permute.xlu0 %4098
      %4102 = vset.pattern.permute.xlu0 0
      %4103 = vperm.xlu0 %4102, %v4025
      %v4104 = vpop.permute.xlu0 %4103
      %v4106 = vadd.f32 %v3994, %v4029
      %v4107 = vadd.f32 %v3995, %v4034
      %v4108 = vadd.f32 %v3996, %v4039
      %v4109 = vadd.f32 %v3997, %v4044
      %v4110 = vadd.f32 %v3998, %v4049
      %v4111 = vadd.f32 %v3999, %v4054
      %v4112 = vadd.f32 %v4000, %v4059
      %v4113 = vadd.f32 %v4001, %v4064
      %v4114 = vadd.f32 %v4002, %v4069
      %v4115 = vadd.f32 %v4003, %v4074
      %v4116 = vadd.f32 %v4004, %v4079
      %v4117 = vadd.f32 %v4005, %v4084
      %v4118 = vadd.f32 %v4006, %v4089
      %v4119 = vadd.f32 %v4007, %v4094
      %v4120 = vadd.f32 %v4008, %v4099
      %v4121 = vadd.f32 %v4009, %v4104
      %v4122 = vmax.f32 %v4106, 0.0
      %v4123 = vmax.f32 %v4107, 0.0
      %v4124 = vmax.f32 %v4108, 0.0
      %v4125 = vmax.f32 %v4109, 0.0
      %v4126 = vmax.f32 %v4110, 0.0
      %v4127 = vmax.f32 %v4111, 0.0
      %v4128 = vmax.f32 %v4112, 0.0
      %v4129 = vmax.f32 %v4113, 0.0
      %v4130 = vmax.f32 %v4114, 0.0
      %v4131 = vmax.f32 %v4115, 0.0
      %v4132 = vmax.f32 %v4116, 0.0
      %v4133 = vmax.f32 %v4117, 0.0
      %v4134 = vmax.f32 %v4118, 0.0
      %v4135 = vmax.f32 %v4119, 0.0
      %v4136 = vmax.f32 %v4120, 0.0
      %v4137 = vmax.f32 %v4121, 0.0
      %v4138 = vld [vmem:[%s55] sm:$0xf]
      %v4140 = vsel %vm1331, %v4122, 0
      %v4143 = vsel %vm1331, %v4123, 0
      %v4146 = vsel %vm1331, %v4124, 0
      %v4149 = vsel %vm1331, %v4125, 0
      %v4152 = vsel %vm1331, %v4126, 0
      %v4155 = vsel %vm1331, %v4127, 0
      %v4158 = vsel %vm1331, %v4128, 0
      %v4161 = vsel %vm1331, %v4129, 0
      %v4164 = vsel %vm1331, %v4130, 0
      %v4167 = vsel %vm1331, %v4131, 0
      %v4170 = vsel %vm1331, %v4132, 0
      %v4173 = vsel %vm1331, %v4133, 0
      %v4176 = vsel %vm1331, %v4134, 0
      %v4179 = vsel %vm1331, %v4135, 0
      %v4182 = vsel %vm1331, %v4136, 0
      %v4185 = vsel %vm1331, %v4137, 0
      %v4188 = vsel %vm1338, %v4138, 0
      %4190 = vmatpush.msra.mxu0 0.0
      %4191 = vmatpush.msra.mxu0 0.0
      %4192 = vmatpush.msra.mxu0 0.0
      %4193 = vmatpush.msra.mxu0 0.0
      %4194 = vmatpush.msra.mxu0 0.0
      %4195 = vmatpush.msra.mxu0 0.0
      %4196 = vmatpush.msra.mxu0 0.0
      %4197 = vmatpush.msra.mxu0 0.0
      %4198 = vmatpush.msra.mxu0 0.0
      %4199 = vmatpush.msra.mxu0 0.0
      %4200 = vmatpush.msra.mxu0 0.0
      %4201 = vmatpush.msra.mxu0 0.0
      %4202 = vmatpush.msra.mxu0 0.0
      %4203 = vmatpush.msra.mxu0 0.0
      %4204 = vmatpush.msra.mxu0 0.0
      %4205 = vmatpush.msra.mxu0 %v4188
      %4206 = vmatmul.f32.gmra.mxu0 %v4140
      %v4207 = vpop.f32.mrf.mxu0
      %v4208 = vadd.f32 0.0, %v4207
      %4209 = vmatmul.f32.gmra.mxu0 %v4143
      %v4210 = vpop.f32.mrf.mxu0
      %v4211 = vadd.f32 0.0, %v4210
      %4212 = vmatmul.f32.gmra.mxu0 %v4146
      %v4213 = vpop.f32.mrf.mxu0
      %v4214 = vadd.f32 0.0, %v4213
      %4215 = vmatmul.f32.gmra.mxu0 %v4149
      %v4216 = vpop.f32.mrf.mxu0
      %v4217 = vadd.f32 0.0, %v4216
      %4218 = vmatmul.f32.gmra.mxu0 %v4152
      %v4219 = vpop.f32.mrf.mxu0
      %v4220 = vadd.f32 0.0, %v4219
      %4221 = vmatmul.f32.gmra.mxu0 %v4155
      %v4222 = vpop.f32.mrf.mxu0
      %v4223 = vadd.f32 0.0, %v4222
      %4224 = vmatmul.f32.gmra.mxu0 %v4158
      %v4225 = vpop.f32.mrf.mxu0
      %v4226 = vadd.f32 0.0, %v4225
      %4227 = vmatmul.f32.gmra.mxu0 %v4161
      %v4228 = vpop.f32.mrf.mxu0
      %v4229 = vadd.f32 0.0, %v4228
      %4230 = vmatmul.f32.gmra.mxu0 %v4164
      %v4231 = vpop.f32.mrf.mxu0
      %v4232 = vadd.f32 0.0, %v4231
      %4233 = vmatmul.f32.gmra.mxu0 %v4167
      %v4234 = vpop.f32.mrf.mxu0
      %v4235 = vadd.f32 0.0, %v4234
      %4236 = vmatmul.f32.gmra.mxu0 %v4170
      %v4237 = vpop.f32.mrf.mxu0
      %v4238 = vadd.f32 0.0, %v4237
      %4239 = vmatmul.f32.gmra.mxu0 %v4173
      %v4240 = vpop.f32.mrf.mxu0
      %v4241 = vadd.f32 0.0, %v4240
      %4242 = vmatmul.f32.gmra.mxu0 %v4176
      %v4243 = vpop.f32.mrf.mxu0
      %v4244 = vadd.f32 0.0, %v4243
      %4245 = vmatmul.f32.gmra.mxu0 %v4179
      %v4246 = vpop.f32.mrf.mxu0
      %v4247 = vadd.f32 0.0, %v4246
      %4248 = vmatmul.f32.gmra.mxu0 %v4182
      %v4249 = vpop.f32.mrf.mxu0
      %v4250 = vadd.f32 0.0, %v4249
      %4251 = vmatmul.f32.gmra.mxu0 %v4185
      %v4252 = vpop.f32.mrf.mxu0
      %v4253 = vadd.f32 0.0, %v4252
      %4254 = vdwg.mxu0
      %v4255 = vld [vmem:[%s51] sm:$0xff]
      %v4256 = vld [vmem:[%s51 + $0x8] sm:$0xff]
      %v4257 = vld [vmem:[%s51 + $0x10] sm:$0xff]
      %v4258 = vld [vmem:[%s51 + $0x18] sm:$0xff]
      %v4259 = vld [vmem:[%s51 + $0x20] sm:$0xff]
      %v4260 = vld [vmem:[%s51 + $0x28] sm:$0xff]
      %v4261 = vld [vmem:[%s51 + $0x30] sm:$0xff]
      %v4262 = vld [vmem:[%s51 + $0x38] sm:$0xff]
      %v4263 = vld [vmem:[%s51 + $0x40] sm:$0xff]
      %v4264 = vld [vmem:[%s51 + $0x48] sm:$0xff]
      %v4265 = vld [vmem:[%s51 + $0x50] sm:$0xff]
      %v4266 = vld [vmem:[%s51 + $0x58] sm:$0xff]
      %v4267 = vld [vmem:[%s51 + $0x60] sm:$0xff]
      %v4268 = vld [vmem:[%s51 + $0x68] sm:$0xff]
      %v4269 = vld [vmem:[%s51 + $0x70] sm:$0xff]
      %v4270 = vld [vmem:[%s51 + $0x78] sm:$0xff]
      %s4271 = scalar_lea.vmem %s55, 4
      %v4272 = vld [vmem:[%s4271] sm:$0xf]
      %v4274 = vsel %vm1338, %v4272, 0
      %4276 = vmatpush.msra.mxu0 0.0
      %4277 = vmatpush.msra.mxu0 0.0
      %4278 = vmatpush.msra.mxu0 0.0
      %4279 = vmatpush.msra.mxu0 0.0
      %4280 = vmatpush.msra.mxu0 0.0
      %4281 = vmatpush.msra.mxu0 0.0
      %4282 = vmatpush.msra.mxu0 0.0
      %4283 = vmatpush.msra.mxu0 0.0
      %4284 = vmatpush.msra.mxu0 0.0
      %4285 = vmatpush.msra.mxu0 0.0
      %4286 = vmatpush.msra.mxu0 0.0
      %4287 = vmatpush.msra.mxu0 0.0
      %4288 = vmatpush.msra.mxu0 0.0
      %4289 = vmatpush.msra.mxu0 0.0
      %4290 = vmatpush.msra.mxu0 0.0
      %4291 = vmatpush.msra.mxu0 %v4274
      %4292 = vmatmul.f32.gmra.mxu0 %v4140
      %v4293 = vpop.f32.mrf.mxu0
      %v4294 = vadd.f32 0.0, %v4293
      %4295 = vmatmul.f32.gmra.mxu0 %v4143
      %v4296 = vpop.f32.mrf.mxu0
      %v4297 = vadd.f32 0.0, %v4296
      %4298 = vmatmul.f32.gmra.mxu0 %v4146
      %v4299 = vpop.f32.mrf.mxu0
      %v4300 = vadd.f32 0.0, %v4299
      %4301 = vmatmul.f32.gmra.mxu0 %v4149
      %v4302 = vpop.f32.mrf.mxu0
      %v4303 = vadd.f32 0.0, %v4302
      %4304 = vmatmul.f32.gmra.mxu0 %v4152
      %v4305 = vpop.f32.mrf.mxu0
      %v4306 = vadd.f32 0.0, %v4305
      %4307 = vmatmul.f32.gmra.mxu0 %v4155
      %v4308 = vpop.f32.mrf.mxu0
      %v4309 = vadd.f32 0.0, %v4308
      %4310 = vmatmul.f32.gmra.mxu0 %v4158
      %v4311 = vpop.f32.mrf.mxu0
      %v4312 = vadd.f32 0.0, %v4311
      %4313 = vmatmul.f32.gmra.mxu0 %v4161
      %v4314 = vpop.f32.mrf.mxu0
      %v4315 = vadd.f32 0.0, %v4314
      %4316 = vmatmul.f32.gmra.mxu0 %v4164
      %v4317 = vpop.f32.mrf.mxu0
      %v4318 = vadd.f32 0.0, %v4317
      %4319 = vmatmul.f32.gmra.mxu0 %v4167
      %v4320 = vpop.f32.mrf.mxu0
      %v4321 = vadd.f32 0.0, %v4320
      %4322 = vmatmul.f32.gmra.mxu0 %v4170
      %v4323 = vpop.f32.mrf.mxu0
      %v4324 = vadd.f32 0.0, %v4323
      %4325 = vmatmul.f32.gmra.mxu0 %v4173
      %v4326 = vpop.f32.mrf.mxu0
      %v4327 = vadd.f32 0.0, %v4326
      %4328 = vmatmul.f32.gmra.mxu0 %v4176
      %v4329 = vpop.f32.mrf.mxu0
      %v4330 = vadd.f32 0.0, %v4329
      %4331 = vmatmul.f32.gmra.mxu0 %v4179
      %v4332 = vpop.f32.mrf.mxu0
      %v4333 = vadd.f32 0.0, %v4332
      %4334 = vmatmul.f32.gmra.mxu0 %v4182
      %v4335 = vpop.f32.mrf.mxu0
      %v4336 = vadd.f32 0.0, %v4335
      %4337 = vmatmul.f32.gmra.mxu0 %v4185
      %v4338 = vpop.f32.mrf.mxu0
      %v4339 = vadd.f32 0.0, %v4338
      %4340 = vdwg.mxu0
      %s4341 = scalar_lea.vmem %s51, 128
      %v4342 = vld [vmem:[%s4341] sm:$0xff]
      %v4343 = vld [vmem:[%s4341 + $0x8] sm:$0xff]
      %v4344 = vld [vmem:[%s4341 + $0x10] sm:$0xff]
      %v4345 = vld [vmem:[%s4341 + $0x18] sm:$0xff]
      %v4346 = vld [vmem:[%s4341 + $0x20] sm:$0xff]
      %v4347 = vld [vmem:[%s4341 + $0x28] sm:$0xff]
      %v4348 = vld [vmem:[%s4341 + $0x30] sm:$0xff]
      %v4349 = vld [vmem:[%s4341 + $0x38] sm:$0xff]
      %v4350 = vld [vmem:[%s4341 + $0x40] sm:$0xff]
      %v4351 = vld [vmem:[%s4341 + $0x48] sm:$0xff]
      %v4352 = vld [vmem:[%s4341 + $0x50] sm:$0xff]
      %v4353 = vld [vmem:[%s4341 + $0x58] sm:$0xff]
      %v4354 = vld [vmem:[%s4341 + $0x60] sm:$0xff]
      %v4355 = vld [vmem:[%s4341 + $0x68] sm:$0xff]
      %v4356 = vld [vmem:[%s4341 + $0x70] sm:$0xff]
      %v4357 = vld [vmem:[%s4341 + $0x78] sm:$0xff]
      %4358 = vmatpush.msra.mxu0 %v4339
      %4359 = vmatpush.msra.mxu0 %v4336
      %4360 = vmatpush.msra.mxu0 %v4333
      %4361 = vmatpush.msra.mxu0 %v4330
      %4362 = vmatpush.msra.mxu0 %v4327
      %4363 = vmatpush.msra.mxu0 %v4324
      %4364 = vmatpush.msra.mxu0 %v4321
      %4365 = vmatpush.msra.mxu0 %v4318
      %4366 = vmatpush.msra.mxu0 %v4315
      %4367 = vmatpush.msra.mxu0 %v4312
      %4368 = vmatpush.msra.mxu0 %v4309
      %4369 = vmatpush.msra.mxu0 %v4306
      %4370 = vmatpush.msra.mxu0 %v4303
      %4371 = vmatpush.msra.mxu0 %v4300
      %4372 = vmatpush.msra.mxu0 %v4297
      %4373 = vmatpush.msra.mxu0 %v4294
      %4374 = vmatmul.f32.gmra.mxu0 %v4342
      %v4375 = vpop.f32.mrf.mxu0
      %v4376 = vadd.f32 0.0, %v4375
      %4377 = vmatmul.f32.gmra.mxu0 %v4343
      %v4378 = vpop.f32.mrf.mxu0
      %v4379 = vadd.f32 0.0, %v4378
      %4380 = vmatmul.f32.gmra.mxu0 %v4344
      %v4381 = vpop.f32.mrf.mxu0
      %v4382 = vadd.f32 0.0, %v4381
      %4383 = vmatmul.f32.gmra.mxu0 %v4345
      %v4384 = vpop.f32.mrf.mxu0
      %v4385 = vadd.f32 0.0, %v4384
      %4386 = vmatmul.f32.gmra.mxu0 %v4346
      %v4387 = vpop.f32.mrf.mxu0
      %v4388 = vadd.f32 0.0, %v4387
      %4389 = vmatmul.f32.gmra.mxu0 %v4347
      %v4390 = vpop.f32.mrf.mxu0
      %v4391 = vadd.f32 0.0, %v4390
      %4392 = vmatmul.f32.gmra.mxu0 %v4348
      %v4393 = vpop.f32.mrf.mxu0
      %v4394 = vadd.f32 0.0, %v4393
      %4395 = vmatmul.f32.gmra.mxu0 %v4349
      %v4396 = vpop.f32.mrf.mxu0
      %v4397 = vadd.f32 0.0, %v4396
      %4398 = vmatmul.f32.gmra.mxu0 %v4350
      %v4399 = vpop.f32.mrf.mxu0
      %v4400 = vadd.f32 0.0, %v4399
      %4401 = vmatmul.f32.gmra.mxu0 %v4351
      %v4402 = vpop.f32.mrf.mxu0
      %v4403 = vadd.f32 0.0, %v4402
      %4404 = vmatmul.f32.gmra.mxu0 %v4352
      %v4405 = vpop.f32.mrf.mxu0
      %v4406 = vadd.f32 0.0, %v4405
      %4407 = vmatmul.f32.gmra.mxu0 %v4353
      %v4408 = vpop.f32.mrf.mxu0
      %v4409 = vadd.f32 0.0, %v4408
      %4410 = vmatmul.f32.gmra.mxu0 %v4354
      %v4411 = vpop.f32.mrf.mxu0
      %v4412 = vadd.f32 0.0, %v4411
      %4413 = vmatmul.f32.gmra.mxu0 %v4355
      %v4414 = vpop.f32.mrf.mxu0
      %v4415 = vadd.f32 0.0, %v4414
      %4416 = vmatmul.f32.gmra.mxu0 %v4356
      %v4417 = vpop.f32.mrf.mxu0
      %v4418 = vadd.f32 0.0, %v4417
      %4419 = vmatmul.f32.gmra.mxu0 %v4357
      %v4420 = vpop.f32.mrf.mxu0
      %v4421 = vadd.f32 0.0, %v4420
      %4422 = vdwg.mxu0
      %4423 = vmatpush.msra.mxu0 %v4253
      %4424 = vmatpush.msra.mxu0 %v4250
      %4425 = vmatpush.msra.mxu0 %v4247
      %4426 = vmatpush.msra.mxu0 %v4244
      %4427 = vmatpush.msra.mxu0 %v4241
      %4428 = vmatpush.msra.mxu0 %v4238
      %4429 = vmatpush.msra.mxu0 %v4235
      %4430 = vmatpush.msra.mxu0 %v4232
      %4431 = vmatpush.msra.mxu0 %v4229
      %4432 = vmatpush.msra.mxu0 %v4226
      %4433 = vmatpush.msra.mxu0 %v4223
      %4434 = vmatpush.msra.mxu0 %v4220
      %4435 = vmatpush.msra.mxu0 %v4217
      %4436 = vmatpush.msra.mxu0 %v4214
      %4437 = vmatpush.msra.mxu0 %v4211
      %4438 = vmatpush.msra.mxu0 %v4208
      %4439 = vmatmul.f32.gmra.mxu0 %v4255
      %v4440 = vpop.f32.mrf.mxu0
      %v4441 = vadd.f32 %v4376, %v4440
      %4442 = vmatmul.f32.gmra.mxu0 %v4256
      %v4443 = vpop.f32.mrf.mxu0
      %v4444 = vadd.f32 %v4379, %v4443
      %4445 = vmatmul.f32.gmra.mxu0 %v4257
      %v4446 = vpop.f32.mrf.mxu0
      %v4447 = vadd.f32 %v4382, %v4446
      %4448 = vmatmul.f32.gmra.mxu0 %v4258
      %v4449 = vpop.f32.mrf.mxu0
      %v4450 = vadd.f32 %v4385, %v4449
      %4451 = vmatmul.f32.gmra.mxu0 %v4259
      %v4452 = vpop.f32.mrf.mxu0
      %v4453 = vadd.f32 %v4388, %v4452
      %4454 = vmatmul.f32.gmra.mxu0 %v4260
      %v4455 = vpop.f32.mrf.mxu0
      %v4456 = vadd.f32 %v4391, %v4455
      %4457 = vmatmul.f32.gmra.mxu0 %v4261
      %v4458 = vpop.f32.mrf.mxu0
      %v4459 = vadd.f32 %v4394, %v4458
      %4460 = vmatmul.f32.gmra.mxu0 %v4262
      %v4461 = vpop.f32.mrf.mxu0
      %v4462 = vadd.f32 %v4397, %v4461
      %4463 = vmatmul.f32.gmra.mxu0 %v4263
      %v4464 = vpop.f32.mrf.mxu0
      %v4465 = vadd.f32 %v4400, %v4464
      %4466 = vmatmul.f32.gmra.mxu0 %v4264
      %v4467 = vpop.f32.mrf.mxu0
      %v4468 = vadd.f32 %v4403, %v4467
      %4469 = vmatmul.f32.gmra.mxu0 %v4265
      %v4470 = vpop.f32.mrf.mxu0
      %v4471 = vadd.f32 %v4406, %v4470
      %4472 = vmatmul.f32.gmra.mxu0 %v4266
      %v4473 = vpop.f32.mrf.mxu0
      %v4474 = vadd.f32 %v4409, %v4473
      %4475 = vmatmul.f32.gmra.mxu0 %v4267
      %v4476 = vpop.f32.mrf.mxu0
      %v4477 = vadd.f32 %v4412, %v4476
      %4478 = vmatmul.f32.gmra.mxu0 %v4268
      %v4479 = vpop.f32.mrf.mxu0
      %v4480 = vadd.f32 %v4415, %v4479
      %4481 = vmatmul.f32.gmra.mxu0 %v4269
      %v4482 = vpop.f32.mrf.mxu0
      %v4483 = vadd.f32 %v4418, %v4482
      %4484 = vmatmul.f32.gmra.mxu0 %v4270
      %v4485 = vpop.f32.mrf.mxu0
      %v4486 = vadd.f32 %v4421, %v4485
      %4487 = vdwg.mxu0
      %s4488 = scalar_lea.vmem %s55, 8
      %v4489 = vld [vmem:[%s4488] sm:$0xf]
      %v4491 = vsel %vm1338, %v4489, 0
      %4493 = vmatpush.msra.mxu0 0.0
      %4494 = vmatpush.msra.mxu0 0.0
      %4495 = vmatpush.msra.mxu0 0.0
      %4496 = vmatpush.msra.mxu0 0.0
      %4497 = vmatpush.msra.mxu0 0.0
      %4498 = vmatpush.msra.mxu0 0.0
      %4499 = vmatpush.msra.mxu0 0.0
      %4500 = vmatpush.msra.mxu0 0.0
      %4501 = vmatpush.msra.mxu0 0.0
      %4502 = vmatpush.msra.mxu0 0.0
      %4503 = vmatpush.msra.mxu0 0.0
      %4504 = vmatpush.msra.mxu0 0.0
      %4505 = vmatpush.msra.mxu0 0.0
      %4506 = vmatpush.msra.mxu0 0.0
      %4507 = vmatpush.msra.mxu0 0.0
      %4508 = vmatpush.msra.mxu0 %v4491
      %4509 = vmatmul.f32.gmra.mxu0 %v4140
      %v4510 = vpop.f32.mrf.mxu0
      %v4511 = vadd.f32 0.0, %v4510
      %4512 = vmatmul.f32.gmra.mxu0 %v4143
      %v4513 = vpop.f32.mrf.mxu0
      %v4514 = vadd.f32 0.0, %v4513
      %4515 = vmatmul.f32.gmra.mxu0 %v4146
      %v4516 = vpop.f32.mrf.mxu0
      %v4517 = vadd.f32 0.0, %v4516
      %4518 = vmatmul.f32.gmra.mxu0 %v4149
      %v4519 = vpop.f32.mrf.mxu0
      %v4520 = vadd.f32 0.0, %v4519
      %4521 = vmatmul.f32.gmra.mxu0 %v4152
      %v4522 = vpop.f32.mrf.mxu0
      %v4523 = vadd.f32 0.0, %v4522
      %4524 = vmatmul.f32.gmra.mxu0 %v4155
      %v4525 = vpop.f32.mrf.mxu0
      %v4526 = vadd.f32 0.0, %v4525
      %4527 = vmatmul.f32.gmra.mxu0 %v4158
      %v4528 = vpop.f32.mrf.mxu0
      %v4529 = vadd.f32 0.0, %v4528
      %4530 = vmatmul.f32.gmra.mxu0 %v4161
      %v4531 = vpop.f32.mrf.mxu0
      %v4532 = vadd.f32 0.0, %v4531
      %4533 = vmatmul.f32.gmra.mxu0 %v4164
      %v4534 = vpop.f32.mrf.mxu0
      %v4535 = vadd.f32 0.0, %v4534
      %4536 = vmatmul.f32.gmra.mxu0 %v4167
      %v4537 = vpop.f32.mrf.mxu0
      %v4538 = vadd.f32 0.0, %v4537
      %4539 = vmatmul.f32.gmra.mxu0 %v4170
      %v4540 = vpop.f32.mrf.mxu0
      %v4541 = vadd.f32 0.0, %v4540
      %4542 = vmatmul.f32.gmra.mxu0 %v4173
      %v4543 = vpop.f32.mrf.mxu0
      %v4544 = vadd.f32 0.0, %v4543
      %4545 = vmatmul.f32.gmra.mxu0 %v4176
      %v4546 = vpop.f32.mrf.mxu0
      %v4547 = vadd.f32 0.0, %v4546
      %4548 = vmatmul.f32.gmra.mxu0 %v4179
      %v4549 = vpop.f32.mrf.mxu0
      %v4550 = vadd.f32 0.0, %v4549
      %4551 = vmatmul.f32.gmra.mxu0 %v4182
      %v4552 = vpop.f32.mrf.mxu0
      %v4553 = vadd.f32 0.0, %v4552
      %4554 = vmatmul.f32.gmra.mxu0 %v4185
      %v4555 = vpop.f32.mrf.mxu0
      %v4556 = vadd.f32 0.0, %v4555
      %4557 = vdwg.mxu0
      %s4558 = scalar_lea.vmem %s51, 256
      %v4559 = vld [vmem:[%s4558] sm:$0xff]
      %v4560 = vld [vmem:[%s4558 + $0x8] sm:$0xff]
      %v4561 = vld [vmem:[%s4558 + $0x10] sm:$0xff]
      %v4562 = vld [vmem:[%s4558 + $0x18] sm:$0xff]
      %v4563 = vld [vmem:[%s4558 + $0x20] sm:$0xff]
      %v4564 = vld [vmem:[%s4558 + $0x28] sm:$0xff]
      %v4565 = vld [vmem:[%s4558 + $0x30] sm:$0xff]
      %v4566 = vld [vmem:[%s4558 + $0x38] sm:$0xff]
      %v4567 = vld [vmem:[%s4558 + $0x40] sm:$0xff]
      %v4568 = vld [vmem:[%s4558 + $0x48] sm:$0xff]
      %v4569 = vld [vmem:[%s4558 + $0x50] sm:$0xff]
      %v4570 = vld [vmem:[%s4558 + $0x58] sm:$0xff]
      %v4571 = vld [vmem:[%s4558 + $0x60] sm:$0xff]
      %v4572 = vld [vmem:[%s4558 + $0x68] sm:$0xff]
      %v4573 = vld [vmem:[%s4558 + $0x70] sm:$0xff]
      %v4574 = vld [vmem:[%s4558 + $0x78] sm:$0xff]
      %4575 = vmatpush.msra.mxu0 %v4556
      %4576 = vmatpush.msra.mxu0 %v4553
      %4577 = vmatpush.msra.mxu0 %v4550
      %4578 = vmatpush.msra.mxu0 %v4547
      %4579 = vmatpush.msra.mxu0 %v4544
      %4580 = vmatpush.msra.mxu0 %v4541
      %4581 = vmatpush.msra.mxu0 %v4538
      %4582 = vmatpush.msra.mxu0 %v4535
      %4583 = vmatpush.msra.mxu0 %v4532
      %4584 = vmatpush.msra.mxu0 %v4529
      %4585 = vmatpush.msra.mxu0 %v4526
      %4586 = vmatpush.msra.mxu0 %v4523
      %4587 = vmatpush.msra.mxu0 %v4520
      %4588 = vmatpush.msra.mxu0 %v4517
      %4589 = vmatpush.msra.mxu0 %v4514
      %4590 = vmatpush.msra.mxu0 %v4511
      %4591 = vmatmul.f32.gmra.mxu0 %v4559
      %v4592 = vpop.f32.mrf.mxu0
      %v4593 = vadd.f32 0.0, %v4592
      %4594 = vmatmul.f32.gmra.mxu0 %v4560
      %v4595 = vpop.f32.mrf.mxu0
      %v4596 = vadd.f32 0.0, %v4595
      %4597 = vmatmul.f32.gmra.mxu0 %v4561
      %v4598 = vpop.f32.mrf.mxu0
      %v4599 = vadd.f32 0.0, %v4598
      %4600 = vmatmul.f32.gmra.mxu0 %v4562
      %v4601 = vpop.f32.mrf.mxu0
      %v4602 = vadd.f32 0.0, %v4601
      %4603 = vmatmul.f32.gmra.mxu0 %v4563
      %v4604 = vpop.f32.mrf.mxu0
      %v4605 = vadd.f32 0.0, %v4604
      %4606 = vmatmul.f32.gmra.mxu0 %v4564
      %v4607 = vpop.f32.mrf.mxu0
      %v4608 = vadd.f32 0.0, %v4607
      %4609 = vmatmul.f32.gmra.mxu0 %v4565
      %v4610 = vpop.f32.mrf.mxu0
      %v4611 = vadd.f32 0.0, %v4610
      %4612 = vmatmul.f32.gmra.mxu0 %v4566
      %v4613 = vpop.f32.mrf.mxu0
      %v4614 = vadd.f32 0.0, %v4613
      %4615 = vmatmul.f32.gmra.mxu0 %v4567
      %v4616 = vpop.f32.mrf.mxu0
      %v4617 = vadd.f32 0.0, %v4616
      %4618 = vmatmul.f32.gmra.mxu0 %v4568
      %v4619 = vpop.f32.mrf.mxu0
      %v4620 = vadd.f32 0.0, %v4619
      %4621 = vmatmul.f32.gmra.mxu0 %v4569
      %v4622 = vpop.f32.mrf.mxu0
      %v4623 = vadd.f32 0.0, %v4622
      %4624 = vmatmul.f32.gmra.mxu0 %v4570
      %v4625 = vpop.f32.mrf.mxu0
      %v4626 = vadd.f32 0.0, %v4625
      %4627 = vmatmul.f32.gmra.mxu0 %v4571
      %v4628 = vpop.f32.mrf.mxu0
      %v4629 = vadd.f32 0.0, %v4628
      %4630 = vmatmul.f32.gmra.mxu0 %v4572
      %v4631 = vpop.f32.mrf.mxu0
      %v4632 = vadd.f32 0.0, %v4631
      %4633 = vmatmul.f32.gmra.mxu0 %v4573
      %v4634 = vpop.f32.mrf.mxu0
      %v4635 = vadd.f32 0.0, %v4634
      %4636 = vmatmul.f32.gmra.mxu0 %v4574
      %v4637 = vpop.f32.mrf.mxu0
      %v4638 = vadd.f32 0.0, %v4637
      %4639 = vdwg.mxu0
      %v4640 = vadd.f32 %v4441, %v4593
      %v4641 = vadd.f32 %v4444, %v4596
      %v4642 = vadd.f32 %v4447, %v4599
      %v4643 = vadd.f32 %v4450, %v4602
      %v4644 = vadd.f32 %v4453, %v4605
      %v4645 = vadd.f32 %v4456, %v4608
      %v4646 = vadd.f32 %v4459, %v4611
      %v4647 = vadd.f32 %v4462, %v4614
      %v4648 = vadd.f32 %v4465, %v4617
      %v4649 = vadd.f32 %v4468, %v4620
      %v4650 = vadd.f32 %v4471, %v4623
      %v4651 = vadd.f32 %v4474, %v4626
      %v4652 = vadd.f32 %v4477, %v4629
      %v4653 = vadd.f32 %v4480, %v4632
      %v4654 = vadd.f32 %v4483, %v4635
      %v4655 = vadd.f32 %v4486, %v4638
      %v4656 = vld [vmem:[%s53] sm:$0xff]
      %v4657 = vld [vmem:[%s53 + $0x8] sm:$0xff]
      %v4658 = vld [vmem:[%s53 + $0x10] sm:$0xff]
      %v4659 = vld [vmem:[%s53 + $0x18] sm:$0xff]
      %v4660 = vld [vmem:[%s53 + $0x20] sm:$0xff]
      %v4661 = vld [vmem:[%s53 + $0x28] sm:$0xff]
      %v4662 = vld [vmem:[%s53 + $0x30] sm:$0xff]
      %v4663 = vld [vmem:[%s53 + $0x38] sm:$0xff]
      %v4664 = vld [vmem:[%s53 + $0x40] sm:$0xff]
      %v4665 = vld [vmem:[%s53 + $0x48] sm:$0xff]
      %v4666 = vld [vmem:[%s53 + $0x50] sm:$0xff]
      %v4667 = vld [vmem:[%s53 + $0x58] sm:$0xff]
      %v4668 = vld [vmem:[%s53 + $0x60] sm:$0xff]
      %v4669 = vld [vmem:[%s53 + $0x68] sm:$0xff]
      %v4670 = vld [vmem:[%s53 + $0x70] sm:$0xff]
      %v4671 = vld [vmem:[%s53 + $0x78] sm:$0xff]
      %4673 = vset.pattern.permute.xlu0 0
      %4674 = vperm.xlu0 %4673, %v4656
      %v4675 = vpop.permute.xlu0 %4674
      %4678 = vset.pattern.permute.xlu0 0
      %4679 = vperm.xlu0 %4678, %v4657
      %v4680 = vpop.permute.xlu0 %4679
      %4683 = vset.pattern.permute.xlu0 0
      %4684 = vperm.xlu0 %4683, %v4658
      %v4685 = vpop.permute.xlu0 %4684
      %4688 = vset.pattern.permute.xlu0 0
      %4689 = vperm.xlu0 %4688, %v4659
      %v4690 = vpop.permute.xlu0 %4689
      %4693 = vset.pattern.permute.xlu0 0
      %4694 = vperm.xlu0 %4693, %v4660
      %v4695 = vpop.permute.xlu0 %4694
      %4698 = vset.pattern.permute.xlu0 0
      %4699 = vperm.xlu0 %4698, %v4661
      %v4700 = vpop.permute.xlu0 %4699
      %4703 = vset.pattern.permute.xlu0 0
      %4704 = vperm.xlu0 %4703, %v4662
      %v4705 = vpop.permute.xlu0 %4704
      %4708 = vset.pattern.permute.xlu0 0
      %4709 = vperm.xlu0 %4708, %v4663
      %v4710 = vpop.permute.xlu0 %4709
      %4713 = vset.pattern.permute.xlu0 0
      %4714 = vperm.xlu0 %4713, %v4664
      %v4715 = vpop.permute.xlu0 %4714
      %4718 = vset.pattern.permute.xlu0 0
      %4719 = vperm.xlu0 %4718, %v4665
      %v4720 = vpop.permute.xlu0 %4719
      %4723 = vset.pattern.permute.xlu0 0
      %4724 = vperm.xlu0 %4723, %v4666
      %v4725 = vpop.permute.xlu0 %4724
      %4728 = vset.pattern.permute.xlu0 0
      %4729 = vperm.xlu0 %4728, %v4667
      %v4730 = vpop.permute.xlu0 %4729
      %4733 = vset.pattern.permute.xlu0 0
      %4734 = vperm.xlu0 %4733, %v4668
      %v4735 = vpop.permute.xlu0 %4734
      %4738 = vset.pattern.permute.xlu0 0
      %4739 = vperm.xlu0 %4738, %v4669
      %v4740 = vpop.permute.xlu0 %4739
      %4743 = vset.pattern.permute.xlu0 0
      %4744 = vperm.xlu0 %4743, %v4670
      %v4745 = vpop.permute.xlu0 %4744
      %4748 = vset.pattern.permute.xlu0 0
      %4749 = vperm.xlu0 %4748, %v4671
      %v4750 = vpop.permute.xlu0 %4749
      %v4752 = vadd.f32 %v4640, %v4675
      %v4753 = vadd.f32 %v4641, %v4680
      %v4754 = vadd.f32 %v4642, %v4685
      %v4755 = vadd.f32 %v4643, %v4690
      %v4756 = vadd.f32 %v4644, %v4695
      %v4757 = vadd.f32 %v4645, %v4700
      %v4758 = vadd.f32 %v4646, %v4705
      %v4759 = vadd.f32 %v4647, %v4710
      %v4760 = vadd.f32 %v4648, %v4715
      %v4761 = vadd.f32 %v4649, %v4720
      %v4762 = vadd.f32 %v4650, %v4725
      %v4763 = vadd.f32 %v4651, %v4730
      %v4764 = vadd.f32 %v4652, %v4735
      %v4765 = vadd.f32 %v4653, %v4740
      %v4766 = vadd.f32 %v4654, %v4745
      %v4767 = vadd.f32 %v4655, %v4750
      %v4768 = vld [vmem:[%s61] sm:$0xff]
      %4769 = vmatpush.msra.mxu0 0.0
      %4770 = vmatpush.msra.mxu0 0.0
      %4771 = vmatpush.msra.mxu0 0.0
      %4772 = vmatpush.msra.mxu0 0.0
      %4773 = vmatpush.msra.mxu0 0.0
      %4774 = vmatpush.msra.mxu0 0.0
      %4775 = vmatpush.msra.mxu0 0.0
      %4776 = vmatpush.msra.mxu0 0.0
      %4777 = vmatpush.msra.mxu0 0.0
      %4778 = vmatpush.msra.mxu0 0.0
      %4779 = vmatpush.msra.mxu0 0.0
      %4780 = vmatpush.msra.mxu0 0.0
      %4781 = vmatpush.msra.mxu0 0.0
      %4782 = vmatpush.msra.mxu0 0.0
      %4783 = vmatpush.msra.mxu0 0.0
      %4784 = vmatpush.msra.mxu0 %v4768
      %4785 = vmatmul.f32.gmra.mxu0 %v3455
      %v4786 = vpop.f32.mrf.mxu0
      %v4787 = vadd.f32 0.0, %v4786
      %4788 = vmatmul.f32.gmra.mxu0 %v3458
      %v4789 = vpop.f32.mrf.mxu0
      %v4790 = vadd.f32 0.0, %v4789
      %4791 = vmatmul.f32.gmra.mxu0 %v3461
      %v4792 = vpop.f32.mrf.mxu0
      %v4793 = vadd.f32 0.0, %v4792
      %4794 = vmatmul.f32.gmra.mxu0 %v3464
      %v4795 = vpop.f32.mrf.mxu0
      %v4796 = vadd.f32 0.0, %v4795
      %4797 = vmatmul.f32.gmra.mxu0 %v3467
      %v4798 = vpop.f32.mrf.mxu0
      %v4799 = vadd.f32 0.0, %v4798
      %4800 = vmatmul.f32.gmra.mxu0 %v3470
      %v4801 = vpop.f32.mrf.mxu0
      %v4802 = vadd.f32 0.0, %v4801
      %4803 = vmatmul.f32.gmra.mxu0 %v3473
      %v4804 = vpop.f32.mrf.mxu0
      %v4805 = vadd.f32 0.0, %v4804
      %4806 = vmatmul.f32.gmra.mxu0 %v3476
      %v4807 = vpop.f32.mrf.mxu0
      %v4808 = vadd.f32 0.0, %v4807
      %4809 = vdwg.mxu0
      %v4810 = vld [vmem:[%s57] sm:$0xff]
      %v4811 = vld [vmem:[%s57 + $0x8] sm:$0xff]
      %v4812 = vld [vmem:[%s57 + $0x10] sm:$0xff]
      %v4813 = vld [vmem:[%s57 + $0x18] sm:$0xff]
      %v4814 = vld [vmem:[%s57 + $0x20] sm:$0xff]
      %v4815 = vld [vmem:[%s57 + $0x28] sm:$0xff]
      %v4816 = vld [vmem:[%s57 + $0x30] sm:$0xff]
      %v4817 = vld [vmem:[%s57 + $0x38] sm:$0xff]
      %v4818 = vld [vmem:[%s57 + $0x40] sm:$0xff]
      %v4819 = vld [vmem:[%s57 + $0x48] sm:$0xff]
      %v4820 = vld [vmem:[%s57 + $0x50] sm:$0xff]
      %v4821 = vld [vmem:[%s57 + $0x58] sm:$0xff]
      %v4822 = vld [vmem:[%s57 + $0x60] sm:$0xff]
      %v4823 = vld [vmem:[%s57 + $0x68] sm:$0xff]
      %v4824 = vld [vmem:[%s57 + $0x70] sm:$0xff]
      %v4825 = vld [vmem:[%s57 + $0x78] sm:$0xff]
      %v4826 = vld [vmem:[%s59] sm:$0xff]
      %v4827 = vld [vmem:[%s59 + $0x8] sm:$0xff]
      %v4828 = vld [vmem:[%s59 + $0x10] sm:$0xff]
      %v4829 = vld [vmem:[%s59 + $0x18] sm:$0xff]
      %v4830 = vld [vmem:[%s59 + $0x20] sm:$0xff]
      %v4831 = vld [vmem:[%s59 + $0x28] sm:$0xff]
      %v4832 = vld [vmem:[%s59 + $0x30] sm:$0xff]
      %v4833 = vld [vmem:[%s59 + $0x38] sm:$0xff]
      %v4834 = vld [vmem:[%s59 + $0x40] sm:$0xff]
      %v4835 = vld [vmem:[%s59 + $0x48] sm:$0xff]
      %v4836 = vld [vmem:[%s59 + $0x50] sm:$0xff]
      %v4837 = vld [vmem:[%s59 + $0x58] sm:$0xff]
      %v4838 = vld [vmem:[%s59 + $0x60] sm:$0xff]
      %v4839 = vld [vmem:[%s59 + $0x68] sm:$0xff]
      %v4840 = vld [vmem:[%s59 + $0x70] sm:$0xff]
      %v4841 = vld [vmem:[%s59 + $0x78] sm:$0xff]
      %4843 = vset.pattern.permute.xlu0 0
      %4844 = vperm.xlu0 %4843, %v4826
      %v4845 = vpop.permute.xlu0 %4844
      %4848 = vset.pattern.permute.xlu0 0
      %4849 = vperm.xlu0 %4848, %v4827
      %v4850 = vpop.permute.xlu0 %4849
      %4853 = vset.pattern.permute.xlu0 0
      %4854 = vperm.xlu0 %4853, %v4828
      %v4855 = vpop.permute.xlu0 %4854
      %4858 = vset.pattern.permute.xlu0 0
      %4859 = vperm.xlu0 %4858, %v4829
      %v4860 = vpop.permute.xlu0 %4859
      %4863 = vset.pattern.permute.xlu0 0
      %4864 = vperm.xlu0 %4863, %v4830
      %v4865 = vpop.permute.xlu0 %4864
      %4868 = vset.pattern.permute.xlu0 0
      %4869 = vperm.xlu0 %4868, %v4831
      %v4870 = vpop.permute.xlu0 %4869
      %4873 = vset.pattern.permute.xlu0 0
      %4874 = vperm.xlu0 %4873, %v4832
      %v4875 = vpop.permute.xlu0 %4874
      %4878 = vset.pattern.permute.xlu0 0
      %4879 = vperm.xlu0 %4878, %v4833
      %v4880 = vpop.permute.xlu0 %4879
      %4883 = vset.pattern.permute.xlu0 0
      %4884 = vperm.xlu0 %4883, %v4834
      %v4885 = vpop.permute.xlu0 %4884
      %4888 = vset.pattern.permute.xlu0 0
      %4889 = vperm.xlu0 %4888, %v4835
      %v4890 = vpop.permute.xlu0 %4889
      %4893 = vset.pattern.permute.xlu0 0
      %4894 = vperm.xlu0 %4893, %v4836
      %v4895 = vpop.permute.xlu0 %4894
      %4898 = vset.pattern.permute.xlu0 0
      %4899 = vperm.xlu0 %4898, %v4837
      %v4900 = vpop.permute.xlu0 %4899
      %4903 = vset.pattern.permute.xlu0 0
      %4904 = vperm.xlu0 %4903, %v4838
      %v4905 = vpop.permute.xlu0 %4904
      %4908 = vset.pattern.permute.xlu0 0
      %4909 = vperm.xlu0 %4908, %v4839
      %v4910 = vpop.permute.xlu0 %4909
      %4913 = vset.pattern.permute.xlu0 0
      %4914 = vperm.xlu0 %4913, %v4840
      %v4915 = vpop.permute.xlu0 %4914
      %4918 = vset.pattern.permute.xlu0 0
      %4919 = vperm.xlu0 %4918, %v4841
      %v4920 = vpop.permute.xlu0 %4919
      %v4923 = vsel %vm1273, %v4810, 0
      %v4926 = vsel %vm1273, %v4811, 0
      %v4929 = vsel %vm1273, %v4812, 0
      %v4932 = vsel %vm1273, %v4813, 0
      %v4935 = vsel %vm1273, %v4814, 0
      %v4938 = vsel %vm1273, %v4815, 0
      %v4941 = vsel %vm1273, %v4816, 0
      %v4944 = vsel %vm1273, %v4817, 0
      %v4947 = vsel %vm1273, %v4818, 0
      %v4950 = vsel %vm1273, %v4819, 0
      %v4953 = vsel %vm1273, %v4820, 0
      %v4956 = vsel %vm1273, %v4821, 0
      %v4959 = vsel %vm1273, %v4822, 0
      %v4962 = vsel %vm1273, %v4823, 0
      %v4965 = vsel %vm1273, %v4824, 0
      %v4968 = vsel %vm1273, %v4825, 0
      %4970 = vmatpush.msra.mxu0 0.0
      %4971 = vmatpush.msra.mxu0 0.0
      %4972 = vmatpush.msra.mxu0 0.0
      %4973 = vmatpush.msra.mxu0 0.0
      %4974 = vmatpush.msra.mxu0 0.0
      %4975 = vmatpush.msra.mxu0 0.0
      %4976 = vmatpush.msra.mxu0 0.0
      %4977 = vmatpush.msra.mxu0 0.0
      %4978 = vmatpush.msra.mxu0 %v4808
      %4979 = vmatpush.msra.mxu0 %v4805
      %4980 = vmatpush.msra.mxu0 %v4802
      %4981 = vmatpush.msra.mxu0 %v4799
      %4982 = vmatpush.msra.mxu0 %v4796
      %4983 = vmatpush.msra.mxu0 %v4793
      %4984 = vmatpush.msra.mxu0 %v4790
      %4985 = vmatpush.msra.mxu0 %v4787
      %4986 = vmatmul.f32.gmra.mxu0 %v4923
      %v4987 = vpop.f32.mrf.mxu0
      %v4988 = vadd.f32 %v4845, %v4987
      %4989 = vmatmul.f32.gmra.mxu0 %v4926
      %v4990 = vpop.f32.mrf.mxu0
      %v4991 = vadd.f32 %v4850, %v4990
      %4992 = vmatmul.f32.gmra.mxu0 %v4929
      %v4993 = vpop.f32.mrf.mxu0
      %v4994 = vadd.f32 %v4855, %v4993
      %4995 = vmatmul.f32.gmra.mxu0 %v4932
      %v4996 = vpop.f32.mrf.mxu0
      %v4997 = vadd.f32 %v4860, %v4996
      %4998 = vmatmul.f32.gmra.mxu0 %v4935
      %v4999 = vpop.f32.mrf.mxu0
      %v5000 = vadd.f32 %v4865, %v4999
      %5001 = vmatmul.f32.gmra.mxu0 %v4938
      %v5002 = vpop.f32.mrf.mxu0
      %v5003 = vadd.f32 %v4870, %v5002
      %5004 = vmatmul.f32.gmra.mxu0 %v4941
      %v5005 = vpop.f32.mrf.mxu0
      %v5006 = vadd.f32 %v4875, %v5005
      %5007 = vmatmul.f32.gmra.mxu0 %v4944
      %v5008 = vpop.f32.mrf.mxu0
      %v5009 = vadd.f32 %v4880, %v5008
      %5010 = vmatmul.f32.gmra.mxu0 %v4947
      %v5011 = vpop.f32.mrf.mxu0
      %v5012 = vadd.f32 %v4885, %v5011
      %5013 = vmatmul.f32.gmra.mxu0 %v4950
      %v5014 = vpop.f32.mrf.mxu0
      %v5015 = vadd.f32 %v4890, %v5014
      %5016 = vmatmul.f32.gmra.mxu0 %v4953
      %v5017 = vpop.f32.mrf.mxu0
      %v5018 = vadd.f32 %v4895, %v5017
      %5019 = vmatmul.f32.gmra.mxu0 %v4956
      %v5020 = vpop.f32.mrf.mxu0
      %v5021 = vadd.f32 %v4900, %v5020
      %5022 = vmatmul.f32.gmra.mxu0 %v4959
      %v5023 = vpop.f32.mrf.mxu0
      %v5024 = vadd.f32 %v4905, %v5023
      %5025 = vmatmul.f32.gmra.mxu0 %v4962
      %v5026 = vpop.f32.mrf.mxu0
      %v5027 = vadd.f32 %v4910, %v5026
      %5028 = vmatmul.f32.gmra.mxu0 %v4965
      %v5029 = vpop.f32.mrf.mxu0
      %v5030 = vadd.f32 %v4915, %v5029
      %5031 = vmatmul.f32.gmra.mxu0 %v4968
      %v5032 = vpop.f32.mrf.mxu0
      %v5033 = vadd.f32 %v4920, %v5032
      %5034 = vdwg.mxu0
      %v5035 = vadd.f32 %v4752, %v4988
      %v5036 = vadd.f32 %v4753, %v4991
      %v5037 = vadd.f32 %v4754, %v4994
      %v5038 = vadd.f32 %v4755, %v4997
      %v5039 = vadd.f32 %v4756, %v5000
      %v5040 = vadd.f32 %v4757, %v5003
      %v5041 = vadd.f32 %v4758, %v5006
      %v5042 = vadd.f32 %v4759, %v5009
      %v5043 = vadd.f32 %v4760, %v5012
      %v5044 = vadd.f32 %v4761, %v5015
      %v5045 = vadd.f32 %v4762, %v5018
      %v5046 = vadd.f32 %v4763, %v5021
      %v5047 = vadd.f32 %v4764, %v5024
      %v5048 = vadd.f32 %v4765, %v5027
      %v5049 = vadd.f32 %v4766, %v5030
      %v5050 = vadd.f32 %v4767, %v5033
      %v5051 = vmax.f32 %v5035, 0.0
      %v5052 = vmax.f32 %v5036, 0.0
      %v5053 = vmax.f32 %v5037, 0.0
      %v5054 = vmax.f32 %v5038, 0.0
      %v5055 = vmax.f32 %v5039, 0.0
      %v5056 = vmax.f32 %v5040, 0.0
      %v5057 = vmax.f32 %v5041, 0.0
      %v5058 = vmax.f32 %v5042, 0.0
      %v5059 = vmax.f32 %v5043, 0.0
      %v5060 = vmax.f32 %v5044, 0.0
      %v5061 = vmax.f32 %v5045, 0.0
      %v5062 = vmax.f32 %v5046, 0.0
      %v5063 = vmax.f32 %v5047, 0.0
      %v5064 = vmax.f32 %v5048, 0.0
      %v5065 = vmax.f32 %v5049, 0.0
      %v5066 = vmax.f32 %v5050, 0.0
      %v5067 = vld [vmem:[%s67] sm:$0xf]
      %v5069 = vsel %vm1331, %v5051, 0
      %v5072 = vsel %vm1331, %v5052, 0
      %v5075 = vsel %vm1331, %v5053, 0
      %v5078 = vsel %vm1331, %v5054, 0
      %v5081 = vsel %vm1331, %v5055, 0
      %v5084 = vsel %vm1331, %v5056, 0
      %v5087 = vsel %vm1331, %v5057, 0
      %v5090 = vsel %vm1331, %v5058, 0
      %v5093 = vsel %vm1331, %v5059, 0
      %v5096 = vsel %vm1331, %v5060, 0
      %v5099 = vsel %vm1331, %v5061, 0
      %v5102 = vsel %vm1331, %v5062, 0
      %v5105 = vsel %vm1331, %v5063, 0
      %v5108 = vsel %vm1331, %v5064, 0
      %v5111 = vsel %vm1331, %v5065, 0
      %v5114 = vsel %vm1331, %v5066, 0
      %v5117 = vsel %vm1338, %v5067, 0
      %5119 = vmatpush.msra.mxu0 0.0
      %5120 = vmatpush.msra.mxu0 0.0
      %5121 = vmatpush.msra.mxu0 0.0
      %5122 = vmatpush.msra.mxu0 0.0
      %5123 = vmatpush.msra.mxu0 0.0
      %5124 = vmatpush.msra.mxu0 0.0
      %5125 = vmatpush.msra.mxu0 0.0
      %5126 = vmatpush.msra.mxu0 0.0
      %5127 = vmatpush.msra.mxu0 0.0
      %5128 = vmatpush.msra.mxu0 0.0
      %5129 = vmatpush.msra.mxu0 0.0
      %5130 = vmatpush.msra.mxu0 0.0
      %5131 = vmatpush.msra.mxu0 0.0
      %5132 = vmatpush.msra.mxu0 0.0
      %5133 = vmatpush.msra.mxu0 0.0
      %5134 = vmatpush.msra.mxu0 %v5117
      %5135 = vmatmul.f32.gmra.mxu0 %v5069
      %v5136 = vpop.f32.mrf.mxu0
      %v5137 = vadd.f32 0.0, %v5136
      %5138 = vmatmul.f32.gmra.mxu0 %v5072
      %v5139 = vpop.f32.mrf.mxu0
      %v5140 = vadd.f32 0.0, %v5139
      %5141 = vmatmul.f32.gmra.mxu0 %v5075
      %v5142 = vpop.f32.mrf.mxu0
      %v5143 = vadd.f32 0.0, %v5142
      %5144 = vmatmul.f32.gmra.mxu0 %v5078
      %v5145 = vpop.f32.mrf.mxu0
      %v5146 = vadd.f32 0.0, %v5145
      %5147 = vmatmul.f32.gmra.mxu0 %v5081
      %v5148 = vpop.f32.mrf.mxu0
      %v5149 = vadd.f32 0.0, %v5148
      %5150 = vmatmul.f32.gmra.mxu0 %v5084
      %v5151 = vpop.f32.mrf.mxu0
      %v5152 = vadd.f32 0.0, %v5151
      %5153 = vmatmul.f32.gmra.mxu0 %v5087
      %v5154 = vpop.f32.mrf.mxu0
      %v5155 = vadd.f32 0.0, %v5154
      %5156 = vmatmul.f32.gmra.mxu0 %v5090
      %v5157 = vpop.f32.mrf.mxu0
      %v5158 = vadd.f32 0.0, %v5157
      %5159 = vmatmul.f32.gmra.mxu0 %v5093
      %v5160 = vpop.f32.mrf.mxu0
      %v5161 = vadd.f32 0.0, %v5160
      %5162 = vmatmul.f32.gmra.mxu0 %v5096
      %v5163 = vpop.f32.mrf.mxu0
      %v5164 = vadd.f32 0.0, %v5163
      %5165 = vmatmul.f32.gmra.mxu0 %v5099
      %v5166 = vpop.f32.mrf.mxu0
      %v5167 = vadd.f32 0.0, %v5166
      %5168 = vmatmul.f32.gmra.mxu0 %v5102
      %v5169 = vpop.f32.mrf.mxu0
      %v5170 = vadd.f32 0.0, %v5169
      %5171 = vmatmul.f32.gmra.mxu0 %v5105
      %v5172 = vpop.f32.mrf.mxu0
      %v5173 = vadd.f32 0.0, %v5172
      %5174 = vmatmul.f32.gmra.mxu0 %v5108
      %v5175 = vpop.f32.mrf.mxu0
      %v5176 = vadd.f32 0.0, %v5175
      %5177 = vmatmul.f32.gmra.mxu0 %v5111
      %v5178 = vpop.f32.mrf.mxu0
      %v5179 = vadd.f32 0.0, %v5178
      %5180 = vmatmul.f32.gmra.mxu0 %v5114
      %v5181 = vpop.f32.mrf.mxu0
      %v5182 = vadd.f32 0.0, %v5181
      %5183 = vdwg.mxu0
      %v5184 = vld [vmem:[%s63] sm:$0xff]
      %v5185 = vld [vmem:[%s63 + $0x8] sm:$0xff]
      %v5186 = vld [vmem:[%s63 + $0x10] sm:$0xff]
      %v5187 = vld [vmem:[%s63 + $0x18] sm:$0xff]
      %v5188 = vld [vmem:[%s63 + $0x20] sm:$0xff]
      %v5189 = vld [vmem:[%s63 + $0x28] sm:$0xff]
      %v5190 = vld [vmem:[%s63 + $0x30] sm:$0xff]
      %v5191 = vld [vmem:[%s63 + $0x38] sm:$0xff]
      %v5192 = vld [vmem:[%s63 + $0x40] sm:$0xff]
      %v5193 = vld [vmem:[%s63 + $0x48] sm:$0xff]
      %v5194 = vld [vmem:[%s63 + $0x50] sm:$0xff]
      %v5195 = vld [vmem:[%s63 + $0x58] sm:$0xff]
      %v5196 = vld [vmem:[%s63 + $0x60] sm:$0xff]
      %v5197 = vld [vmem:[%s63 + $0x68] sm:$0xff]
      %v5198 = vld [vmem:[%s63 + $0x70] sm:$0xff]
      %v5199 = vld [vmem:[%s63 + $0x78] sm:$0xff]
      %v5200 = vld [vmem:[%s63 + $0x80] sm:$0xff]
      %v5201 = vld [vmem:[%s63 + $0x88] sm:$0xff]
      %v5202 = vld [vmem:[%s63 + $0x90] sm:$0xff]
      %v5203 = vld [vmem:[%s63 + $0x98] sm:$0xff]
      %v5204 = vld [vmem:[%s63 + $0xa0] sm:$0xff]
      %v5205 = vld [vmem:[%s63 + $0xa8] sm:$0xff]
      %v5206 = vld [vmem:[%s63 + $0xb0] sm:$0xff]
      %v5207 = vld [vmem:[%s63 + $0xb8] sm:$0xff]
      %v5208 = vld [vmem:[%s63 + $0xc0] sm:$0xff]
      %v5209 = vld [vmem:[%s63 + $0xc8] sm:$0xff]
      %v5210 = vld [vmem:[%s63 + $0xd0] sm:$0xff]
      %v5211 = vld [vmem:[%s63 + $0xd8] sm:$0xff]
      %v5212 = vld [vmem:[%s63 + $0xe0] sm:$0xff]
      %v5213 = vld [vmem:[%s63 + $0xe8] sm:$0xff]
      %v5214 = vld [vmem:[%s63 + $0xf0] sm:$0xff]
      %v5215 = vld [vmem:[%s63 + $0xf8] sm:$0xff]
      %s5216 = scalar_lea.vmem %s67, 4
      %v5217 = vld [vmem:[%s5216] sm:$0xf]
      %v5219 = vsel %vm1338, %v5217, 0
      %5221 = vmatpush.msra.mxu0 0.0
      %5222 = vmatpush.msra.mxu0 0.0
      %5223 = vmatpush.msra.mxu0 0.0
      %5224 = vmatpush.msra.mxu0 0.0
      %5225 = vmatpush.msra.mxu0 0.0
      %5226 = vmatpush.msra.mxu0 0.0
      %5227 = vmatpush.msra.mxu0 0.0
      %5228 = vmatpush.msra.mxu0 0.0
      %5229 = vmatpush.msra.mxu0 0.0
      %5230 = vmatpush.msra.mxu0 0.0
      %5231 = vmatpush.msra.mxu0 0.0
      %5232 = vmatpush.msra.mxu0 0.0
      %5233 = vmatpush.msra.mxu0 0.0
      %5234 = vmatpush.msra.mxu0 0.0
      %5235 = vmatpush.msra.mxu0 0.0
      %5236 = vmatpush.msra.mxu0 %v5219
      %5237 = vmatmul.f32.gmra.mxu0 %v5069
      %v5238 = vpop.f32.mrf.mxu0
      %v5239 = vadd.f32 0.0, %v5238
      %5240 = vmatmul.f32.gmra.mxu0 %v5072
      %v5241 = vpop.f32.mrf.mxu0
      %v5242 = vadd.f32 0.0, %v5241
      %5243 = vmatmul.f32.gmra.mxu0 %v5075
      %v5244 = vpop.f32.mrf.mxu0
      %v5245 = vadd.f32 0.0, %v5244
      %5246 = vmatmul.f32.gmra.mxu0 %v5078
      %v5247 = vpop.f32.mrf.mxu0
      %v5248 = vadd.f32 0.0, %v5247
      %5249 = vmatmul.f32.gmra.mxu0 %v5081
      %v5250 = vpop.f32.mrf.mxu0
      %v5251 = vadd.f32 0.0, %v5250
      %5252 = vmatmul.f32.gmra.mxu0 %v5084
      %v5253 = vpop.f32.mrf.mxu0
      %v5254 = vadd.f32 0.0, %v5253
      %5255 = vmatmul.f32.gmra.mxu0 %v5087
      %v5256 = vpop.f32.mrf.mxu0
      %v5257 = vadd.f32 0.0, %v5256
      %5258 = vmatmul.f32.gmra.mxu0 %v5090
      %v5259 = vpop.f32.mrf.mxu0
      %v5260 = vadd.f32 0.0, %v5259
      %5261 = vmatmul.f32.gmra.mxu0 %v5093
      %v5262 = vpop.f32.mrf.mxu0
      %v5263 = vadd.f32 0.0, %v5262
      %5264 = vmatmul.f32.gmra.mxu0 %v5096
      %v5265 = vpop.f32.mrf.mxu0
      %v5266 = vadd.f32 0.0, %v5265
      %5267 = vmatmul.f32.gmra.mxu0 %v5099
      %v5268 = vpop.f32.mrf.mxu0
      %v5269 = vadd.f32 0.0, %v5268
      %5270 = vmatmul.f32.gmra.mxu0 %v5102
      %v5271 = vpop.f32.mrf.mxu0
      %v5272 = vadd.f32 0.0, %v5271
      %5273 = vmatmul.f32.gmra.mxu0 %v5105
      %v5274 = vpop.f32.mrf.mxu0
      %v5275 = vadd.f32 0.0, %v5274
      %5276 = vmatmul.f32.gmra.mxu0 %v5108
      %v5277 = vpop.f32.mrf.mxu0
      %v5278 = vadd.f32 0.0, %v5277
      %5279 = vmatmul.f32.gmra.mxu0 %v5111
      %v5280 = vpop.f32.mrf.mxu0
      %v5281 = vadd.f32 0.0, %v5280
      %5282 = vmatmul.f32.gmra.mxu0 %v5114
      %v5283 = vpop.f32.mrf.mxu0
      %v5284 = vadd.f32 0.0, %v5283
      %5285 = vdwg.mxu0
      %s5286 = scalar_lea.vmem %s63, 256
      %v5287 = vld [vmem:[%s5286] sm:$0xff]
      %v5288 = vld [vmem:[%s5286 + $0x8] sm:$0xff]
      %v5289 = vld [vmem:[%s5286 + $0x10] sm:$0xff]
      %v5290 = vld [vmem:[%s5286 + $0x18] sm:$0xff]
      %v5291 = vld [vmem:[%s5286 + $0x20] sm:$0xff]
      %v5292 = vld [vmem:[%s5286 + $0x28] sm:$0xff]
      %v5293 = vld [vmem:[%s5286 + $0x30] sm:$0xff]
      %v5294 = vld [vmem:[%s5286 + $0x38] sm:$0xff]
      %v5295 = vld [vmem:[%s5286 + $0x40] sm:$0xff]
      %v5296 = vld [vmem:[%s5286 + $0x48] sm:$0xff]
      %v5297 = vld [vmem:[%s5286 + $0x50] sm:$0xff]
      %v5298 = vld [vmem:[%s5286 + $0x58] sm:$0xff]
      %v5299 = vld [vmem:[%s5286 + $0x60] sm:$0xff]
      %v5300 = vld [vmem:[%s5286 + $0x68] sm:$0xff]
      %v5301 = vld [vmem:[%s5286 + $0x70] sm:$0xff]
      %v5302 = vld [vmem:[%s5286 + $0x78] sm:$0xff]
      %v5303 = vld [vmem:[%s5286 + $0x80] sm:$0xff]
      %v5304 = vld [vmem:[%s5286 + $0x88] sm:$0xff]
      %v5305 = vld [vmem:[%s5286 + $0x90] sm:$0xff]
      %v5306 = vld [vmem:[%s5286 + $0x98] sm:$0xff]
      %v5307 = vld [vmem:[%s5286 + $0xa0] sm:$0xff]
      %v5308 = vld [vmem:[%s5286 + $0xa8] sm:$0xff]
      %v5309 = vld [vmem:[%s5286 + $0xb0] sm:$0xff]
      %v5310 = vld [vmem:[%s5286 + $0xb8] sm:$0xff]
      %v5311 = vld [vmem:[%s5286 + $0xc0] sm:$0xff]
      %v5312 = vld [vmem:[%s5286 + $0xc8] sm:$0xff]
      %v5313 = vld [vmem:[%s5286 + $0xd0] sm:$0xff]
      %v5314 = vld [vmem:[%s5286 + $0xd8] sm:$0xff]
      %v5315 = vld [vmem:[%s5286 + $0xe0] sm:$0xff]
      %v5316 = vld [vmem:[%s5286 + $0xe8] sm:$0xff]
      %v5317 = vld [vmem:[%s5286 + $0xf0] sm:$0xff]
      %v5318 = vld [vmem:[%s5286 + $0xf8] sm:$0xff]
      %5319 = vmatpush.msra.mxu0 %v5284
      %5320 = vmatpush.msra.mxu0 %v5281
      %5321 = vmatpush.msra.mxu0 %v5278
      %5322 = vmatpush.msra.mxu0 %v5275
      %5323 = vmatpush.msra.mxu0 %v5272
      %5324 = vmatpush.msra.mxu0 %v5269
      %5325 = vmatpush.msra.mxu0 %v5266
      %5326 = vmatpush.msra.mxu0 %v5263
      %5327 = vmatpush.msra.mxu0 %v5260
      %5328 = vmatpush.msra.mxu0 %v5257
      %5329 = vmatpush.msra.mxu0 %v5254
      %5330 = vmatpush.msra.mxu0 %v5251
      %5331 = vmatpush.msra.mxu0 %v5248
      %5332 = vmatpush.msra.mxu0 %v5245
      %5333 = vmatpush.msra.mxu0 %v5242
      %5334 = vmatpush.msra.mxu0 %v5239
      %5335 = vmatmul.f32.gmra.mxu0 %v5287
      %v5336 = vpop.f32.mrf.mxu0
      %v5337 = vadd.f32 0.0, %v5336
      %5338 = vmatmul.f32.gmra.mxu0 %v5288
      %v5339 = vpop.f32.mrf.mxu0
      %v5340 = vadd.f32 0.0, %v5339
      %5341 = vmatmul.f32.gmra.mxu0 %v5289
      %v5342 = vpop.f32.mrf.mxu0
      %v5343 = vadd.f32 0.0, %v5342
      %5344 = vmatmul.f32.gmra.mxu0 %v5290
      %v5345 = vpop.f32.mrf.mxu0
      %v5346 = vadd.f32 0.0, %v5345
      %5347 = vmatmul.f32.gmra.mxu0 %v5291
      %v5348 = vpop.f32.mrf.mxu0
      %v5349 = vadd.f32 0.0, %v5348
      %5350 = vmatmul.f32.gmra.mxu0 %v5292
      %v5351 = vpop.f32.mrf.mxu0
      %v5352 = vadd.f32 0.0, %v5351
      %5353 = vmatmul.f32.gmra.mxu0 %v5293
      %v5354 = vpop.f32.mrf.mxu0
      %v5355 = vadd.f32 0.0, %v5354
      %5356 = vmatmul.f32.gmra.mxu0 %v5294
      %v5357 = vpop.f32.mrf.mxu0
      %v5358 = vadd.f32 0.0, %v5357
      %5359 = vmatmul.f32.gmra.mxu0 %v5295
      %v5360 = vpop.f32.mrf.mxu0
      %v5361 = vadd.f32 0.0, %v5360
      %5362 = vmatmul.f32.gmra.mxu0 %v5296
      %v5363 = vpop.f32.mrf.mxu0
      %v5364 = vadd.f32 0.0, %v5363
      %5365 = vmatmul.f32.gmra.mxu0 %v5297
      %v5366 = vpop.f32.mrf.mxu0
      %v5367 = vadd.f32 0.0, %v5366
      %5368 = vmatmul.f32.gmra.mxu0 %v5298
      %v5369 = vpop.f32.mrf.mxu0
      %v5370 = vadd.f32 0.0, %v5369
      %5371 = vmatmul.f32.gmra.mxu0 %v5299
      %v5372 = vpop.f32.mrf.mxu0
      %v5373 = vadd.f32 0.0, %v5372
      %5374 = vmatmul.f32.gmra.mxu0 %v5300
      %v5375 = vpop.f32.mrf.mxu0
      %v5376 = vadd.f32 0.0, %v5375
      %5377 = vmatmul.f32.gmra.mxu0 %v5301
      %v5378 = vpop.f32.mrf.mxu0
      %v5379 = vadd.f32 0.0, %v5378
      %5380 = vmatmul.f32.gmra.mxu0 %v5302
      %v5381 = vpop.f32.mrf.mxu0
      %v5382 = vadd.f32 0.0, %v5381
      %5383 = vmatmul.f32.gmra.mxu0 %v5303
      %v5384 = vpop.f32.mrf.mxu0
      %v5385 = vadd.f32 0.0, %v5384
      %5386 = vmatmul.f32.gmra.mxu0 %v5304
      %v5387 = vpop.f32.mrf.mxu0
      %v5388 = vadd.f32 0.0, %v5387
      %5389 = vmatmul.f32.gmra.mxu0 %v5305
      %v5390 = vpop.f32.mrf.mxu0
      %v5391 = vadd.f32 0.0, %v5390
      %5392 = vmatmul.f32.gmra.mxu0 %v5306
      %v5393 = vpop.f32.mrf.mxu0
      %v5394 = vadd.f32 0.0, %v5393
      %5395 = vmatmul.f32.gmra.mxu0 %v5307
      %v5396 = vpop.f32.mrf.mxu0
      %v5397 = vadd.f32 0.0, %v5396
      %5398 = vmatmul.f32.gmra.mxu0 %v5308
      %v5399 = vpop.f32.mrf.mxu0
      %v5400 = vadd.f32 0.0, %v5399
      %5401 = vmatmul.f32.gmra.mxu0 %v5309
      %v5402 = vpop.f32.mrf.mxu0
      %v5403 = vadd.f32 0.0, %v5402
      %5404 = vmatmul.f32.gmra.mxu0 %v5310
      %v5405 = vpop.f32.mrf.mxu0
      %v5406 = vadd.f32 0.0, %v5405
      %5407 = vmatmul.f32.gmra.mxu0 %v5311
      %v5408 = vpop.f32.mrf.mxu0
      %v5409 = vadd.f32 0.0, %v5408
      %5410 = vmatmul.f32.gmra.mxu0 %v5312
      %v5411 = vpop.f32.mrf.mxu0
      %v5412 = vadd.f32 0.0, %v5411
      %5413 = vmatmul.f32.gmra.mxu0 %v5313
      %v5414 = vpop.f32.mrf.mxu0
      %v5415 = vadd.f32 0.0, %v5414
      %5416 = vmatmul.f32.gmra.mxu0 %v5314
      %v5417 = vpop.f32.mrf.mxu0
      %v5418 = vadd.f32 0.0, %v5417
      %5419 = vmatmul.f32.gmra.mxu0 %v5315
      %v5420 = vpop.f32.mrf.mxu0
      %v5421 = vadd.f32 0.0, %v5420
      %5422 = vmatmul.f32.gmra.mxu0 %v5316
      %v5423 = vpop.f32.mrf.mxu0
      %v5424 = vadd.f32 0.0, %v5423
      %5425 = vmatmul.f32.gmra.mxu0 %v5317
      %v5426 = vpop.f32.mrf.mxu0
      %v5427 = vadd.f32 0.0, %v5426
      %5428 = vmatmul.f32.gmra.mxu0 %v5318
      %v5429 = vpop.f32.mrf.mxu0
      %v5430 = vadd.f32 0.0, %v5429
      %5431 = vdwg.mxu0
      %5432 = vmatpush.msra.mxu0 %v5182
      %5433 = vmatpush.msra.mxu0 %v5179
      %5434 = vmatpush.msra.mxu0 %v5176
      %5435 = vmatpush.msra.mxu0 %v5173
      %5436 = vmatpush.msra.mxu0 %v5170
      %5437 = vmatpush.msra.mxu0 %v5167
      %5438 = vmatpush.msra.mxu0 %v5164
      %5439 = vmatpush.msra.mxu0 %v5161
      %5440 = vmatpush.msra.mxu0 %v5158
      %5441 = vmatpush.msra.mxu0 %v5155
      %5442 = vmatpush.msra.mxu0 %v5152
      %5443 = vmatpush.msra.mxu0 %v5149
      %5444 = vmatpush.msra.mxu0 %v5146
      %5445 = vmatpush.msra.mxu0 %v5143
      %5446 = vmatpush.msra.mxu0 %v5140
      %5447 = vmatpush.msra.mxu0 %v5137
      %5448 = vmatmul.f32.gmra.mxu0 %v5184
      %v5449 = vpop.f32.mrf.mxu0
      %v5450 = vadd.f32 %v5337, %v5449
      %5451 = vmatmul.f32.gmra.mxu0 %v5185
      %v5452 = vpop.f32.mrf.mxu0
      %v5453 = vadd.f32 %v5340, %v5452
      %5454 = vmatmul.f32.gmra.mxu0 %v5186
      %v5455 = vpop.f32.mrf.mxu0
      %v5456 = vadd.f32 %v5343, %v5455
      %5457 = vmatmul.f32.gmra.mxu0 %v5187
      %v5458 = vpop.f32.mrf.mxu0
      %v5459 = vadd.f32 %v5346, %v5458
      %5460 = vmatmul.f32.gmra.mxu0 %v5188
      %v5461 = vpop.f32.mrf.mxu0
      %v5462 = vadd.f32 %v5349, %v5461
      %5463 = vmatmul.f32.gmra.mxu0 %v5189
      %v5464 = vpop.f32.mrf.mxu0
      %v5465 = vadd.f32 %v5352, %v5464
      %5466 = vmatmul.f32.gmra.mxu0 %v5190
      %v5467 = vpop.f32.mrf.mxu0
      %v5468 = vadd.f32 %v5355, %v5467
      %5469 = vmatmul.f32.gmra.mxu0 %v5191
      %v5470 = vpop.f32.mrf.mxu0
      %v5471 = vadd.f32 %v5358, %v5470
      %5472 = vmatmul.f32.gmra.mxu0 %v5192
      %v5473 = vpop.f32.mrf.mxu0
      %v5474 = vadd.f32 %v5361, %v5473
      %5475 = vmatmul.f32.gmra.mxu0 %v5193
      %v5476 = vpop.f32.mrf.mxu0
      %v5477 = vadd.f32 %v5364, %v5476
      %5478 = vmatmul.f32.gmra.mxu0 %v5194
      %v5479 = vpop.f32.mrf.mxu0
      %v5480 = vadd.f32 %v5367, %v5479
      %5481 = vmatmul.f32.gmra.mxu0 %v5195
      %v5482 = vpop.f32.mrf.mxu0
      %v5483 = vadd.f32 %v5370, %v5482
      %5484 = vmatmul.f32.gmra.mxu0 %v5196
      %v5485 = vpop.f32.mrf.mxu0
      %v5486 = vadd.f32 %v5373, %v5485
      %5487 = vmatmul.f32.gmra.mxu0 %v5197
      %v5488 = vpop.f32.mrf.mxu0
      %v5489 = vadd.f32 %v5376, %v5488
      %5490 = vmatmul.f32.gmra.mxu0 %v5198
      %v5491 = vpop.f32.mrf.mxu0
      %v5492 = vadd.f32 %v5379, %v5491
      %5493 = vmatmul.f32.gmra.mxu0 %v5199
      %v5494 = vpop.f32.mrf.mxu0
      %v5495 = vadd.f32 %v5382, %v5494
      %5496 = vmatmul.f32.gmra.mxu0 %v5200
      %v5497 = vpop.f32.mrf.mxu0
      %v5498 = vadd.f32 %v5385, %v5497
      %5499 = vmatmul.f32.gmra.mxu0 %v5201
      %v5500 = vpop.f32.mrf.mxu0
      %v5501 = vadd.f32 %v5388, %v5500
      %5502 = vmatmul.f32.gmra.mxu0 %v5202
      %v5503 = vpop.f32.mrf.mxu0
      %v5504 = vadd.f32 %v5391, %v5503
      %5505 = vmatmul.f32.gmra.mxu0 %v5203
      %v5506 = vpop.f32.mrf.mxu0
      %v5507 = vadd.f32 %v5394, %v5506
      %5508 = vmatmul.f32.gmra.mxu0 %v5204
      %v5509 = vpop.f32.mrf.mxu0
      %v5510 = vadd.f32 %v5397, %v5509
      %5511 = vmatmul.f32.gmra.mxu0 %v5205
      %v5512 = vpop.f32.mrf.mxu0
      %v5513 = vadd.f32 %v5400, %v5512
      %5514 = vmatmul.f32.gmra.mxu0 %v5206
      %v5515 = vpop.f32.mrf.mxu0
      %v5516 = vadd.f32 %v5403, %v5515
      %5517 = vmatmul.f32.gmra.mxu0 %v5207
      %v5518 = vpop.f32.mrf.mxu0
      %v5519 = vadd.f32 %v5406, %v5518
      %5520 = vmatmul.f32.gmra.mxu0 %v5208
      %v5521 = vpop.f32.mrf.mxu0
      %v5522 = vadd.f32 %v5409, %v5521
      %5523 = vmatmul.f32.gmra.mxu0 %v5209
      %v5524 = vpop.f32.mrf.mxu0
      %v5525 = vadd.f32 %v5412, %v5524
      %5526 = vmatmul.f32.gmra.mxu0 %v5210
      %v5527 = vpop.f32.mrf.mxu0
      %v5528 = vadd.f32 %v5415, %v5527
      %5529 = vmatmul.f32.gmra.mxu0 %v5211
      %v5530 = vpop.f32.mrf.mxu0
      %v5531 = vadd.f32 %v5418, %v5530
      %5532 = vmatmul.f32.gmra.mxu0 %v5212
      %v5533 = vpop.f32.mrf.mxu0
      %v5534 = vadd.f32 %v5421, %v5533
      %5535 = vmatmul.f32.gmra.mxu0 %v5213
      %v5536 = vpop.f32.mrf.mxu0
      %v5537 = vadd.f32 %v5424, %v5536
      %5538 = vmatmul.f32.gmra.mxu0 %v5214
      %v5539 = vpop.f32.mrf.mxu0
      %v5540 = vadd.f32 %v5427, %v5539
      %5541 = vmatmul.f32.gmra.mxu0 %v5215
      %v5542 = vpop.f32.mrf.mxu0
      %v5543 = vadd.f32 %v5430, %v5542
      %5544 = vdwg.mxu0
      %s5545 = scalar_lea.vmem %s67, 8
      %v5546 = vld [vmem:[%s5545] sm:$0xf]
      %v5548 = vsel %vm1338, %v5546, 0
      %5550 = vmatpush.msra.mxu0 0.0
      %5551 = vmatpush.msra.mxu0 0.0
      %5552 = vmatpush.msra.mxu0 0.0
      %5553 = vmatpush.msra.mxu0 0.0
      %5554 = vmatpush.msra.mxu0 0.0
      %5555 = vmatpush.msra.mxu0 0.0
      %5556 = vmatpush.msra.mxu0 0.0
      %5557 = vmatpush.msra.mxu0 0.0
      %5558 = vmatpush.msra.mxu0 0.0
      %5559 = vmatpush.msra.mxu0 0.0
      %5560 = vmatpush.msra.mxu0 0.0
      %5561 = vmatpush.msra.mxu0 0.0
      %5562 = vmatpush.msra.mxu0 0.0
      %5563 = vmatpush.msra.mxu0 0.0
      %5564 = vmatpush.msra.mxu0 0.0
      %5565 = vmatpush.msra.mxu0 %v5548
      %5566 = vmatmul.f32.gmra.mxu0 %v5069
      %v5567 = vpop.f32.mrf.mxu0
      %v5568 = vadd.f32 0.0, %v5567
      %5569 = vmatmul.f32.gmra.mxu0 %v5072
      %v5570 = vpop.f32.mrf.mxu0
      %v5571 = vadd.f32 0.0, %v5570
      %5572 = vmatmul.f32.gmra.mxu0 %v5075
      %v5573 = vpop.f32.mrf.mxu0
      %v5574 = vadd.f32 0.0, %v5573
      %5575 = vmatmul.f32.gmra.mxu0 %v5078
      %v5576 = vpop.f32.mrf.mxu0
      %v5577 = vadd.f32 0.0, %v5576
      %5578 = vmatmul.f32.gmra.mxu0 %v5081
      %v5579 = vpop.f32.mrf.mxu0
      %v5580 = vadd.f32 0.0, %v5579
      %5581 = vmatmul.f32.gmra.mxu0 %v5084
      %v5582 = vpop.f32.mrf.mxu0
      %v5583 = vadd.f32 0.0, %v5582
      %5584 = vmatmul.f32.gmra.mxu0 %v5087
      %v5585 = vpop.f32.mrf.mxu0
      %v5586 = vadd.f32 0.0, %v5585
      %5587 = vmatmul.f32.gmra.mxu0 %v5090
      %v5588 = vpop.f32.mrf.mxu0
      %v5589 = vadd.f32 0.0, %v5588
      %5590 = vmatmul.f32.gmra.mxu0 %v5093
      %v5591 = vpop.f32.mrf.mxu0
      %v5592 = vadd.f32 0.0, %v5591
      %5593 = vmatmul.f32.gmra.mxu0 %v5096
      %v5594 = vpop.f32.mrf.mxu0
      %v5595 = vadd.f32 0.0, %v5594
      %5596 = vmatmul.f32.gmra.mxu0 %v5099
      %v5597 = vpop.f32.mrf.mxu0
      %v5598 = vadd.f32 0.0, %v5597
      %5599 = vmatmul.f32.gmra.mxu0 %v5102
      %v5600 = vpop.f32.mrf.mxu0
      %v5601 = vadd.f32 0.0, %v5600
      %5602 = vmatmul.f32.gmra.mxu0 %v5105
      %v5603 = vpop.f32.mrf.mxu0
      %v5604 = vadd.f32 0.0, %v5603
      %5605 = vmatmul.f32.gmra.mxu0 %v5108
      %v5606 = vpop.f32.mrf.mxu0
      %v5607 = vadd.f32 0.0, %v5606
      %5608 = vmatmul.f32.gmra.mxu0 %v5111
      %v5609 = vpop.f32.mrf.mxu0
      %v5610 = vadd.f32 0.0, %v5609
      %5611 = vmatmul.f32.gmra.mxu0 %v5114
      %v5612 = vpop.f32.mrf.mxu0
      %v5613 = vadd.f32 0.0, %v5612
      %5614 = vdwg.mxu0
      %s5615 = scalar_lea.vmem %s63, 512
      %v5616 = vld [vmem:[%s5615] sm:$0xff]
      %v5617 = vld [vmem:[%s5615 + $0x8] sm:$0xff]
      %v5618 = vld [vmem:[%s5615 + $0x10] sm:$0xff]
      %v5619 = vld [vmem:[%s5615 + $0x18] sm:$0xff]
      %v5620 = vld [vmem:[%s5615 + $0x20] sm:$0xff]
      %v5621 = vld [vmem:[%s5615 + $0x28] sm:$0xff]
      %v5622 = vld [vmem:[%s5615 + $0x30] sm:$0xff]
      %v5623 = vld [vmem:[%s5615 + $0x38] sm:$0xff]
      %v5624 = vld [vmem:[%s5615 + $0x40] sm:$0xff]
      %v5625 = vld [vmem:[%s5615 + $0x48] sm:$0xff]
      %v5626 = vld [vmem:[%s5615 + $0x50] sm:$0xff]
      %v5627 = vld [vmem:[%s5615 + $0x58] sm:$0xff]
      %v5628 = vld [vmem:[%s5615 + $0x60] sm:$0xff]
      %v5629 = vld [vmem:[%s5615 + $0x68] sm:$0xff]
      %v5630 = vld [vmem:[%s5615 + $0x70] sm:$0xff]
      %v5631 = vld [vmem:[%s5615 + $0x78] sm:$0xff]
      %v5632 = vld [vmem:[%s5615 + $0x80] sm:$0xff]
      %v5633 = vld [vmem:[%s5615 + $0x88] sm:$0xff]
      %v5634 = vld [vmem:[%s5615 + $0x90] sm:$0xff]
      %v5635 = vld [vmem:[%s5615 + $0x98] sm:$0xff]
      %v5636 = vld [vmem:[%s5615 + $0xa0] sm:$0xff]
      %v5637 = vld [vmem:[%s5615 + $0xa8] sm:$0xff]
      %v5638 = vld [vmem:[%s5615 + $0xb0] sm:$0xff]
      %v5639 = vld [vmem:[%s5615 + $0xb8] sm:$0xff]
      %v5640 = vld [vmem:[%s5615 + $0xc0] sm:$0xff]
      %v5641 = vld [vmem:[%s5615 + $0xc8] sm:$0xff]
      %v5642 = vld [vmem:[%s5615 + $0xd0] sm:$0xff]
      %v5643 = vld [vmem:[%s5615 + $0xd8] sm:$0xff]
      %v5644 = vld [vmem:[%s5615 + $0xe0] sm:$0xff]
      %v5645 = vld [vmem:[%s5615 + $0xe8] sm:$0xff]
      %v5646 = vld [vmem:[%s5615 + $0xf0] sm:$0xff]
      %v5647 = vld [vmem:[%s5615 + $0xf8] sm:$0xff]
      %5648 = vmatpush.msra.mxu0 %v5613
      %5649 = vmatpush.msra.mxu0 %v5610
      %5650 = vmatpush.msra.mxu0 %v5607
      %5651 = vmatpush.msra.mxu0 %v5604
      %5652 = vmatpush.msra.mxu0 %v5601
      %5653 = vmatpush.msra.mxu0 %v5598
      %5654 = vmatpush.msra.mxu0 %v5595
      %5655 = vmatpush.msra.mxu0 %v5592
      %5656 = vmatpush.msra.mxu0 %v5589
      %5657 = vmatpush.msra.mxu0 %v5586
      %5658 = vmatpush.msra.mxu0 %v5583
      %5659 = vmatpush.msra.mxu0 %v5580
      %5660 = vmatpush.msra.mxu0 %v5577
      %5661 = vmatpush.msra.mxu0 %v5574
      %5662 = vmatpush.msra.mxu0 %v5571
      %5663 = vmatpush.msra.mxu0 %v5568
      %5664 = vmatmul.f32.gmra.mxu0 %v5616
      %v5665 = vpop.f32.mrf.mxu0
      %v5666 = vadd.f32 0.0, %v5665
      %5667 = vmatmul.f32.gmra.mxu0 %v5617
      %v5668 = vpop.f32.mrf.mxu0
      %v5669 = vadd.f32 0.0, %v5668
      %5670 = vmatmul.f32.gmra.mxu0 %v5618
      %v5671 = vpop.f32.mrf.mxu0
      %v5672 = vadd.f32 0.0, %v5671
      %5673 = vmatmul.f32.gmra.mxu0 %v5619
      %v5674 = vpop.f32.mrf.mxu0
      %v5675 = vadd.f32 0.0, %v5674
      %5676 = vmatmul.f32.gmra.mxu0 %v5620
      %v5677 = vpop.f32.mrf.mxu0
      %v5678 = vadd.f32 0.0, %v5677
      %5679 = vmatmul.f32.gmra.mxu0 %v5621
      %v5680 = vpop.f32.mrf.mxu0
      %v5681 = vadd.f32 0.0, %v5680
      %5682 = vmatmul.f32.gmra.mxu0 %v5622
      %v5683 = vpop.f32.mrf.mxu0
      %v5684 = vadd.f32 0.0, %v5683
      %5685 = vmatmul.f32.gmra.mxu0 %v5623
      %v5686 = vpop.f32.mrf.mxu0
      %v5687 = vadd.f32 0.0, %v5686
      %5688 = vmatmul.f32.gmra.mxu0 %v5624
      %v5689 = vpop.f32.mrf.mxu0
      %v5690 = vadd.f32 0.0, %v5689
      %5691 = vmatmul.f32.gmra.mxu0 %v5625
      %v5692 = vpop.f32.mrf.mxu0
      %v5693 = vadd.f32 0.0, %v5692
      %5694 = vmatmul.f32.gmra.mxu0 %v5626
      %v5695 = vpop.f32.mrf.mxu0
      %v5696 = vadd.f32 0.0, %v5695
      %5697 = vmatmul.f32.gmra.mxu0 %v5627
      %v5698 = vpop.f32.mrf.mxu0
      %v5699 = vadd.f32 0.0, %v5698
      %5700 = vmatmul.f32.gmra.mxu0 %v5628
      %v5701 = vpop.f32.mrf.mxu0
      %v5702 = vadd.f32 0.0, %v5701
      %5703 = vmatmul.f32.gmra.mxu0 %v5629
      %v5704 = vpop.f32.mrf.mxu0
      %v5705 = vadd.f32 0.0, %v5704
      %5706 = vmatmul.f32.gmra.mxu0 %v5630
      %v5707 = vpop.f32.mrf.mxu0
      %v5708 = vadd.f32 0.0, %v5707
      %5709 = vmatmul.f32.gmra.mxu0 %v5631
      %v5710 = vpop.f32.mrf.mxu0
      %v5711 = vadd.f32 0.0, %v5710
      %5712 = vmatmul.f32.gmra.mxu0 %v5632
      %v5713 = vpop.f32.mrf.mxu0
      %v5714 = vadd.f32 0.0, %v5713
      %5715 = vmatmul.f32.gmra.mxu0 %v5633
      %v5716 = vpop.f32.mrf.mxu0
      %v5717 = vadd.f32 0.0, %v5716
      %5718 = vmatmul.f32.gmra.mxu0 %v5634
      %v5719 = vpop.f32.mrf.mxu0
      %v5720 = vadd.f32 0.0, %v5719
      %5721 = vmatmul.f32.gmra.mxu0 %v5635
      %v5722 = vpop.f32.mrf.mxu0
      %v5723 = vadd.f32 0.0, %v5722
      %5724 = vmatmul.f32.gmra.mxu0 %v5636
      %v5725 = vpop.f32.mrf.mxu0
      %v5726 = vadd.f32 0.0, %v5725
      %5727 = vmatmul.f32.gmra.mxu0 %v5637
      %v5728 = vpop.f32.mrf.mxu0
      %v5729 = vadd.f32 0.0, %v5728
      %5730 = vmatmul.f32.gmra.mxu0 %v5638
      %v5731 = vpop.f32.mrf.mxu0
      %v5732 = vadd.f32 0.0, %v5731
      %5733 = vmatmul.f32.gmra.mxu0 %v5639
      %v5734 = vpop.f32.mrf.mxu0
      %v5735 = vadd.f32 0.0, %v5734
      %5736 = vmatmul.f32.gmra.mxu0 %v5640
      %v5737 = vpop.f32.mrf.mxu0
      %v5738 = vadd.f32 0.0, %v5737
      %5739 = vmatmul.f32.gmra.mxu0 %v5641
      %v5740 = vpop.f32.mrf.mxu0
      %v5741 = vadd.f32 0.0, %v5740
      %5742 = vmatmul.f32.gmra.mxu0 %v5642
      %v5743 = vpop.f32.mrf.mxu0
      %v5744 = vadd.f32 0.0, %v5743
      %5745 = vmatmul.f32.gmra.mxu0 %v5643
      %v5746 = vpop.f32.mrf.mxu0
      %v5747 = vadd.f32 0.0, %v5746
      %5748 = vmatmul.f32.gmra.mxu0 %v5644
      %v5749 = vpop.f32.mrf.mxu0
      %v5750 = vadd.f32 0.0, %v5749
      %5751 = vmatmul.f32.gmra.mxu0 %v5645
      %v5752 = vpop.f32.mrf.mxu0
      %v5753 = vadd.f32 0.0, %v5752
      %5754 = vmatmul.f32.gmra.mxu0 %v5646
      %v5755 = vpop.f32.mrf.mxu0
      %v5756 = vadd.f32 0.0, %v5755
      %5757 = vmatmul.f32.gmra.mxu0 %v5647
      %v5758 = vpop.f32.mrf.mxu0
      %v5759 = vadd.f32 0.0, %v5758
      %5760 = vdwg.mxu0
      %v5761 = vadd.f32 %v5450, %v5666
      %v5762 = vadd.f32 %v5453, %v5669
      %v5763 = vadd.f32 %v5456, %v5672
      %v5764 = vadd.f32 %v5459, %v5675
      %v5765 = vadd.f32 %v5462, %v5678
      %v5766 = vadd.f32 %v5465, %v5681
      %v5767 = vadd.f32 %v5468, %v5684
      %v5768 = vadd.f32 %v5471, %v5687
      %v5769 = vadd.f32 %v5474, %v5690
      %v5770 = vadd.f32 %v5477, %v5693
      %v5771 = vadd.f32 %v5480, %v5696
      %v5772 = vadd.f32 %v5483, %v5699
      %v5773 = vadd.f32 %v5486, %v5702
      %v5774 = vadd.f32 %v5489, %v5705
      %v5775 = vadd.f32 %v5492, %v5708
      %v5776 = vadd.f32 %v5495, %v5711
      %v5777 = vadd.f32 %v5498, %v5714
      %v5778 = vadd.f32 %v5501, %v5717
      %v5779 = vadd.f32 %v5504, %v5720
      %v5780 = vadd.f32 %v5507, %v5723
      %v5781 = vadd.f32 %v5510, %v5726
      %v5782 = vadd.f32 %v5513, %v5729
      %v5783 = vadd.f32 %v5516, %v5732
      %v5784 = vadd.f32 %v5519, %v5735
      %v5785 = vadd.f32 %v5522, %v5738
      %v5786 = vadd.f32 %v5525, %v5741
      %v5787 = vadd.f32 %v5528, %v5744
      %v5788 = vadd.f32 %v5531, %v5747
      %v5789 = vadd.f32 %v5534, %v5750
      %v5790 = vadd.f32 %v5537, %v5753
      %v5791 = vadd.f32 %v5540, %v5756
      %v5792 = vadd.f32 %v5543, %v5759
      %v5793 = vld [vmem:[%s65] sm:$0xff]
      %v5794 = vld [vmem:[%s65 + $0x8] sm:$0xff]
      %v5795 = vld [vmem:[%s65 + $0x10] sm:$0xff]
      %v5796 = vld [vmem:[%s65 + $0x18] sm:$0xff]
      %v5797 = vld [vmem:[%s65 + $0x20] sm:$0xff]
      %v5798 = vld [vmem:[%s65 + $0x28] sm:$0xff]
      %v5799 = vld [vmem:[%s65 + $0x30] sm:$0xff]
      %v5800 = vld [vmem:[%s65 + $0x38] sm:$0xff]
      %v5801 = vld [vmem:[%s65 + $0x40] sm:$0xff]
      %v5802 = vld [vmem:[%s65 + $0x48] sm:$0xff]
      %v5803 = vld [vmem:[%s65 + $0x50] sm:$0xff]
      %v5804 = vld [vmem:[%s65 + $0x58] sm:$0xff]
      %v5805 = vld [vmem:[%s65 + $0x60] sm:$0xff]
      %v5806 = vld [vmem:[%s65 + $0x68] sm:$0xff]
      %v5807 = vld [vmem:[%s65 + $0x70] sm:$0xff]
      %v5808 = vld [vmem:[%s65 + $0x78] sm:$0xff]
      %v5809 = vld [vmem:[%s65 + $0x80] sm:$0xff]
      %v5810 = vld [vmem:[%s65 + $0x88] sm:$0xff]
      %v5811 = vld [vmem:[%s65 + $0x90] sm:$0xff]
      %v5812 = vld [vmem:[%s65 + $0x98] sm:$0xff]
      %v5813 = vld [vmem:[%s65 + $0xa0] sm:$0xff]
      %v5814 = vld [vmem:[%s65 + $0xa8] sm:$0xff]
      %v5815 = vld [vmem:[%s65 + $0xb0] sm:$0xff]
      %v5816 = vld [vmem:[%s65 + $0xb8] sm:$0xff]
      %v5817 = vld [vmem:[%s65 + $0xc0] sm:$0xff]
      %v5818 = vld [vmem:[%s65 + $0xc8] sm:$0xff]
      %v5819 = vld [vmem:[%s65 + $0xd0] sm:$0xff]
      %v5820 = vld [vmem:[%s65 + $0xd8] sm:$0xff]
      %v5821 = vld [vmem:[%s65 + $0xe0] sm:$0xff]
      %v5822 = vld [vmem:[%s65 + $0xe8] sm:$0xff]
      %v5823 = vld [vmem:[%s65 + $0xf0] sm:$0xff]
      %v5824 = vld [vmem:[%s65 + $0xf8] sm:$0xff]
      %5826 = vset.pattern.permute.xlu0 0
      %5827 = vperm.xlu0 %5826, %v5793
      %v5828 = vpop.permute.xlu0 %5827
      %5831 = vset.pattern.permute.xlu0 0
      %5832 = vperm.xlu0 %5831, %v5794
      %v5833 = vpop.permute.xlu0 %5832
      %5836 = vset.pattern.permute.xlu0 0
      %5837 = vperm.xlu0 %5836, %v5795
      %v5838 = vpop.permute.xlu0 %5837
      %5841 = vset.pattern.permute.xlu0 0
      %5842 = vperm.xlu0 %5841, %v5796
      %v5843 = vpop.permute.xlu0 %5842
      %5846 = vset.pattern.permute.xlu0 0
      %5847 = vperm.xlu0 %5846, %v5797
      %v5848 = vpop.permute.xlu0 %5847
      %5851 = vset.pattern.permute.xlu0 0
      %5852 = vperm.xlu0 %5851, %v5798
      %v5853 = vpop.permute.xlu0 %5852
      %5856 = vset.pattern.permute.xlu0 0
      %5857 = vperm.xlu0 %5856, %v5799
      %v5858 = vpop.permute.xlu0 %5857
      %5861 = vset.pattern.permute.xlu0 0
      %5862 = vperm.xlu0 %5861, %v5800
      %v5863 = vpop.permute.xlu0 %5862
      %5866 = vset.pattern.permute.xlu0 0
      %5867 = vperm.xlu0 %5866, %v5801
      %v5868 = vpop.permute.xlu0 %5867
      %5871 = vset.pattern.permute.xlu0 0
      %5872 = vperm.xlu0 %5871, %v5802
      %v5873 = vpop.permute.xlu0 %5872
      %5876 = vset.pattern.permute.xlu0 0
      %5877 = vperm.xlu0 %5876, %v5803
      %v5878 = vpop.permute.xlu0 %5877
      %5881 = vset.pattern.permute.xlu0 0
      %5882 = vperm.xlu0 %5881, %v5804
      %v5883 = vpop.permute.xlu0 %5882
      %5886 = vset.pattern.permute.xlu0 0
      %5887 = vperm.xlu0 %5886, %v5805
      %v5888 = vpop.permute.xlu0 %5887
      %5891 = vset.pattern.permute.xlu0 0
      %5892 = vperm.xlu0 %5891, %v5806
      %v5893 = vpop.permute.xlu0 %5892
      %5896 = vset.pattern.permute.xlu0 0
      %5897 = vperm.xlu0 %5896, %v5807
      %v5898 = vpop.permute.xlu0 %5897
      %5901 = vset.pattern.permute.xlu0 0
      %5902 = vperm.xlu0 %5901, %v5808
      %v5903 = vpop.permute.xlu0 %5902
      %5906 = vset.pattern.permute.xlu0 0
      %5907 = vperm.xlu0 %5906, %v5809
      %v5908 = vpop.permute.xlu0 %5907
      %5911 = vset.pattern.permute.xlu0 0
      %5912 = vperm.xlu0 %5911, %v5810
      %v5913 = vpop.permute.xlu0 %5912
      %5916 = vset.pattern.permute.xlu0 0
      %5917 = vperm.xlu0 %5916, %v5811
      %v5918 = vpop.permute.xlu0 %5917
      %5921 = vset.pattern.permute.xlu0 0
      %5922 = vperm.xlu0 %5921, %v5812
      %v5923 = vpop.permute.xlu0 %5922
      %5926 = vset.pattern.permute.xlu0 0
      %5927 = vperm.xlu0 %5926, %v5813
      %v5928 = vpop.permute.xlu0 %5927
      %5931 = vset.pattern.permute.xlu0 0
      %5932 = vperm.xlu0 %5931, %v5814
      %v5933 = vpop.permute.xlu0 %5932
      %5936 = vset.pattern.permute.xlu0 0
      %5937 = vperm.xlu0 %5936, %v5815
      %v5938 = vpop.permute.xlu0 %5937
      %5941 = vset.pattern.permute.xlu0 0
      %5942 = vperm.xlu0 %5941, %v5816
      %v5943 = vpop.permute.xlu0 %5942
      %5946 = vset.pattern.permute.xlu0 0
      %5947 = vperm.xlu0 %5946, %v5817
      %v5948 = vpop.permute.xlu0 %5947
      %5951 = vset.pattern.permute.xlu0 0
      %5952 = vperm.xlu0 %5951, %v5818
      %v5953 = vpop.permute.xlu0 %5952
      %5956 = vset.pattern.permute.xlu0 0
      %5957 = vperm.xlu0 %5956, %v5819
      %v5958 = vpop.permute.xlu0 %5957
      %5961 = vset.pattern.permute.xlu0 0
      %5962 = vperm.xlu0 %5961, %v5820
      %v5963 = vpop.permute.xlu0 %5962
      %5966 = vset.pattern.permute.xlu0 0
      %5967 = vperm.xlu0 %5966, %v5821
      %v5968 = vpop.permute.xlu0 %5967
      %5971 = vset.pattern.permute.xlu0 0
      %5972 = vperm.xlu0 %5971, %v5822
      %v5973 = vpop.permute.xlu0 %5972
      %5976 = vset.pattern.permute.xlu0 0
      %5977 = vperm.xlu0 %5976, %v5823
      %v5978 = vpop.permute.xlu0 %5977
      %5981 = vset.pattern.permute.xlu0 0
      %5982 = vperm.xlu0 %5981, %v5824
      %v5983 = vpop.permute.xlu0 %5982
      %v5985 = vadd.f32 %v5761, %v5828
      %v5986 = vadd.f32 %v5762, %v5833
      %v5987 = vadd.f32 %v5763, %v5838
      %v5988 = vadd.f32 %v5764, %v5843
      %v5989 = vadd.f32 %v5765, %v5848
      %v5990 = vadd.f32 %v5766, %v5853
      %v5991 = vadd.f32 %v5767, %v5858
      %v5992 = vadd.f32 %v5768, %v5863
      %v5993 = vadd.f32 %v5769, %v5868
      %v5994 = vadd.f32 %v5770, %v5873
      %v5995 = vadd.f32 %v5771, %v5878
      %v5996 = vadd.f32 %v5772, %v5883
      %v5997 = vadd.f32 %v5773, %v5888
      %v5998 = vadd.f32 %v5774, %v5893
      %v5999 = vadd.f32 %v5775, %v5898
      %v6000 = vadd.f32 %v5776, %v5903
      %v6001 = vadd.f32 %v5777, %v5908
      %v6002 = vadd.f32 %v5778, %v5913
      %v6003 = vadd.f32 %v5779, %v5918
      %v6004 = vadd.f32 %v5780, %v5923
      %v6005 = vadd.f32 %v5781, %v5928
      %v6006 = vadd.f32 %v5782, %v5933
      %v6007 = vadd.f32 %v5783, %v5938
      %v6008 = vadd.f32 %v5784, %v5943
      %v6009 = vadd.f32 %v5785, %v5948
      %v6010 = vadd.f32 %v5786, %v5953
      %v6011 = vadd.f32 %v5787, %v5958
      %v6012 = vadd.f32 %v5788, %v5963
      %v6013 = vadd.f32 %v5789, %v5968
      %v6014 = vadd.f32 %v5790, %v5973
      %v6015 = vadd.f32 %v5791, %v5978
      %v6016 = vadd.f32 %v5792, %v5983
      %v6017 = vmax.f32 %v5985, 0.0
      %v6018 = vmax.f32 %v5986, 0.0
      %v6019 = vmax.f32 %v5987, 0.0
      %v6020 = vmax.f32 %v5988, 0.0
      %v6021 = vmax.f32 %v5989, 0.0
      %v6022 = vmax.f32 %v5990, 0.0
      %v6023 = vmax.f32 %v5991, 0.0
      %v6024 = vmax.f32 %v5992, 0.0
      %v6025 = vmax.f32 %v5993, 0.0
      %v6026 = vmax.f32 %v5994, 0.0
      %v6027 = vmax.f32 %v5995, 0.0
      %v6028 = vmax.f32 %v5996, 0.0
      %v6029 = vmax.f32 %v5997, 0.0
      %v6030 = vmax.f32 %v5998, 0.0
      %v6031 = vmax.f32 %v5999, 0.0
      %v6032 = vmax.f32 %v6000, 0.0
      %v6033 = vmax.f32 %v6001, 0.0
      %v6034 = vmax.f32 %v6002, 0.0
      %v6035 = vmax.f32 %v6003, 0.0
      %v6036 = vmax.f32 %v6004, 0.0
      %v6037 = vmax.f32 %v6005, 0.0
      %v6038 = vmax.f32 %v6006, 0.0
      %v6039 = vmax.f32 %v6007, 0.0
      %v6040 = vmax.f32 %v6008, 0.0
      %v6041 = vmax.f32 %v6009, 0.0
      %v6042 = vmax.f32 %v6010, 0.0
      %v6043 = vmax.f32 %v6011, 0.0
      %v6044 = vmax.f32 %v6012, 0.0
      %v6045 = vmax.f32 %v6013, 0.0
      %v6046 = vmax.f32 %v6014, 0.0
      %v6047 = vmax.f32 %v6015, 0.0
      %v6048 = vmax.f32 %v6016, 0.0
      %v6049 = vld [vmem:[%s73] sm:$0x3]
      %vm6050 = vcmask 15360
      %v6052 = vsel %vm6050, %v6017, 0
      %v6055 = vsel %vm6050, %v6018, 0
      %v6058 = vsel %vm6050, %v6019, 0
      %v6061 = vsel %vm6050, %v6020, 0
      %v6064 = vsel %vm6050, %v6021, 0
      %v6067 = vsel %vm6050, %v6022, 0
      %v6070 = vsel %vm6050, %v6023, 0
      %v6073 = vsel %vm6050, %v6024, 0
      %v6076 = vsel %vm6050, %v6025, 0
      %v6079 = vsel %vm6050, %v6026, 0
      %v6082 = vsel %vm6050, %v6027, 0
      %v6085 = vsel %vm6050, %v6028, 0
      %v6088 = vsel %vm6050, %v6029, 0
      %v6091 = vsel %vm6050, %v6030, 0
      %v6094 = vsel %vm6050, %v6031, 0
      %v6097 = vsel %vm6050, %v6032, 0
      %v6100 = vsel %vm6050, %v6033, 0
      %v6103 = vsel %vm6050, %v6034, 0
      %v6106 = vsel %vm6050, %v6035, 0
      %v6109 = vsel %vm6050, %v6036, 0
      %v6112 = vsel %vm6050, %v6037, 0
      %v6115 = vsel %vm6050, %v6038, 0
      %v6118 = vsel %vm6050, %v6039, 0
      %v6121 = vsel %vm6050, %v6040, 0
      %v6124 = vsel %vm6050, %v6041, 0
      %v6127 = vsel %vm6050, %v6042, 0
      %v6130 = vsel %vm6050, %v6043, 0
      %v6133 = vsel %vm6050, %v6044, 0
      %v6136 = vsel %vm6050, %v6045, 0
      %v6139 = vsel %vm6050, %v6046, 0
      %v6142 = vsel %vm6050, %v6047, 0
      %v6145 = vsel %vm6050, %v6048, 0
      %vm6147 = vcmask 1041408
      %v6149 = vsel %vm6147, %v6049, 0
      %6151 = vmatpush.msra.mxu0 0.0
      %6152 = vmatpush.msra.mxu0 0.0
      %6153 = vmatpush.msra.mxu0 0.0
      %6154 = vmatpush.msra.mxu0 0.0
      %6155 = vmatpush.msra.mxu0 0.0
      %6156 = vmatpush.msra.mxu0 0.0
      %6157 = vmatpush.msra.mxu0 0.0
      %6158 = vmatpush.msra.mxu0 0.0
      %6159 = vmatpush.msra.mxu0 0.0
      %6160 = vmatpush.msra.mxu0 0.0
      %6161 = vmatpush.msra.mxu0 0.0
      %6162 = vmatpush.msra.mxu0 0.0
      %6163 = vmatpush.msra.mxu0 0.0
      %6164 = vmatpush.msra.mxu0 0.0
      %6165 = vmatpush.msra.mxu0 0.0
      %6166 = vmatpush.msra.mxu0 %v6149
      %6167 = vmatmul.f32.gmra.mxu0 %v6052
      %v6168 = vpop.f32.mrf.mxu0
      %v6169 = vadd.f32 0.0, %v6168
      %6170 = vmatmul.f32.gmra.mxu0 %v6055
      %v6171 = vpop.f32.mrf.mxu0
      %v6172 = vadd.f32 0.0, %v6171
      %6173 = vmatmul.f32.gmra.mxu0 %v6058
      %v6174 = vpop.f32.mrf.mxu0
      %v6175 = vadd.f32 0.0, %v6174
      %6176 = vmatmul.f32.gmra.mxu0 %v6061
      %v6177 = vpop.f32.mrf.mxu0
      %v6178 = vadd.f32 0.0, %v6177
      %6179 = vmatmul.f32.gmra.mxu0 %v6064
      %v6180 = vpop.f32.mrf.mxu0
      %v6181 = vadd.f32 0.0, %v6180
      %6182 = vmatmul.f32.gmra.mxu0 %v6067
      %v6183 = vpop.f32.mrf.mxu0
      %v6184 = vadd.f32 0.0, %v6183
      %6185 = vmatmul.f32.gmra.mxu0 %v6070
      %v6186 = vpop.f32.mrf.mxu0
      %v6187 = vadd.f32 0.0, %v6186
      %6188 = vmatmul.f32.gmra.mxu0 %v6073
      %v6189 = vpop.f32.mrf.mxu0
      %v6190 = vadd.f32 0.0, %v6189
      %6191 = vmatmul.f32.gmra.mxu0 %v6076
      %v6192 = vpop.f32.mrf.mxu0
      %v6193 = vadd.f32 0.0, %v6192
      %6194 = vmatmul.f32.gmra.mxu0 %v6079
      %v6195 = vpop.f32.mrf.mxu0
      %v6196 = vadd.f32 0.0, %v6195
      %6197 = vmatmul.f32.gmra.mxu0 %v6082
      %v6198 = vpop.f32.mrf.mxu0
      %v6199 = vadd.f32 0.0, %v6198
      %6200 = vmatmul.f32.gmra.mxu0 %v6085
      %v6201 = vpop.f32.mrf.mxu0
      %v6202 = vadd.f32 0.0, %v6201
      %6203 = vmatmul.f32.gmra.mxu0 %v6088
      %v6204 = vpop.f32.mrf.mxu0
      %v6205 = vadd.f32 0.0, %v6204
      %6206 = vmatmul.f32.gmra.mxu0 %v6091
      %v6207 = vpop.f32.mrf.mxu0
      %v6208 = vadd.f32 0.0, %v6207
      %6209 = vmatmul.f32.gmra.mxu0 %v6094
      %v6210 = vpop.f32.mrf.mxu0
      %v6211 = vadd.f32 0.0, %v6210
      %6212 = vmatmul.f32.gmra.mxu0 %v6097
      %v6213 = vpop.f32.mrf.mxu0
      %v6214 = vadd.f32 0.0, %v6213
      %6215 = vmatmul.f32.gmra.mxu0 %v6100
      %v6216 = vpop.f32.mrf.mxu0
      %v6217 = vadd.f32 0.0, %v6216
      %6218 = vmatmul.f32.gmra.mxu0 %v6103
      %v6219 = vpop.f32.mrf.mxu0
      %v6220 = vadd.f32 0.0, %v6219
      %6221 = vmatmul.f32.gmra.mxu0 %v6106
      %v6222 = vpop.f32.mrf.mxu0
      %v6223 = vadd.f32 0.0, %v6222
      %6224 = vmatmul.f32.gmra.mxu0 %v6109
      %v6225 = vpop.f32.mrf.mxu0
      %v6226 = vadd.f32 0.0, %v6225
      %6227 = vmatmul.f32.gmra.mxu0 %v6112
      %v6228 = vpop.f32.mrf.mxu0
      %v6229 = vadd.f32 0.0, %v6228
      %6230 = vmatmul.f32.gmra.mxu0 %v6115
      %v6231 = vpop.f32.mrf.mxu0
      %v6232 = vadd.f32 0.0, %v6231
      %6233 = vmatmul.f32.gmra.mxu0 %v6118
      %v6234 = vpop.f32.mrf.mxu0
      %v6235 = vadd.f32 0.0, %v6234
      %6236 = vmatmul.f32.gmra.mxu0 %v6121
      %v6237 = vpop.f32.mrf.mxu0
      %v6238 = vadd.f32 0.0, %v6237
      %6239 = vmatmul.f32.gmra.mxu0 %v6124
      %v6240 = vpop.f32.mrf.mxu0
      %v6241 = vadd.f32 0.0, %v6240
      %6242 = vmatmul.f32.gmra.mxu0 %v6127
      %v6243 = vpop.f32.mrf.mxu0
      %v6244 = vadd.f32 0.0, %v6243
      %6245 = vmatmul.f32.gmra.mxu0 %v6130
      %v6246 = vpop.f32.mrf.mxu0
      %v6247 = vadd.f32 0.0, %v6246
      %6248 = vmatmul.f32.gmra.mxu0 %v6133
      %v6249 = vpop.f32.mrf.mxu0
      %v6250 = vadd.f32 0.0, %v6249
      %6251 = vmatmul.f32.gmra.mxu0 %v6136
      %v6252 = vpop.f32.mrf.mxu0
      %v6253 = vadd.f32 0.0, %v6252
      %6254 = vmatmul.f32.gmra.mxu0 %v6139
      %v6255 = vpop.f32.mrf.mxu0
      %v6256 = vadd.f32 0.0, %v6255
      %6257 = vmatmul.f32.gmra.mxu0 %v6142
      %v6258 = vpop.f32.mrf.mxu0
      %v6259 = vadd.f32 0.0, %v6258
      %6260 = vmatmul.f32.gmra.mxu0 %v6145
      %v6261 = vpop.f32.mrf.mxu0
      %v6262 = vadd.f32 0.0, %v6261
      %6263 = vdwg.mxu0
      %v6264 = vld [vmem:[%s69] sm:$0xff]
      %v6265 = vld [vmem:[%s69 + $0x8] sm:$0xff]
      %v6266 = vld [vmem:[%s69 + $0x10] sm:$0xff]
      %v6267 = vld [vmem:[%s69 + $0x18] sm:$0xff]
      %v6268 = vld [vmem:[%s69 + $0x20] sm:$0xff]
      %v6269 = vld [vmem:[%s69 + $0x28] sm:$0xff]
      %v6270 = vld [vmem:[%s69 + $0x30] sm:$0xff]
      %v6271 = vld [vmem:[%s69 + $0x38] sm:$0xff]
      %v6272 = vld [vmem:[%s69 + $0x40] sm:$0xff]
      %v6273 = vld [vmem:[%s69 + $0x48] sm:$0xff]
      %v6274 = vld [vmem:[%s69 + $0x50] sm:$0xff]
      %v6275 = vld [vmem:[%s69 + $0x58] sm:$0xff]
      %v6276 = vld [vmem:[%s69 + $0x60] sm:$0xff]
      %v6277 = vld [vmem:[%s69 + $0x68] sm:$0xff]
      %v6278 = vld [vmem:[%s69 + $0x70] sm:$0xff]
      %v6279 = vld [vmem:[%s69 + $0x78] sm:$0xff]
      %v6280 = vld [vmem:[%s69 + $0x80] sm:$0xff]
      %v6281 = vld [vmem:[%s69 + $0x88] sm:$0xff]
      %v6282 = vld [vmem:[%s69 + $0x90] sm:$0xff]
      %v6283 = vld [vmem:[%s69 + $0x98] sm:$0xff]
      %v6284 = vld [vmem:[%s69 + $0xa0] sm:$0xff]
      %v6285 = vld [vmem:[%s69 + $0xa8] sm:$0xff]
      %v6286 = vld [vmem:[%s69 + $0xb0] sm:$0xff]
      %v6287 = vld [vmem:[%s69 + $0xb8] sm:$0xff]
      %v6288 = vld [vmem:[%s69 + $0xc0] sm:$0xff]
      %v6289 = vld [vmem:[%s69 + $0xc8] sm:$0xff]
      %v6290 = vld [vmem:[%s69 + $0xd0] sm:$0xff]
      %v6291 = vld [vmem:[%s69 + $0xd8] sm:$0xff]
      %v6292 = vld [vmem:[%s69 + $0xe0] sm:$0xff]
      %v6293 = vld [vmem:[%s69 + $0xe8] sm:$0xff]
      %v6294 = vld [vmem:[%s69 + $0xf0] sm:$0xff]
      %v6295 = vld [vmem:[%s69 + $0xf8] sm:$0xff]
      %v6296 = vld [vmem:[%s69 + $0x100] sm:$0xff]
      %v6297 = vld [vmem:[%s69 + $0x108] sm:$0xff]
      %v6298 = vld [vmem:[%s69 + $0x110] sm:$0xff]
      %v6299 = vld [vmem:[%s69 + $0x118] sm:$0xff]
      %v6300 = vld [vmem:[%s69 + $0x120] sm:$0xff]
      %v6301 = vld [vmem:[%s69 + $0x128] sm:$0xff]
      %v6302 = vld [vmem:[%s69 + $0x130] sm:$0xff]
      %v6303 = vld [vmem:[%s69 + $0x138] sm:$0xff]
      %v6304 = vld [vmem:[%s69 + $0x140] sm:$0xff]
      %v6305 = vld [vmem:[%s69 + $0x148] sm:$0xff]
      %v6306 = vld [vmem:[%s69 + $0x150] sm:$0xff]
      %v6307 = vld [vmem:[%s69 + $0x158] sm:$0xff]
      %v6308 = vld [vmem:[%s69 + $0x160] sm:$0xff]
      %v6309 = vld [vmem:[%s69 + $0x168] sm:$0xff]
      %v6310 = vld [vmem:[%s69 + $0x170] sm:$0xff]
      %v6311 = vld [vmem:[%s69 + $0x178] sm:$0xff]
      %v6312 = vld [vmem:[%s69 + $0x180] sm:$0xff]
      %v6313 = vld [vmem:[%s69 + $0x188] sm:$0xff]
      %v6314 = vld [vmem:[%s69 + $0x190] sm:$0xff]
      %v6315 = vld [vmem:[%s69 + $0x198] sm:$0xff]
      %v6316 = vld [vmem:[%s69 + $0x1a0] sm:$0xff]
      %v6317 = vld [vmem:[%s69 + $0x1a8] sm:$0xff]
      %v6318 = vld [vmem:[%s69 + $0x1b0] sm:$0xff]
      %v6319 = vld [vmem:[%s69 + $0x1b8] sm:$0xff]
      %v6320 = vld [vmem:[%s69 + $0x1c0] sm:$0xff]
      %v6321 = vld [vmem:[%s69 + $0x1c8] sm:$0xff]
      %v6322 = vld [vmem:[%s69 + $0x1d0] sm:$0xff]
      %v6323 = vld [vmem:[%s69 + $0x1d8] sm:$0xff]
      %v6324 = vld [vmem:[%s69 + $0x1e0] sm:$0xff]
      %v6325 = vld [vmem:[%s69 + $0x1e8] sm:$0xff]
      %v6326 = vld [vmem:[%s69 + $0x1f0] sm:$0xff]
      %v6327 = vld [vmem:[%s69 + $0x1f8] sm:$0xff]
      %s6328 = scalar_lea.vmem %s73, 2
      %v6329 = vld [vmem:[%s6328] sm:$0x3]
      %v6331 = vsel %vm6147, %v6329, 0
      %6333 = vmatpush.msra.mxu0 0.0
      %6334 = vmatpush.msra.mxu0 0.0
      %6335 = vmatpush.msra.mxu0 0.0
      %6336 = vmatpush.msra.mxu0 0.0
      %6337 = vmatpush.msra.mxu0 0.0
      %6338 = vmatpush.msra.mxu0 0.0
      %6339 = vmatpush.msra.mxu0 0.0
      %6340 = vmatpush.msra.mxu0 0.0
      %6341 = vmatpush.msra.mxu0 0.0
      %6342 = vmatpush.msra.mxu0 0.0
      %6343 = vmatpush.msra.mxu0 0.0
      %6344 = vmatpush.msra.mxu0 0.0
      %6345 = vmatpush.msra.mxu0 0.0
      %6346 = vmatpush.msra.mxu0 0.0
      %6347 = vmatpush.msra.mxu0 0.0
      %6348 = vmatpush.msra.mxu0 %v6331
      %6349 = vmatmul.f32.gmra.mxu0 %v6052
      %v6350 = vpop.f32.mrf.mxu0
      %v6351 = vadd.f32 0.0, %v6350
      %6352 = vmatmul.f32.gmra.mxu0 %v6055
      %v6353 = vpop.f32.mrf.mxu0
      %v6354 = vadd.f32 0.0, %v6353
      %6355 = vmatmul.f32.gmra.mxu0 %v6058
      %v6356 = vpop.f32.mrf.mxu0
      %v6357 = vadd.f32 0.0, %v6356
      %6358 = vmatmul.f32.gmra.mxu0 %v6061
      %v6359 = vpop.f32.mrf.mxu0
      %v6360 = vadd.f32 0.0, %v6359
      %6361 = vmatmul.f32.gmra.mxu0 %v6064
      %v6362 = vpop.f32.mrf.mxu0
      %v6363 = vadd.f32 0.0, %v6362
      %6364 = vmatmul.f32.gmra.mxu0 %v6067
      %v6365 = vpop.f32.mrf.mxu0
      %v6366 = vadd.f32 0.0, %v6365
      %6367 = vmatmul.f32.gmra.mxu0 %v6070
      %v6368 = vpop.f32.mrf.mxu0
      %v6369 = vadd.f32 0.0, %v6368
      %6370 = vmatmul.f32.gmra.mxu0 %v6073
      %v6371 = vpop.f32.mrf.mxu0
      %v6372 = vadd.f32 0.0, %v6371
      %6373 = vmatmul.f32.gmra.mxu0 %v6076
      %v6374 = vpop.f32.mrf.mxu0
      %v6375 = vadd.f32 0.0, %v6374
      %6376 = vmatmul.f32.gmra.mxu0 %v6079
      %v6377 = vpop.f32.mrf.mxu0
      %v6378 = vadd.f32 0.0, %v6377
      %6379 = vmatmul.f32.gmra.mxu0 %v6082
      %v6380 = vpop.f32.mrf.mxu0
      %v6381 = vadd.f32 0.0, %v6380
      %6382 = vmatmul.f32.gmra.mxu0 %v6085
      %v6383 = vpop.f32.mrf.mxu0
      %v6384 = vadd.f32 0.0, %v6383
      %6385 = vmatmul.f32.gmra.mxu0 %v6088
      %v6386 = vpop.f32.mrf.mxu0
      %v6387 = vadd.f32 0.0, %v6386
      %6388 = vmatmul.f32.gmra.mxu0 %v6091
      %v6389 = vpop.f32.mrf.mxu0
      %v6390 = vadd.f32 0.0, %v6389
      %6391 = vmatmul.f32.gmra.mxu0 %v6094
      %v6392 = vpop.f32.mrf.mxu0
      %v6393 = vadd.f32 0.0, %v6392
      %6394 = vmatmul.f32.gmra.mxu0 %v6097
      %v6395 = vpop.f32.mrf.mxu0
      %v6396 = vadd.f32 0.0, %v6395
      %6397 = vmatmul.f32.gmra.mxu0 %v6100
      %v6398 = vpop.f32.mrf.mxu0
      %v6399 = vadd.f32 0.0, %v6398
      %6400 = vmatmul.f32.gmra.mxu0 %v6103
      %v6401 = vpop.f32.mrf.mxu0
      %v6402 = vadd.f32 0.0, %v6401
      %6403 = vmatmul.f32.gmra.mxu0 %v6106
      %v6404 = vpop.f32.mrf.mxu0
      %v6405 = vadd.f32 0.0, %v6404
      %6406 = vmatmul.f32.gmra.mxu0 %v6109
      %v6407 = vpop.f32.mrf.mxu0
      %v6408 = vadd.f32 0.0, %v6407
      %6409 = vmatmul.f32.gmra.mxu0 %v6112
      %v6410 = vpop.f32.mrf.mxu0
      %v6411 = vadd.f32 0.0, %v6410
      %6412 = vmatmul.f32.gmra.mxu0 %v6115
      %v6413 = vpop.f32.mrf.mxu0
      %v6414 = vadd.f32 0.0, %v6413
      %6415 = vmatmul.f32.gmra.mxu0 %v6118
      %v6416 = vpop.f32.mrf.mxu0
      %v6417 = vadd.f32 0.0, %v6416
      %6418 = vmatmul.f32.gmra.mxu0 %v6121
      %v6419 = vpop.f32.mrf.mxu0
      %v6420 = vadd.f32 0.0, %v6419
      %6421 = vmatmul.f32.gmra.mxu0 %v6124
      %v6422 = vpop.f32.mrf.mxu0
      %v6423 = vadd.f32 0.0, %v6422
      %6424 = vmatmul.f32.gmra.mxu0 %v6127
      %v6425 = vpop.f32.mrf.mxu0
      %v6426 = vadd.f32 0.0, %v6425
      %6427 = vmatmul.f32.gmra.mxu0 %v6130
      %v6428 = vpop.f32.mrf.mxu0
      %v6429 = vadd.f32 0.0, %v6428
      %6430 = vmatmul.f32.gmra.mxu0 %v6133
      %v6431 = vpop.f32.mrf.mxu0
      %v6432 = vadd.f32 0.0, %v6431
      %6433 = vmatmul.f32.gmra.mxu0 %v6136
      %v6434 = vpop.f32.mrf.mxu0
      %v6435 = vadd.f32 0.0, %v6434
      %6436 = vmatmul.f32.gmra.mxu0 %v6139
      %v6437 = vpop.f32.mrf.mxu0
      %v6438 = vadd.f32 0.0, %v6437
      %6439 = vmatmul.f32.gmra.mxu0 %v6142
      %v6440 = vpop.f32.mrf.mxu0
      %v6441 = vadd.f32 0.0, %v6440
      %6442 = vmatmul.f32.gmra.mxu0 %v6145
      %v6443 = vpop.f32.mrf.mxu0
      %v6444 = vadd.f32 0.0, %v6443
      %6445 = vdwg.mxu0
      %s6446 = scalar_lea.vmem %s69, 512
      %v6447 = vld [vmem:[%s6446] sm:$0xff]
      %v6448 = vld [vmem:[%s6446 + $0x8] sm:$0xff]
      %v6449 = vld [vmem:[%s6446 + $0x10] sm:$0xff]
      %v6450 = vld [vmem:[%s6446 + $0x18] sm:$0xff]
      %v6451 = vld [vmem:[%s6446 + $0x20] sm:$0xff]
      %v6452 = vld [vmem:[%s6446 + $0x28] sm:$0xff]
      %v6453 = vld [vmem:[%s6446 + $0x30] sm:$0xff]
      %v6454 = vld [vmem:[%s6446 + $0x38] sm:$0xff]
      %v6455 = vld [vmem:[%s6446 + $0x40] sm:$0xff]
      %v6456 = vld [vmem:[%s6446 + $0x48] sm:$0xff]
      %v6457 = vld [vmem:[%s6446 + $0x50] sm:$0xff]
      %v6458 = vld [vmem:[%s6446 + $0x58] sm:$0xff]
      %v6459 = vld [vmem:[%s6446 + $0x60] sm:$0xff]
      %v6460 = vld [vmem:[%s6446 + $0x68] sm:$0xff]
      %v6461 = vld [vmem:[%s6446 + $0x70] sm:$0xff]
      %v6462 = vld [vmem:[%s6446 + $0x78] sm:$0xff]
      %v6463 = vld [vmem:[%s6446 + $0x80] sm:$0xff]
      %v6464 = vld [vmem:[%s6446 + $0x88] sm:$0xff]
      %v6465 = vld [vmem:[%s6446 + $0x90] sm:$0xff]
      %v6466 = vld [vmem:[%s6446 + $0x98] sm:$0xff]
      %v6467 = vld [vmem:[%s6446 + $0xa0] sm:$0xff]
      %v6468 = vld [vmem:[%s6446 + $0xa8] sm:$0xff]
      %v6469 = vld [vmem:[%s6446 + $0xb0] sm:$0xff]
      %v6470 = vld [vmem:[%s6446 + $0xb8] sm:$0xff]
      %v6471 = vld [vmem:[%s6446 + $0xc0] sm:$0xff]
      %v6472 = vld [vmem:[%s6446 + $0xc8] sm:$0xff]
      %v6473 = vld [vmem:[%s6446 + $0xd0] sm:$0xff]
      %v6474 = vld [vmem:[%s6446 + $0xd8] sm:$0xff]
      %v6475 = vld [vmem:[%s6446 + $0xe0] sm:$0xff]
      %v6476 = vld [vmem:[%s6446 + $0xe8] sm:$0xff]
      %v6477 = vld [vmem:[%s6446 + $0xf0] sm:$0xff]
      %v6478 = vld [vmem:[%s6446 + $0xf8] sm:$0xff]
      %v6479 = vld [vmem:[%s6446 + $0x100] sm:$0xff]
      %v6480 = vld [vmem:[%s6446 + $0x108] sm:$0xff]
      %v6481 = vld [vmem:[%s6446 + $0x110] sm:$0xff]
      %v6482 = vld [vmem:[%s6446 + $0x118] sm:$0xff]
      %v6483 = vld [vmem:[%s6446 + $0x120] sm:$0xff]
      %v6484 = vld [vmem:[%s6446 + $0x128] sm:$0xff]
      %v6485 = vld [vmem:[%s6446 + $0x130] sm:$0xff]
      %v6486 = vld [vmem:[%s6446 + $0x138] sm:$0xff]
      %v6487 = vld [vmem:[%s6446 + $0x140] sm:$0xff]
      %v6488 = vld [vmem:[%s6446 + $0x148] sm:$0xff]
      %v6489 = vld [vmem:[%s6446 + $0x150] sm:$0xff]
      %v6490 = vld [vmem:[%s6446 + $0x158] sm:$0xff]
      %v6491 = vld [vmem:[%s6446 + $0x160] sm:$0xff]
      %v6492 = vld [vmem:[%s6446 + $0x168] sm:$0xff]
      %v6493 = vld [vmem:[%s6446 + $0x170] sm:$0xff]
      %v6494 = vld [vmem:[%s6446 + $0x178] sm:$0xff]
      %v6495 = vld [vmem:[%s6446 + $0x180] sm:$0xff]
      %v6496 = vld [vmem:[%s6446 + $0x188] sm:$0xff]
      %v6497 = vld [vmem:[%s6446 + $0x190] sm:$0xff]
      %v6498 = vld [vmem:[%s6446 + $0x198] sm:$0xff]
      %v6499 = vld [vmem:[%s6446 + $0x1a0] sm:$0xff]
      %v6500 = vld [vmem:[%s6446 + $0x1a8] sm:$0xff]
      %v6501 = vld [vmem:[%s6446 + $0x1b0] sm:$0xff]
      %v6502 = vld [vmem:[%s6446 + $0x1b8] sm:$0xff]
      %v6503 = vld [vmem:[%s6446 + $0x1c0] sm:$0xff]
      %v6504 = vld [vmem:[%s6446 + $0x1c8] sm:$0xff]
      %v6505 = vld [vmem:[%s6446 + $0x1d0] sm:$0xff]
      %v6506 = vld [vmem:[%s6446 + $0x1d8] sm:$0xff]
      %v6507 = vld [vmem:[%s6446 + $0x1e0] sm:$0xff]
      %v6508 = vld [vmem:[%s6446 + $0x1e8] sm:$0xff]
      %v6509 = vld [vmem:[%s6446 + $0x1f0] sm:$0xff]
      %v6510 = vld [vmem:[%s6446 + $0x1f8] sm:$0xff]
      %6511 = vmatpush.msra.mxu0 %v6396
      %6512 = vmatpush.msra.mxu0 %v6393
      %6513 = vmatpush.msra.mxu0 %v6390
      %6514 = vmatpush.msra.mxu0 %v6387
      %6515 = vmatpush.msra.mxu0 %v6384
      %6516 = vmatpush.msra.mxu0 %v6381
      %6517 = vmatpush.msra.mxu0 %v6378
      %6518 = vmatpush.msra.mxu0 %v6375
      %6519 = vmatpush.msra.mxu0 %v6372
      %6520 = vmatpush.msra.mxu0 %v6369
      %6521 = vmatpush.msra.mxu0 %v6366
      %6522 = vmatpush.msra.mxu0 %v6363
      %6523 = vmatpush.msra.mxu0 %v6360
      %6524 = vmatpush.msra.mxu0 %v6357
      %6525 = vmatpush.msra.mxu0 %v6354
      %6526 = vmatpush.msra.mxu0 %v6351
      %6527 = vmatmul.f32.gmra.mxu0 %v6447
      %v6528 = vpop.f32.mrf.mxu0
      %v6529 = vadd.f32 0.0, %v6528
      %6530 = vmatmul.f32.gmra.mxu0 %v6449
      %v6531 = vpop.f32.mrf.mxu0
      %v6532 = vadd.f32 0.0, %v6531
      %6533 = vmatmul.f32.gmra.mxu0 %v6451
      %v6534 = vpop.f32.mrf.mxu0
      %v6535 = vadd.f32 0.0, %v6534
      %6536 = vmatmul.f32.gmra.mxu0 %v6453
      %v6537 = vpop.f32.mrf.mxu0
      %v6538 = vadd.f32 0.0, %v6537
      %6539 = vmatmul.f32.gmra.mxu0 %v6455
      %v6540 = vpop.f32.mrf.mxu0
      %v6541 = vadd.f32 0.0, %v6540
      %6542 = vmatmul.f32.gmra.mxu0 %v6457
      %v6543 = vpop.f32.mrf.mxu0
      %v6544 = vadd.f32 0.0, %v6543
      %6545 = vmatmul.f32.gmra.mxu0 %v6459
      %v6546 = vpop.f32.mrf.mxu0
      %v6547 = vadd.f32 0.0, %v6546
      %6548 = vmatmul.f32.gmra.mxu0 %v6461
      %v6549 = vpop.f32.mrf.mxu0
      %v6550 = vadd.f32 0.0, %v6549
      %6551 = vmatmul.f32.gmra.mxu0 %v6463
      %v6552 = vpop.f32.mrf.mxu0
      %v6553 = vadd.f32 0.0, %v6552
      %6554 = vmatmul.f32.gmra.mxu0 %v6465
      %v6555 = vpop.f32.mrf.mxu0
      %v6556 = vadd.f32 0.0, %v6555
      %6557 = vmatmul.f32.gmra.mxu0 %v6467
      %v6558 = vpop.f32.mrf.mxu0
      %v6559 = vadd.f32 0.0, %v6558
      %6560 = vmatmul.f32.gmra.mxu0 %v6469
      %v6561 = vpop.f32.mrf.mxu0
      %v6562 = vadd.f32 0.0, %v6561
      %6563 = vmatmul.f32.gmra.mxu0 %v6471
      %v6564 = vpop.f32.mrf.mxu0
      %v6565 = vadd.f32 0.0, %v6564
      %6566 = vmatmul.f32.gmra.mxu0 %v6473
      %v6567 = vpop.f32.mrf.mxu0
      %v6568 = vadd.f32 0.0, %v6567
      %6569 = vmatmul.f32.gmra.mxu0 %v6475
      %v6570 = vpop.f32.mrf.mxu0
      %v6571 = vadd.f32 0.0, %v6570
      %6572 = vmatmul.f32.gmra.mxu0 %v6477
      %v6573 = vpop.f32.mrf.mxu0
      %v6574 = vadd.f32 0.0, %v6573
      %6575 = vmatmul.f32.gmra.mxu0 %v6479
      %v6576 = vpop.f32.mrf.mxu0
      %v6577 = vadd.f32 0.0, %v6576
      %6578 = vmatmul.f32.gmra.mxu0 %v6481
      %v6579 = vpop.f32.mrf.mxu0
      %v6580 = vadd.f32 0.0, %v6579
      %6581 = vmatmul.f32.gmra.mxu0 %v6483
      %v6582 = vpop.f32.mrf.mxu0
      %v6583 = vadd.f32 0.0, %v6582
      %6584 = vmatmul.f32.gmra.mxu0 %v6485
      %v6585 = vpop.f32.mrf.mxu0
      %v6586 = vadd.f32 0.0, %v6585
      %6587 = vmatmul.f32.gmra.mxu0 %v6487
      %v6588 = vpop.f32.mrf.mxu0
      %v6589 = vadd.f32 0.0, %v6588
      %6590 = vmatmul.f32.gmra.mxu0 %v6489
      %v6591 = vpop.f32.mrf.mxu0
      %v6592 = vadd.f32 0.0, %v6591
      %6593 = vmatmul.f32.gmra.mxu0 %v6491
      %v6594 = vpop.f32.mrf.mxu0
      %v6595 = vadd.f32 0.0, %v6594
      %6596 = vmatmul.f32.gmra.mxu0 %v6493
      %v6597 = vpop.f32.mrf.mxu0
      %v6598 = vadd.f32 0.0, %v6597
      %6599 = vmatmul.f32.gmra.mxu0 %v6495
      %v6600 = vpop.f32.mrf.mxu0
      %v6601 = vadd.f32 0.0, %v6600
      %6602 = vmatmul.f32.gmra.mxu0 %v6497
      %v6603 = vpop.f32.mrf.mxu0
      %v6604 = vadd.f32 0.0, %v6603
      %6605 = vmatmul.f32.gmra.mxu0 %v6499
      %v6606 = vpop.f32.mrf.mxu0
      %v6607 = vadd.f32 0.0, %v6606
      %6608 = vmatmul.f32.gmra.mxu0 %v6501
      %v6609 = vpop.f32.mrf.mxu0
      %v6610 = vadd.f32 0.0, %v6609
      %6611 = vmatmul.f32.gmra.mxu0 %v6503
      %v6612 = vpop.f32.mrf.mxu0
      %v6613 = vadd.f32 0.0, %v6612
      %6614 = vmatmul.f32.gmra.mxu0 %v6505
      %v6615 = vpop.f32.mrf.mxu0
      %v6616 = vadd.f32 0.0, %v6615
      %6617 = vmatmul.f32.gmra.mxu0 %v6507
      %v6618 = vpop.f32.mrf.mxu0
      %v6619 = vadd.f32 0.0, %v6618
      %6620 = vmatmul.f32.gmra.mxu0 %v6509
      %v6621 = vpop.f32.mrf.mxu0
      %v6622 = vadd.f32 0.0, %v6621
      %6623 = vdwg.mxu0
      %6624 = vmatpush.msra.mxu0 %v6444
      %6625 = vmatpush.msra.mxu0 %v6441
      %6626 = vmatpush.msra.mxu0 %v6438
      %6627 = vmatpush.msra.mxu0 %v6435
      %6628 = vmatpush.msra.mxu0 %v6432
      %6629 = vmatpush.msra.mxu0 %v6429
      %6630 = vmatpush.msra.mxu0 %v6426
      %6631 = vmatpush.msra.mxu0 %v6423
      %6632 = vmatpush.msra.mxu0 %v6420
      %6633 = vmatpush.msra.mxu0 %v6417
      %6634 = vmatpush.msra.mxu0 %v6414
      %6635 = vmatpush.msra.mxu0 %v6411
      %6636 = vmatpush.msra.mxu0 %v6408
      %6637 = vmatpush.msra.mxu0 %v6405
      %6638 = vmatpush.msra.mxu0 %v6402
      %6639 = vmatpush.msra.mxu0 %v6399
      %6640 = vmatmul.f32.gmra.mxu0 %v6448
      %v6641 = vpop.f32.mrf.mxu0
      %v6642 = vadd.f32 %v6529, %v6641
      %6643 = vmatmul.f32.gmra.mxu0 %v6450
      %v6644 = vpop.f32.mrf.mxu0
      %v6645 = vadd.f32 %v6532, %v6644
      %6646 = vmatmul.f32.gmra.mxu0 %v6452
      %v6647 = vpop.f32.mrf.mxu0
      %v6648 = vadd.f32 %v6535, %v6647
      %6649 = vmatmul.f32.gmra.mxu0 %v6454
      %v6650 = vpop.f32.mrf.mxu0
      %v6651 = vadd.f32 %v6538, %v6650
      %6652 = vmatmul.f32.gmra.mxu0 %v6456
      %v6653 = vpop.f32.mrf.mxu0
      %v6654 = vadd.f32 %v6541, %v6653
      %6655 = vmatmul.f32.gmra.mxu0 %v6458
      %v6656 = vpop.f32.mrf.mxu0
      %v6657 = vadd.f32 %v6544, %v6656
      %6658 = vmatmul.f32.gmra.mxu0 %v6460
      %v6659 = vpop.f32.mrf.mxu0
      %v6660 = vadd.f32 %v6547, %v6659
      %6661 = vmatmul.f32.gmra.mxu0 %v6462
      %v6662 = vpop.f32.mrf.mxu0
      %v6663 = vadd.f32 %v6550, %v6662
      %6664 = vmatmul.f32.gmra.mxu0 %v6464
      %v6665 = vpop.f32.mrf.mxu0
      %v6666 = vadd.f32 %v6553, %v6665
      %6667 = vmatmul.f32.gmra.mxu0 %v6466
      %v6668 = vpop.f32.mrf.mxu0
      %v6669 = vadd.f32 %v6556, %v6668
      %6670 = vmatmul.f32.gmra.mxu0 %v6468
      %v6671 = vpop.f32.mrf.mxu0
      %v6672 = vadd.f32 %v6559, %v6671
      %6673 = vmatmul.f32.gmra.mxu0 %v6470
      %v6674 = vpop.f32.mrf.mxu0
      %v6675 = vadd.f32 %v6562, %v6674
      %6676 = vmatmul.f32.gmra.mxu0 %v6472
      %v6677 = vpop.f32.mrf.mxu0
      %v6678 = vadd.f32 %v6565, %v6677
      %6679 = vmatmul.f32.gmra.mxu0 %v6474
      %v6680 = vpop.f32.mrf.mxu0
      %v6681 = vadd.f32 %v6568, %v6680
      %6682 = vmatmul.f32.gmra.mxu0 %v6476
      %v6683 = vpop.f32.mrf.mxu0
      %v6684 = vadd.f32 %v6571, %v6683
      %6685 = vmatmul.f32.gmra.mxu0 %v6478
      %v6686 = vpop.f32.mrf.mxu0
      %v6687 = vadd.f32 %v6574, %v6686
      %6688 = vmatmul.f32.gmra.mxu0 %v6480
      %v6689 = vpop.f32.mrf.mxu0
      %v6690 = vadd.f32 %v6577, %v6689
      %6691 = vmatmul.f32.gmra.mxu0 %v6482
      %v6692 = vpop.f32.mrf.mxu0
      %v6693 = vadd.f32 %v6580, %v6692
      %6694 = vmatmul.f32.gmra.mxu0 %v6484
      %v6695 = vpop.f32.mrf.mxu0
      %v6696 = vadd.f32 %v6583, %v6695
      %6697 = vmatmul.f32.gmra.mxu0 %v6486
      %v6698 = vpop.f32.mrf.mxu0
      %v6699 = vadd.f32 %v6586, %v6698
      %6700 = vmatmul.f32.gmra.mxu0 %v6488
      %v6701 = vpop.f32.mrf.mxu0
      %v6702 = vadd.f32 %v6589, %v6701
      %6703 = vmatmul.f32.gmra.mxu0 %v6490
      %v6704 = vpop.f32.mrf.mxu0
      %v6705 = vadd.f32 %v6592, %v6704
      %6706 = vmatmul.f32.gmra.mxu0 %v6492
      %v6707 = vpop.f32.mrf.mxu0
      %v6708 = vadd.f32 %v6595, %v6707
      %6709 = vmatmul.f32.gmra.mxu0 %v6494
      %v6710 = vpop.f32.mrf.mxu0
      %v6711 = vadd.f32 %v6598, %v6710
      %6712 = vmatmul.f32.gmra.mxu0 %v6496
      %v6713 = vpop.f32.mrf.mxu0
      %v6714 = vadd.f32 %v6601, %v6713
      %6715 = vmatmul.f32.gmra.mxu0 %v6498
      %v6716 = vpop.f32.mrf.mxu0
      %v6717 = vadd.f32 %v6604, %v6716
      %6718 = vmatmul.f32.gmra.mxu0 %v6500
      %v6719 = vpop.f32.mrf.mxu0
      %v6720 = vadd.f32 %v6607, %v6719
      %6721 = vmatmul.f32.gmra.mxu0 %v6502
      %v6722 = vpop.f32.mrf.mxu0
      %v6723 = vadd.f32 %v6610, %v6722
      %6724 = vmatmul.f32.gmra.mxu0 %v6504
      %v6725 = vpop.f32.mrf.mxu0
      %v6726 = vadd.f32 %v6613, %v6725
      %6727 = vmatmul.f32.gmra.mxu0 %v6506
      %v6728 = vpop.f32.mrf.mxu0
      %v6729 = vadd.f32 %v6616, %v6728
      %6730 = vmatmul.f32.gmra.mxu0 %v6508
      %v6731 = vpop.f32.mrf.mxu0
      %v6732 = vadd.f32 %v6619, %v6731
      %6733 = vmatmul.f32.gmra.mxu0 %v6510
      %v6734 = vpop.f32.mrf.mxu0
      %v6735 = vadd.f32 %v6622, %v6734
      %6736 = vdwg.mxu0
      %6737 = vmatpush.msra.mxu0 %v6214
      %6738 = vmatpush.msra.mxu0 %v6211
      %6739 = vmatpush.msra.mxu0 %v6208
      %6740 = vmatpush.msra.mxu0 %v6205
      %6741 = vmatpush.msra.mxu0 %v6202
      %6742 = vmatpush.msra.mxu0 %v6199
      %6743 = vmatpush.msra.mxu0 %v6196
      %6744 = vmatpush.msra.mxu0 %v6193
      %6745 = vmatpush.msra.mxu0 %v6190
      %6746 = vmatpush.msra.mxu0 %v6187
      %6747 = vmatpush.msra.mxu0 %v6184
      %6748 = vmatpush.msra.mxu0 %v6181
      %6749 = vmatpush.msra.mxu0 %v6178
      %6750 = vmatpush.msra.mxu0 %v6175
      %6751 = vmatpush.msra.mxu0 %v6172
      %6752 = vmatpush.msra.mxu0 %v6169
      %6753 = vmatmul.f32.gmra.mxu0 %v6264
      %v6754 = vpop.f32.mrf.mxu0
      %v6755 = vadd.f32 %v6642, %v6754
      %6756 = vmatmul.f32.gmra.mxu0 %v6266
      %v6757 = vpop.f32.mrf.mxu0
      %v6758 = vadd.f32 %v6645, %v6757
      %6759 = vmatmul.f32.gmra.mxu0 %v6268
      %v6760 = vpop.f32.mrf.mxu0
      %v6761 = vadd.f32 %v6648, %v6760
      %6762 = vmatmul.f32.gmra.mxu0 %v6270
      %v6763 = vpop.f32.mrf.mxu0
      %v6764 = vadd.f32 %v6651, %v6763
      %6765 = vmatmul.f32.gmra.mxu0 %v6272
      %v6766 = vpop.f32.mrf.mxu0
      %v6767 = vadd.f32 %v6654, %v6766
      %6768 = vmatmul.f32.gmra.mxu0 %v6274
      %v6769 = vpop.f32.mrf.mxu0
      %v6770 = vadd.f32 %v6657, %v6769
      %6771 = vmatmul.f32.gmra.mxu0 %v6276
      %v6772 = vpop.f32.mrf.mxu0
      %v6773 = vadd.f32 %v6660, %v6772
      %6774 = vmatmul.f32.gmra.mxu0 %v6278
      %v6775 = vpop.f32.mrf.mxu0
      %v6776 = vadd.f32 %v6663, %v6775
      %6777 = vmatmul.f32.gmra.mxu0 %v6280
      %v6778 = vpop.f32.mrf.mxu0
      %v6779 = vadd.f32 %v6666, %v6778
      %6780 = vmatmul.f32.gmra.mxu0 %v6282
      %v6781 = vpop.f32.mrf.mxu0
      %v6782 = vadd.f32 %v6669, %v6781
      %6783 = vmatmul.f32.gmra.mxu0 %v6284
      %v6784 = vpop.f32.mrf.mxu0
      %v6785 = vadd.f32 %v6672, %v6784
      %6786 = vmatmul.f32.gmra.mxu0 %v6286
      %v6787 = vpop.f32.mrf.mxu0
      %v6788 = vadd.f32 %v6675, %v6787
      %6789 = vmatmul.f32.gmra.mxu0 %v6288
      %v6790 = vpop.f32.mrf.mxu0
      %v6791 = vadd.f32 %v6678, %v6790
      %6792 = vmatmul.f32.gmra.mxu0 %v6290
      %v6793 = vpop.f32.mrf.mxu0
      %v6794 = vadd.f32 %v6681, %v6793
      %6795 = vmatmul.f32.gmra.mxu0 %v6292
      %v6796 = vpop.f32.mrf.mxu0
      %v6797 = vadd.f32 %v6684, %v6796
      %6798 = vmatmul.f32.gmra.mxu0 %v6294
      %v6799 = vpop.f32.mrf.mxu0
      %v6800 = vadd.f32 %v6687, %v6799
      %6801 = vmatmul.f32.gmra.mxu0 %v6296
      %v6802 = vpop.f32.mrf.mxu0
      %v6803 = vadd.f32 %v6690, %v6802
      %6804 = vmatmul.f32.gmra.mxu0 %v6298
      %v6805 = vpop.f32.mrf.mxu0
      %v6806 = vadd.f32 %v6693, %v6805
      %6807 = vmatmul.f32.gmra.mxu0 %v6300
      %v6808 = vpop.f32.mrf.mxu0
      %v6809 = vadd.f32 %v6696, %v6808
      %6810 = vmatmul.f32.gmra.mxu0 %v6302
      %v6811 = vpop.f32.mrf.mxu0
      %v6812 = vadd.f32 %v6699, %v6811
      %6813 = vmatmul.f32.gmra.mxu0 %v6304
      %v6814 = vpop.f32.mrf.mxu0
      %v6815 = vadd.f32 %v6702, %v6814
      %6816 = vmatmul.f32.gmra.mxu0 %v6306
      %v6817 = vpop.f32.mrf.mxu0
      %v6818 = vadd.f32 %v6705, %v6817
      %6819 = vmatmul.f32.gmra.mxu0 %v6308
      %v6820 = vpop.f32.mrf.mxu0
      %v6821 = vadd.f32 %v6708, %v6820
      %6822 = vmatmul.f32.gmra.mxu0 %v6310
      %v6823 = vpop.f32.mrf.mxu0
      %v6824 = vadd.f32 %v6711, %v6823
      %6825 = vmatmul.f32.gmra.mxu0 %v6312
      %v6826 = vpop.f32.mrf.mxu0
      %v6827 = vadd.f32 %v6714, %v6826
      %6828 = vmatmul.f32.gmra.mxu0 %v6314
      %v6829 = vpop.f32.mrf.mxu0
      %v6830 = vadd.f32 %v6717, %v6829
      %6831 = vmatmul.f32.gmra.mxu0 %v6316
      %v6832 = vpop.f32.mrf.mxu0
      %v6833 = vadd.f32 %v6720, %v6832
      %6834 = vmatmul.f32.gmra.mxu0 %v6318
      %v6835 = vpop.f32.mrf.mxu0
      %v6836 = vadd.f32 %v6723, %v6835
      %6837 = vmatmul.f32.gmra.mxu0 %v6320
      %v6838 = vpop.f32.mrf.mxu0
      %v6839 = vadd.f32 %v6726, %v6838
      %6840 = vmatmul.f32.gmra.mxu0 %v6322
      %v6841 = vpop.f32.mrf.mxu0
      %v6842 = vadd.f32 %v6729, %v6841
      %6843 = vmatmul.f32.gmra.mxu0 %v6324
      %v6844 = vpop.f32.mrf.mxu0
      %v6845 = vadd.f32 %v6732, %v6844
      %6846 = vmatmul.f32.gmra.mxu0 %v6326
      %v6847 = vpop.f32.mrf.mxu0
      %v6848 = vadd.f32 %v6735, %v6847
      %6849 = vdwg.mxu0
      %6850 = vmatpush.msra.mxu0 %v6262
      %6851 = vmatpush.msra.mxu0 %v6259
      %6852 = vmatpush.msra.mxu0 %v6256
      %6853 = vmatpush.msra.mxu0 %v6253
      %6854 = vmatpush.msra.mxu0 %v6250
      %6855 = vmatpush.msra.mxu0 %v6247
      %6856 = vmatpush.msra.mxu0 %v6244
      %6857 = vmatpush.msra.mxu0 %v6241
      %6858 = vmatpush.msra.mxu0 %v6238
      %6859 = vmatpush.msra.mxu0 %v6235
      %6860 = vmatpush.msra.mxu0 %v6232
      %6861 = vmatpush.msra.mxu0 %v6229
      %6862 = vmatpush.msra.mxu0 %v6226
      %6863 = vmatpush.msra.mxu0 %v6223
      %6864 = vmatpush.msra.mxu0 %v6220
      %6865 = vmatpush.msra.mxu0 %v6217
      %6866 = vmatmul.f32.gmra.mxu0 %v6265
      %v6867 = vpop.f32.mrf.mxu0
      %v6868 = vadd.f32 %v6755, %v6867
      %6869 = vmatmul.f32.gmra.mxu0 %v6267
      %v6870 = vpop.f32.mrf.mxu0
      %v6871 = vadd.f32 %v6758, %v6870
      %6872 = vmatmul.f32.gmra.mxu0 %v6269
      %v6873 = vpop.f32.mrf.mxu0
      %v6874 = vadd.f32 %v6761, %v6873
      %6875 = vmatmul.f32.gmra.mxu0 %v6271
      %v6876 = vpop.f32.mrf.mxu0
      %v6877 = vadd.f32 %v6764, %v6876
      %6878 = vmatmul.f32.gmra.mxu0 %v6273
      %v6879 = vpop.f32.mrf.mxu0
      %v6880 = vadd.f32 %v6767, %v6879
      %6881 = vmatmul.f32.gmra.mxu0 %v6275
      %v6882 = vpop.f32.mrf.mxu0
      %v6883 = vadd.f32 %v6770, %v6882
      %6884 = vmatmul.f32.gmra.mxu0 %v6277
      %v6885 = vpop.f32.mrf.mxu0
      %v6886 = vadd.f32 %v6773, %v6885
      %6887 = vmatmul.f32.gmra.mxu0 %v6279
      %v6888 = vpop.f32.mrf.mxu0
      %v6889 = vadd.f32 %v6776, %v6888
      %6890 = vmatmul.f32.gmra.mxu0 %v6281
      %v6891 = vpop.f32.mrf.mxu0
      %v6892 = vadd.f32 %v6779, %v6891
      %6893 = vmatmul.f32.gmra.mxu0 %v6283
      %v6894 = vpop.f32.mrf.mxu0
      %v6895 = vadd.f32 %v6782, %v6894
      %6896 = vmatmul.f32.gmra.mxu0 %v6285
      %v6897 = vpop.f32.mrf.mxu0
      %v6898 = vadd.f32 %v6785, %v6897
      %6899 = vmatmul.f32.gmra.mxu0 %v6287
      %v6900 = vpop.f32.mrf.mxu0
      %v6901 = vadd.f32 %v6788, %v6900
      %6902 = vmatmul.f32.gmra.mxu0 %v6289
      %v6903 = vpop.f32.mrf.mxu0
      %v6904 = vadd.f32 %v6791, %v6903
      %6905 = vmatmul.f32.gmra.mxu0 %v6291
      %v6906 = vpop.f32.mrf.mxu0
      %v6907 = vadd.f32 %v6794, %v6906
      %6908 = vmatmul.f32.gmra.mxu0 %v6293
      %v6909 = vpop.f32.mrf.mxu0
      %v6910 = vadd.f32 %v6797, %v6909
      %6911 = vmatmul.f32.gmra.mxu0 %v6295
      %v6912 = vpop.f32.mrf.mxu0
      %v6913 = vadd.f32 %v6800, %v6912
      %6914 = vmatmul.f32.gmra.mxu0 %v6297
      %v6915 = vpop.f32.mrf.mxu0
      %v6916 = vadd.f32 %v6803, %v6915
      %6917 = vmatmul.f32.gmra.mxu0 %v6299
      %v6918 = vpop.f32.mrf.mxu0
      %v6919 = vadd.f32 %v6806, %v6918
      %6920 = vmatmul.f32.gmra.mxu0 %v6301
      %v6921 = vpop.f32.mrf.mxu0
      %v6922 = vadd.f32 %v6809, %v6921
      %6923 = vmatmul.f32.gmra.mxu0 %v6303
      %v6924 = vpop.f32.mrf.mxu0
      %v6925 = vadd.f32 %v6812, %v6924
      %6926 = vmatmul.f32.gmra.mxu0 %v6305
      %v6927 = vpop.f32.mrf.mxu0
      %v6928 = vadd.f32 %v6815, %v6927
      %6929 = vmatmul.f32.gmra.mxu0 %v6307
      %v6930 = vpop.f32.mrf.mxu0
      %v6931 = vadd.f32 %v6818, %v6930
      %6932 = vmatmul.f32.gmra.mxu0 %v6309
      %v6933 = vpop.f32.mrf.mxu0
      %v6934 = vadd.f32 %v6821, %v6933
      %6935 = vmatmul.f32.gmra.mxu0 %v6311
      %v6936 = vpop.f32.mrf.mxu0
      %v6937 = vadd.f32 %v6824, %v6936
      %6938 = vmatmul.f32.gmra.mxu0 %v6313
      %v6939 = vpop.f32.mrf.mxu0
      %v6940 = vadd.f32 %v6827, %v6939
      %6941 = vmatmul.f32.gmra.mxu0 %v6315
      %v6942 = vpop.f32.mrf.mxu0
      %v6943 = vadd.f32 %v6830, %v6942
      %6944 = vmatmul.f32.gmra.mxu0 %v6317
      %v6945 = vpop.f32.mrf.mxu0
      %v6946 = vadd.f32 %v6833, %v6945
      %6947 = vmatmul.f32.gmra.mxu0 %v6319
      %v6948 = vpop.f32.mrf.mxu0
      %v6949 = vadd.f32 %v6836, %v6948
      %6950 = vmatmul.f32.gmra.mxu0 %v6321
      %v6951 = vpop.f32.mrf.mxu0
      %v6952 = vadd.f32 %v6839, %v6951
      %6953 = vmatmul.f32.gmra.mxu0 %v6323
      %v6954 = vpop.f32.mrf.mxu0
      %v6955 = vadd.f32 %v6842, %v6954
      %6956 = vmatmul.f32.gmra.mxu0 %v6325
      %v6957 = vpop.f32.mrf.mxu0
      %v6958 = vadd.f32 %v6845, %v6957
      %6959 = vmatmul.f32.gmra.mxu0 %v6327
      %v6960 = vpop.f32.mrf.mxu0
      %v6961 = vadd.f32 %v6848, %v6960
      %6962 = vdwg.mxu0
      %s6963 = scalar_lea.vmem %s73, 4
      %v6964 = vld [vmem:[%s6963] sm:$0x3]
      %v6966 = vsel %vm6147, %v6964, 0
      %6968 = vmatpush.msra.mxu0 0.0
      %6969 = vmatpush.msra.mxu0 0.0
      %6970 = vmatpush.msra.mxu0 0.0
      %6971 = vmatpush.msra.mxu0 0.0
      %6972 = vmatpush.msra.mxu0 0.0
      %6973 = vmatpush.msra.mxu0 0.0
      %6974 = vmatpush.msra.mxu0 0.0
      %6975 = vmatpush.msra.mxu0 0.0
      %6976 = vmatpush.msra.mxu0 0.0
      %6977 = vmatpush.msra.mxu0 0.0
      %6978 = vmatpush.msra.mxu0 0.0
      %6979 = vmatpush.msra.mxu0 0.0
      %6980 = vmatpush.msra.mxu0 0.0
      %6981 = vmatpush.msra.mxu0 0.0
      %6982 = vmatpush.msra.mxu0 0.0
      %6983 = vmatpush.msra.mxu0 %v6966
      %6984 = vmatmul.f32.gmra.mxu0 %v6052
      %v6985 = vpop.f32.mrf.mxu0
      %v6986 = vadd.f32 0.0, %v6985
      %6987 = vmatmul.f32.gmra.mxu0 %v6055
      %v6988 = vpop.f32.mrf.mxu0
      %v6989 = vadd.f32 0.0, %v6988
      %6990 = vmatmul.f32.gmra.mxu0 %v6058
      %v6991 = vpop.f32.mrf.mxu0
      %v6992 = vadd.f32 0.0, %v6991
      %6993 = vmatmul.f32.gmra.mxu0 %v6061
      %v6994 = vpop.f32.mrf.mxu0
      %v6995 = vadd.f32 0.0, %v6994
      %6996 = vmatmul.f32.gmra.mxu0 %v6064
      %v6997 = vpop.f32.mrf.mxu0
      %v6998 = vadd.f32 0.0, %v6997
      %6999 = vmatmul.f32.gmra.mxu0 %v6067
      %v7000 = vpop.f32.mrf.mxu0
      %v7001 = vadd.f32 0.0, %v7000
      %7002 = vmatmul.f32.gmra.mxu0 %v6070
      %v7003 = vpop.f32.mrf.mxu0
      %v7004 = vadd.f32 0.0, %v7003
      %7005 = vmatmul.f32.gmra.mxu0 %v6073
      %v7006 = vpop.f32.mrf.mxu0
      %v7007 = vadd.f32 0.0, %v7006
      %7008 = vmatmul.f32.gmra.mxu0 %v6076
      %v7009 = vpop.f32.mrf.mxu0
      %v7010 = vadd.f32 0.0, %v7009
      %7011 = vmatmul.f32.gmra.mxu0 %v6079
      %v7012 = vpop.f32.mrf.mxu0
      %v7013 = vadd.f32 0.0, %v7012
      %7014 = vmatmul.f32.gmra.mxu0 %v6082
      %v7015 = vpop.f32.mrf.mxu0
      %v7016 = vadd.f32 0.0, %v7015
      %7017 = vmatmul.f32.gmra.mxu0 %v6085
      %v7018 = vpop.f32.mrf.mxu0
      %v7019 = vadd.f32 0.0, %v7018
      %7020 = vmatmul.f32.gmra.mxu0 %v6088
      %v7021 = vpop.f32.mrf.mxu0
      %v7022 = vadd.f32 0.0, %v7021
      %7023 = vmatmul.f32.gmra.mxu0 %v6091
      %v7024 = vpop.f32.mrf.mxu0
      %v7025 = vadd.f32 0.0, %v7024
      %7026 = vmatmul.f32.gmra.mxu0 %v6094
      %v7027 = vpop.f32.mrf.mxu0
      %v7028 = vadd.f32 0.0, %v7027
      %7029 = vmatmul.f32.gmra.mxu0 %v6097
      %v7030 = vpop.f32.mrf.mxu0
      %v7031 = vadd.f32 0.0, %v7030
      %7032 = vmatmul.f32.gmra.mxu0 %v6100
      %v7033 = vpop.f32.mrf.mxu0
      %v7034 = vadd.f32 0.0, %v7033
      %7035 = vmatmul.f32.gmra.mxu0 %v6103
      %v7036 = vpop.f32.mrf.mxu0
      %v7037 = vadd.f32 0.0, %v7036
      %7038 = vmatmul.f32.gmra.mxu0 %v6106
      %v7039 = vpop.f32.mrf.mxu0
      %v7040 = vadd.f32 0.0, %v7039
      %7041 = vmatmul.f32.gmra.mxu0 %v6109
      %v7042 = vpop.f32.mrf.mxu0
      %v7043 = vadd.f32 0.0, %v7042
      %7044 = vmatmul.f32.gmra.mxu0 %v6112
      %v7045 = vpop.f32.mrf.mxu0
      %v7046 = vadd.f32 0.0, %v7045
      %7047 = vmatmul.f32.gmra.mxu0 %v6115
      %v7048 = vpop.f32.mrf.mxu0
      %v7049 = vadd.f32 0.0, %v7048
      %7050 = vmatmul.f32.gmra.mxu0 %v6118
      %v7051 = vpop.f32.mrf.mxu0
      %v7052 = vadd.f32 0.0, %v7051
      %7053 = vmatmul.f32.gmra.mxu0 %v6121
      %v7054 = vpop.f32.mrf.mxu0
      %v7055 = vadd.f32 0.0, %v7054
      %7056 = vmatmul.f32.gmra.mxu0 %v6124
      %v7057 = vpop.f32.mrf.mxu0
      %v7058 = vadd.f32 0.0, %v7057
      %7059 = vmatmul.f32.gmra.mxu0 %v6127
      %v7060 = vpop.f32.mrf.mxu0
      %v7061 = vadd.f32 0.0, %v7060
      %7062 = vmatmul.f32.gmra.mxu0 %v6130
      %v7063 = vpop.f32.mrf.mxu0
      %v7064 = vadd.f32 0.0, %v7063
      %7065 = vmatmul.f32.gmra.mxu0 %v6133
      %v7066 = vpop.f32.mrf.mxu0
      %v7067 = vadd.f32 0.0, %v7066
      %7068 = vmatmul.f32.gmra.mxu0 %v6136
      %v7069 = vpop.f32.mrf.mxu0
      %v7070 = vadd.f32 0.0, %v7069
      %7071 = vmatmul.f32.gmra.mxu0 %v6139
      %v7072 = vpop.f32.mrf.mxu0
      %v7073 = vadd.f32 0.0, %v7072
      %7074 = vmatmul.f32.gmra.mxu0 %v6142
      %v7075 = vpop.f32.mrf.mxu0
      %v7076 = vadd.f32 0.0, %v7075
      %7077 = vmatmul.f32.gmra.mxu0 %v6145
      %v7078 = vpop.f32.mrf.mxu0
      %v7079 = vadd.f32 0.0, %v7078
      %7080 = vdwg.mxu0
      %s7081 = scalar_lea.vmem %s69, 1024
      %v7082 = vld [vmem:[%s7081] sm:$0xff]
      %v7083 = vld [vmem:[%s7081 + $0x8] sm:$0xff]
      %v7084 = vld [vmem:[%s7081 + $0x10] sm:$0xff]
      %v7085 = vld [vmem:[%s7081 + $0x18] sm:$0xff]
      %v7086 = vld [vmem:[%s7081 + $0x20] sm:$0xff]
      %v7087 = vld [vmem:[%s7081 + $0x28] sm:$0xff]
      %v7088 = vld [vmem:[%s7081 + $0x30] sm:$0xff]
      %v7089 = vld [vmem:[%s7081 + $0x38] sm:$0xff]
      %v7090 = vld [vmem:[%s7081 + $0x40] sm:$0xff]
      %v7091 = vld [vmem:[%s7081 + $0x48] sm:$0xff]
      %v7092 = vld [vmem:[%s7081 + $0x50] sm:$0xff]
      %v7093 = vld [vmem:[%s7081 + $0x58] sm:$0xff]
      %v7094 = vld [vmem:[%s7081 + $0x60] sm:$0xff]
      %v7095 = vld [vmem:[%s7081 + $0x68] sm:$0xff]
      %v7096 = vld [vmem:[%s7081 + $0x70] sm:$0xff]
      %v7097 = vld [vmem:[%s7081 + $0x78] sm:$0xff]
      %v7098 = vld [vmem:[%s7081 + $0x80] sm:$0xff]
      %v7099 = vld [vmem:[%s7081 + $0x88] sm:$0xff]
      %v7100 = vld [vmem:[%s7081 + $0x90] sm:$0xff]
      %v7101 = vld [vmem:[%s7081 + $0x98] sm:$0xff]
      %v7102 = vld [vmem:[%s7081 + $0xa0] sm:$0xff]
      %v7103 = vld [vmem:[%s7081 + $0xa8] sm:$0xff]
      %v7104 = vld [vmem:[%s7081 + $0xb0] sm:$0xff]
      %v7105 = vld [vmem:[%s7081 + $0xb8] sm:$0xff]
      %v7106 = vld [vmem:[%s7081 + $0xc0] sm:$0xff]
      %v7107 = vld [vmem:[%s7081 + $0xc8] sm:$0xff]
      %v7108 = vld [vmem:[%s7081 + $0xd0] sm:$0xff]
      %v7109 = vld [vmem:[%s7081 + $0xd8] sm:$0xff]
      %v7110 = vld [vmem:[%s7081 + $0xe0] sm:$0xff]
      %v7111 = vld [vmem:[%s7081 + $0xe8] sm:$0xff]
      %v7112 = vld [vmem:[%s7081 + $0xf0] sm:$0xff]
      %v7113 = vld [vmem:[%s7081 + $0xf8] sm:$0xff]
      %v7114 = vld [vmem:[%s7081 + $0x100] sm:$0xff]
      %v7115 = vld [vmem:[%s7081 + $0x108] sm:$0xff]
      %v7116 = vld [vmem:[%s7081 + $0x110] sm:$0xff]
      %v7117 = vld [vmem:[%s7081 + $0x118] sm:$0xff]
      %v7118 = vld [vmem:[%s7081 + $0x120] sm:$0xff]
      %v7119 = vld [vmem:[%s7081 + $0x128] sm:$0xff]
      %v7120 = vld [vmem:[%s7081 + $0x130] sm:$0xff]
      %v7121 = vld [vmem:[%s7081 + $0x138] sm:$0xff]
      %v7122 = vld [vmem:[%s7081 + $0x140] sm:$0xff]
      %v7123 = vld [vmem:[%s7081 + $0x148] sm:$0xff]
      %v7124 = vld [vmem:[%s7081 + $0x150] sm:$0xff]
      %v7125 = vld [vmem:[%s7081 + $0x158] sm:$0xff]
      %v7126 = vld [vmem:[%s7081 + $0x160] sm:$0xff]
      %v7127 = vld [vmem:[%s7081 + $0x168] sm:$0xff]
      %v7128 = vld [vmem:[%s7081 + $0x170] sm:$0xff]
      %v7129 = vld [vmem:[%s7081 + $0x178] sm:$0xff]
      %v7130 = vld [vmem:[%s7081 + $0x180] sm:$0xff]
      %v7131 = vld [vmem:[%s7081 + $0x188] sm:$0xff]
      %v7132 = vld [vmem:[%s7081 + $0x190] sm:$0xff]
      %v7133 = vld [vmem:[%s7081 + $0x198] sm:$0xff]
      %v7134 = vld [vmem:[%s7081 + $0x1a0] sm:$0xff]
      %v7135 = vld [vmem:[%s7081 + $0x1a8] sm:$0xff]
      %v7136 = vld [vmem:[%s7081 + $0x1b0] sm:$0xff]
      %v7137 = vld [vmem:[%s7081 + $0x1b8] sm:$0xff]
      %v7138 = vld [vmem:[%s7081 + $0x1c0] sm:$0xff]
      %v7139 = vld [vmem:[%s7081 + $0x1c8] sm:$0xff]
      %v7140 = vld [vmem:[%s7081 + $0x1d0] sm:$0xff]
      %v7141 = vld [vmem:[%s7081 + $0x1d8] sm:$0xff]
      %v7142 = vld [vmem:[%s7081 + $0x1e0] sm:$0xff]
      %v7143 = vld [vmem:[%s7081 + $0x1e8] sm:$0xff]
      %v7144 = vld [vmem:[%s7081 + $0x1f0] sm:$0xff]
      %v7145 = vld [vmem:[%s7081 + $0x1f8] sm:$0xff]
      %7146 = vmatpush.msra.mxu0 %v7031
      %7147 = vmatpush.msra.mxu0 %v7028
      %7148 = vmatpush.msra.mxu0 %v7025
      %7149 = vmatpush.msra.mxu0 %v7022
      %7150 = vmatpush.msra.mxu0 %v7019
      %7151 = vmatpush.msra.mxu0 %v7016
      %7152 = vmatpush.msra.mxu0 %v7013
      %7153 = vmatpush.msra.mxu0 %v7010
      %7154 = vmatpush.msra.mxu0 %v7007
      %7155 = vmatpush.msra.mxu0 %v7004
      %7156 = vmatpush.msra.mxu0 %v7001
      %7157 = vmatpush.msra.mxu0 %v6998
      %7158 = vmatpush.msra.mxu0 %v6995
      %7159 = vmatpush.msra.mxu0 %v6992
      %7160 = vmatpush.msra.mxu0 %v6989
      %7161 = vmatpush.msra.mxu0 %v6986
      %7162 = vmatmul.f32.gmra.mxu0 %v7082
      %v7163 = vpop.f32.mrf.mxu0
      %v7164 = vadd.f32 0.0, %v7163
      %7165 = vmatmul.f32.gmra.mxu0 %v7084
      %v7166 = vpop.f32.mrf.mxu0
      %v7167 = vadd.f32 0.0, %v7166
      %7168 = vmatmul.f32.gmra.mxu0 %v7086
      %v7169 = vpop.f32.mrf.mxu0
      %v7170 = vadd.f32 0.0, %v7169
      %7171 = vmatmul.f32.gmra.mxu0 %v7088
      %v7172 = vpop.f32.mrf.mxu0
      %v7173 = vadd.f32 0.0, %v7172
      %7174 = vmatmul.f32.gmra.mxu0 %v7090
      %v7175 = vpop.f32.mrf.mxu0
      %v7176 = vadd.f32 0.0, %v7175
      %7177 = vmatmul.f32.gmra.mxu0 %v7092
      %v7178 = vpop.f32.mrf.mxu0
      %v7179 = vadd.f32 0.0, %v7178
      %7180 = vmatmul.f32.gmra.mxu0 %v7094
      %v7181 = vpop.f32.mrf.mxu0
      %v7182 = vadd.f32 0.0, %v7181
      %7183 = vmatmul.f32.gmra.mxu0 %v7096
      %v7184 = vpop.f32.mrf.mxu0
      %v7185 = vadd.f32 0.0, %v7184
      %7186 = vmatmul.f32.gmra.mxu0 %v7098
      %v7187 = vpop.f32.mrf.mxu0
      %v7188 = vadd.f32 0.0, %v7187
      %7189 = vmatmul.f32.gmra.mxu0 %v7100
      %v7190 = vpop.f32.mrf.mxu0
      %v7191 = vadd.f32 0.0, %v7190
      %7192 = vmatmul.f32.gmra.mxu0 %v7102
      %v7193 = vpop.f32.mrf.mxu0
      %v7194 = vadd.f32 0.0, %v7193
      %7195 = vmatmul.f32.gmra.mxu0 %v7104
      %v7196 = vpop.f32.mrf.mxu0
      %v7197 = vadd.f32 0.0, %v7196
      %7198 = vmatmul.f32.gmra.mxu0 %v7106
      %v7199 = vpop.f32.mrf.mxu0
      %v7200 = vadd.f32 0.0, %v7199
      %7201 = vmatmul.f32.gmra.mxu0 %v7108
      %v7202 = vpop.f32.mrf.mxu0
      %v7203 = vadd.f32 0.0, %v7202
      %7204 = vmatmul.f32.gmra.mxu0 %v7110
      %v7205 = vpop.f32.mrf.mxu0
      %v7206 = vadd.f32 0.0, %v7205
      %7207 = vmatmul.f32.gmra.mxu0 %v7112
      %v7208 = vpop.f32.mrf.mxu0
      %v7209 = vadd.f32 0.0, %v7208
      %7210 = vmatmul.f32.gmra.mxu0 %v7114
      %v7211 = vpop.f32.mrf.mxu0
      %v7212 = vadd.f32 0.0, %v7211
      %7213 = vmatmul.f32.gmra.mxu0 %v7116
      %v7214 = vpop.f32.mrf.mxu0
      %v7215 = vadd.f32 0.0, %v7214
      %7216 = vmatmul.f32.gmra.mxu0 %v7118
      %v7217 = vpop.f32.mrf.mxu0
      %v7218 = vadd.f32 0.0, %v7217
      %7219 = vmatmul.f32.gmra.mxu0 %v7120
      %v7220 = vpop.f32.mrf.mxu0
      %v7221 = vadd.f32 0.0, %v7220
      %7222 = vmatmul.f32.gmra.mxu0 %v7122
      %v7223 = vpop.f32.mrf.mxu0
      %v7224 = vadd.f32 0.0, %v7223
      %7225 = vmatmul.f32.gmra.mxu0 %v7124
      %v7226 = vpop.f32.mrf.mxu0
      %v7227 = vadd.f32 0.0, %v7226
      %7228 = vmatmul.f32.gmra.mxu0 %v7126
      %v7229 = vpop.f32.mrf.mxu0
      %v7230 = vadd.f32 0.0, %v7229
      %7231 = vmatmul.f32.gmra.mxu0 %v7128
      %v7232 = vpop.f32.mrf.mxu0
      %v7233 = vadd.f32 0.0, %v7232
      %7234 = vmatmul.f32.gmra.mxu0 %v7130
      %v7235 = vpop.f32.mrf.mxu0
      %v7236 = vadd.f32 0.0, %v7235
      %7237 = vmatmul.f32.gmra.mxu0 %v7132
      %v7238 = vpop.f32.mrf.mxu0
      %v7239 = vadd.f32 0.0, %v7238
      %7240 = vmatmul.f32.gmra.mxu0 %v7134
      %v7241 = vpop.f32.mrf.mxu0
      %v7242 = vadd.f32 0.0, %v7241
      %7243 = vmatmul.f32.gmra.mxu0 %v7136
      %v7244 = vpop.f32.mrf.mxu0
      %v7245 = vadd.f32 0.0, %v7244
      %7246 = vmatmul.f32.gmra.mxu0 %v7138
      %v7247 = vpop.f32.mrf.mxu0
      %v7248 = vadd.f32 0.0, %v7247
      %7249 = vmatmul.f32.gmra.mxu0 %v7140
      %v7250 = vpop.f32.mrf.mxu0
      %v7251 = vadd.f32 0.0, %v7250
      %7252 = vmatmul.f32.gmra.mxu0 %v7142
      %v7253 = vpop.f32.mrf.mxu0
      %v7254 = vadd.f32 0.0, %v7253
      %7255 = vmatmul.f32.gmra.mxu0 %v7144
      %v7256 = vpop.f32.mrf.mxu0
      %v7257 = vadd.f32 0.0, %v7256
      %7258 = vdwg.mxu0
      %7259 = vmatpush.msra.mxu0 %v7079
      %7260 = vmatpush.msra.mxu0 %v7076
      %7261 = vmatpush.msra.mxu0 %v7073
      %7262 = vmatpush.msra.mxu0 %v7070
      %7263 = vmatpush.msra.mxu0 %v7067
      %7264 = vmatpush.msra.mxu0 %v7064
      %7265 = vmatpush.msra.mxu0 %v7061
      %7266 = vmatpush.msra.mxu0 %v7058
      %7267 = vmatpush.msra.mxu0 %v7055
      %7268 = vmatpush.msra.mxu0 %v7052
      %7269 = vmatpush.msra.mxu0 %v7049
      %7270 = vmatpush.msra.mxu0 %v7046
      %7271 = vmatpush.msra.mxu0 %v7043
      %7272 = vmatpush.msra.mxu0 %v7040
      %7273 = vmatpush.msra.mxu0 %v7037
      %7274 = vmatpush.msra.mxu0 %v7034
      %7275 = vmatmul.f32.gmra.mxu0 %v7083
      %v7276 = vpop.f32.mrf.mxu0
      %v7277 = vadd.f32 %v7164, %v7276
      %7278 = vmatmul.f32.gmra.mxu0 %v7085
      %v7279 = vpop.f32.mrf.mxu0
      %v7280 = vadd.f32 %v7167, %v7279
      %7281 = vmatmul.f32.gmra.mxu0 %v7087
      %v7282 = vpop.f32.mrf.mxu0
      %v7283 = vadd.f32 %v7170, %v7282
      %7284 = vmatmul.f32.gmra.mxu0 %v7089
      %v7285 = vpop.f32.mrf.mxu0
      %v7286 = vadd.f32 %v7173, %v7285
      %7287 = vmatmul.f32.gmra.mxu0 %v7091
      %v7288 = vpop.f32.mrf.mxu0
      %v7289 = vadd.f32 %v7176, %v7288
      %7290 = vmatmul.f32.gmra.mxu0 %v7093
      %v7291 = vpop.f32.mrf.mxu0
      %v7292 = vadd.f32 %v7179, %v7291
      %7293 = vmatmul.f32.gmra.mxu0 %v7095
      %v7294 = vpop.f32.mrf.mxu0
      %v7295 = vadd.f32 %v7182, %v7294
      %7296 = vmatmul.f32.gmra.mxu0 %v7097
      %v7297 = vpop.f32.mrf.mxu0
      %v7298 = vadd.f32 %v7185, %v7297
      %7299 = vmatmul.f32.gmra.mxu0 %v7099
      %v7300 = vpop.f32.mrf.mxu0
      %v7301 = vadd.f32 %v7188, %v7300
      %7302 = vmatmul.f32.gmra.mxu0 %v7101
      %v7303 = vpop.f32.mrf.mxu0
      %v7304 = vadd.f32 %v7191, %v7303
      %7305 = vmatmul.f32.gmra.mxu0 %v7103
      %v7306 = vpop.f32.mrf.mxu0
      %v7307 = vadd.f32 %v7194, %v7306
      %7308 = vmatmul.f32.gmra.mxu0 %v7105
      %v7309 = vpop.f32.mrf.mxu0
      %v7310 = vadd.f32 %v7197, %v7309
      %7311 = vmatmul.f32.gmra.mxu0 %v7107
      %v7312 = vpop.f32.mrf.mxu0
      %v7313 = vadd.f32 %v7200, %v7312
      %7314 = vmatmul.f32.gmra.mxu0 %v7109
      %v7315 = vpop.f32.mrf.mxu0
      %v7316 = vadd.f32 %v7203, %v7315
      %7317 = vmatmul.f32.gmra.mxu0 %v7111
      %v7318 = vpop.f32.mrf.mxu0
      %v7319 = vadd.f32 %v7206, %v7318
      %7320 = vmatmul.f32.gmra.mxu0 %v7113
      %v7321 = vpop.f32.mrf.mxu0
      %v7322 = vadd.f32 %v7209, %v7321
      %7323 = vmatmul.f32.gmra.mxu0 %v7115
      %v7324 = vpop.f32.mrf.mxu0
      %v7325 = vadd.f32 %v7212, %v7324
      %7326 = vmatmul.f32.gmra.mxu0 %v7117
      %v7327 = vpop.f32.mrf.mxu0
      %v7328 = vadd.f32 %v7215, %v7327
      %7329 = vmatmul.f32.gmra.mxu0 %v7119
      %v7330 = vpop.f32.mrf.mxu0
      %v7331 = vadd.f32 %v7218, %v7330
      %7332 = vmatmul.f32.gmra.mxu0 %v7121
      %v7333 = vpop.f32.mrf.mxu0
      %v7334 = vadd.f32 %v7221, %v7333
      %7335 = vmatmul.f32.gmra.mxu0 %v7123
      %v7336 = vpop.f32.mrf.mxu0
      %v7337 = vadd.f32 %v7224, %v7336
      %7338 = vmatmul.f32.gmra.mxu0 %v7125
      %v7339 = vpop.f32.mrf.mxu0
      %v7340 = vadd.f32 %v7227, %v7339
      %7341 = vmatmul.f32.gmra.mxu0 %v7127
      %v7342 = vpop.f32.mrf.mxu0
      %v7343 = vadd.f32 %v7230, %v7342
      %7344 = vmatmul.f32.gmra.mxu0 %v7129
      %v7345 = vpop.f32.mrf.mxu0
      %v7346 = vadd.f32 %v7233, %v7345
      %7347 = vmatmul.f32.gmra.mxu0 %v7131
      %v7348 = vpop.f32.mrf.mxu0
      %v7349 = vadd.f32 %v7236, %v7348
      %7350 = vmatmul.f32.gmra.mxu0 %v7133
      %v7351 = vpop.f32.mrf.mxu0
      %v7352 = vadd.f32 %v7239, %v7351
      %7353 = vmatmul.f32.gmra.mxu0 %v7135
      %v7354 = vpop.f32.mrf.mxu0
      %v7355 = vadd.f32 %v7242, %v7354
      %7356 = vmatmul.f32.gmra.mxu0 %v7137
      %v7357 = vpop.f32.mrf.mxu0
      %v7358 = vadd.f32 %v7245, %v7357
      %7359 = vmatmul.f32.gmra.mxu0 %v7139
      %v7360 = vpop.f32.mrf.mxu0
      %v7361 = vadd.f32 %v7248, %v7360
      %7362 = vmatmul.f32.gmra.mxu0 %v7141
      %v7363 = vpop.f32.mrf.mxu0
      %v7364 = vadd.f32 %v7251, %v7363
      %7365 = vmatmul.f32.gmra.mxu0 %v7143
      %v7366 = vpop.f32.mrf.mxu0
      %v7367 = vadd.f32 %v7254, %v7366
      %7368 = vmatmul.f32.gmra.mxu0 %v7145
      %v7369 = vpop.f32.mrf.mxu0
      %v7370 = vadd.f32 %v7257, %v7369
      %7371 = vdwg.mxu0
      %v7372 = vadd.f32 %v6868, %v7277
      %v7373 = vadd.f32 %v6871, %v7280
      %v7374 = vadd.f32 %v6874, %v7283
      %v7375 = vadd.f32 %v6877, %v7286
      %v7376 = vadd.f32 %v6880, %v7289
      %v7377 = vadd.f32 %v6883, %v7292
      %v7378 = vadd.f32 %v6886, %v7295
      %v7379 = vadd.f32 %v6889, %v7298
      %v7380 = vadd.f32 %v6892, %v7301
      %v7381 = vadd.f32 %v6895, %v7304
      %v7382 = vadd.f32 %v6898, %v7307
      %v7383 = vadd.f32 %v6901, %v7310
      %v7384 = vadd.f32 %v6904, %v7313
      %v7385 = vadd.f32 %v6907, %v7316
      %v7386 = vadd.f32 %v6910, %v7319
      %v7387 = vadd.f32 %v6913, %v7322
      %v7388 = vadd.f32 %v6916, %v7325
      %v7389 = vadd.f32 %v6919, %v7328
      %v7390 = vadd.f32 %v6922, %v7331
      %v7391 = vadd.f32 %v6925, %v7334
      %v7392 = vadd.f32 %v6928, %v7337
      %v7393 = vadd.f32 %v6931, %v7340
      %v7394 = vadd.f32 %v6934, %v7343
      %v7395 = vadd.f32 %v6937, %v7346
      %v7396 = vadd.f32 %v6940, %v7349
      %v7397 = vadd.f32 %v6943, %v7352
      %v7398 = vadd.f32 %v6946, %v7355
      %v7399 = vadd.f32 %v6949, %v7358
      %v7400 = vadd.f32 %v6952, %v7361
      %v7401 = vadd.f32 %v6955, %v7364
      %v7402 = vadd.f32 %v6958, %v7367
      %v7403 = vadd.f32 %v6961, %v7370
      %v7404 = vld [vmem:[%s71] sm:$0xff]
      %v7405 = vld [vmem:[%s71 + $0x8] sm:$0xff]
      %v7406 = vld [vmem:[%s71 + $0x10] sm:$0xff]
      %v7407 = vld [vmem:[%s71 + $0x18] sm:$0xff]
      %v7408 = vld [vmem:[%s71 + $0x20] sm:$0xff]
      %v7409 = vld [vmem:[%s71 + $0x28] sm:$0xff]
      %v7410 = vld [vmem:[%s71 + $0x30] sm:$0xff]
      %v7411 = vld [vmem:[%s71 + $0x38] sm:$0xff]
      %v7412 = vld [vmem:[%s71 + $0x40] sm:$0xff]
      %v7413 = vld [vmem:[%s71 + $0x48] sm:$0xff]
      %v7414 = vld [vmem:[%s71 + $0x50] sm:$0xff]
      %v7415 = vld [vmem:[%s71 + $0x58] sm:$0xff]
      %v7416 = vld [vmem:[%s71 + $0x60] sm:$0xff]
      %v7417 = vld [vmem:[%s71 + $0x68] sm:$0xff]
      %v7418 = vld [vmem:[%s71 + $0x70] sm:$0xff]
      %v7419 = vld [vmem:[%s71 + $0x78] sm:$0xff]
      %v7420 = vld [vmem:[%s71 + $0x80] sm:$0xff]
      %v7421 = vld [vmem:[%s71 + $0x88] sm:$0xff]
      %v7422 = vld [vmem:[%s71 + $0x90] sm:$0xff]
      %v7423 = vld [vmem:[%s71 + $0x98] sm:$0xff]
      %v7424 = vld [vmem:[%s71 + $0xa0] sm:$0xff]
      %v7425 = vld [vmem:[%s71 + $0xa8] sm:$0xff]
      %v7426 = vld [vmem:[%s71 + $0xb0] sm:$0xff]
      %v7427 = vld [vmem:[%s71 + $0xb8] sm:$0xff]
      %v7428 = vld [vmem:[%s71 + $0xc0] sm:$0xff]
      %v7429 = vld [vmem:[%s71 + $0xc8] sm:$0xff]
      %v7430 = vld [vmem:[%s71 + $0xd0] sm:$0xff]
      %v7431 = vld [vmem:[%s71 + $0xd8] sm:$0xff]
      %v7432 = vld [vmem:[%s71 + $0xe0] sm:$0xff]
      %v7433 = vld [vmem:[%s71 + $0xe8] sm:$0xff]
      %v7434 = vld [vmem:[%s71 + $0xf0] sm:$0xff]
      %v7435 = vld [vmem:[%s71 + $0xf8] sm:$0xff]
      %7437 = vset.pattern.permute.xlu0 0
      %7438 = vperm.xlu0 %7437, %v7404
      %v7439 = vpop.permute.xlu0 %7438
      %7442 = vset.pattern.permute.xlu0 0
      %7443 = vperm.xlu0 %7442, %v7405
      %v7444 = vpop.permute.xlu0 %7443
      %7447 = vset.pattern.permute.xlu0 0
      %7448 = vperm.xlu0 %7447, %v7406
      %v7449 = vpop.permute.xlu0 %7448
      %7452 = vset.pattern.permute.xlu0 0
      %7453 = vperm.xlu0 %7452, %v7407
      %v7454 = vpop.permute.xlu0 %7453
      %7457 = vset.pattern.permute.xlu0 0
      %7458 = vperm.xlu0 %7457, %v7408
      %v7459 = vpop.permute.xlu0 %7458
      %7462 = vset.pattern.permute.xlu0 0
      %7463 = vperm.xlu0 %7462, %v7409
      %v7464 = vpop.permute.xlu0 %7463
      %7467 = vset.pattern.permute.xlu0 0
      %7468 = vperm.xlu0 %7467, %v7410
      %v7469 = vpop.permute.xlu0 %7468
      %7472 = vset.pattern.permute.xlu0 0
      %7473 = vperm.xlu0 %7472, %v7411
      %v7474 = vpop.permute.xlu0 %7473
      %7477 = vset.pattern.permute.xlu0 0
      %7478 = vperm.xlu0 %7477, %v7412
      %v7479 = vpop.permute.xlu0 %7478
      %7482 = vset.pattern.permute.xlu0 0
      %7483 = vperm.xlu0 %7482, %v7413
      %v7484 = vpop.permute.xlu0 %7483
      %7487 = vset.pattern.permute.xlu0 0
      %7488 = vperm.xlu0 %7487, %v7414
      %v7489 = vpop.permute.xlu0 %7488
      %7492 = vset.pattern.permute.xlu0 0
      %7493 = vperm.xlu0 %7492, %v7415
      %v7494 = vpop.permute.xlu0 %7493
      %7497 = vset.pattern.permute.xlu0 0
      %7498 = vperm.xlu0 %7497, %v7416
      %v7499 = vpop.permute.xlu0 %7498
      %7502 = vset.pattern.permute.xlu0 0
      %7503 = vperm.xlu0 %7502, %v7417
      %v7504 = vpop.permute.xlu0 %7503
      %7507 = vset.pattern.permute.xlu0 0
      %7508 = vperm.xlu0 %7507, %v7418
      %v7509 = vpop.permute.xlu0 %7508
      %7512 = vset.pattern.permute.xlu0 0
      %7513 = vperm.xlu0 %7512, %v7419
      %v7514 = vpop.permute.xlu0 %7513
      %7517 = vset.pattern.permute.xlu0 0
      %7518 = vperm.xlu0 %7517, %v7420
      %v7519 = vpop.permute.xlu0 %7518
      %7522 = vset.pattern.permute.xlu0 0
      %7523 = vperm.xlu0 %7522, %v7421
      %v7524 = vpop.permute.xlu0 %7523
      %7527 = vset.pattern.permute.xlu0 0
      %7528 = vperm.xlu0 %7527, %v7422
      %v7529 = vpop.permute.xlu0 %7528
      %7532 = vset.pattern.permute.xlu0 0
      %7533 = vperm.xlu0 %7532, %v7423
      %v7534 = vpop.permute.xlu0 %7533
      %7537 = vset.pattern.permute.xlu0 0
      %7538 = vperm.xlu0 %7537, %v7424
      %v7539 = vpop.permute.xlu0 %7538
      %7542 = vset.pattern.permute.xlu0 0
      %7543 = vperm.xlu0 %7542, %v7425
      %v7544 = vpop.permute.xlu0 %7543
      %7547 = vset.pattern.permute.xlu0 0
      %7548 = vperm.xlu0 %7547, %v7426
      %v7549 = vpop.permute.xlu0 %7548
      %7552 = vset.pattern.permute.xlu0 0
      %7553 = vperm.xlu0 %7552, %v7427
      %v7554 = vpop.permute.xlu0 %7553
      %7557 = vset.pattern.permute.xlu0 0
      %7558 = vperm.xlu0 %7557, %v7428
      %v7559 = vpop.permute.xlu0 %7558
      %7562 = vset.pattern.permute.xlu0 0
      %7563 = vperm.xlu0 %7562, %v7429
      %v7564 = vpop.permute.xlu0 %7563
      %7567 = vset.pattern.permute.xlu0 0
      %7568 = vperm.xlu0 %7567, %v7430
      %v7569 = vpop.permute.xlu0 %7568
      %7572 = vset.pattern.permute.xlu0 0
      %7573 = vperm.xlu0 %7572, %v7431
      %v7574 = vpop.permute.xlu0 %7573
      %7577 = vset.pattern.permute.xlu0 0
      %7578 = vperm.xlu0 %7577, %v7432
      %v7579 = vpop.permute.xlu0 %7578
      %7582 = vset.pattern.permute.xlu0 0
      %7583 = vperm.xlu0 %7582, %v7433
      %v7584 = vpop.permute.xlu0 %7583
      %7587 = vset.pattern.permute.xlu0 0
      %7588 = vperm.xlu0 %7587, %v7434
      %v7589 = vpop.permute.xlu0 %7588
      %7592 = vset.pattern.permute.xlu0 0
      %7593 = vperm.xlu0 %7592, %v7435
      %v7594 = vpop.permute.xlu0 %7593
      %v7596 = vadd.f32 %v7372, %v7439
      %v7597 = vadd.f32 %v7373, %v7444
      %v7598 = vadd.f32 %v7374, %v7449
      %v7599 = vadd.f32 %v7375, %v7454
      %v7600 = vadd.f32 %v7376, %v7459
      %v7601 = vadd.f32 %v7377, %v7464
      %v7602 = vadd.f32 %v7378, %v7469
      %v7603 = vadd.f32 %v7379, %v7474
      %v7604 = vadd.f32 %v7380, %v7479
      %v7605 = vadd.f32 %v7381, %v7484
      %v7606 = vadd.f32 %v7382, %v7489
      %v7607 = vadd.f32 %v7383, %v7494
      %v7608 = vadd.f32 %v7384, %v7499
      %v7609 = vadd.f32 %v7385, %v7504
      %v7610 = vadd.f32 %v7386, %v7509
      %v7611 = vadd.f32 %v7387, %v7514
      %v7612 = vadd.f32 %v7388, %v7519
      %v7613 = vadd.f32 %v7389, %v7524
      %v7614 = vadd.f32 %v7390, %v7529
      %v7615 = vadd.f32 %v7391, %v7534
      %v7616 = vadd.f32 %v7392, %v7539
      %v7617 = vadd.f32 %v7393, %v7544
      %v7618 = vadd.f32 %v7394, %v7549
      %v7619 = vadd.f32 %v7395, %v7554
      %v7620 = vadd.f32 %v7396, %v7559
      %v7621 = vadd.f32 %v7397, %v7564
      %v7622 = vadd.f32 %v7398, %v7569
      %v7623 = vadd.f32 %v7399, %v7574
      %v7624 = vadd.f32 %v7400, %v7579
      %v7625 = vadd.f32 %v7401, %v7584
      %v7626 = vadd.f32 %v7402, %v7589
      %v7627 = vadd.f32 %v7403, %v7594
      %v7628 = vld [vmem:[%s79] sm:$0xf]
      %v7630 = vsel %vm1338, %v7628, 0
      %7632 = vmatpush.msra.mxu0 0.0
      %7633 = vmatpush.msra.mxu0 0.0
      %7634 = vmatpush.msra.mxu0 0.0
      %7635 = vmatpush.msra.mxu0 0.0
      %7636 = vmatpush.msra.mxu0 0.0
      %7637 = vmatpush.msra.mxu0 0.0
      %7638 = vmatpush.msra.mxu0 0.0
      %7639 = vmatpush.msra.mxu0 0.0
      %7640 = vmatpush.msra.mxu0 0.0
      %7641 = vmatpush.msra.mxu0 0.0
      %7642 = vmatpush.msra.mxu0 0.0
      %7643 = vmatpush.msra.mxu0 0.0
      %7644 = vmatpush.msra.mxu0 0.0
      %7645 = vmatpush.msra.mxu0 0.0
      %7646 = vmatpush.msra.mxu0 0.0
      %7647 = vmatpush.msra.mxu0 %v7630
      %7648 = vmatmul.f32.gmra.mxu0 %v5069
      %v7649 = vpop.f32.mrf.mxu0
      %v7650 = vadd.f32 0.0, %v7649
      %7651 = vmatmul.f32.gmra.mxu0 %v5072
      %v7652 = vpop.f32.mrf.mxu0
      %v7653 = vadd.f32 0.0, %v7652
      %7654 = vmatmul.f32.gmra.mxu0 %v5075
      %v7655 = vpop.f32.mrf.mxu0
      %v7656 = vadd.f32 0.0, %v7655
      %7657 = vmatmul.f32.gmra.mxu0 %v5078
      %v7658 = vpop.f32.mrf.mxu0
      %v7659 = vadd.f32 0.0, %v7658
      %7660 = vmatmul.f32.gmra.mxu0 %v5081
      %v7661 = vpop.f32.mrf.mxu0
      %v7662 = vadd.f32 0.0, %v7661
      %7663 = vmatmul.f32.gmra.mxu0 %v5084
      %v7664 = vpop.f32.mrf.mxu0
      %v7665 = vadd.f32 0.0, %v7664
      %7666 = vmatmul.f32.gmra.mxu0 %v5087
      %v7667 = vpop.f32.mrf.mxu0
      %v7668 = vadd.f32 0.0, %v7667
      %7669 = vmatmul.f32.gmra.mxu0 %v5090
      %v7670 = vpop.f32.mrf.mxu0
      %v7671 = vadd.f32 0.0, %v7670
      %7672 = vmatmul.f32.gmra.mxu0 %v5093
      %v7673 = vpop.f32.mrf.mxu0
      %v7674 = vadd.f32 0.0, %v7673
      %7675 = vmatmul.f32.gmra.mxu0 %v5096
      %v7676 = vpop.f32.mrf.mxu0
      %v7677 = vadd.f32 0.0, %v7676
      %7678 = vmatmul.f32.gmra.mxu0 %v5099
      %v7679 = vpop.f32.mrf.mxu0
      %v7680 = vadd.f32 0.0, %v7679
      %7681 = vmatmul.f32.gmra.mxu0 %v5102
      %v7682 = vpop.f32.mrf.mxu0
      %v7683 = vadd.f32 0.0, %v7682
      %7684 = vmatmul.f32.gmra.mxu0 %v5105
      %v7685 = vpop.f32.mrf.mxu0
      %v7686 = vadd.f32 0.0, %v7685
      %7687 = vmatmul.f32.gmra.mxu0 %v5108
      %v7688 = vpop.f32.mrf.mxu0
      %v7689 = vadd.f32 0.0, %v7688
      %7690 = vmatmul.f32.gmra.mxu0 %v5111
      %v7691 = vpop.f32.mrf.mxu0
      %v7692 = vadd.f32 0.0, %v7691
      %7693 = vmatmul.f32.gmra.mxu0 %v5114
      %v7694 = vpop.f32.mrf.mxu0
      %v7695 = vadd.f32 0.0, %v7694
      %7696 = vdwg.mxu0
      %v7697 = vld [vmem:[%s75] sm:$0xff]
      %v7698 = vld [vmem:[%s75 + $0x8] sm:$0xff]
      %v7699 = vld [vmem:[%s75 + $0x10] sm:$0xff]
      %v7700 = vld [vmem:[%s75 + $0x18] sm:$0xff]
      %v7701 = vld [vmem:[%s75 + $0x20] sm:$0xff]
      %v7702 = vld [vmem:[%s75 + $0x28] sm:$0xff]
      %v7703 = vld [vmem:[%s75 + $0x30] sm:$0xff]
      %v7704 = vld [vmem:[%s75 + $0x38] sm:$0xff]
      %v7705 = vld [vmem:[%s75 + $0x40] sm:$0xff]
      %v7706 = vld [vmem:[%s75 + $0x48] sm:$0xff]
      %v7707 = vld [vmem:[%s75 + $0x50] sm:$0xff]
      %v7708 = vld [vmem:[%s75 + $0x58] sm:$0xff]
      %v7709 = vld [vmem:[%s75 + $0x60] sm:$0xff]
      %v7710 = vld [vmem:[%s75 + $0x68] sm:$0xff]
      %v7711 = vld [vmem:[%s75 + $0x70] sm:$0xff]
      %v7712 = vld [vmem:[%s75 + $0x78] sm:$0xff]
      %v7713 = vld [vmem:[%s75 + $0x80] sm:$0xff]
      %v7714 = vld [vmem:[%s75 + $0x88] sm:$0xff]
      %v7715 = vld [vmem:[%s75 + $0x90] sm:$0xff]
      %v7716 = vld [vmem:[%s75 + $0x98] sm:$0xff]
      %v7717 = vld [vmem:[%s75 + $0xa0] sm:$0xff]
      %v7718 = vld [vmem:[%s75 + $0xa8] sm:$0xff]
      %v7719 = vld [vmem:[%s75 + $0xb0] sm:$0xff]
      %v7720 = vld [vmem:[%s75 + $0xb8] sm:$0xff]
      %v7721 = vld [vmem:[%s75 + $0xc0] sm:$0xff]
      %v7722 = vld [vmem:[%s75 + $0xc8] sm:$0xff]
      %v7723 = vld [vmem:[%s75 + $0xd0] sm:$0xff]
      %v7724 = vld [vmem:[%s75 + $0xd8] sm:$0xff]
      %v7725 = vld [vmem:[%s75 + $0xe0] sm:$0xff]
      %v7726 = vld [vmem:[%s75 + $0xe8] sm:$0xff]
      %v7727 = vld [vmem:[%s75 + $0xf0] sm:$0xff]
      %v7728 = vld [vmem:[%s75 + $0xf8] sm:$0xff]
      %v7729 = vld [vmem:[%s77] sm:$0xff]
      %v7730 = vld [vmem:[%s77 + $0x8] sm:$0xff]
      %v7731 = vld [vmem:[%s77 + $0x10] sm:$0xff]
      %v7732 = vld [vmem:[%s77 + $0x18] sm:$0xff]
      %v7733 = vld [vmem:[%s77 + $0x20] sm:$0xff]
      %v7734 = vld [vmem:[%s77 + $0x28] sm:$0xff]
      %v7735 = vld [vmem:[%s77 + $0x30] sm:$0xff]
      %v7736 = vld [vmem:[%s77 + $0x38] sm:$0xff]
      %v7737 = vld [vmem:[%s77 + $0x40] sm:$0xff]
      %v7738 = vld [vmem:[%s77 + $0x48] sm:$0xff]
      %v7739 = vld [vmem:[%s77 + $0x50] sm:$0xff]
      %v7740 = vld [vmem:[%s77 + $0x58] sm:$0xff]
      %v7741 = vld [vmem:[%s77 + $0x60] sm:$0xff]
      %v7742 = vld [vmem:[%s77 + $0x68] sm:$0xff]
      %v7743 = vld [vmem:[%s77 + $0x70] sm:$0xff]
      %v7744 = vld [vmem:[%s77 + $0x78] sm:$0xff]
      %v7745 = vld [vmem:[%s77 + $0x80] sm:$0xff]
      %v7746 = vld [vmem:[%s77 + $0x88] sm:$0xff]
      %v7747 = vld [vmem:[%s77 + $0x90] sm:$0xff]
      %v7748 = vld [vmem:[%s77 + $0x98] sm:$0xff]
      %v7749 = vld [vmem:[%s77 + $0xa0] sm:$0xff]
      %v7750 = vld [vmem:[%s77 + $0xa8] sm:$0xff]
      %v7751 = vld [vmem:[%s77 + $0xb0] sm:$0xff]
      %v7752 = vld [vmem:[%s77 + $0xb8] sm:$0xff]
      %v7753 = vld [vmem:[%s77 + $0xc0] sm:$0xff]
      %v7754 = vld [vmem:[%s77 + $0xc8] sm:$0xff]
      %v7755 = vld [vmem:[%s77 + $0xd0] sm:$0xff]
      %v7756 = vld [vmem:[%s77 + $0xd8] sm:$0xff]
      %v7757 = vld [vmem:[%s77 + $0xe0] sm:$0xff]
      %v7758 = vld [vmem:[%s77 + $0xe8] sm:$0xff]
      %v7759 = vld [vmem:[%s77 + $0xf0] sm:$0xff]
      %v7760 = vld [vmem:[%s77 + $0xf8] sm:$0xff]
      %7762 = vset.pattern.permute.xlu0 0
      %7763 = vperm.xlu0 %7762, %v7729
      %v7764 = vpop.permute.xlu0 %7763
      %7767 = vset.pattern.permute.xlu0 0
      %7768 = vperm.xlu0 %7767, %v7730
      %v7769 = vpop.permute.xlu0 %7768
      %7772 = vset.pattern.permute.xlu0 0
      %7773 = vperm.xlu0 %7772, %v7731
      %v7774 = vpop.permute.xlu0 %7773
      %7777 = vset.pattern.permute.xlu0 0
      %7778 = vperm.xlu0 %7777, %v7732
      %v7779 = vpop.permute.xlu0 %7778
      %7782 = vset.pattern.permute.xlu0 0
      %7783 = vperm.xlu0 %7782, %v7733
      %v7784 = vpop.permute.xlu0 %7783
      %7787 = vset.pattern.permute.xlu0 0
      %7788 = vperm.xlu0 %7787, %v7734
      %v7789 = vpop.permute.xlu0 %7788
      %7792 = vset.pattern.permute.xlu0 0
      %7793 = vperm.xlu0 %7792, %v7735
      %v7794 = vpop.permute.xlu0 %7793
      %7797 = vset.pattern.permute.xlu0 0
      %7798 = vperm.xlu0 %7797, %v7736
      %v7799 = vpop.permute.xlu0 %7798
      %7802 = vset.pattern.permute.xlu0 0
      %7803 = vperm.xlu0 %7802, %v7737
      %v7804 = vpop.permute.xlu0 %7803
      %7807 = vset.pattern.permute.xlu0 0
      %7808 = vperm.xlu0 %7807, %v7738
      %v7809 = vpop.permute.xlu0 %7808
      %7812 = vset.pattern.permute.xlu0 0
      %7813 = vperm.xlu0 %7812, %v7739
      %v7814 = vpop.permute.xlu0 %7813
      %7817 = vset.pattern.permute.xlu0 0
      %7818 = vperm.xlu0 %7817, %v7740
      %v7819 = vpop.permute.xlu0 %7818
      %7822 = vset.pattern.permute.xlu0 0
      %7823 = vperm.xlu0 %7822, %v7741
      %v7824 = vpop.permute.xlu0 %7823
      %7827 = vset.pattern.permute.xlu0 0
      %7828 = vperm.xlu0 %7827, %v7742
      %v7829 = vpop.permute.xlu0 %7828
      %7832 = vset.pattern.permute.xlu0 0
      %7833 = vperm.xlu0 %7832, %v7743
      %v7834 = vpop.permute.xlu0 %7833
      %7837 = vset.pattern.permute.xlu0 0
      %7838 = vperm.xlu0 %7837, %v7744
      %v7839 = vpop.permute.xlu0 %7838
      %7842 = vset.pattern.permute.xlu0 0
      %7843 = vperm.xlu0 %7842, %v7745
      %v7844 = vpop.permute.xlu0 %7843
      %7847 = vset.pattern.permute.xlu0 0
      %7848 = vperm.xlu0 %7847, %v7746
      %v7849 = vpop.permute.xlu0 %7848
      %7852 = vset.pattern.permute.xlu0 0
      %7853 = vperm.xlu0 %7852, %v7747
      %v7854 = vpop.permute.xlu0 %7853
      %7857 = vset.pattern.permute.xlu0 0
      %7858 = vperm.xlu0 %7857, %v7748
      %v7859 = vpop.permute.xlu0 %7858
      %7862 = vset.pattern.permute.xlu0 0
      %7863 = vperm.xlu0 %7862, %v7749
      %v7864 = vpop.permute.xlu0 %7863
      %7867 = vset.pattern.permute.xlu0 0
      %7868 = vperm.xlu0 %7867, %v7750
      %v7869 = vpop.permute.xlu0 %7868
      %7872 = vset.pattern.permute.xlu0 0
      %7873 = vperm.xlu0 %7872, %v7751
      %v7874 = vpop.permute.xlu0 %7873
      %7877 = vset.pattern.permute.xlu0 0
      %7878 = vperm.xlu0 %7877, %v7752
      %v7879 = vpop.permute.xlu0 %7878
      %7882 = vset.pattern.permute.xlu0 0
      %7883 = vperm.xlu0 %7882, %v7753
      %v7884 = vpop.permute.xlu0 %7883
      %7887 = vset.pattern.permute.xlu0 0
      %7888 = vperm.xlu0 %7887, %v7754
      %v7889 = vpop.permute.xlu0 %7888
      %7892 = vset.pattern.permute.xlu0 0
      %7893 = vperm.xlu0 %7892, %v7755
      %v7894 = vpop.permute.xlu0 %7893
      %7897 = vset.pattern.permute.xlu0 0
      %7898 = vperm.xlu0 %7897, %v7756
      %v7899 = vpop.permute.xlu0 %7898
      %7902 = vset.pattern.permute.xlu0 0
      %7903 = vperm.xlu0 %7902, %v7757
      %v7904 = vpop.permute.xlu0 %7903
      %7907 = vset.pattern.permute.xlu0 0
      %7908 = vperm.xlu0 %7907, %v7758
      %v7909 = vpop.permute.xlu0 %7908
      %7912 = vset.pattern.permute.xlu0 0
      %7913 = vperm.xlu0 %7912, %v7759
      %v7914 = vpop.permute.xlu0 %7913
      %7917 = vset.pattern.permute.xlu0 0
      %7918 = vperm.xlu0 %7917, %v7760
      %v7919 = vpop.permute.xlu0 %7918
      %7921 = vmatpush.msra.mxu0 %v7695
      %7922 = vmatpush.msra.mxu0 %v7692
      %7923 = vmatpush.msra.mxu0 %v7689
      %7924 = vmatpush.msra.mxu0 %v7686
      %7925 = vmatpush.msra.mxu0 %v7683
      %7926 = vmatpush.msra.mxu0 %v7680
      %7927 = vmatpush.msra.mxu0 %v7677
      %7928 = vmatpush.msra.mxu0 %v7674
      %7929 = vmatpush.msra.mxu0 %v7671
      %7930 = vmatpush.msra.mxu0 %v7668
      %7931 = vmatpush.msra.mxu0 %v7665
      %7932 = vmatpush.msra.mxu0 %v7662
      %7933 = vmatpush.msra.mxu0 %v7659
      %7934 = vmatpush.msra.mxu0 %v7656
      %7935 = vmatpush.msra.mxu0 %v7653
      %7936 = vmatpush.msra.mxu0 %v7650
      %7937 = vmatmul.f32.gmra.mxu0 %v7697
      %v7938 = vpop.f32.mrf.mxu0
      %v7939 = vadd.f32 %v7764, %v7938
      %7940 = vmatmul.f32.gmra.mxu0 %v7698
      %v7941 = vpop.f32.mrf.mxu0
      %v7942 = vadd.f32 %v7769, %v7941
      %7943 = vmatmul.f32.gmra.mxu0 %v7699
      %v7944 = vpop.f32.mrf.mxu0
      %v7945 = vadd.f32 %v7774, %v7944
      %7946 = vmatmul.f32.gmra.mxu0 %v7700
      %v7947 = vpop.f32.mrf.mxu0
      %v7948 = vadd.f32 %v7779, %v7947
      %7949 = vmatmul.f32.gmra.mxu0 %v7701
      %v7950 = vpop.f32.mrf.mxu0
      %v7951 = vadd.f32 %v7784, %v7950
      %7952 = vmatmul.f32.gmra.mxu0 %v7702
      %v7953 = vpop.f32.mrf.mxu0
      %v7954 = vadd.f32 %v7789, %v7953
      %7955 = vmatmul.f32.gmra.mxu0 %v7703
      %v7956 = vpop.f32.mrf.mxu0
      %v7957 = vadd.f32 %v7794, %v7956
      %7958 = vmatmul.f32.gmra.mxu0 %v7704
      %v7959 = vpop.f32.mrf.mxu0
      %v7960 = vadd.f32 %v7799, %v7959
      %7961 = vmatmul.f32.gmra.mxu0 %v7705
      %v7962 = vpop.f32.mrf.mxu0
      %v7963 = vadd.f32 %v7804, %v7962
      %7964 = vmatmul.f32.gmra.mxu0 %v7706
      %v7965 = vpop.f32.mrf.mxu0
      %v7966 = vadd.f32 %v7809, %v7965
      %7967 = vmatmul.f32.gmra.mxu0 %v7707
      %v7968 = vpop.f32.mrf.mxu0
      %v7969 = vadd.f32 %v7814, %v7968
      %7970 = vmatmul.f32.gmra.mxu0 %v7708
      %v7971 = vpop.f32.mrf.mxu0
      %v7972 = vadd.f32 %v7819, %v7971
      %7973 = vmatmul.f32.gmra.mxu0 %v7709
      %v7974 = vpop.f32.mrf.mxu0
      %v7975 = vadd.f32 %v7824, %v7974
      %7976 = vmatmul.f32.gmra.mxu0 %v7710
      %v7977 = vpop.f32.mrf.mxu0
      %v7978 = vadd.f32 %v7829, %v7977
      %7979 = vmatmul.f32.gmra.mxu0 %v7711
      %v7980 = vpop.f32.mrf.mxu0
      %v7981 = vadd.f32 %v7834, %v7980
      %7982 = vmatmul.f32.gmra.mxu0 %v7712
      %v7983 = vpop.f32.mrf.mxu0
      %v7984 = vadd.f32 %v7839, %v7983
      %7985 = vmatmul.f32.gmra.mxu0 %v7713
      %v7986 = vpop.f32.mrf.mxu0
      %v7987 = vadd.f32 %v7844, %v7986
      %7988 = vmatmul.f32.gmra.mxu0 %v7714
      %v7989 = vpop.f32.mrf.mxu0
      %v7990 = vadd.f32 %v7849, %v7989
      %7991 = vmatmul.f32.gmra.mxu0 %v7715
      %v7992 = vpop.f32.mrf.mxu0
      %v7993 = vadd.f32 %v7854, %v7992
      %7994 = vmatmul.f32.gmra.mxu0 %v7716
      %v7995 = vpop.f32.mrf.mxu0
      %v7996 = vadd.f32 %v7859, %v7995
      %7997 = vmatmul.f32.gmra.mxu0 %v7717
      %v7998 = vpop.f32.mrf.mxu0
      %v7999 = vadd.f32 %v7864, %v7998
      %8000 = vmatmul.f32.gmra.mxu0 %v7718
      %v8001 = vpop.f32.mrf.mxu0
      %v8002 = vadd.f32 %v7869, %v8001
      %8003 = vmatmul.f32.gmra.mxu0 %v7719
      %v8004 = vpop.f32.mrf.mxu0
      %v8005 = vadd.f32 %v7874, %v8004
      %8006 = vmatmul.f32.gmra.mxu0 %v7720
      %v8007 = vpop.f32.mrf.mxu0
      %v8008 = vadd.f32 %v7879, %v8007
      %8009 = vmatmul.f32.gmra.mxu0 %v7721
      %v8010 = vpop.f32.mrf.mxu0
      %v8011 = vadd.f32 %v7884, %v8010
      %8012 = vmatmul.f32.gmra.mxu0 %v7722
      %v8013 = vpop.f32.mrf.mxu0
      %v8014 = vadd.f32 %v7889, %v8013
      %8015 = vmatmul.f32.gmra.mxu0 %v7723
      %v8016 = vpop.f32.mrf.mxu0
      %v8017 = vadd.f32 %v7894, %v8016
      %8018 = vmatmul.f32.gmra.mxu0 %v7724
      %v8019 = vpop.f32.mrf.mxu0
      %v8020 = vadd.f32 %v7899, %v8019
      %8021 = vmatmul.f32.gmra.mxu0 %v7725
      %v8022 = vpop.f32.mrf.mxu0
      %v8023 = vadd.f32 %v7904, %v8022
      %8024 = vmatmul.f32.gmra.mxu0 %v7726
      %v8025 = vpop.f32.mrf.mxu0
      %v8026 = vadd.f32 %v7909, %v8025
      %8027 = vmatmul.f32.gmra.mxu0 %v7727
      %v8028 = vpop.f32.mrf.mxu0
      %v8029 = vadd.f32 %v7914, %v8028
      %8030 = vmatmul.f32.gmra.mxu0 %v7728
      %v8031 = vpop.f32.mrf.mxu0
      %v8032 = vadd.f32 %v7919, %v8031
      %8033 = vdwg.mxu0
      %v8034 = vadd.f32 %v7596, %v7939
      %v8035 = vadd.f32 %v7597, %v7942
      %v8036 = vadd.f32 %v7598, %v7945
      %v8037 = vadd.f32 %v7599, %v7948
      %v8038 = vadd.f32 %v7600, %v7951
      %v8039 = vadd.f32 %v7601, %v7954
      %v8040 = vadd.f32 %v7602, %v7957
      %v8041 = vadd.f32 %v7603, %v7960
      %v8042 = vadd.f32 %v7604, %v7963
      %v8043 = vadd.f32 %v7605, %v7966
      %v8044 = vadd.f32 %v7606, %v7969
      %v8045 = vadd.f32 %v7607, %v7972
      %v8046 = vadd.f32 %v7608, %v7975
      %v8047 = vadd.f32 %v7609, %v7978
      %v8048 = vadd.f32 %v7610, %v7981
      %v8049 = vadd.f32 %v7611, %v7984
      %v8050 = vadd.f32 %v7612, %v7987
      %v8051 = vadd.f32 %v7613, %v7990
      %v8052 = vadd.f32 %v7614, %v7993
      %v8053 = vadd.f32 %v7615, %v7996
      %v8054 = vadd.f32 %v7616, %v7999
      %v8055 = vadd.f32 %v7617, %v8002
      %v8056 = vadd.f32 %v7618, %v8005
      %v8057 = vadd.f32 %v7619, %v8008
      %v8058 = vadd.f32 %v7620, %v8011
      %v8059 = vadd.f32 %v7621, %v8014
      %v8060 = vadd.f32 %v7622, %v8017
      %v8061 = vadd.f32 %v7623, %v8020
      %v8062 = vadd.f32 %v7624, %v8023
      %v8063 = vadd.f32 %v7625, %v8026
      %v8064 = vadd.f32 %v7626, %v8029
      %v8065 = vadd.f32 %v7627, %v8032
      %v8066 = vmax.f32 %v8034, 0.0
      %v8067 = vmax.f32 %v8035, 0.0
      %v8068 = vmax.f32 %v8036, 0.0
      %v8069 = vmax.f32 %v8037, 0.0
      %v8070 = vmax.f32 %v8038, 0.0
      %v8071 = vmax.f32 %v8039, 0.0
      %v8072 = vmax.f32 %v8040, 0.0
      %v8073 = vmax.f32 %v8041, 0.0
      %v8074 = vmax.f32 %v8042, 0.0
      %v8075 = vmax.f32 %v8043, 0.0
      %v8076 = vmax.f32 %v8044, 0.0
      %v8077 = vmax.f32 %v8045, 0.0
      %v8078 = vmax.f32 %v8046, 0.0
      %v8079 = vmax.f32 %v8047, 0.0
      %v8080 = vmax.f32 %v8048, 0.0
      %v8081 = vmax.f32 %v8049, 0.0
      %v8082 = vmax.f32 %v8050, 0.0
      %v8083 = vmax.f32 %v8051, 0.0
      %v8084 = vmax.f32 %v8052, 0.0
      %v8085 = vmax.f32 %v8053, 0.0
      %v8086 = vmax.f32 %v8054, 0.0
      %v8087 = vmax.f32 %v8055, 0.0
      %v8088 = vmax.f32 %v8056, 0.0
      %v8089 = vmax.f32 %v8057, 0.0
      %v8090 = vmax.f32 %v8058, 0.0
      %v8091 = vmax.f32 %v8059, 0.0
      %v8092 = vmax.f32 %v8060, 0.0
      %v8093 = vmax.f32 %v8061, 0.0
      %v8094 = vmax.f32 %v8062, 0.0
      %v8095 = vmax.f32 %v8063, 0.0
      %v8096 = vmax.f32 %v8064, 0.0
      %v8097 = vmax.f32 %v8065, 0.0
      %v8098 = vsel %vm6050, %v8066, 0.0
      %8099 = vadd.xlane.f32.xlu0 %v8098
      %v8100 = vpop.xlane.xlu0 %8099
      %v8101 = vsel %vm6050, %v8067, 0.0
      %8102 = vadd.xlane.f32.xlu0 %v8101
      %v8103 = vpop.xlane.xlu0 %8102
      %v8104 = vsel %vm6050, %v8068, 0.0
      %8105 = vadd.xlane.f32.xlu0 %v8104
      %v8106 = vpop.xlane.xlu0 %8105
      %v8107 = vsel %vm6050, %v8069, 0.0
      %8108 = vadd.xlane.f32.xlu0 %v8107
      %v8109 = vpop.xlane.xlu0 %8108
      %v8110 = vsel %vm6050, %v8070, 0.0
      %8111 = vadd.xlane.f32.xlu0 %v8110
      %v8112 = vpop.xlane.xlu0 %8111
      %v8113 = vsel %vm6050, %v8071, 0.0
      %8114 = vadd.xlane.f32.xlu0 %v8113
      %v8115 = vpop.xlane.xlu0 %8114
      %v8116 = vsel %vm6050, %v8072, 0.0
      %8117 = vadd.xlane.f32.xlu0 %v8116
      %v8118 = vpop.xlane.xlu0 %8117
      %v8119 = vsel %vm6050, %v8073, 0.0
      %8120 = vadd.xlane.f32.xlu0 %v8119
      %v8121 = vpop.xlane.xlu0 %8120
      %v8122 = vsel %vm6050, %v8074, 0.0
      %8123 = vadd.xlane.f32.xlu0 %v8122
      %v8124 = vpop.xlane.xlu0 %8123
      %v8125 = vsel %vm6050, %v8075, 0.0
      %8126 = vadd.xlane.f32.xlu0 %v8125
      %v8127 = vpop.xlane.xlu0 %8126
      %v8128 = vsel %vm6050, %v8076, 0.0
      %8129 = vadd.xlane.f32.xlu0 %v8128
      %v8130 = vpop.xlane.xlu0 %8129
      %v8131 = vsel %vm6050, %v8077, 0.0
      %8132 = vadd.xlane.f32.xlu0 %v8131
      %v8133 = vpop.xlane.xlu0 %8132
      %v8134 = vsel %vm6050, %v8078, 0.0
      %8135 = vadd.xlane.f32.xlu0 %v8134
      %v8136 = vpop.xlane.xlu0 %8135
      %v8137 = vsel %vm6050, %v8079, 0.0
      %8138 = vadd.xlane.f32.xlu0 %v8137
      %v8139 = vpop.xlane.xlu0 %8138
      %v8140 = vsel %vm6050, %v8080, 0.0
      %8141 = vadd.xlane.f32.xlu0 %v8140
      %v8142 = vpop.xlane.xlu0 %8141
      %v8143 = vsel %vm6050, %v8081, 0.0
      %8144 = vadd.xlane.f32.xlu0 %v8143
      %v8145 = vpop.xlane.xlu0 %8144
      %v8146 = vsel %vm6050, %v8082, 0.0
      %8147 = vadd.xlane.f32.xlu0 %v8146
      %v8148 = vpop.xlane.xlu0 %8147
      %v8149 = vsel %vm6050, %v8083, 0.0
      %8150 = vadd.xlane.f32.xlu0 %v8149
      %v8151 = vpop.xlane.xlu0 %8150
      %v8152 = vsel %vm6050, %v8084, 0.0
      %8153 = vadd.xlane.f32.xlu0 %v8152
      %v8154 = vpop.xlane.xlu0 %8153
      %v8155 = vsel %vm6050, %v8085, 0.0
      %8156 = vadd.xlane.f32.xlu0 %v8155
      %v8157 = vpop.xlane.xlu0 %8156
      %v8158 = vsel %vm6050, %v8086, 0.0
      %8159 = vadd.xlane.f32.xlu0 %v8158
      %v8160 = vpop.xlane.xlu0 %8159
      %v8161 = vsel %vm6050, %v8087, 0.0
      %8162 = vadd.xlane.f32.xlu0 %v8161
      %v8163 = vpop.xlane.xlu0 %8162
      %v8164 = vsel %vm6050, %v8088, 0.0
      %8165 = vadd.xlane.f32.xlu0 %v8164
      %v8166 = vpop.xlane.xlu0 %8165
      %v8167 = vsel %vm6050, %v8089, 0.0
      %8168 = vadd.xlane.f32.xlu0 %v8167
      %v8169 = vpop.xlane.xlu0 %8168
      %v8170 = vsel %vm6050, %v8090, 0.0
      %8171 = vadd.xlane.f32.xlu0 %v8170
      %v8172 = vpop.xlane.xlu0 %8171
      %v8173 = vsel %vm6050, %v8091, 0.0
      %8174 = vadd.xlane.f32.xlu0 %v8173
      %v8175 = vpop.xlane.xlu0 %8174
      %v8176 = vsel %vm6050, %v8092, 0.0
      %8177 = vadd.xlane.f32.xlu0 %v8176
      %v8178 = vpop.xlane.xlu0 %8177
      %v8179 = vsel %vm6050, %v8093, 0.0
      %8180 = vadd.xlane.f32.xlu0 %v8179
      %v8181 = vpop.xlane.xlu0 %8180
      %v8182 = vsel %vm6050, %v8094, 0.0
      %8183 = vadd.xlane.f32.xlu0 %v8182
      %v8184 = vpop.xlane.xlu0 %8183
      %v8185 = vsel %vm6050, %v8095, 0.0
      %8186 = vadd.xlane.f32.xlu0 %v8185
      %v8187 = vpop.xlane.xlu0 %8186
      %v8188 = vsel %vm6050, %v8096, 0.0
      %8189 = vadd.xlane.f32.xlu0 %v8188
      %v8190 = vpop.xlane.xlu0 %8189
      %v8191 = vsel %vm6050, %v8097, 0.0
      %8192 = vadd.xlane.f32.xlu0 %v8191
      %v8193 = vpop.xlane.xlu0 %8192
      %v8194 = vrcp.pop 2.0
      %v8195 = vmul.f32 2.0, %v8194
      %v8196 = vsub.f32 1.0, %v8195
      %v8197 = vmul.f32 %v8194, %v8196
      %v8198 = vadd.f32 %v8194, %v8197
      %vm8199 = vweird.f32 %v8194
      %v8200 = vsel %vm8199, %v8194, %v8198
      %v8201 = vmul.f32 %v8100, %v8200
      %v8202 = vmul.f32 %v8103, %v8200
      %v8203 = vmul.f32 %v8106, %v8200
      %v8204 = vmul.f32 %v8109, %v8200
      %v8205 = vmul.f32 %v8112, %v8200
      %v8206 = vmul.f32 %v8115, %v8200
      %v8207 = vmul.f32 %v8118, %v8200
      %v8208 = vmul.f32 %v8121, %v8200
      %v8209 = vmul.f32 %v8124, %v8200
      %v8210 = vmul.f32 %v8127, %v8200
      %v8211 = vmul.f32 %v8130, %v8200
      %v8212 = vmul.f32 %v8133, %v8200
      %v8213 = vmul.f32 %v8136, %v8200
      %v8214 = vmul.f32 %v8139, %v8200
      %v8215 = vmul.f32 %v8142, %v8200
      %v8216 = vmul.f32 %v8145, %v8200
      %v8217 = vmul.f32 %v8148, %v8200
      %v8218 = vmul.f32 %v8151, %v8200
      %v8219 = vmul.f32 %v8154, %v8200
      %v8220 = vmul.f32 %v8157, %v8200
      %v8221 = vmul.f32 %v8160, %v8200
      %v8222 = vmul.f32 %v8163, %v8200
      %v8223 = vmul.f32 %v8166, %v8200
      %v8224 = vmul.f32 %v8169, %v8200
      %v8225 = vmul.f32 %v8172, %v8200
      %v8226 = vmul.f32 %v8175, %v8200
      %v8227 = vmul.f32 %v8178, %v8200
      %v8228 = vmul.f32 %v8181, %v8200
      %v8229 = vmul.f32 %v8184, %v8200
      %v8230 = vmul.f32 %v8187, %v8200
      %v8231 = vmul.f32 %v8190, %v8200
      %v8232 = vmul.f32 %v8193, %v8200
      %v8233 = vld [vmem:[%s81] sm:$0xff]
      %v8234 = vld [vmem:[%s81 + $0x8] sm:$0xff]
      %v8235 = vld [vmem:[%s81 + $0x10] sm:$0xff]
      %v8236 = vld [vmem:[%s81 + $0x18] sm:$0xff]
      %v8237 = vld [vmem:[%s81 + $0x20] sm:$0xff]
      %v8238 = vld [vmem:[%s81 + $0x28] sm:$0xff]
      %v8239 = vld [vmem:[%s81 + $0x30] sm:$0xff]
      %v8240 = vld [vmem:[%s81 + $0x38] sm:$0xff]
      %v8241 = vld [vmem:[%s81 + $0x40] sm:$0xff]
      %v8242 = vld [vmem:[%s81 + $0x48] sm:$0xff]
      %v8243 = vld [vmem:[%s81 + $0x50] sm:$0xff]
      %v8244 = vld [vmem:[%s81 + $0x58] sm:$0xff]
      %v8245 = vld [vmem:[%s81 + $0x60] sm:$0xff]
      %v8246 = vld [vmem:[%s81 + $0x68] sm:$0xff]
      %v8247 = vld [vmem:[%s81 + $0x70] sm:$0xff]
      %v8248 = vld [vmem:[%s81 + $0x78] sm:$0xff]
      %v8249 = vld [vmem:[%s81 + $0x80] sm:$0xff]
      %v8250 = vld [vmem:[%s81 + $0x88] sm:$0xff]
      %v8251 = vld [vmem:[%s81 + $0x90] sm:$0xff]
      %v8252 = vld [vmem:[%s81 + $0x98] sm:$0xff]
      %v8253 = vld [vmem:[%s81 + $0xa0] sm:$0xff]
      %v8254 = vld [vmem:[%s81 + $0xa8] sm:$0xff]
      %v8255 = vld [vmem:[%s81 + $0xb0] sm:$0xff]
      %v8256 = vld [vmem:[%s81 + $0xb8] sm:$0xff]
      %v8257 = vld [vmem:[%s81 + $0xc0] sm:$0xff]
      %v8258 = vld [vmem:[%s81 + $0xc8] sm:$0xff]
      %v8259 = vld [vmem:[%s81 + $0xd0] sm:$0xff]
      %v8260 = vld [vmem:[%s81 + $0xd8] sm:$0xff]
      %v8261 = vld [vmem:[%s81 + $0xe0] sm:$0xff]
      %v8262 = vld [vmem:[%s81 + $0xe8] sm:$0xff]
      %v8263 = vld [vmem:[%s81 + $0xf0] sm:$0xff]
      %v8264 = vld [vmem:[%s81 + $0xf8] sm:$0xff]
      %v8265 = vld [vmem:[%s81 + $0x100] sm:$0xff]
      %v8266 = vld [vmem:[%s81 + $0x108] sm:$0xff]
      %v8267 = vld [vmem:[%s81 + $0x110] sm:$0xff]
      %v8268 = vld [vmem:[%s81 + $0x118] sm:$0xff]
      %v8269 = vld [vmem:[%s81 + $0x120] sm:$0xff]
      %v8270 = vld [vmem:[%s81 + $0x128] sm:$0xff]
      %v8271 = vld [vmem:[%s81 + $0x130] sm:$0xff]
      %v8272 = vld [vmem:[%s81 + $0x138] sm:$0xff]
      %v8273 = vld [vmem:[%s81 + $0x140] sm:$0xff]
      %v8274 = vld [vmem:[%s81 + $0x148] sm:$0xff]
      %v8275 = vld [vmem:[%s81 + $0x150] sm:$0xff]
      %v8276 = vld [vmem:[%s81 + $0x158] sm:$0xff]
      %v8277 = vld [vmem:[%s81 + $0x160] sm:$0xff]
      %v8278 = vld [vmem:[%s81 + $0x168] sm:$0xff]
      %v8279 = vld [vmem:[%s81 + $0x170] sm:$0xff]
      %v8280 = vld [vmem:[%s81 + $0x178] sm:$0xff]
      %v8281 = vld [vmem:[%s81 + $0x180] sm:$0xff]
      %v8282 = vld [vmem:[%s81 + $0x188] sm:$0xff]
      %v8283 = vld [vmem:[%s81 + $0x190] sm:$0xff]
      %v8284 = vld [vmem:[%s81 + $0x198] sm:$0xff]
      %v8285 = vld [vmem:[%s81 + $0x1a0] sm:$0xff]
      %v8286 = vld [vmem:[%s81 + $0x1a8] sm:$0xff]
      %v8287 = vld [vmem:[%s81 + $0x1b0] sm:$0xff]
      %v8288 = vld [vmem:[%s81 + $0x1b8] sm:$0xff]
      %v8289 = vld [vmem:[%s81 + $0x1c0] sm:$0xff]
      %v8290 = vld [vmem:[%s81 + $0x1c8] sm:$0xff]
      %v8291 = vld [vmem:[%s81 + $0x1d0] sm:$0xff]
      %v8292 = vld [vmem:[%s81 + $0x1d8] sm:$0xff]
      %v8293 = vld [vmem:[%s81 + $0x1e0] sm:$0xff]
      %v8294 = vld [vmem:[%s81 + $0x1e8] sm:$0xff]
      %v8295 = vld [vmem:[%s81 + $0x1f0] sm:$0xff]
      %v8296 = vld [vmem:[%s81 + $0x1f8] sm:$0xff]
      %v8297 = vld [vmem:[%s83] sm:$0xff]
      %v8298 = vld [vmem:[%s83 + $0x8] sm:$0xff]
      %v8299 = vld [vmem:[%s83 + $0x10] sm:$0xff]
      %v8300 = vld [vmem:[%s83 + $0x18] sm:$0xff]
      %v8301 = vld [vmem:[%s83 + $0x20] sm:$0xff]
      %v8302 = vld [vmem:[%s83 + $0x28] sm:$0xff]
      %v8303 = vld [vmem:[%s83 + $0x30] sm:$0xff]
      %v8304 = vld [vmem:[%s83 + $0x38] sm:$0xff]
      %v8305 = vld [vmem:[%s83 + $0x40] sm:$0xff]
      %v8306 = vld [vmem:[%s83 + $0x48] sm:$0xff]
      %v8307 = vld [vmem:[%s83 + $0x50] sm:$0xff]
      %v8308 = vld [vmem:[%s83 + $0x58] sm:$0xff]
      %v8309 = vld [vmem:[%s83 + $0x60] sm:$0xff]
      %v8310 = vld [vmem:[%s83 + $0x68] sm:$0xff]
      %v8311 = vld [vmem:[%s83 + $0x70] sm:$0xff]
      %v8312 = vld [vmem:[%s83 + $0x78] sm:$0xff]
      %v8313 = vld [vmem:[%s83 + $0x80] sm:$0xff]
      %v8314 = vld [vmem:[%s83 + $0x88] sm:$0xff]
      %v8315 = vld [vmem:[%s83 + $0x90] sm:$0xff]
      %v8316 = vld [vmem:[%s83 + $0x98] sm:$0xff]
      %v8317 = vld [vmem:[%s83 + $0xa0] sm:$0xff]
      %v8318 = vld [vmem:[%s83 + $0xa8] sm:$0xff]
      %v8319 = vld [vmem:[%s83 + $0xb0] sm:$0xff]
      %v8320 = vld [vmem:[%s83 + $0xb8] sm:$0xff]
      %v8321 = vld [vmem:[%s83 + $0xc0] sm:$0xff]
      %v8322 = vld [vmem:[%s83 + $0xc8] sm:$0xff]
      %v8323 = vld [vmem:[%s83 + $0xd0] sm:$0xff]
      %v8324 = vld [vmem:[%s83 + $0xd8] sm:$0xff]
      %v8325 = vld [vmem:[%s83 + $0xe0] sm:$0xff]
      %v8326 = vld [vmem:[%s83 + $0xe8] sm:$0xff]
      %v8327 = vld [vmem:[%s83 + $0xf0] sm:$0xff]
      %v8328 = vld [vmem:[%s83 + $0xf8] sm:$0xff]
      %8329 = vmatpush.msra.mxu0 %v8216
      %8330 = vmatpush.msra.mxu0 %v8215
      %8331 = vmatpush.msra.mxu0 %v8214
      %8332 = vmatpush.msra.mxu0 %v8213
      %8333 = vmatpush.msra.mxu0 %v8212
      %8334 = vmatpush.msra.mxu0 %v8211
      %8335 = vmatpush.msra.mxu0 %v8210
      %8336 = vmatpush.msra.mxu0 %v8209
      %8337 = vmatpush.msra.mxu0 %v8208
      %8338 = vmatpush.msra.mxu0 %v8207
      %8339 = vmatpush.msra.mxu0 %v8206
      %8340 = vmatpush.msra.mxu0 %v8205
      %8341 = vmatpush.msra.mxu0 %v8204
      %8342 = vmatpush.msra.mxu0 %v8203
      %8343 = vmatpush.msra.mxu0 %v8202
      %8344 = vmatpush.msra.mxu0 %v8201
      %8345 = vmatmul.f32.gmra.mxu0 %v8233
      %v8346 = vpop.f32.mrf.mxu0
      %v8347 = vadd.f32 %v8297, %v8346
      %8348 = vmatmul.f32.gmra.mxu0 %v8235
      %v8349 = vpop.f32.mrf.mxu0
      %v8350 = vadd.f32 %v8298, %v8349
      %8351 = vmatmul.f32.gmra.mxu0 %v8237
      %v8352 = vpop.f32.mrf.mxu0
      %v8353 = vadd.f32 %v8299, %v8352
      %8354 = vmatmul.f32.gmra.mxu0 %v8239
      %v8355 = vpop.f32.mrf.mxu0
      %v8356 = vadd.f32 %v8300, %v8355
      %8357 = vmatmul.f32.gmra.mxu0 %v8241
      %v8358 = vpop.f32.mrf.mxu0
      %v8359 = vadd.f32 %v8301, %v8358
      %8360 = vmatmul.f32.gmra.mxu0 %v8243
      %v8361 = vpop.f32.mrf.mxu0
      %v8362 = vadd.f32 %v8302, %v8361
      %8363 = vmatmul.f32.gmra.mxu0 %v8245
      %v8364 = vpop.f32.mrf.mxu0
      %v8365 = vadd.f32 %v8303, %v8364
      %8366 = vmatmul.f32.gmra.mxu0 %v8247
      %v8367 = vpop.f32.mrf.mxu0
      %v8368 = vadd.f32 %v8304, %v8367
      %8369 = vmatmul.f32.gmra.mxu0 %v8249
      %v8370 = vpop.f32.mrf.mxu0
      %v8371 = vadd.f32 %v8305, %v8370
      %8372 = vmatmul.f32.gmra.mxu0 %v8251
      %v8373 = vpop.f32.mrf.mxu0
      %v8374 = vadd.f32 %v8306, %v8373
      %8375 = vmatmul.f32.gmra.mxu0 %v8253
      %v8376 = vpop.f32.mrf.mxu0
      %v8377 = vadd.f32 %v8307, %v8376
      %8378 = vmatmul.f32.gmra.mxu0 %v8255
      %v8379 = vpop.f32.mrf.mxu0
      %v8380 = vadd.f32 %v8308, %v8379
      %8381 = vmatmul.f32.gmra.mxu0 %v8257
      %v8382 = vpop.f32.mrf.mxu0
      %v8383 = vadd.f32 %v8309, %v8382
      %8384 = vmatmul.f32.gmra.mxu0 %v8259
      %v8385 = vpop.f32.mrf.mxu0
      %v8386 = vadd.f32 %v8310, %v8385
      %8387 = vmatmul.f32.gmra.mxu0 %v8261
      %v8388 = vpop.f32.mrf.mxu0
      %v8389 = vadd.f32 %v8311, %v8388
      %8390 = vmatmul.f32.gmra.mxu0 %v8263
      %v8391 = vpop.f32.mrf.mxu0
      %v8392 = vadd.f32 %v8312, %v8391
      %8393 = vmatmul.f32.gmra.mxu0 %v8265
      %v8394 = vpop.f32.mrf.mxu0
      %v8395 = vadd.f32 %v8313, %v8394
      %8396 = vmatmul.f32.gmra.mxu0 %v8267
      %v8397 = vpop.f32.mrf.mxu0
      %v8398 = vadd.f32 %v8314, %v8397
      %8399 = vmatmul.f32.gmra.mxu0 %v8269
      %v8400 = vpop.f32.mrf.mxu0
      %v8401 = vadd.f32 %v8315, %v8400
      %8402 = vmatmul.f32.gmra.mxu0 %v8271
      %v8403 = vpop.f32.mrf.mxu0
      %v8404 = vadd.f32 %v8316, %v8403
      %8405 = vmatmul.f32.gmra.mxu0 %v8273
      %v8406 = vpop.f32.mrf.mxu0
      %v8407 = vadd.f32 %v8317, %v8406
      %8408 = vmatmul.f32.gmra.mxu0 %v8275
      %v8409 = vpop.f32.mrf.mxu0
      %v8410 = vadd.f32 %v8318, %v8409
      %8411 = vmatmul.f32.gmra.mxu0 %v8277
      %v8412 = vpop.f32.mrf.mxu0
      %v8413 = vadd.f32 %v8319, %v8412
      %8414 = vmatmul.f32.gmra.mxu0 %v8279
      %v8415 = vpop.f32.mrf.mxu0
      %v8416 = vadd.f32 %v8320, %v8415
      %8417 = vmatmul.f32.gmra.mxu0 %v8281
      %v8418 = vpop.f32.mrf.mxu0
      %v8419 = vadd.f32 %v8321, %v8418
      %8420 = vmatmul.f32.gmra.mxu0 %v8283
      %v8421 = vpop.f32.mrf.mxu0
      %v8422 = vadd.f32 %v8322, %v8421
      %8423 = vmatmul.f32.gmra.mxu0 %v8285
      %v8424 = vpop.f32.mrf.mxu0
      %v8425 = vadd.f32 %v8323, %v8424
      %8426 = vmatmul.f32.gmra.mxu0 %v8287
      %v8427 = vpop.f32.mrf.mxu0
      %v8428 = vadd.f32 %v8324, %v8427
      %8429 = vmatmul.f32.gmra.mxu0 %v8289
      %v8430 = vpop.f32.mrf.mxu0
      %v8431 = vadd.f32 %v8325, %v8430
      %8432 = vmatmul.f32.gmra.mxu0 %v8291
      %v8433 = vpop.f32.mrf.mxu0
      %v8434 = vadd.f32 %v8326, %v8433
      %8435 = vmatmul.f32.gmra.mxu0 %v8293
      %v8436 = vpop.f32.mrf.mxu0
      %v8437 = vadd.f32 %v8327, %v8436
      %8438 = vmatmul.f32.gmra.mxu0 %v8295
      %v8439 = vpop.f32.mrf.mxu0
      %v8440 = vadd.f32 %v8328, %v8439
      %8441 = vdwg.mxu0
      %8442 = vmatpush.msra.mxu0 %v8232
      %8443 = vmatpush.msra.mxu0 %v8231
      %8444 = vmatpush.msra.mxu0 %v8230
      %8445 = vmatpush.msra.mxu0 %v8229
      %8446 = vmatpush.msra.mxu0 %v8228
      %8447 = vmatpush.msra.mxu0 %v8227
      %8448 = vmatpush.msra.mxu0 %v8226
      %8449 = vmatpush.msra.mxu0 %v8225
      %8450 = vmatpush.msra.mxu0 %v8224
      %8451 = vmatpush.msra.mxu0 %v8223
      %8452 = vmatpush.msra.mxu0 %v8222
      %8453 = vmatpush.msra.mxu0 %v8221
      %8454 = vmatpush.msra.mxu0 %v8220
      %8455 = vmatpush.msra.mxu0 %v8219
      %8456 = vmatpush.msra.mxu0 %v8218
      %8457 = vmatpush.msra.mxu0 %v8217
      %8458 = vmatmul.f32.gmra.mxu0 %v8234
      %v8459 = vpop.f32.mrf.mxu0
      %v8460 = vadd.f32 %v8347, %v8459
      %8461 = vmatmul.f32.gmra.mxu0 %v8236
      %v8462 = vpop.f32.mrf.mxu0
      %v8463 = vadd.f32 %v8350, %v8462
      %8464 = vmatmul.f32.gmra.mxu0 %v8238
      %v8465 = vpop.f32.mrf.mxu0
      %v8466 = vadd.f32 %v8353, %v8465
      %8467 = vmatmul.f32.gmra.mxu0 %v8240
      %v8468 = vpop.f32.mrf.mxu0
      %v8469 = vadd.f32 %v8356, %v8468
      %8470 = vmatmul.f32.gmra.mxu0 %v8242
      %v8471 = vpop.f32.mrf.mxu0
      %v8472 = vadd.f32 %v8359, %v8471
      %8473 = vmatmul.f32.gmra.mxu0 %v8244
      %v8474 = vpop.f32.mrf.mxu0
      %v8475 = vadd.f32 %v8362, %v8474
      %8476 = vmatmul.f32.gmra.mxu0 %v8246
      %v8477 = vpop.f32.mrf.mxu0
      %v8478 = vadd.f32 %v8365, %v8477
      %8479 = vmatmul.f32.gmra.mxu0 %v8248
      %v8480 = vpop.f32.mrf.mxu0
      %v8481 = vadd.f32 %v8368, %v8480
      %8482 = vmatmul.f32.gmra.mxu0 %v8250
      %v8483 = vpop.f32.mrf.mxu0
      %v8484 = vadd.f32 %v8371, %v8483
      %8485 = vmatmul.f32.gmra.mxu0 %v8252
      %v8486 = vpop.f32.mrf.mxu0
      %v8487 = vadd.f32 %v8374, %v8486
      %8488 = vmatmul.f32.gmra.mxu0 %v8254
      %v8489 = vpop.f32.mrf.mxu0
      %v8490 = vadd.f32 %v8377, %v8489
      %8491 = vmatmul.f32.gmra.mxu0 %v8256
      %v8492 = vpop.f32.mrf.mxu0
      %v8493 = vadd.f32 %v8380, %v8492
      %8494 = vmatmul.f32.gmra.mxu0 %v8258
      %v8495 = vpop.f32.mrf.mxu0
      %v8496 = vadd.f32 %v8383, %v8495
      %8497 = vmatmul.f32.gmra.mxu0 %v8260
      %v8498 = vpop.f32.mrf.mxu0
      %v8499 = vadd.f32 %v8386, %v8498
      %8500 = vmatmul.f32.gmra.mxu0 %v8262
      %v8501 = vpop.f32.mrf.mxu0
      %v8502 = vadd.f32 %v8389, %v8501
      %8503 = vmatmul.f32.gmra.mxu0 %v8264
      %v8504 = vpop.f32.mrf.mxu0
      %v8505 = vadd.f32 %v8392, %v8504
      %8506 = vmatmul.f32.gmra.mxu0 %v8266
      %v8507 = vpop.f32.mrf.mxu0
      %v8508 = vadd.f32 %v8395, %v8507
      %8509 = vmatmul.f32.gmra.mxu0 %v8268
      %v8510 = vpop.f32.mrf.mxu0
      %v8511 = vadd.f32 %v8398, %v8510
      %8512 = vmatmul.f32.gmra.mxu0 %v8270
      %v8513 = vpop.f32.mrf.mxu0
      %v8514 = vadd.f32 %v8401, %v8513
      %8515 = vmatmul.f32.gmra.mxu0 %v8272
      %v8516 = vpop.f32.mrf.mxu0
      %v8517 = vadd.f32 %v8404, %v8516
      %8518 = vmatmul.f32.gmra.mxu0 %v8274
      %v8519 = vpop.f32.mrf.mxu0
      %v8520 = vadd.f32 %v8407, %v8519
      %8521 = vmatmul.f32.gmra.mxu0 %v8276
      %v8522 = vpop.f32.mrf.mxu0
      %v8523 = vadd.f32 %v8410, %v8522
      %8524 = vmatmul.f32.gmra.mxu0 %v8278
      %v8525 = vpop.f32.mrf.mxu0
      %v8526 = vadd.f32 %v8413, %v8525
      %8527 = vmatmul.f32.gmra.mxu0 %v8280
      %v8528 = vpop.f32.mrf.mxu0
      %v8529 = vadd.f32 %v8416, %v8528
      %8530 = vmatmul.f32.gmra.mxu0 %v8282
      %v8531 = vpop.f32.mrf.mxu0
      %v8532 = vadd.f32 %v8419, %v8531
      %8533 = vmatmul.f32.gmra.mxu0 %v8284
      %v8534 = vpop.f32.mrf.mxu0
      %v8535 = vadd.f32 %v8422, %v8534
      %8536 = vmatmul.f32.gmra.mxu0 %v8286
      %v8537 = vpop.f32.mrf.mxu0
      %v8538 = vadd.f32 %v8425, %v8537
      %8539 = vmatmul.f32.gmra.mxu0 %v8288
      %v8540 = vpop.f32.mrf.mxu0
      %v8541 = vadd.f32 %v8428, %v8540
      %8542 = vmatmul.f32.gmra.mxu0 %v8290
      %v8543 = vpop.f32.mrf.mxu0
      %v8544 = vadd.f32 %v8431, %v8543
      %8545 = vmatmul.f32.gmra.mxu0 %v8292
      %v8546 = vpop.f32.mrf.mxu0
      %v8547 = vadd.f32 %v8434, %v8546
      %8548 = vmatmul.f32.gmra.mxu0 %v8294
      %v8549 = vpop.f32.mrf.mxu0
      %v8550 = vadd.f32 %v8437, %v8549
      %8551 = vmatmul.f32.gmra.mxu0 %v8296
      %v8552 = vpop.f32.mrf.mxu0
      %v8553 = vadd.f32 %v8440, %v8552
      %8554 = vdwg.mxu0
      %vm8555 = vcmask 7168
      %8556 = vst.msk [vmem:[%s1263] sm:$0xff] %vm8555, %v8460
      %8557 = vst.msk [vmem:[%s1263 + $0x8] sm:$0xff] %vm8555, %v8463
      %8558 = vst.msk [vmem:[%s1263 + $0x10] sm:$0xff] %vm8555, %v8466
      %8559 = vst.msk [vmem:[%s1263 + $0x18] sm:$0xff] %vm8555, %v8469
      %8560 = vst.msk [vmem:[%s1263 + $0x20] sm:$0xff] %vm8555, %v8472
      %8561 = vst.msk [vmem:[%s1263 + $0x28] sm:$0xff] %vm8555, %v8475
      %8562 = vst.msk [vmem:[%s1263 + $0x30] sm:$0xff] %vm8555, %v8478
      %8563 = vst.msk [vmem:[%s1263 + $0x38] sm:$0xff] %vm8555, %v8481
      %8564 = vst.msk [vmem:[%s1263 + $0x40] sm:$0xff] %vm8555, %v8484
      %8565 = vst.msk [vmem:[%s1263 + $0x48] sm:$0xff] %vm8555, %v8487
      %8566 = vst.msk [vmem:[%s1263 + $0x50] sm:$0xff] %vm8555, %v8490
      %8567 = vst.msk [vmem:[%s1263 + $0x58] sm:$0xff] %vm8555, %v8493
      %8568 = vst.msk [vmem:[%s1263 + $0x60] sm:$0xff] %vm8555, %v8496
      %8569 = vst.msk [vmem:[%s1263 + $0x68] sm:$0xff] %vm8555, %v8499
      %8570 = vst.msk [vmem:[%s1263 + $0x70] sm:$0xff] %vm8555, %v8502
      %8571 = vst.msk [vmem:[%s1263 + $0x78] sm:$0xff] %vm8555, %v8505
      %8572 = vst.msk [vmem:[%s1263 + $0x80] sm:$0xff] %vm8555, %v8508
      %8573 = vst.msk [vmem:[%s1263 + $0x88] sm:$0xff] %vm8555, %v8511
      %8574 = vst.msk [vmem:[%s1263 + $0x90] sm:$0xff] %vm8555, %v8514
      %8575 = vst.msk [vmem:[%s1263 + $0x98] sm:$0xff] %vm8555, %v8517
      %8576 = vst.msk [vmem:[%s1263 + $0xa0] sm:$0xff] %vm8555, %v8520
      %8577 = vst.msk [vmem:[%s1263 + $0xa8] sm:$0xff] %vm8555, %v8523
      %8578 = vst.msk [vmem:[%s1263 + $0xb0] sm:$0xff] %vm8555, %v8526
      %8579 = vst.msk [vmem:[%s1263 + $0xb8] sm:$0xff] %vm8555, %v8529
      %8580 = vst.msk [vmem:[%s1263 + $0xc0] sm:$0xff] %vm8555, %v8532
      %8581 = vst.msk [vmem:[%s1263 + $0xc8] sm:$0xff] %vm8555, %v8535
      %8582 = vst.msk [vmem:[%s1263 + $0xd0] sm:$0xff] %vm8555, %v8538
      %8583 = vst.msk [vmem:[%s1263 + $0xd8] sm:$0xff] %vm8555, %v8541
      %8584 = vst.msk [vmem:[%s1263 + $0xe0] sm:$0xff] %vm8555, %v8544
      %8585 = vst.msk [vmem:[%s1263 + $0xe8] sm:$0xff] %vm8555, %v8547
      %8586 = vst.msk [vmem:[%s1263 + $0xf0] sm:$0xff] %vm8555, %v8550
      %8587 = vst.msk [vmem:[%s1263 + $0xf8] sm:$0xff] %vm8555, %v8553
      %p8588 = scmp.lt.s32.totalorder %s96, 1
      %s8589 = scalar_select %p8588, %s96, 1
      %s8590 = smul.addr %s8589, 32
      %s8591 = smul.addr %s8590, 8
      %s8592 = scalar_lea.vmem %s85, %s8591
      // Predicated region
      $region189: #{convresnet_forward.1} parent=187 // pred_check
        %p8593 = pneg %p1001
      $region190: #{convresnet_forward.1} parent=187 // pred_check_branch
        %8595 = sbr.rel (%p8593) target = $region192
      $region191: #{convresnet_forward.1} parent=187 // pred_region
        _
      $region192: #{convresnet_forward.1} parent=187 // pred_fallthru
        _
    $region188: #{convresnet_forward.1} parent=5 // pred_fallthru
      _
    %p8596 = scmp.le.s32.totalorder 2, %s91
    // Predicated region
    $region193: #{convresnet_forward.1} parent=5 // pred_check
      %p8597 = pneg %p8596
    $region194: #{convresnet_forward.1} parent=5 // pred_check_branch
      %8599 = sbr.rel (%p8597) target = $region196
    $region195: #{convresnet_forward.1} parent=5 // pred_region
      %s8600 = ssub.s32 %s91, 2
      // Predicated region
      $region197: #{convresnet_forward.1} parent=195 // pred_check
        %p8601 = pneg %p1007
      $region198: #{convresnet_forward.1} parent=195 // pred_check_branch
        %8603 = sbr.rel (%p8601) target = $region200
      $region199: #{convresnet_forward.1} parent=195 // pred_region
        %p8604 = scmp.lt.s32.totalorder %s97, 1
        %s8605 = scalar_select %p8604, %s97, 1
        %s8606 = smul.addr %s8605, 32
        %s8607 = smul.addr %s8606, 8
        %s8608 = scalar_lea.vmem %s85, %s8607
      $region200: #{convresnet_forward.1} parent=195 // pred_fallthru
        _
    $region196: #{convresnet_forward.1} parent=5 // pred_fallthru
      _
  $region6: #{convresnet_forward.1} parent=0 // loop_footer
    %s95 = sadd.s32 1, %s91
  $region7: #{convresnet_forward.1} parent=0 // loop_footer_branch
    %90 = sbr.rel target = $region3
  $region8: #{convresnet_forward.1} parent=0 // loop_exit
    _

</llo_original>
